<compile_context>
chip_gen: v6e
topology: v6e:2x2x1
jax: 0.10.0
libtpu: 0.0.40
codegen_flags: <defaults>
</compile_context>

<pallas_src>
import math
import jax
import jax.numpy as jnp
from jax.experimental import pallas as pl
from jax.experimental.pallas import tpu as pltpu

# ---------------- config (mirrors config.model.*) ----------------
HID_DIM    = 32          # con_gcn.hid_dim
COORDS_IN  = 2           # con_gcn.coords_dim[0]
COORDS_OUT = 3           # gconv_output out_c
N_LAYERS   = 2           # con_gcn.num_layer
N_HEAD     = 4           # con_gcn.n_head
N_PTS      = 16          # con_gcn.n_pts (graph nodes)
K_CHEB     = 3           # ChebConv(K=2) -> K+1 = 3 Chebyshev terms (GraFormer convention)
LN_EPS     = 1e-6
BATCH      = 2
DK         = HID_DIM // N_HEAD


# ====================== fused Pallas kernel ======================

def gcnpose_fused_kernel(x_ref, t1_ref, t2_ref, abias_ref, lhat_ref,
                         inw_ref, inb_ref, outw_ref, outb_ref,
                         ln_ref, wqkv_ref, bqkv_ref, wo_ref, bo_ref,
                         gw1_ref, gb1_ref, gw2_ref, gb2_ref,
                         rw1_ref, rb1_ref, rw2_ref, rb2_ref,
                         o_ref):
    D = HID_DIM
    inv_sqrt_dk = 1.0 / math.sqrt(DK)

    # hoist graph operators / attention bias (loaded once, reused every layer)
    t1 = t1_ref[...]          # [BN, BN] block-diag T1(L)
    t2 = t2_ref[...]          # [BN, BN] block-diag T2(L)
    abias = abias_ref[...]    # [BN, BN] additive mask (0 keep / -1e9 masked or cross-batch)

    def cheb(h, w, b):
        # sum_k (T_k h) W_k  with T0 = I folded away: [BN,3C] @ [3C,Cout] single matmul
        hcat = jnp.concatenate(
            [h,
             jnp.dot(t1, h, preferred_element_type=jnp.float32),
             jnp.dot(t2, h, preferred_element_type=jnp.float32)],
            axis=-1)
        return jnp.dot(hcat, w, preferred_element_type=jnp.float32) + b

    def layer_norm(h, a, b):
        # GraFormer LayerNorm: unbiased std, eps added to std
        mean = jnp.mean(h, axis=-1, keepdims=True)
        var = jnp.sum((h - mean) ** 2, axis=-1, keepdims=True) / (h.shape[-1] - 1)
        return a * (h - mean) / (jnp.sqrt(var) + LN_EPS) + b

    # ---- gconv_input : ChebConv(Cin -> D) ----
    h = cheb(x_ref[...], inw_ref[...], inb_ref[...])            # [BN, D]

    n_layers = ln_ref.shape[0]
    for l in range(n_layers):                                    # static unroll
        ln = ln_ref[l]                                           # [4, D]
        wo = wo_ref[l]                                           # [D, D]
        lhat = lhat_ref[l]                                       # [BN, BN]

        # ---- PGraAttenLayer sublayer 1: h + MHA(LayerNorm(h), mask) ----
        hn = layer_norm(h, ln[0:1, :], ln[1:2, :])
        qkv = (jnp.dot(hn, wqkv_ref[l], preferred_element_type=jnp.float32)
               + bqkv_ref[l])                                    # [BN, 3D]
        att = jnp.broadcast_to(bo_ref[l], h.shape)               # start from W_out bias
        for hd in range(N_HEAD):                                 # static head loop (tiny D)
            q = qkv[:, hd * DK:(hd + 1) * DK]
            k = qkv[:, D + hd * DK:D + (hd + 1) * DK]
            v = qkv[:, 2 * D + hd * DK:2 * D + (hd + 1) * DK]
            s = jnp.dot(q, k.T, preferred_element_type=jnp.float32) * inv_sqrt_dk + abias
            s = s - jnp.max(s, axis=-1, keepdims=True)
            e = jnp.exp(s)
            p = e / jnp.sum(e, axis=-1, keepdims=True)
            hv = jnp.dot(p, v, preferred_element_type=jnp.float32)          # [BN, DK]
            # concat(heads) @ W_out == sum_h head_h @ W_out[h*dk:(h+1)*dk, :]
            att = att + jnp.dot(hv, wo[hd * DK:(hd + 1) * DK, :],
                                preferred_element_type=jnp.float32)
        h = h + att

        # ---- PGraAttenLayer sublayer 2: h + GraphNet(LayerNorm(h)) ----
        hn = layer_norm(h, ln[2:3, :], ln[3:4, :])
        g = (jnp.dot(jnp.dot(lhat, hn, preferred_element_type=jnp.float32),
                     gw1_ref[l], preferred_element_type=jnp.float32)
             + gb1_ref[l])
        g = jnp.maximum(g, 0.0)                                  # LAM_Gconv1 + ReLU
        g = (jnp.dot(jnp.dot(lhat, g, preferred_element_type=jnp.float32),
                     gw2_ref[l], preferred_element_type=jnp.float32)
             + gb2_ref[l])                                       # LAM_Gconv2 (no act)
        h = h + g

        # ---- _ResChebGC: h + relu(Cheb2(relu(Cheb1(h)))) ----
        c1 = jnp.maximum(cheb(h, rw1_ref[l], rb1_ref[l]), 0.0)
        c2 = jnp.maximum(cheb(c1, rw2_ref[l], rb2_ref[l]), 0.0)
        h = h + c2

    # ---- gconv_output : ChebConv(D -> 3) ----
    o_ref[...] = cheb(h, outw_ref[...], outb_ref[...])           # [BN, 3]


# ====================== pallas_call wrapper ======================

def _full_spec(a):
    nd = a.ndim
    return pl.BlockSpec(a.shape, lambda i, _nd=nd: (0,) * _nd)


def gcnpose_forward(params, x, mask):
    B, N, Cin = x.shape
    BN = B * N
    D = HID_DIM
    xf = x.reshape(BN, Cin)                                      # fold batch into rows

    # block-diagonal graph operators over the folded batch dimension
    eye_b = jnp.eye(B, dtype=jnp.float32)
    t1 = jnp.kron(eye_b, params["tl"][1])                        # [BN, BN]
    t2 = jnp.kron(eye_b, params["tl"][2])                        # [BN, BN]

    # attention additive bias: within-batch block structure + key mask, computed once
    mask_bn = jnp.tile(mask.reshape(-1)[:N], (B,))               # [BN]
    same_batch = jnp.kron(eye_b, jnp.ones((N, N), jnp.float32))  # [BN, BN]
    keep = same_batch * mask_bn[None, :]
    abias = jnp.where(keep > 0, 0.0, -1e9).astype(jnp.float32)

    layers = params["layers"]
    lhat = jnp.stack([jnp.kron(eye_b, lam_laplacian(l["a_hat"])) for l in layers])

    # consolidate per-layer params into a few stacked tensors (fewer DMA descriptors)
    ln = jnp.stack([jnp.concatenate([l["ln1_a"], l["ln1_b"], l["ln2_a"], l["ln2_b"]],
                                    axis=0) for l in layers])            # [L, 4, D]
    wqkv = jnp.stack([jnp.concatenate([l["wq"], l["wk"], l["wv"]], axis=1)
                      for l in layers])                                  # [L, D, 3D]
    bqkv = jnp.stack([jnp.concatenate([l["bq"], l["bk"], l["bv"]], axis=1)
                      for l in layers])                                  # [L, 1, 3D]
    wo = jnp.stack([l["wo"] for l in layers])                            # [L, D, D]
    bo = jnp.stack([l["bo"] for l in layers])                            # [L, 1, D]
    gw1 = jnp.stack([l["gn_w1"] for l in layers])                        # [L, D, 2D]
    gb1 = jnp.stack([l["gn_b1"] for l in layers])                        # [L, 1, 2D]
    gw2 = jnp.stack([l["gn_w2"] for l in layers])                        # [L, 2D, D]
    gb2 = jnp.stack([l["gn_b2"] for l in layers])                        # [L, 1, D]
    rw1 = jnp.stack([l["rc_w1"].reshape(K_CHEB * D, D) for l in layers])  # [L, 3D, D]
    rb1 = jnp.stack([l["rc_b1"] for l in layers])                        # [L, 1, D]
    rw2 = jnp.stack([l["rc_w2"].reshape(K_CHEB * D, D) for l in layers])  # [L, 3D, D]
    rb2 = jnp.stack([l["rc_b2"] for l in layers])                        # [L, 1, D]

    in_w = params["in_w"].reshape(K_CHEB * Cin, D)               # stacked Cheb weights
    out_w = params["out_w"].reshape(K_CHEB * D, COORDS_OUT)

    args = (xf, t1, t2, abias, lhat,
            in_w, params["in_b"], out_w, params["out_b"],
            ln, wqkv, bqkv, wo, bo,
            gw1, gb1, gw2, gb2,
            rw1, rb1, rw2, rb2)

    out_flat = pl.pallas_call(
        gcnpose_fused_kernel,
        out_shape=jax.ShapeDtypeStruct((BN, COORDS_OUT), jnp.float32),
        grid=(1,),
        in_specs=[_full_spec(a) for a in args],
        out_specs=pl.BlockSpec((BN, COORDS_OUT), lambda i: (0, 0)),
        compiler_params=pltpu.CompilerParams(dimension_semantics=("arbitrary",)),
    )(*args)
    return out_flat.reshape(B, N, COORDS_OUT)


# ====================== graph Laplacians & params ======================

def cheb_polys(adj):
    # ChebConv.get_laplacian (normalized) + cheb_polynomial for self.K = K+1 = 3 terms
    d = jnp.sum(adj, axis=-1) ** (-0.5)
    L = jnp.eye(N_PTS, dtype=jnp.float32) - (d[:, None] * adj) * d[None, :]
    T0 = jnp.eye(N_PTS, dtype=jnp.float32)
    T1 = L
    T2 = 2.0 * (L @ L) - T0
    return jnp.stack([T0, T1, T2], axis=0)                       # [K, N, N]


def lam_laplacian(a_hat):
    # LAM_Gconv.laplacian_batch (A_hat identical across batch -> compute once)
    d = (jnp.sum(a_hat, axis=1) + 1e-5) ** (-0.5)
    return (d[:, None] * a_hat) * d[None, :]


def init_params(key):
    keys = iter(jax.random.split(key, 128))

    def nrm(shape, scale=0.1):
        return scale * jax.random.normal(next(keys), shape, jnp.float32)

    # adjacency: chain graph over the N_PTS joints (skeleton-like)
    idx = jnp.arange(N_PTS - 1)
    adj = jnp.zeros((N_PTS, N_PTS), jnp.float32)
    adj = adj.at[idx, idx + 1].set(1.0).at[idx + 1, idx].set(1.0)

    D = HID_DIM
    params = {
        "tl":    cheb_polys(adj),
        "in_w":  nrm((K_CHEB, COORDS_IN, D)),  "in_b":  jnp.zeros((1, D), jnp.float32),
        "out_w": nrm((K_CHEB, D, COORDS_OUT)), "out_b": jnp.zeros((1, COORDS_OUT), jnp.float32),
        "layers": [],
    }
    for _ in range(N_LAYERS):
        params["layers"].append(dict(
            ln1_a=jnp.ones((1, D), jnp.float32), ln1_b=jnp.zeros((1, D), jnp.float32),
            wq=nrm((D, D)), bq=jnp.zeros((1, D), jnp.float32),
            wk=nrm((D, D)), bk=jnp.zeros((1, D), jnp.float32),
            wv=nrm((D, D)), bv=jnp.zeros((1, D), jnp.float32),
            wo=nrm((D, D)), bo=jnp.zeros((1, D), jnp.float32),
            ln2_a=jnp.ones((1, D), jnp.float32), ln2_b=jnp.zeros((1, D), jnp.float32),
            a_hat=jnp.eye(N_PTS, dtype=jnp.float32),   # GraphNet.A_hat (learned, init I)
            gn_w1=nrm((D, 2 * D)), gn_b1=jnp.zeros((1, 2 * D), jnp.float32),
            gn_w2=nrm((2 * D, D)), gn_b2=jnp.zeros((1, D), jnp.float32),
            rc_w1=nrm((K_CHEB, D, D)), rc_b1=jnp.zeros((1, D), jnp.float32),
            rc_w2=nrm((K_CHEB, D, D)), rc_b2=jnp.zeros((1, D), jnp.float32),
        ))
    return params


# ====================== main ======================

if __name__ == "__main__":
    key = jax.random.PRNGKey(0)
    k_p, k_x = jax.random.split(key)

    params = init_params(k_p)
    x = jax.random.normal(k_x, (BATCH, N_PTS, COORDS_IN), jnp.float32)  # 2D joints
    mask = jnp.ones((1, N_PTS), jnp.float32)                            # all-True src mask

    fwd = jax.jit(gcnpose_forward)
    out = jax.block_until_ready(fwd(params, x, mask))

    assert out.shape == (BATCH, N_PTS, COORDS_OUT), out.shape
    assert out.dtype == jnp.float32
    assert bool(jnp.all(jnp.isfinite(out)))
    print("KERNEL_OK")
</pallas_src>

<mosaic_0001>
module attributes {stable_mosaic.version = 11 : i64} {
  func.func @gcnpose_fused_kernel(%arg0: i32, %arg1: memref<32x2xf32, #tpu.memory_space<vmem>>, %arg2: memref<32x32xf32, #tpu.memory_space<vmem>>, %arg3: memref<32x32xf32, #tpu.memory_space<vmem>>, %arg4: memref<32x32xf32, #tpu.memory_space<vmem>>, %arg5: memref<2x32x32xf32, #tpu.memory_space<vmem>>, %arg6: memref<6x32xf32, #tpu.memory_space<vmem>>, %arg7: memref<1x32xf32, #tpu.memory_space<vmem>>, %arg8: memref<96x3xf32, #tpu.memory_space<vmem>>, %arg9: memref<1x3xf32, #tpu.memory_space<vmem>>, %arg10: memref<2x4x32xf32, #tpu.memory_space<vmem>>, %arg11: memref<2x32x96xf32, #tpu.memory_space<vmem>>, %arg12: memref<2x1x96xf32, #tpu.memory_space<vmem>>, %arg13: memref<2x32x32xf32, #tpu.memory_space<vmem>>, %arg14: memref<2x1x32xf32, #tpu.memory_space<vmem>>, %arg15: memref<2x32x64xf32, #tpu.memory_space<vmem>>, %arg16: memref<2x1x64xf32, #tpu.memory_space<vmem>>, %arg17: memref<2x64x32xf32, #tpu.memory_space<vmem>>, %arg18: memref<2x1x32xf32, #tpu.memory_space<vmem>>, %arg19: memref<2x96x32xf32, #tpu.memory_space<vmem>>, %arg20: memref<2x1x32xf32, #tpu.memory_space<vmem>>, %arg21: memref<2x96x32xf32, #tpu.memory_space<vmem>>, %arg22: memref<2x1x32xf32, #tpu.memory_space<vmem>>, %arg23: memref<32x3xf32, #tpu.memory_space<vmem>>) attributes {dimension_semantics = [#tpu.dimension_semantics<arbitrary>], iteration_bounds = array<i64: 1>, scalar_prefetch = 0 : i64, scratch_operands = 0 : i64, tpu.core_type = #tpu.core_type<tc>, window_params = [{pipeline_mode = #tpu.pipeline_mode<synchronous>, transform_indices = @transform_0, window_bounds = array<i64: 32, 2>}, {pipeline_mode = #tpu.pipeline_mode<synchronous>, transform_indices = @transform_1, window_bounds = array<i64: 32, 32>}, {pipeline_mode = #tpu.pipeline_mode<synchronous>, transform_indices = @transform_2, window_bounds = array<i64: 32, 32>}, {pipeline_mode = #tpu.pipeline_mode<synchronous>, transform_indices = @transform_3, window_bounds = array<i64: 32, 32>}, {pipeline_mode = #tpu.pipeline_mode<synchronous>, transform_indices = @transform_4, window_bounds = array<i64: 2, 32, 32>}, {pipeline_mode = #tpu.pipeline_mode<synchronous>, transform_indices = @transform_5, window_bounds = array<i64: 6, 32>}, {pipeline_mode = #tpu.pipeline_mode<synchronous>, transform_indices = @transform_6, window_bounds = array<i64: 1, 32>}, {pipeline_mode = #tpu.pipeline_mode<synchronous>, transform_indices = @transform_7, window_bounds = array<i64: 96, 3>}, {pipeline_mode = #tpu.pipeline_mode<synchronous>, transform_indices = @transform_8, window_bounds = array<i64: 1, 3>}, {pipeline_mode = #tpu.pipeline_mode<synchronous>, transform_indices = @transform_9, window_bounds = array<i64: 2, 4, 32>}, {pipeline_mode = #tpu.pipeline_mode<synchronous>, transform_indices = @transform_10, window_bounds = array<i64: 2, 32, 96>}, {pipeline_mode = #tpu.pipeline_mode<synchronous>, transform_indices = @transform_11, window_bounds = array<i64: 2, 1, 96>}, {pipeline_mode = #tpu.pipeline_mode<synchronous>, transform_indices = @transform_12, window_bounds = array<i64: 2, 32, 32>}, {pipeline_mode = #tpu.pipeline_mode<synchronous>, transform_indices = @transform_13, window_bounds = array<i64: 2, 1, 32>}, {pipeline_mode = #tpu.pipeline_mode<synchronous>, transform_indices = @transform_14, window_bounds = array<i64: 2, 32, 64>}, {pipeline_mode = #tpu.pipeline_mode<synchronous>, transform_indices = @transform_15, window_bounds = array<i64: 2, 1, 64>}, {pipeline_mode = #tpu.pipeline_mode<synchronous>, transform_indices = @transform_16, window_bounds = array<i64: 2, 64, 32>}, {pipeline_mode = #tpu.pipeline_mode<synchronous>, transform_indices = @transform_17, window_bounds = array<i64: 2, 1, 32>}, {pipeline_mode = #tpu.pipeline_mode<synchronous>, transform_indices = @transform_18, window_bounds = array<i64: 2, 96, 32>}, {pipeline_mode = #tpu.pipeline_mode<synchronous>, transform_indices = @transform_19, window_bounds = array<i64: 2, 1, 32>}, {pipeline_mode = #tpu.pipeline_mode<synchronous>, transform_indices = @transform_20, window_bounds = array<i64: 2, 96, 32>}, {pipeline_mode = #tpu.pipeline_mode<synchronous>, transform_indices = @transform_21, window_bounds = array<i64: 2, 1, 32>}, {pipeline_mode = #tpu.pipeline_mode<synchronous>, transform_indices = @transform_22, window_bounds = array<i64: 32, 3>}]} {
    %c0 = arith.constant 0 : index
    %c0_0 = arith.constant 0 : index
    %0 = vector.load %arg2[%c0, %c0_0] : memref<32x32xf32, #tpu.memory_space<vmem>>, vector<32x32xf32>
    %c0_1 = arith.constant 0 : index
    %c0_2 = arith.constant 0 : index
    %1 = vector.load %arg3[%c0_1, %c0_2] : memref<32x32xf32, #tpu.memory_space<vmem>>, vector<32x32xf32>
    %c0_3 = arith.constant 0 : index
    %c0_4 = arith.constant 0 : index
    %2 = vector.load %arg4[%c0_3, %c0_4] : memref<32x32xf32, #tpu.memory_space<vmem>>, vector<32x32xf32>
    %c0_5 = arith.constant 0 : index
    %c0_6 = arith.constant 0 : index
    %3 = vector.load %arg1[%c0_5, %c0_6] : memref<32x2xf32, #tpu.memory_space<vmem>>, vector<32x2xf32>
    %c0_7 = arith.constant 0 : index
    %c0_8 = arith.constant 0 : index
    %4 = vector.load %arg6[%c0_7, %c0_8] : memref<6x32xf32, #tpu.memory_space<vmem>>, vector<6x32xf32>
    %c0_9 = arith.constant 0 : index
    %c0_10 = arith.constant 0 : index
    %5 = vector.load %arg7[%c0_9, %c0_10] : memref<1x32xf32, #tpu.memory_space<vmem>>, vector<1x32xf32>
    %cst = arith.constant dense<0.000000e+00> : vector<32x2xf32>
    %6 = tpu.matmul %0, %3, %cst {dimension_numbers = #tpu.dot_dimension_numbers<[1], [0], [0], [1], [0, 0, 1, 1], [], []>} : vector<32x32xf32>, vector<32x2xf32>, vector<32x2xf32> -> vector<32x2xf32>
    %cst_11 = arith.constant dense<0.000000e+00> : vector<32x2xf32>
    %7 = tpu.matmul %1, %3, %cst_11 {dimension_numbers = #tpu.dot_dimension_numbers<[1], [0], [0], [1], [0, 0, 1, 1], [], []>} : vector<32x32xf32>, vector<32x2xf32>, vector<32x2xf32> -> vector<32x2xf32>
    %8 = tpu.concatenate %3, %6, %7 in 1 : vector<32x2xf32>, vector<32x2xf32>, vector<32x2xf32> -> vector<32x6xf32>
    %cst_12 = arith.constant dense<0.000000e+00> : vector<32x32xf32>
    %9 = tpu.matmul %8, %4, %cst_12 {dimension_numbers = #tpu.dot_dimension_numbers<[1], [0], [0], [1], [0, 0, 1, 1], [], []>} : vector<32x6xf32>, vector<6x32xf32>, vector<32x32xf32> -> vector<32x32xf32>
    %10 = vector.broadcast %5 : vector<1x32xf32> to vector<32x32xf32>
    %11 = arith.addf %9, %10 : vector<32x32xf32>
    %c0_13 = arith.constant 0 : index
    %c0_14 = arith.constant 0 : index
    %c0_15 = arith.constant 0 : index
    %12 = vector.load %arg10[%c0_13, %c0_14, %c0_15] : memref<2x4x32xf32, #tpu.memory_space<vmem>>, vector<1x4x32xf32>
    %13 = vector.shape_cast %12 : vector<1x4x32xf32> to vector<4x32xf32>
    %c0_16 = arith.constant 0 : index
    %c0_17 = arith.constant 0 : index
    %c0_18 = arith.constant 0 : index
    %14 = vector.load %arg13[%c0_16, %c0_17, %c0_18] : memref<2x32x32xf32, #tpu.memory_space<vmem>>, vector<1x32x32xf32>
    %15 = vector.shape_cast %14 : vector<1x32x32xf32> to vector<32x32xf32>
    %c0_19 = arith.constant 0 : index
    %c0_20 = arith.constant 0 : index
    %c0_21 = arith.constant 0 : index
    %16 = vector.load %arg5[%c0_19, %c0_20, %c0_21] : memref<2x32x32xf32, #tpu.memory_space<vmem>>, vector<1x32x32xf32>
    %17 = vector.shape_cast %16 : vector<1x32x32xf32> to vector<32x32xf32>
    %18 = vector.extract_strided_slice %13 {offsets = [0, 0], sizes = [1, 32], strides = [1, 1]} : vector<4x32xf32> to vector<1x32xf32>
    %19 = vector.extract_strided_slice %13 {offsets = [1, 0], sizes = [1, 32], strides = [1, 1]} : vector<4x32xf32> to vector<1x32xf32>
    %cst_22 = arith.constant dense<0.000000e+00> : vector<32xf32>
    %20 = vector.multi_reduction <add>, %11, %cst_22 [1] : vector<32x32xf32> to vector<32xf32>
    %21 = vector.shape_cast %20 : vector<32xf32> to vector<32x1xf32>
    %cst_23 = arith.constant 3.200000e+01 : f32
    %22 = vector.broadcast %cst_23 : f32 to vector<32x1xf32>
    %23 = arith.divf %21, %22 : vector<32x1xf32>
    %24 = vector.broadcast %23 : vector<32x1xf32> to vector<32x32xf32>
    %25 = arith.subf %11, %24 : vector<32x32xf32>
    %26 = arith.mulf %25, %25 : vector<32x32xf32>
    %cst_24 = arith.constant dense<0.000000e+00> : vector<32xf32>
    %27 = vector.multi_reduction <add>, %26, %cst_24 [1] : vector<32x32xf32> to vector<32xf32>
    %28 = vector.shape_cast %27 : vector<32xf32> to vector<32x1xf32>
    %cst_25 = arith.constant 3.100000e+01 : f32
    %29 = vector.broadcast %cst_25 : f32 to vector<32x1xf32>
    %30 = arith.divf %28, %29 : vector<32x1xf32>
    %31 = vector.broadcast %23 : vector<32x1xf32> to vector<32x32xf32>
    %32 = arith.subf %11, %31 : vector<32x32xf32>
    %33 = vector.broadcast %18 : vector<1x32xf32> to vector<32x32xf32>
    %34 = arith.mulf %33, %32 : vector<32x32xf32>
    %35 = math.sqrt %30 : vector<32x1xf32>
    %cst_26 = arith.constant 9.99999997E-7 : f32
    %36 = vector.broadcast %cst_26 : f32 to vector<32x1xf32>
    %37 = arith.addf %35, %36 : vector<32x1xf32>
    %38 = vector.broadcast %37 : vector<32x1xf32> to vector<32x32xf32>
    %39 = arith.divf %34, %38 : vector<32x32xf32>
    %40 = vector.broadcast %19 : vector<1x32xf32> to vector<32x32xf32>
    %41 = arith.addf %39, %40 : vector<32x32xf32>
    %c0_27 = arith.constant 0 : index
    %c0_28 = arith.constant 0 : index
    %c0_29 = arith.constant 0 : index
    %42 = vector.load %arg11[%c0_27, %c0_28, %c0_29] : memref<2x32x96xf32, #tpu.memory_space<vmem>>, vector<1x32x96xf32>
    %43 = vector.shape_cast %42 : vector<1x32x96xf32> to vector<32x96xf32>
    %cst_30 = arith.constant dense<0.000000e+00> : vector<32x96xf32>
    %44 = tpu.matmul %41, %43, %cst_30 {dimension_numbers = #tpu.dot_dimension_numbers<[1], [0], [0], [1], [0, 0, 1, 1], [], []>} : vector<32x32xf32>, vector<32x96xf32>, vector<32x96xf32> -> vector<32x96xf32>
    %c0_31 = arith.constant 0 : index
    %c0_32 = arith.constant 0 : index
    %c0_33 = arith.constant 0 : index
    %45 = vector.load %arg12[%c0_31, %c0_32, %c0_33] : memref<2x1x96xf32, #tpu.memory_space<vmem>>, vector<1x1x96xf32>
    %46 = vector.shape_cast %45 : vector<1x1x96xf32> to vector<1x96xf32>
    %47 = vector.broadcast %46 : vector<1x96xf32> to vector<32x96xf32>
    %48 = arith.addf %44, %47 : vector<32x96xf32>
    %c0_34 = arith.constant 0 : index
    %c0_35 = arith.constant 0 : index
    %c0_36 = arith.constant 0 : index
    %49 = vector.load %arg14[%c0_34, %c0_35, %c0_36] : memref<2x1x32xf32, #tpu.memory_space<vmem>>, vector<1x1x32xf32>
    %50 = vector.shape_cast %49 : vector<1x1x32xf32> to vector<1x32xf32>
    %51 = vector.shape_cast %50 : vector<1x32xf32> to vector<1x32xf32>
    %52 = vector.broadcast %51 : vector<1x32xf32> to vector<32x32xf32>
    %53 = vector.extract_strided_slice %48 {offsets = [0, 0], sizes = [32, 8], strides = [1, 1]} : vector<32x96xf32> to vector<32x8xf32>
    %54 = vector.extract_strided_slice %48 {offsets = [0, 32], sizes = [32, 8], strides = [1, 1]} : vector<32x96xf32> to vector<32x8xf32>
    %55 = vector.extract_strided_slice %48 {offsets = [0, 64], sizes = [32, 8], strides = [1, 1]} : vector<32x96xf32> to vector<32x8xf32>
    %56 = tpu.transpose %54, [1, 0] : vector<32x8xf32> -> vector<8x32xf32>
    %cst_37 = arith.constant dense<0.000000e+00> : vector<32x32xf32>
    %57 = tpu.matmul %53, %56, %cst_37 {dimension_numbers = #tpu.dot_dimension_numbers<[1], [0], [0], [1], [0, 0, 1, 1], [], []>} : vector<32x8xf32>, vector<8x32xf32>, vector<32x32xf32> -> vector<32x32xf32>
    %cst_38 = arith.constant 0.353553385 : f32
    %58 = vector.broadcast %cst_38 : f32 to vector<32x32xf32>
    %59 = arith.mulf %57, %58 : vector<32x32xf32>
    %60 = arith.addf %59, %2 : vector<32x32xf32>
    %cst_39 = arith.constant dense<0xFF800000> : vector<32xf32>
    %61 = vector.multi_reduction <maximumf>, %60, %cst_39 [1] : vector<32x32xf32> to vector<32xf32>
    %62 = vector.shape_cast %61 : vector<32xf32> to vector<32x1xf32>
    %63 = vector.broadcast %62 : vector<32x1xf32> to vector<32x32xf32>
    %64 = arith.subf %60, %63 : vector<32x32xf32>
    %65 = math.exp %64 : vector<32x32xf32>
    %cst_40 = arith.constant dense<0.000000e+00> : vector<32xf32>
    %66 = vector.multi_reduction <add>, %65, %cst_40 [1] : vector<32x32xf32> to vector<32xf32>
    %67 = vector.shape_cast %66 : vector<32xf32> to vector<32x1xf32>
    %68 = vector.broadcast %67 : vector<32x1xf32> to vector<32x32xf32>
    %69 = arith.divf %65, %68 : vector<32x32xf32>
    %cst_41 = arith.constant dense<0.000000e+00> : vector<32x8xf32>
    %70 = tpu.matmul %69, %55, %cst_41 {dimension_numbers = #tpu.dot_dimension_numbers<[1], [0], [0], [1], [0, 0, 1, 1], [], []>} : vector<32x32xf32>, vector<32x8xf32>, vector<32x8xf32> -> vector<32x8xf32>
    %71 = vector.extract_strided_slice %15 {offsets = [0, 0], sizes = [8, 32], strides = [1, 1]} : vector<32x32xf32> to vector<8x32xf32>
    %cst_42 = arith.constant dense<0.000000e+00> : vector<32x32xf32>
    %72 = tpu.matmul %70, %71, %cst_42 {dimension_numbers = #tpu.dot_dimension_numbers<[1], [0], [0], [1], [0, 0, 1, 1], [], []>} : vector<32x8xf32>, vector<8x32xf32>, vector<32x32xf32> -> vector<32x32xf32>
    %73 = arith.addf %52, %72 : vector<32x32xf32>
    %74 = vector.extract_strided_slice %48 {offsets = [0, 8], sizes = [32, 8], strides = [1, 1]} : vector<32x96xf32> to vector<32x8xf32>
    %75 = vector.extract_strided_slice %48 {offsets = [0, 40], sizes = [32, 8], strides = [1, 1]} : vector<32x96xf32> to vector<32x8xf32>
    %76 = vector.extract_strided_slice %48 {offsets = [0, 72], sizes = [32, 8], strides = [1, 1]} : vector<32x96xf32> to vector<32x8xf32>
    %77 = tpu.transpose %75, [1, 0] : vector<32x8xf32> -> vector<8x32xf32>
    %cst_43 = arith.constant dense<0.000000e+00> : vector<32x32xf32>
    %78 = tpu.matmul %74, %77, %cst_43 {dimension_numbers = #tpu.dot_dimension_numbers<[1], [0], [0], [1], [0, 0, 1, 1], [], []>} : vector<32x8xf32>, vector<8x32xf32>, vector<32x32xf32> -> vector<32x32xf32>
    %cst_44 = arith.constant 0.353553385 : f32
    %79 = vector.broadcast %cst_44 : f32 to vector<32x32xf32>
    %80 = arith.mulf %78, %79 : vector<32x32xf32>
    %81 = arith.addf %80, %2 : vector<32x32xf32>
    %cst_45 = arith.constant dense<0xFF800000> : vector<32xf32>
    %82 = vector.multi_reduction <maximumf>, %81, %cst_45 [1] : vector<32x32xf32> to vector<32xf32>
    %83 = vector.shape_cast %82 : vector<32xf32> to vector<32x1xf32>
    %84 = vector.broadcast %83 : vector<32x1xf32> to vector<32x32xf32>
    %85 = arith.subf %81, %84 : vector<32x32xf32>
    %86 = math.exp %85 : vector<32x32xf32>
    %cst_46 = arith.constant dense<0.000000e+00> : vector<32xf32>
    %87 = vector.multi_reduction <add>, %86, %cst_46 [1] : vector<32x32xf32> to vector<32xf32>
    %88 = vector.shape_cast %87 : vector<32xf32> to vector<32x1xf32>
    %89 = vector.broadcast %88 : vector<32x1xf32> to vector<32x32xf32>
    %90 = arith.divf %86, %89 : vector<32x32xf32>
    %cst_47 = arith.constant dense<0.000000e+00> : vector<32x8xf32>
    %91 = tpu.matmul %90, %76, %cst_47 {dimension_numbers = #tpu.dot_dimension_numbers<[1], [0], [0], [1], [0, 0, 1, 1], [], []>} : vector<32x32xf32>, vector<32x8xf32>, vector<32x8xf32> -> vector<32x8xf32>
    %92 = vector.extract_strided_slice %15 {offsets = [8, 0], sizes = [8, 32], strides = [1, 1]} : vector<32x32xf32> to vector<8x32xf32>
    %cst_48 = arith.constant dense<0.000000e+00> : vector<32x32xf32>
    %93 = tpu.matmul %91, %92, %cst_48 {dimension_numbers = #tpu.dot_dimension_numbers<[1], [0], [0], [1], [0, 0, 1, 1], [], []>} : vector<32x8xf32>, vector<8x32xf32>, vector<32x32xf32> -> vector<32x32xf32>
    %94 = arith.addf %73, %93 : vector<32x32xf32>
    %95 = vector.extract_strided_slice %48 {offsets = [0, 16], sizes = [32, 8], strides = [1, 1]} : vector<32x96xf32> to vector<32x8xf32>
    %96 = vector.extract_strided_slice %48 {offsets = [0, 48], sizes = [32, 8], strides = [1, 1]} : vector<32x96xf32> to vector<32x8xf32>
    %97 = vector.extract_strided_slice %48 {offsets = [0, 80], sizes = [32, 8], strides = [1, 1]} : vector<32x96xf32> to vector<32x8xf32>
    %98 = tpu.transpose %96, [1, 0] : vector<32x8xf32> -> vector<8x32xf32>
    %cst_49 = arith.constant dense<0.000000e+00> : vector<32x32xf32>
    %99 = tpu.matmul %95, %98, %cst_49 {dimension_numbers = #tpu.dot_dimension_numbers<[1], [0], [0], [1], [0, 0, 1, 1], [], []>} : vector<32x8xf32>, vector<8x32xf32>, vector<32x32xf32> -> vector<32x32xf32>
    %cst_50 = arith.constant 0.353553385 : f32
    %100 = vector.broadcast %cst_50 : f32 to vector<32x32xf32>
    %101 = arith.mulf %99, %100 : vector<32x32xf32>
    %102 = arith.addf %101, %2 : vector<32x32xf32>
    %cst_51 = arith.constant dense<0xFF800000> : vector<32xf32>
    %103 = vector.multi_reduction <maximumf>, %102, %cst_51 [1] : vector<32x32xf32> to vector<32xf32>
    %104 = vector.shape_cast %103 : vector<32xf32> to vector<32x1xf32>
    %105 = vector.broadcast %104 : vector<32x1xf32> to vector<32x32xf32>
    %106 = arith.subf %102, %105 : vector<32x32xf32>
    %107 = math.exp %106 : vector<32x32xf32>
    %cst_52 = arith.constant dense<0.000000e+00> : vector<32xf32>
    %108 = vector.multi_reduction <add>, %107, %cst_52 [1] : vector<32x32xf32> to vector<32xf32>
    %109 = vector.shape_cast %108 : vector<32xf32> to vector<32x1xf32>
    %110 = vector.broadcast %109 : vector<32x1xf32> to vector<32x32xf32>
    %111 = arith.divf %107, %110 : vector<32x32xf32>
    %cst_53 = arith.constant dense<0.000000e+00> : vector<32x8xf32>
    %112 = tpu.matmul %111, %97, %cst_53 {dimension_numbers = #tpu.dot_dimension_numbers<[1], [0], [0], [1], [0, 0, 1, 1], [], []>} : vector<32x32xf32>, vector<32x8xf32>, vector<32x8xf32> -> vector<32x8xf32>
    %113 = vector.extract_strided_slice %15 {offsets = [16, 0], sizes = [8, 32], strides = [1, 1]} : vector<32x32xf32> to vector<8x32xf32>
    %cst_54 = arith.constant dense<0.000000e+00> : vector<32x32xf32>
    %114 = tpu.matmul %112, %113, %cst_54 {dimension_numbers = #tpu.dot_dimension_numbers<[1], [0], [0], [1], [0, 0, 1, 1], [], []>} : vector<32x8xf32>, vector<8x32xf32>, vector<32x32xf32> -> vector<32x32xf32>
    %115 = arith.addf %94, %114 : vector<32x32xf32>
    %116 = vector.extract_strided_slice %48 {offsets = [0, 24], sizes = [32, 8], strides = [1, 1]} : vector<32x96xf32> to vector<32x8xf32>
    %117 = vector.extract_strided_slice %48 {offsets = [0, 56], sizes = [32, 8], strides = [1, 1]} : vector<32x96xf32> to vector<32x8xf32>
    %118 = vector.extract_strided_slice %48 {offsets = [0, 88], sizes = [32, 8], strides = [1, 1]} : vector<32x96xf32> to vector<32x8xf32>
    %119 = tpu.transpose %117, [1, 0] : vector<32x8xf32> -> vector<8x32xf32>
    %cst_55 = arith.constant dense<0.000000e+00> : vector<32x32xf32>
    %120 = tpu.matmul %116, %119, %cst_55 {dimension_numbers = #tpu.dot_dimension_numbers<[1], [0], [0], [1], [0, 0, 1, 1], [], []>} : vector<32x8xf32>, vector<8x32xf32>, vector<32x32xf32> -> vector<32x32xf32>
    %cst_56 = arith.constant 0.353553385 : f32
    %121 = vector.broadcast %cst_56 : f32 to vector<32x32xf32>
    %122 = arith.mulf %120, %121 : vector<32x32xf32>
    %123 = arith.addf %122, %2 : vector<32x32xf32>
    %cst_57 = arith.constant dense<0xFF800000> : vector<32xf32>
    %124 = vector.multi_reduction <maximumf>, %123, %cst_57 [1] : vector<32x32xf32> to vector<32xf32>
    %125 = vector.shape_cast %124 : vector<32xf32> to vector<32x1xf32>
    %126 = vector.broadcast %125 : vector<32x1xf32> to vector<32x32xf32>
    %127 = arith.subf %123, %126 : vector<32x32xf32>
    %128 = math.exp %127 : vector<32x32xf32>
    %cst_58 = arith.constant dense<0.000000e+00> : vector<32xf32>
    %129 = vector.multi_reduction <add>, %128, %cst_58 [1] : vector<32x32xf32> to vector<32xf32>
    %130 = vector.shape_cast %129 : vector<32xf32> to vector<32x1xf32>
    %131 = vector.broadcast %130 : vector<32x1xf32> to vector<32x32xf32>
    %132 = arith.divf %128, %131 : vector<32x32xf32>
    %cst_59 = arith.constant dense<0.000000e+00> : vector<32x8xf32>
    %133 = tpu.matmul %132, %118, %cst_59 {dimension_numbers = #tpu.dot_dimension_numbers<[1], [0], [0], [1], [0, 0, 1, 1], [], []>} : vector<32x32xf32>, vector<32x8xf32>, vector<32x8xf32> -> vector<32x8xf32>
    %134 = vector.extract_strided_slice %15 {offsets = [24, 0], sizes = [8, 32], strides = [1, 1]} : vector<32x32xf32> to vector<8x32xf32>
    %cst_60 = arith.constant dense<0.000000e+00> : vector<32x32xf32>
    %135 = tpu.matmul %133, %134, %cst_60 {dimension_numbers = #tpu.dot_dimension_numbers<[1], [0], [0], [1], [0, 0, 1, 1], [], []>} : vector<32x8xf32>, vector<8x32xf32>, vector<32x32xf32> -> vector<32x32xf32>
    %136 = arith.addf %115, %135 : vector<32x32xf32>
    %137 = arith.addf %11, %136 : vector<32x32xf32>
    %138 = vector.extract_strided_slice %13 {offsets = [2, 0], sizes = [1, 32], strides = [1, 1]} : vector<4x32xf32> to vector<1x32xf32>
    %139 = vector.extract_strided_slice %13 {offsets = [3, 0], sizes = [1, 32], strides = [1, 1]} : vector<4x32xf32> to vector<1x32xf32>
    %cst_61 = arith.constant dense<0.000000e+00> : vector<32xf32>
    %140 = vector.multi_reduction <add>, %137, %cst_61 [1] : vector<32x32xf32> to vector<32xf32>
    %141 = vector.shape_cast %140 : vector<32xf32> to vector<32x1xf32>
    %cst_62 = arith.constant 3.200000e+01 : f32
    %142 = vector.broadcast %cst_62 : f32 to vector<32x1xf32>
    %143 = arith.divf %141, %142 : vector<32x1xf32>
    %144 = vector.broadcast %143 : vector<32x1xf32> to vector<32x32xf32>
    %145 = arith.subf %137, %144 : vector<32x32xf32>
    %146 = arith.mulf %145, %145 : vector<32x32xf32>
    %cst_63 = arith.constant dense<0.000000e+00> : vector<32xf32>
    %147 = vector.multi_reduction <add>, %146, %cst_63 [1] : vector<32x32xf32> to vector<32xf32>
    %148 = vector.shape_cast %147 : vector<32xf32> to vector<32x1xf32>
    %cst_64 = arith.constant 3.100000e+01 : f32
    %149 = vector.broadcast %cst_64 : f32 to vector<32x1xf32>
    %150 = arith.divf %148, %149 : vector<32x1xf32>
    %151 = vector.broadcast %143 : vector<32x1xf32> to vector<32x32xf32>
    %152 = arith.subf %137, %151 : vector<32x32xf32>
    %153 = vector.broadcast %138 : vector<1x32xf32> to vector<32x32xf32>
    %154 = arith.mulf %153, %152 : vector<32x32xf32>
    %155 = math.sqrt %150 : vector<32x1xf32>
    %cst_65 = arith.constant 9.99999997E-7 : f32
    %156 = vector.broadcast %cst_65 : f32 to vector<32x1xf32>
    %157 = arith.addf %155, %156 : vector<32x1xf32>
    %158 = vector.broadcast %157 : vector<32x1xf32> to vector<32x32xf32>
    %159 = arith.divf %154, %158 : vector<32x32xf32>
    %160 = vector.broadcast %139 : vector<1x32xf32> to vector<32x32xf32>
    %161 = arith.addf %159, %160 : vector<32x32xf32>
    %cst_66 = arith.constant dense<0.000000e+00> : vector<32x32xf32>
    %162 = tpu.matmul %17, %161, %cst_66 {dimension_numbers = #tpu.dot_dimension_numbers<[1], [0], [0], [1], [0, 0, 1, 1], [], []>} : vector<32x32xf32>, vector<32x32xf32>, vector<32x32xf32> -> vector<32x32xf32>
    %c0_67 = arith.constant 0 : index
    %c0_68 = arith.constant 0 : index
    %c0_69 = arith.constant 0 : index
    %163 = vector.load %arg15[%c0_67, %c0_68, %c0_69] : memref<2x32x64xf32, #tpu.memory_space<vmem>>, vector<1x32x64xf32>
    %164 = vector.shape_cast %163 : vector<1x32x64xf32> to vector<32x64xf32>
    %cst_70 = arith.constant dense<0.000000e+00> : vector<32x64xf32>
    %165 = tpu.matmul %162, %164, %cst_70 {dimension_numbers = #tpu.dot_dimension_numbers<[1], [0], [0], [1], [0, 0, 1, 1], [], []>} : vector<32x32xf32>, vector<32x64xf32>, vector<32x64xf32> -> vector<32x64xf32>
    %c0_71 = arith.constant 0 : index
    %c0_72 = arith.constant 0 : index
    %c0_73 = arith.constant 0 : index
    %166 = vector.load %arg16[%c0_71, %c0_72, %c0_73] : memref<2x1x64xf32, #tpu.memory_space<vmem>>, vector<1x1x64xf32>
    %167 = vector.shape_cast %166 : vector<1x1x64xf32> to vector<1x64xf32>
    %168 = vector.broadcast %167 : vector<1x64xf32> to vector<32x64xf32>
    %169 = arith.addf %165, %168 : vector<32x64xf32>
    %cst_74 = arith.constant 0.000000e+00 : f32
    %170 = vector.broadcast %cst_74 : f32 to vector<32x64xf32>
    %171 = arith.maximumf %169, %170 : vector<32x64xf32>
    %cst_75 = arith.constant dense<0.000000e+00> : vector<32x64xf32>
    %172 = tpu.matmul %17, %171, %cst_75 {dimension_numbers = #tpu.dot_dimension_numbers<[1], [0], [0], [1], [0, 0, 1, 1], [], []>} : vector<32x32xf32>, vector<32x64xf32>, vector<32x64xf32> -> vector<32x64xf32>
    %c0_76 = arith.constant 0 : index
    %c0_77 = arith.constant 0 : index
    %c0_78 = arith.constant 0 : index
    %173 = vector.load %arg17[%c0_76, %c0_77, %c0_78] : memref<2x64x32xf32, #tpu.memory_space<vmem>>, vector<1x64x32xf32>
    %174 = vector.shape_cast %173 : vector<1x64x32xf32> to vector<64x32xf32>
    %cst_79 = arith.constant dense<0.000000e+00> : vector<32x32xf32>
    %175 = tpu.matmul %172, %174, %cst_79 {dimension_numbers = #tpu.dot_dimension_numbers<[1], [0], [0], [1], [0, 0, 1, 1], [], []>} : vector<32x64xf32>, vector<64x32xf32>, vector<32x32xf32> -> vector<32x32xf32>
    %c0_80 = arith.constant 0 : index
    %c0_81 = arith.constant 0 : index
    %c0_82 = arith.constant 0 : index
    %176 = vector.load %arg18[%c0_80, %c0_81, %c0_82] : memref<2x1x32xf32, #tpu.memory_space<vmem>>, vector<1x1x32xf32>
    %177 = vector.shape_cast %176 : vector<1x1x32xf32> to vector<1x32xf32>
    %178 = vector.broadcast %177 : vector<1x32xf32> to vector<32x32xf32>
    %179 = arith.addf %175, %178 : vector<32x32xf32>
    %180 = arith.addf %137, %179 : vector<32x32xf32>
    %c0_83 = arith.constant 0 : index
    %c0_84 = arith.constant 0 : index
    %c0_85 = arith.constant 0 : index
    %181 = vector.load %arg19[%c0_83, %c0_84, %c0_85] : memref<2x96x32xf32, #tpu.memory_space<vmem>>, vector<1x96x32xf32>
    %182 = vector.shape_cast %181 : vector<1x96x32xf32> to vector<96x32xf32>
    %c0_86 = arith.constant 0 : index
    %c0_87 = arith.constant 0 : index
    %c0_88 = arith.constant 0 : index
    %183 = vector.load %arg20[%c0_86, %c0_87, %c0_88] : memref<2x1x32xf32, #tpu.memory_space<vmem>>, vector<1x1x32xf32>
    %184 = vector.shape_cast %183 : vector<1x1x32xf32> to vector<1x32xf32>
    %cst_89 = arith.constant dense<0.000000e+00> : vector<32x32xf32>
    %185 = tpu.matmul %0, %180, %cst_89 {dimension_numbers = #tpu.dot_dimension_numbers<[1], [0], [0], [1], [0, 0, 1, 1], [], []>} : vector<32x32xf32>, vector<32x32xf32>, vector<32x32xf32> -> vector<32x32xf32>
    %cst_90 = arith.constant dense<0.000000e+00> : vector<32x32xf32>
    %186 = tpu.matmul %1, %180, %cst_90 {dimension_numbers = #tpu.dot_dimension_numbers<[1], [0], [0], [1], [0, 0, 1, 1], [], []>} : vector<32x32xf32>, vector<32x32xf32>, vector<32x32xf32> -> vector<32x32xf32>
    %187 = tpu.concatenate %180, %185, %186 in 1 : vector<32x32xf32>, vector<32x32xf32>, vector<32x32xf32> -> vector<32x96xf32>
    %cst_91 = arith.constant dense<0.000000e+00> : vector<32x32xf32>
    %188 = tpu.matmul %187, %182, %cst_91 {dimension_numbers = #tpu.dot_dimension_numbers<[1], [0], [0], [1], [0, 0, 1, 1], [], []>} : vector<32x96xf32>, vector<96x32xf32>, vector<32x32xf32> -> vector<32x32xf32>
    %189 = vector.broadcast %184 : vector<1x32xf32> to vector<32x32xf32>
    %190 = arith.addf %188, %189 : vector<32x32xf32>
    %cst_92 = arith.constant 0.000000e+00 : f32
    %191 = vector.broadcast %cst_92 : f32 to vector<32x32xf32>
    %192 = arith.maximumf %190, %191 : vector<32x32xf32>
    %c0_93 = arith.constant 0 : index
    %c0_94 = arith.constant 0 : index
    %c0_95 = arith.constant 0 : index
    %193 = vector.load %arg21[%c0_93, %c0_94, %c0_95] : memref<2x96x32xf32, #tpu.memory_space<vmem>>, vector<1x96x32xf32>
    %194 = vector.shape_cast %193 : vector<1x96x32xf32> to vector<96x32xf32>
    %c0_96 = arith.constant 0 : index
    %c0_97 = arith.constant 0 : index
    %c0_98 = arith.constant 0 : index
    %195 = vector.load %arg22[%c0_96, %c0_97, %c0_98] : memref<2x1x32xf32, #tpu.memory_space<vmem>>, vector<1x1x32xf32>
    %196 = vector.shape_cast %195 : vector<1x1x32xf32> to vector<1x32xf32>
    %cst_99 = arith.constant dense<0.000000e+00> : vector<32x32xf32>
    %197 = tpu.matmul %0, %192, %cst_99 {dimension_numbers = #tpu.dot_dimension_numbers<[1], [0], [0], [1], [0, 0, 1, 1], [], []>} : vector<32x32xf32>, vector<32x32xf32>, vector<32x32xf32> -> vector<32x32xf32>
    %cst_100 = arith.constant dense<0.000000e+00> : vector<32x32xf32>
    %198 = tpu.matmul %1, %192, %cst_100 {dimension_numbers = #tpu.dot_dimension_numbers<[1], [0], [0], [1], [0, 0, 1, 1], [], []>} : vector<32x32xf32>, vector<32x32xf32>, vector<32x32xf32> -> vector<32x32xf32>
    %199 = tpu.concatenate %192, %197, %198 in 1 : vector<32x32xf32>, vector<32x32xf32>, vector<32x32xf32> -> vector<32x96xf32>
    %cst_101 = arith.constant dense<0.000000e+00> : vector<32x32xf32>
    %200 = tpu.matmul %199, %194, %cst_101 {dimension_numbers = #tpu.dot_dimension_numbers<[1], [0], [0], [1], [0, 0, 1, 1], [], []>} : vector<32x96xf32>, vector<96x32xf32>, vector<32x32xf32> -> vector<32x32xf32>
    %201 = vector.broadcast %196 : vector<1x32xf32> to vector<32x32xf32>
    %202 = arith.addf %200, %201 : vector<32x32xf32>
    %cst_102 = arith.constant 0.000000e+00 : f32
    %203 = vector.broadcast %cst_102 : f32 to vector<32x32xf32>
    %204 = arith.maximumf %202, %203 : vector<32x32xf32>
    %205 = arith.addf %180, %204 : vector<32x32xf32>
    %c1 = arith.constant 1 : index
    %c0_103 = arith.constant 0 : index
    %c0_104 = arith.constant 0 : index
    %206 = vector.load %arg10[%c1, %c0_103, %c0_104] : memref<2x4x32xf32, #tpu.memory_space<vmem>>, vector<1x4x32xf32>
    %207 = vector.shape_cast %206 : vector<1x4x32xf32> to vector<4x32xf32>
    %c1_105 = arith.constant 1 : index
    %c0_106 = arith.constant 0 : index
    %c0_107 = arith.constant 0 : index
    %208 = vector.load %arg13[%c1_105, %c0_106, %c0_107] : memref<2x32x32xf32, #tpu.memory_space<vmem>>, vector<1x32x32xf32>
    %209 = vector.shape_cast %208 : vector<1x32x32xf32> to vector<32x32xf32>
    %c1_108 = arith.constant 1 : index
    %c0_109 = arith.constant 0 : index
    %c0_110 = arith.constant 0 : index
    %210 = vector.load %arg5[%c1_108, %c0_109, %c0_110] : memref<2x32x32xf32, #tpu.memory_space<vmem>>, vector<1x32x32xf32>
    %211 = vector.shape_cast %210 : vector<1x32x32xf32> to vector<32x32xf32>
    %212 = vector.extract_strided_slice %207 {offsets = [0, 0], sizes = [1, 32], strides = [1, 1]} : vector<4x32xf32> to vector<1x32xf32>
    %213 = vector.extract_strided_slice %207 {offsets = [1, 0], sizes = [1, 32], strides = [1, 1]} : vector<4x32xf32> to vector<1x32xf32>
    %cst_111 = arith.constant dense<0.000000e+00> : vector<32xf32>
    %214 = vector.multi_reduction <add>, %205, %cst_111 [1] : vector<32x32xf32> to vector<32xf32>
    %215 = vector.shape_cast %214 : vector<32xf32> to vector<32x1xf32>
    %cst_112 = arith.constant 3.200000e+01 : f32
    %216 = vector.broadcast %cst_112 : f32 to vector<32x1xf32>
    %217 = arith.divf %215, %216 : vector<32x1xf32>
    %218 = vector.broadcast %217 : vector<32x1xf32> to vector<32x32xf32>
    %219 = arith.subf %205, %218 : vector<32x32xf32>
    %220 = arith.mulf %219, %219 : vector<32x32xf32>
    %cst_113 = arith.constant dense<0.000000e+00> : vector<32xf32>
    %221 = vector.multi_reduction <add>, %220, %cst_113 [1] : vector<32x32xf32> to vector<32xf32>
    %222 = vector.shape_cast %221 : vector<32xf32> to vector<32x1xf32>
    %cst_114 = arith.constant 3.100000e+01 : f32
    %223 = vector.broadcast %cst_114 : f32 to vector<32x1xf32>
    %224 = arith.divf %222, %223 : vector<32x1xf32>
    %225 = vector.broadcast %217 : vector<32x1xf32> to vector<32x32xf32>
    %226 = arith.subf %205, %225 : vector<32x32xf32>
    %227 = vector.broadcast %212 : vector<1x32xf32> to vector<32x32xf32>
    %228 = arith.mulf %227, %226 : vector<32x32xf32>
    %229 = math.sqrt %224 : vector<32x1xf32>
    %cst_115 = arith.constant 9.99999997E-7 : f32
    %230 = vector.broadcast %cst_115 : f32 to vector<32x1xf32>
    %231 = arith.addf %229, %230 : vector<32x1xf32>
    %232 = vector.broadcast %231 : vector<32x1xf32> to vector<32x32xf32>
    %233 = arith.divf %228, %232 : vector<32x32xf32>
    %234 = vector.broadcast %213 : vector<1x32xf32> to vector<32x32xf32>
    %235 = arith.addf %233, %234 : vector<32x32xf32>
    %c1_116 = arith.constant 1 : index
    %c0_117 = arith.constant 0 : index
    %c0_118 = arith.constant 0 : index
    %236 = vector.load %arg11[%c1_116, %c0_117, %c0_118] : memref<2x32x96xf32, #tpu.memory_space<vmem>>, vector<1x32x96xf32>
    %237 = vector.shape_cast %236 : vector<1x32x96xf32> to vector<32x96xf32>
    %cst_119 = arith.constant dense<0.000000e+00> : vector<32x96xf32>
    %238 = tpu.matmul %235, %237, %cst_119 {dimension_numbers = #tpu.dot_dimension_numbers<[1], [0], [0], [1], [0, 0, 1, 1], [], []>} : vector<32x32xf32>, vector<32x96xf32>, vector<32x96xf32> -> vector<32x96xf32>
    %c1_120 = arith.constant 1 : index
    %c0_121 = arith.constant 0 : index
    %c0_122 = arith.constant 0 : index
    %239 = vector.load %arg12[%c1_120, %c0_121, %c0_122] : memref<2x1x96xf32, #tpu.memory_space<vmem>>, vector<1x1x96xf32>
    %240 = vector.shape_cast %239 : vector<1x1x96xf32> to vector<1x96xf32>
    %241 = vector.broadcast %240 : vector<1x96xf32> to vector<32x96xf32>
    %242 = arith.addf %238, %241 : vector<32x96xf32>
    %c1_123 = arith.constant 1 : index
    %c0_124 = arith.constant 0 : index
    %c0_125 = arith.constant 0 : index
    %243 = vector.load %arg14[%c1_123, %c0_124, %c0_125] : memref<2x1x32xf32, #tpu.memory_space<vmem>>, vector<1x1x32xf32>
    %244 = vector.shape_cast %243 : vector<1x1x32xf32> to vector<1x32xf32>
    %245 = vector.shape_cast %244 : vector<1x32xf32> to vector<1x32xf32>
    %246 = vector.broadcast %245 : vector<1x32xf32> to vector<32x32xf32>
    %247 = vector.extract_strided_slice %242 {offsets = [0, 0], sizes = [32, 8], strides = [1, 1]} : vector<32x96xf32> to vector<32x8xf32>
    %248 = vector.extract_strided_slice %242 {offsets = [0, 32], sizes = [32, 8], strides = [1, 1]} : vector<32x96xf32> to vector<32x8xf32>
    %249 = vector.extract_strided_slice %242 {offsets = [0, 64], sizes = [32, 8], strides = [1, 1]} : vector<32x96xf32> to vector<32x8xf32>
    %250 = tpu.transpose %248, [1, 0] : vector<32x8xf32> -> vector<8x32xf32>
    %cst_126 = arith.constant dense<0.000000e+00> : vector<32x32xf32>
    %251 = tpu.matmul %247, %250, %cst_126 {dimension_numbers = #tpu.dot_dimension_numbers<[1], [0], [0], [1], [0, 0, 1, 1], [], []>} : vector<32x8xf32>, vector<8x32xf32>, vector<32x32xf32> -> vector<32x32xf32>
    %cst_127 = arith.constant 0.353553385 : f32
    %252 = vector.broadcast %cst_127 : f32 to vector<32x32xf32>
    %253 = arith.mulf %251, %252 : vector<32x32xf32>
    %254 = arith.addf %253, %2 : vector<32x32xf32>
    %cst_128 = arith.constant dense<0xFF800000> : vector<32xf32>
    %255 = vector.multi_reduction <maximumf>, %254, %cst_128 [1] : vector<32x32xf32> to vector<32xf32>
    %256 = vector.shape_cast %255 : vector<32xf32> to vector<32x1xf32>
    %257 = vector.broadcast %256 : vector<32x1xf32> to vector<32x32xf32>
    %258 = arith.subf %254, %257 : vector<32x32xf32>
    %259 = math.exp %258 : vector<32x32xf32>
    %cst_129 = arith.constant dense<0.000000e+00> : vector<32xf32>
    %260 = vector.multi_reduction <add>, %259, %cst_129 [1] : vector<32x32xf32> to vector<32xf32>
    %261 = vector.shape_cast %260 : vector<32xf32> to vector<32x1xf32>
    %262 = vector.broadcast %261 : vector<32x1xf32> to vector<32x32xf32>
    %263 = arith.divf %259, %262 : vector<32x32xf32>
    %cst_130 = arith.constant dense<0.000000e+00> : vector<32x8xf32>
    %264 = tpu.matmul %263, %249, %cst_130 {dimension_numbers = #tpu.dot_dimension_numbers<[1], [0], [0], [1], [0, 0, 1, 1], [], []>} : vector<32x32xf32>, vector<32x8xf32>, vector<32x8xf32> -> vector<32x8xf32>
    %265 = vector.extract_strided_slice %209 {offsets = [0, 0], sizes = [8, 32], strides = [1, 1]} : vector<32x32xf32> to vector<8x32xf32>
    %cst_131 = arith.constant dense<0.000000e+00> : vector<32x32xf32>
    %266 = tpu.matmul %264, %265, %cst_131 {dimension_numbers = #tpu.dot_dimension_numbers<[1], [0], [0], [1], [0, 0, 1, 1], [], []>} : vector<32x8xf32>, vector<8x32xf32>, vector<32x32xf32> -> vector<32x32xf32>
    %267 = arith.addf %246, %266 : vector<32x32xf32>
    %268 = vector.extract_strided_slice %242 {offsets = [0, 8], sizes = [32, 8], strides = [1, 1]} : vector<32x96xf32> to vector<32x8xf32>
    %269 = vector.extract_strided_slice %242 {offsets = [0, 40], sizes = [32, 8], strides = [1, 1]} : vector<32x96xf32> to vector<32x8xf32>
    %270 = vector.extract_strided_slice %242 {offsets = [0, 72], sizes = [32, 8], strides = [1, 1]} : vector<32x96xf32> to vector<32x8xf32>
    %271 = tpu.transpose %269, [1, 0] : vector<32x8xf32> -> vector<8x32xf32>
    %cst_132 = arith.constant dense<0.000000e+00> : vector<32x32xf32>
    %272 = tpu.matmul %268, %271, %cst_132 {dimension_numbers = #tpu.dot_dimension_numbers<[1], [0], [0], [1], [0, 0, 1, 1], [], []>} : vector<32x8xf32>, vector<8x32xf32>, vector<32x32xf32> -> vector<32x32xf32>
    %cst_133 = arith.constant 0.353553385 : f32
    %273 = vector.broadcast %cst_133 : f32 to vector<32x32xf32>
    %274 = arith.mulf %272, %273 : vector<32x32xf32>
    %275 = arith.addf %274, %2 : vector<32x32xf32>
    %cst_134 = arith.constant dense<0xFF800000> : vector<32xf32>
    %276 = vector.multi_reduction <maximumf>, %275, %cst_134 [1] : vector<32x32xf32> to vector<32xf32>
    %277 = vector.shape_cast %276 : vector<32xf32> to vector<32x1xf32>
    %278 = vector.broadcast %277 : vector<32x1xf32> to vector<32x32xf32>
    %279 = arith.subf %275, %278 : vector<32x32xf32>
    %280 = math.exp %279 : vector<32x32xf32>
    %cst_135 = arith.constant dense<0.000000e+00> : vector<32xf32>
    %281 = vector.multi_reduction <add>, %280, %cst_135 [1] : vector<32x32xf32> to vector<32xf32>
    %282 = vector.shape_cast %281 : vector<32xf32> to vector<32x1xf32>
    %283 = vector.broadcast %282 : vector<32x1xf32> to vector<32x32xf32>
    %284 = arith.divf %280, %283 : vector<32x32xf32>
    %cst_136 = arith.constant dense<0.000000e+00> : vector<32x8xf32>
    %285 = tpu.matmul %284, %270, %cst_136 {dimension_numbers = #tpu.dot_dimension_numbers<[1], [0], [0], [1], [0, 0, 1, 1], [], []>} : vector<32x32xf32>, vector<32x8xf32>, vector<32x8xf32> -> vector<32x8xf32>
    %286 = vector.extract_strided_slice %209 {offsets = [8, 0], sizes = [8, 32], strides = [1, 1]} : vector<32x32xf32> to vector<8x32xf32>
    %cst_137 = arith.constant dense<0.000000e+00> : vector<32x32xf32>
    %287 = tpu.matmul %285, %286, %cst_137 {dimension_numbers = #tpu.dot_dimension_numbers<[1], [0], [0], [1], [0, 0, 1, 1], [], []>} : vector<32x8xf32>, vector<8x32xf32>, vector<32x32xf32> -> vector<32x32xf32>
    %288 = arith.addf %267, %287 : vector<32x32xf32>
    %289 = vector.extract_strided_slice %242 {offsets = [0, 16], sizes = [32, 8], strides = [1, 1]} : vector<32x96xf32> to vector<32x8xf32>
    %290 = vector.extract_strided_slice %242 {offsets = [0, 48], sizes = [32, 8], strides = [1, 1]} : vector<32x96xf32> to vector<32x8xf32>
    %291 = vector.extract_strided_slice %242 {offsets = [0, 80], sizes = [32, 8], strides = [1, 1]} : vector<32x96xf32> to vector<32x8xf32>
    %292 = tpu.transpose %290, [1, 0] : vector<32x8xf32> -> vector<8x32xf32>
    %cst_138 = arith.constant dense<0.000000e+00> : vector<32x32xf32>
    %293 = tpu.matmul %289, %292, %cst_138 {dimension_numbers = #tpu.dot_dimension_numbers<[1], [0], [0], [1], [0, 0, 1, 1], [], []>} : vector<32x8xf32>, vector<8x32xf32>, vector<32x32xf32> -> vector<32x32xf32>
    %cst_139 = arith.constant 0.353553385 : f32
    %294 = vector.broadcast %cst_139 : f32 to vector<32x32xf32>
    %295 = arith.mulf %293, %294 : vector<32x32xf32>
    %296 = arith.addf %295, %2 : vector<32x32xf32>
    %cst_140 = arith.constant dense<0xFF800000> : vector<32xf32>
    %297 = vector.multi_reduction <maximumf>, %296, %cst_140 [1] : vector<32x32xf32> to vector<32xf32>
    %298 = vector.shape_cast %297 : vector<32xf32> to vector<32x1xf32>
    %299 = vector.broadcast %298 : vector<32x1xf32> to vector<32x32xf32>
    %300 = arith.subf %296, %299 : vector<32x32xf32>
    %301 = math.exp %300 : vector<32x32xf32>
    %cst_141 = arith.constant dense<0.000000e+00> : vector<32xf32>
    %302 = vector.multi_reduction <add>, %301, %cst_141 [1] : vector<32x32xf32> to vector<32xf32>
    %303 = vector.shape_cast %302 : vector<32xf32> to vector<32x1xf32>
    %304 = vector.broadcast %303 : vector<32x1xf32> to vector<32x32xf32>
    %305 = arith.divf %301, %304 : vector<32x32xf32>
    %cst_142 = arith.constant dense<0.000000e+00> : vector<32x8xf32>
    %306 = tpu.matmul %305, %291, %cst_142 {dimension_numbers = #tpu.dot_dimension_numbers<[1], [0], [0], [1], [0, 0, 1, 1], [], []>} : vector<32x32xf32>, vector<32x8xf32>, vector<32x8xf32> -> vector<32x8xf32>
    %307 = vector.extract_strided_slice %209 {offsets = [16, 0], sizes = [8, 32], strides = [1, 1]} : vector<32x32xf32> to vector<8x32xf32>
    %cst_143 = arith.constant dense<0.000000e+00> : vector<32x32xf32>
    %308 = tpu.matmul %306, %307, %cst_143 {dimension_numbers = #tpu.dot_dimension_numbers<[1], [0], [0], [1], [0, 0, 1, 1], [], []>} : vector<32x8xf32>, vector<8x32xf32>, vector<32x32xf32> -> vector<32x32xf32>
    %309 = arith.addf %288, %308 : vector<32x32xf32>
    %310 = vector.extract_strided_slice %242 {offsets = [0, 24], sizes = [32, 8], strides = [1, 1]} : vector<32x96xf32> to vector<32x8xf32>
    %311 = vector.extract_strided_slice %242 {offsets = [0, 56], sizes = [32, 8], strides = [1, 1]} : vector<32x96xf32> to vector<32x8xf32>
    %312 = vector.extract_strided_slice %242 {offsets = [0, 88], sizes = [32, 8], strides = [1, 1]} : vector<32x96xf32> to vector<32x8xf32>
    %313 = tpu.transpose %311, [1, 0] : vector<32x8xf32> -> vector<8x32xf32>
    %cst_144 = arith.constant dense<0.000000e+00> : vector<32x32xf32>
    %314 = tpu.matmul %310, %313, %cst_144 {dimension_numbers = #tpu.dot_dimension_numbers<[1], [0], [0], [1], [0, 0, 1, 1], [], []>} : vector<32x8xf32>, vector<8x32xf32>, vector<32x32xf32> -> vector<32x32xf32>
    %cst_145 = arith.constant 0.353553385 : f32
    %315 = vector.broadcast %cst_145 : f32 to vector<32x32xf32>
    %316 = arith.mulf %314, %315 : vector<32x32xf32>
    %317 = arith.addf %316, %2 : vector<32x32xf32>
    %cst_146 = arith.constant dense<0xFF800000> : vector<32xf32>
    %318 = vector.multi_reduction <maximumf>, %317, %cst_146 [1] : vector<32x32xf32> to vector<32xf32>
    %319 = vector.shape_cast %318 : vector<32xf32> to vector<32x1xf32>
    %320 = vector.broadcast %319 : vector<32x1xf32> to vector<32x32xf32>
    %321 = arith.subf %317, %320 : vector<32x32xf32>
    %322 = math.exp %321 : vector<32x32xf32>
    %cst_147 = arith.constant dense<0.000000e+00> : vector<32xf32>
    %323 = vector.multi_reduction <add>, %322, %cst_147 [1] : vector<32x32xf32> to vector<32xf32>
    %324 = vector.shape_cast %323 : vector<32xf32> to vector<32x1xf32>
    %325 = vector.broadcast %324 : vector<32x1xf32> to vector<32x32xf32>
    %326 = arith.divf %322, %325 : vector<32x32xf32>
    %cst_148 = arith.constant dense<0.000000e+00> : vector<32x8xf32>
    %327 = tpu.matmul %326, %312, %cst_148 {dimension_numbers = #tpu.dot_dimension_numbers<[1], [0], [0], [1], [0, 0, 1, 1], [], []>} : vector<32x32xf32>, vector<32x8xf32>, vector<32x8xf32> -> vector<32x8xf32>
    %328 = vector.extract_strided_slice %209 {offsets = [24, 0], sizes = [8, 32], strides = [1, 1]} : vector<32x32xf32> to vector<8x32xf32>
    %cst_149 = arith.constant dense<0.000000e+00> : vector<32x32xf32>
    %329 = tpu.matmul %327, %328, %cst_149 {dimension_numbers = #tpu.dot_dimension_numbers<[1], [0], [0], [1], [0, 0, 1, 1], [], []>} : vector<32x8xf32>, vector<8x32xf32>, vector<32x32xf32> -> vector<32x32xf32>
    %330 = arith.addf %309, %329 : vector<32x32xf32>
    %331 = arith.addf %205, %330 : vector<32x32xf32>
    %332 = vector.extract_strided_slice %207 {offsets = [2, 0], sizes = [1, 32], strides = [1, 1]} : vector<4x32xf32> to vector<1x32xf32>
    %333 = vector.extract_strided_slice %207 {offsets = [3, 0], sizes = [1, 32], strides = [1, 1]} : vector<4x32xf32> to vector<1x32xf32>
    %cst_150 = arith.constant dense<0.000000e+00> : vector<32xf32>
    %334 = vector.multi_reduction <add>, %331, %cst_150 [1] : vector<32x32xf32> to vector<32xf32>
    %335 = vector.shape_cast %334 : vector<32xf32> to vector<32x1xf32>
    %cst_151 = arith.constant 3.200000e+01 : f32
    %336 = vector.broadcast %cst_151 : f32 to vector<32x1xf32>
    %337 = arith.divf %335, %336 : vector<32x1xf32>
    %338 = vector.broadcast %337 : vector<32x1xf32> to vector<32x32xf32>
    %339 = arith.subf %331, %338 : vector<32x32xf32>
    %340 = arith.mulf %339, %339 : vector<32x32xf32>
    %cst_152 = arith.constant dense<0.000000e+00> : vector<32xf32>
    %341 = vector.multi_reduction <add>, %340, %cst_152 [1] : vector<32x32xf32> to vector<32xf32>
    %342 = vector.shape_cast %341 : vector<32xf32> to vector<32x1xf32>
    %cst_153 = arith.constant 3.100000e+01 : f32
    %343 = vector.broadcast %cst_153 : f32 to vector<32x1xf32>
    %344 = arith.divf %342, %343 : vector<32x1xf32>
    %345 = vector.broadcast %337 : vector<32x1xf32> to vector<32x32xf32>
    %346 = arith.subf %331, %345 : vector<32x32xf32>
    %347 = vector.broadcast %332 : vector<1x32xf32> to vector<32x32xf32>
    %348 = arith.mulf %347, %346 : vector<32x32xf32>
    %349 = math.sqrt %344 : vector<32x1xf32>
    %cst_154 = arith.constant 9.99999997E-7 : f32
    %350 = vector.broadcast %cst_154 : f32 to vector<32x1xf32>
    %351 = arith.addf %349, %350 : vector<32x1xf32>
    %352 = vector.broadcast %351 : vector<32x1xf32> to vector<32x32xf32>
    %353 = arith.divf %348, %352 : vector<32x32xf32>
    %354 = vector.broadcast %333 : vector<1x32xf32> to vector<32x32xf32>
    %355 = arith.addf %353, %354 : vector<32x32xf32>
    %cst_155 = arith.constant dense<0.000000e+00> : vector<32x32xf32>
    %356 = tpu.matmul %211, %355, %cst_155 {dimension_numbers = #tpu.dot_dimension_numbers<[1], [0], [0], [1], [0, 0, 1, 1], [], []>} : vector<32x32xf32>, vector<32x32xf32>, vector<32x32xf32> -> vector<32x32xf32>
    %c1_156 = arith.constant 1 : index
    %c0_157 = arith.constant 0 : index
    %c0_158 = arith.constant 0 : index
    %357 = vector.load %arg15[%c1_156, %c0_157, %c0_158] : memref<2x32x64xf32, #tpu.memory_space<vmem>>, vector<1x32x64xf32>
    %358 = vector.shape_cast %357 : vector<1x32x64xf32> to vector<32x64xf32>
    %cst_159 = arith.constant dense<0.000000e+00> : vector<32x64xf32>
    %359 = tpu.matmul %356, %358, %cst_159 {dimension_numbers = #tpu.dot_dimension_numbers<[1], [0], [0], [1], [0, 0, 1, 1], [], []>} : vector<32x32xf32>, vector<32x64xf32>, vector<32x64xf32> -> vector<32x64xf32>
    %c1_160 = arith.constant 1 : index
    %c0_161 = arith.constant 0 : index
    %c0_162 = arith.constant 0 : index
    %360 = vector.load %arg16[%c1_160, %c0_161, %c0_162] : memref<2x1x64xf32, #tpu.memory_space<vmem>>, vector<1x1x64xf32>
    %361 = vector.shape_cast %360 : vector<1x1x64xf32> to vector<1x64xf32>
    %362 = vector.broadcast %361 : vector<1x64xf32> to vector<32x64xf32>
    %363 = arith.addf %359, %362 : vector<32x64xf32>
    %cst_163 = arith.constant 0.000000e+00 : f32
    %364 = vector.broadcast %cst_163 : f32 to vector<32x64xf32>
    %365 = arith.maximumf %363, %364 : vector<32x64xf32>
    %cst_164 = arith.constant dense<0.000000e+00> : vector<32x64xf32>
    %366 = tpu.matmul %211, %365, %cst_164 {dimension_numbers = #tpu.dot_dimension_numbers<[1], [0], [0], [1], [0, 0, 1, 1], [], []>} : vector<32x32xf32>, vector<32x64xf32>, vector<32x64xf32> -> vector<32x64xf32>
    %c1_165 = arith.constant 1 : index
    %c0_166 = arith.constant 0 : index
    %c0_167 = arith.constant 0 : index
    %367 = vector.load %arg17[%c1_165, %c0_166, %c0_167] : memref<2x64x32xf32, #tpu.memory_space<vmem>>, vector<1x64x32xf32>
    %368 = vector.shape_cast %367 : vector<1x64x32xf32> to vector<64x32xf32>
    %cst_168 = arith.constant dense<0.000000e+00> : vector<32x32xf32>
    %369 = tpu.matmul %366, %368, %cst_168 {dimension_numbers = #tpu.dot_dimension_numbers<[1], [0], [0], [1], [0, 0, 1, 1], [], []>} : vector<32x64xf32>, vector<64x32xf32>, vector<32x32xf32> -> vector<32x32xf32>
    %c1_169 = arith.constant 1 : index
    %c0_170 = arith.constant 0 : index
    %c0_171 = arith.constant 0 : index
    %370 = vector.load %arg18[%c1_169, %c0_170, %c0_171] : memref<2x1x32xf32, #tpu.memory_space<vmem>>, vector<1x1x32xf32>
    %371 = vector.shape_cast %370 : vector<1x1x32xf32> to vector<1x32xf32>
    %372 = vector.broadcast %371 : vector<1x32xf32> to vector<32x32xf32>
    %373 = arith.addf %369, %372 : vector<32x32xf32>
    %374 = arith.addf %331, %373 : vector<32x32xf32>
    %c1_172 = arith.constant 1 : index
    %c0_173 = arith.constant 0 : index
    %c0_174 = arith.constant 0 : index
    %375 = vector.load %arg19[%c1_172, %c0_173, %c0_174] : memref<2x96x32xf32, #tpu.memory_space<vmem>>, vector<1x96x32xf32>
    %376 = vector.shape_cast %375 : vector<1x96x32xf32> to vector<96x32xf32>
    %c1_175 = arith.constant 1 : index
    %c0_176 = arith.constant 0 : index
    %c0_177 = arith.constant 0 : index
    %377 = vector.load %arg20[%c1_175, %c0_176, %c0_177] : memref<2x1x32xf32, #tpu.memory_space<vmem>>, vector<1x1x32xf32>
    %378 = vector.shape_cast %377 : vector<1x1x32xf32> to vector<1x32xf32>
    %cst_178 = arith.constant dense<0.000000e+00> : vector<32x32xf32>
    %379 = tpu.matmul %0, %374, %cst_178 {dimension_numbers = #tpu.dot_dimension_numbers<[1], [0], [0], [1], [0, 0, 1, 1], [], []>} : vector<32x32xf32>, vector<32x32xf32>, vector<32x32xf32> -> vector<32x32xf32>
    %cst_179 = arith.constant dense<0.000000e+00> : vector<32x32xf32>
    %380 = tpu.matmul %1, %374, %cst_179 {dimension_numbers = #tpu.dot_dimension_numbers<[1], [0], [0], [1], [0, 0, 1, 1], [], []>} : vector<32x32xf32>, vector<32x32xf32>, vector<32x32xf32> -> vector<32x32xf32>
    %381 = tpu.concatenate %374, %379, %380 in 1 : vector<32x32xf32>, vector<32x32xf32>, vector<32x32xf32> -> vector<32x96xf32>
    %cst_180 = arith.constant dense<0.000000e+00> : vector<32x32xf32>
    %382 = tpu.matmul %381, %376, %cst_180 {dimension_numbers = #tpu.dot_dimension_numbers<[1], [0], [0], [1], [0, 0, 1, 1], [], []>} : vector<32x96xf32>, vector<96x32xf32>, vector<32x32xf32> -> vector<32x32xf32>
    %383 = vector.broadcast %378 : vector<1x32xf32> to vector<32x32xf32>
    %384 = arith.addf %382, %383 : vector<32x32xf32>
    %cst_181 = arith.constant 0.000000e+00 : f32
    %385 = vector.broadcast %cst_181 : f32 to vector<32x32xf32>
    %386 = arith.maximumf %384, %385 : vector<32x32xf32>
    %c1_182 = arith.constant 1 : index
    %c0_183 = arith.constant 0 : index
    %c0_184 = arith.constant 0 : index
    %387 = vector.load %arg21[%c1_182, %c0_183, %c0_184] : memref<2x96x32xf32, #tpu.memory_space<vmem>>, vector<1x96x32xf32>
    %388 = vector.shape_cast %387 : vector<1x96x32xf32> to vector<96x32xf32>
    %c1_185 = arith.constant 1 : index
    %c0_186 = arith.constant 0 : index
    %c0_187 = arith.constant 0 : index
    %389 = vector.load %arg22[%c1_185, %c0_186, %c0_187] : memref<2x1x32xf32, #tpu.memory_space<vmem>>, vector<1x1x32xf32>
    %390 = vector.shape_cast %389 : vector<1x1x32xf32> to vector<1x32xf32>
    %cst_188 = arith.constant dense<0.000000e+00> : vector<32x32xf32>
    %391 = tpu.matmul %0, %386, %cst_188 {dimension_numbers = #tpu.dot_dimension_numbers<[1], [0], [0], [1], [0, 0, 1, 1], [], []>} : vector<32x32xf32>, vector<32x32xf32>, vector<32x32xf32> -> vector<32x32xf32>
    %cst_189 = arith.constant dense<0.000000e+00> : vector<32x32xf32>
    %392 = tpu.matmul %1, %386, %cst_189 {dimension_numbers = #tpu.dot_dimension_numbers<[1], [0], [0], [1], [0, 0, 1, 1], [], []>} : vector<32x32xf32>, vector<32x32xf32>, vector<32x32xf32> -> vector<32x32xf32>
    %393 = tpu.concatenate %386, %391, %392 in 1 : vector<32x32xf32>, vector<32x32xf32>, vector<32x32xf32> -> vector<32x96xf32>
    %cst_190 = arith.constant dense<0.000000e+00> : vector<32x32xf32>
    %394 = tpu.matmul %393, %388, %cst_190 {dimension_numbers = #tpu.dot_dimension_numbers<[1], [0], [0], [1], [0, 0, 1, 1], [], []>} : vector<32x96xf32>, vector<96x32xf32>, vector<32x32xf32> -> vector<32x32xf32>
    %395 = vector.broadcast %390 : vector<1x32xf32> to vector<32x32xf32>
    %396 = arith.addf %394, %395 : vector<32x32xf32>
    %cst_191 = arith.constant 0.000000e+00 : f32
    %397 = vector.broadcast %cst_191 : f32 to vector<32x32xf32>
    %398 = arith.maximumf %396, %397 : vector<32x32xf32>
    %399 = arith.addf %374, %398 : vector<32x32xf32>
    %c0_192 = arith.constant 0 : index
    %c0_193 = arith.constant 0 : index
    %400 = vector.load %arg8[%c0_192, %c0_193] : memref<96x3xf32, #tpu.memory_space<vmem>>, vector<96x3xf32>
    %c0_194 = arith.constant 0 : index
    %c0_195 = arith.constant 0 : index
    %401 = vector.load %arg9[%c0_194, %c0_195] : memref<1x3xf32, #tpu.memory_space<vmem>>, vector<1x3xf32>
    %cst_196 = arith.constant dense<0.000000e+00> : vector<32x32xf32>
    %402 = tpu.matmul %0, %399, %cst_196 {dimension_numbers = #tpu.dot_dimension_numbers<[1], [0], [0], [1], [0, 0, 1, 1], [], []>} : vector<32x32xf32>, vector<32x32xf32>, vector<32x32xf32> -> vector<32x32xf32>
    %cst_197 = arith.constant dense<0.000000e+00> : vector<32x32xf32>
    %403 = tpu.matmul %1, %399, %cst_197 {dimension_numbers = #tpu.dot_dimension_numbers<[1], [0], [0], [1], [0, 0, 1, 1], [], []>} : vector<32x32xf32>, vector<32x32xf32>, vector<32x32xf32> -> vector<32x32xf32>
    %404 = tpu.concatenate %399, %402, %403 in 1 : vector<32x32xf32>, vector<32x32xf32>, vector<32x32xf32> -> vector<32x96xf32>
    %cst_198 = arith.constant dense<0.000000e+00> : vector<32x3xf32>
    %405 = tpu.matmul %404, %400, %cst_198 {dimension_numbers = #tpu.dot_dimension_numbers<[1], [0], [0], [1], [0, 0, 1, 1], [], []>} : vector<32x96xf32>, vector<96x3xf32>, vector<32x3xf32> -> vector<32x3xf32>
    %406 = vector.broadcast %401 : vector<1x3xf32> to vector<32x3xf32>
    %407 = arith.addf %405, %406 : vector<32x3xf32>
    %c0_199 = arith.constant 0 : index
    %c0_200 = arith.constant 0 : index
    %408 = vector.load %arg23[%c0_199, %c0_200] : memref<32x3xf32, #tpu.memory_space<vmem>>, vector<32x3xf32>
    tpu.vector_store %arg23[%c0_199, %c0_200], %407 {strides = array<i32>} : memref<32x3xf32, #tpu.memory_space<vmem>>, vector<32x3xf32>,
    return
  }
  func.func @transform_0(%arg0: i32) -> (i32, i32) {
    %c0_i32 = arith.constant 0 : i32
    %c0_i32_0 = arith.constant 0 : i32
    %c0_i32_1 = arith.constant 0 : i32
    return %c0_i32, %c0_i32_0 : i32, i32
  }
  func.func @transform_1(%arg0: i32) -> (i32, i32) {
    %c0_i32 = arith.constant 0 : i32
    %c0_i32_0 = arith.constant 0 : i32
    %c0_i32_1 = arith.constant 0 : i32
    return %c0_i32, %c0_i32_0 : i32, i32
  }
  func.func @transform_2(%arg0: i32) -> (i32, i32) {
    %c0_i32 = arith.constant 0 : i32
    %c0_i32_0 = arith.constant 0 : i32
    %c0_i32_1 = arith.constant 0 : i32
    return %c0_i32, %c0_i32_0 : i32, i32
  }
  func.func @transform_3(%arg0: i32) -> (i32, i32) {
    %c0_i32 = arith.constant 0 : i32
    %c0_i32_0 = arith.constant 0 : i32
    %c0_i32_1 = arith.constant 0 : i32
    return %c0_i32, %c0_i32_0 : i32, i32
  }
  func.func @transform_4(%arg0: i32) -> (i32, i32, i32) {
    %c0_i32 = arith.constant 0 : i32
    %c0_i32_0 = arith.constant 0 : i32
    %c0_i32_1 = arith.constant 0 : i32
    %c0_i32_2 = arith.constant 0 : i32
    return %c0_i32, %c0_i32_0, %c0_i32_1 : i32, i32, i32
  }
  func.func @transform_5(%arg0: i32) -> (i32, i32) {
    %c0_i32 = arith.constant 0 : i32
    %c0_i32_0 = arith.constant 0 : i32
    %c0_i32_1 = arith.constant 0 : i32
    return %c0_i32, %c0_i32_0 : i32, i32
  }
  func.func @transform_6(%arg0: i32) -> (i32, i32) {
    %c0_i32 = arith.constant 0 : i32
    %c0_i32_0 = arith.constant 0 : i32
    %c0_i32_1 = arith.constant 0 : i32
    return %c0_i32, %c0_i32_0 : i32, i32
  }
  func.func @transform_7(%arg0: i32) -> (i32, i32) {
    %c0_i32 = arith.constant 0 : i32
    %c0_i32_0 = arith.constant 0 : i32
    %c0_i32_1 = arith.constant 0 : i32
    return %c0_i32, %c0_i32_0 : i32, i32
  }
  func.func @transform_8(%arg0: i32) -> (i32, i32) {
    %c0_i32 = arith.constant 0 : i32
    %c0_i32_0 = arith.constant 0 : i32
    %c0_i32_1 = arith.constant 0 : i32
    return %c0_i32, %c0_i32_0 : i32, i32
  }
  func.func @transform_9(%arg0: i32) -> (i32, i32, i32) {
    %c0_i32 = arith.constant 0 : i32
    %c0_i32_0 = arith.constant 0 : i32
    %c0_i32_1 = arith.constant 0 : i32
    %c0_i32_2 = arith.constant 0 : i32
    return %c0_i32, %c0_i32_0, %c0_i32_1 : i32, i32, i32
  }
  func.func @transform_10(%arg0: i32) -> (i32, i32, i32) {
    %c0_i32 = arith.constant 0 : i32
    %c0_i32_0 = arith.constant 0 : i32
    %c0_i32_1 = arith.constant 0 : i32
    %c0_i32_2 = arith.constant 0 : i32
    return %c0_i32, %c0_i32_0, %c0_i32_1 : i32, i32, i32
  }
  func.func @transform_11(%arg0: i32) -> (i32, i32, i32) {
    %c0_i32 = arith.constant 0 : i32
    %c0_i32_0 = arith.constant 0 : i32
    %c0_i32_1 = arith.constant 0 : i32
    %c0_i32_2 = arith.constant 0 : i32
    return %c0_i32, %c0_i32_0, %c0_i32_1 : i32, i32, i32
  }
  func.func @transform_12(%arg0: i32) -> (i32, i32, i32) {
    %c0_i32 = arith.constant 0 : i32
    %c0_i32_0 = arith.constant 0 : i32
    %c0_i32_1 = arith.constant 0 : i32
    %c0_i32_2 = arith.constant 0 : i32
    return %c0_i32, %c0_i32_0, %c0_i32_1 : i32, i32, i32
  }
  func.func @transform_13(%arg0: i32) -> (i32, i32, i32) {
    %c0_i32 = arith.constant 0 : i32
    %c0_i32_0 = arith.constant 0 : i32
    %c0_i32_1 = arith.constant 0 : i32
    %c0_i32_2 = arith.constant 0 : i32
    return %c0_i32, %c0_i32_0, %c0_i32_1 : i32, i32, i32
  }
  func.func @transform_14(%arg0: i32) -> (i32, i32, i32) {
    %c0_i32 = arith.constant 0 : i32
    %c0_i32_0 = arith.constant 0 : i32
    %c0_i32_1 = arith.constant 0 : i32
    %c0_i32_2 = arith.constant 0 : i32
    return %c0_i32, %c0_i32_0, %c0_i32_1 : i32, i32, i32
  }
  func.func @transform_15(%arg0: i32) -> (i32, i32, i32) {
    %c0_i32 = arith.constant 0 : i32
    %c0_i32_0 = arith.constant 0 : i32
    %c0_i32_1 = arith.constant 0 : i32
    %c0_i32_2 = arith.constant 0 : i32
    return %c0_i32, %c0_i32_0, %c0_i32_1 : i32, i32, i32
  }
  func.func @transform_16(%arg0: i32) -> (i32, i32, i32) {
    %c0_i32 = arith.constant 0 : i32
    %c0_i32_0 = arith.constant 0 : i32
    %c0_i32_1 = arith.constant 0 : i32
    %c0_i32_2 = arith.constant 0 : i32
    return %c0_i32, %c0_i32_0, %c0_i32_1 : i32, i32, i32
  }
  func.func @transform_17(%arg0: i32) -> (i32, i32, i32) {
    %c0_i32 = arith.constant 0 : i32
    %c0_i32_0 = arith.constant 0 : i32
    %c0_i32_1 = arith.constant 0 : i32
    %c0_i32_2 = arith.constant 0 : i32
    return %c0_i32, %c0_i32_0, %c0_i32_1 : i32, i32, i32
  }
  func.func @transform_18(%arg0: i32) -> (i32, i32, i32) {
    %c0_i32 = arith.constant 0 : i32
    %c0_i32_0 = arith.constant 0 : i32
    %c0_i32_1 = arith.constant 0 : i32
    %c0_i32_2 = arith.constant 0 : i32
    return %c0_i32, %c0_i32_0, %c0_i32_1 : i32, i32, i32
  }
  func.func @transform_19(%arg0: i32) -> (i32, i32, i32) {
    %c0_i32 = arith.constant 0 : i32
    %c0_i32_0 = arith.constant 0 : i32
    %c0_i32_1 = arith.constant 0 : i32
    %c0_i32_2 = arith.constant 0 : i32
    return %c0_i32, %c0_i32_0, %c0_i32_1 : i32, i32, i32
  }
  func.func @transform_20(%arg0: i32) -> (i32, i32, i32) {
    %c0_i32 = arith.constant 0 : i32
    %c0_i32_0 = arith.constant 0 : i32
    %c0_i32_1 = arith.constant 0 : i32
    %c0_i32_2 = arith.constant 0 : i32
    return %c0_i32, %c0_i32_0, %c0_i32_1 : i32, i32, i32
  }
  func.func @transform_21(%arg0: i32) -> (i32, i32, i32) {
    %c0_i32 = arith.constant 0 : i32
    %c0_i32_0 = arith.constant 0 : i32
    %c0_i32_1 = arith.constant 0 : i32
    %c0_i32_2 = arith.constant 0 : i32
    return %c0_i32, %c0_i32_0, %c0_i32_1 : i32, i32, i32
  }
  func.func @transform_22(%arg0: i32) -> (i32, i32) {
    %c0_i32 = arith.constant 0 : i32
    %c0_i32_0 = arith.constant 0 : i32
    %c0_i32_1 = arith.constant 0 : i32
    return %c0_i32, %c0_i32_0 : i32, i32
  }
}

</mosaic_0001>

<llo_original>
// kernel: tile.6
$region0: #{tile.6}
  #allocation0 [shape = 's32[1]{0}', space=sflag, size = 0x4, scoped, tag = 'scoped memory for tile.6']
  %s0 = inlined_call_operand.vmem [shape: f32[16], index: 0, kind: input, shape index: {}]
  %s1 = inlined_call_operand.vmem [shape: f32[2,16], index: 1, kind: output, shape index: {}]
  // Predicated region
  $region2: #{tile.6} parent=0 // pred_check
    _
  $region3: #{tile.6} parent=0 // pred_check_branch
    %3 = sbr.rel (0) target = $region5
  $region4: #{tile.6} parent=0 // pred_region
    _
  $region5: #{tile.6} parent=0 // pred_fallthru
    _
  %v4 = vld [vmem:[%s0] ss:$0 sm:$0xff]
  %5 = vst [vmem:[%s1] sm:$0x3] %v4

// kernel: mul.35
$region0: #{mul.35}
  %s0 = inlined_call_operand.vmem [shape: f32[2,16], index: 0, kind: input, shape index: {}]
  %s1 = inlined_call_operand.vmem [shape: f32[32], index: 1, kind: output, shape index: {}]
  $region1: #{mul.35} parent=0
    #allocation0 [shape = 'u8[4096]{0}', space=vmem, size = 0x1000, scoped, tag = 'scoped mem for output reshape']
    #allocation1 [shape = 'u8[4096]{0}', space=vmem, size = 0x1000, scoped, tag = 'scoped mem for input reshape']
    %s3 = sshll.u32 1, 2
    %s4 = ssub.s32 %s3, 1
    %v5 = vld [vmem:[%s0] sm:%s4]
    %6 = vst [vmem:[#allocation1] sm:%s4] %v5
    %v7 = vld [vmem:[#allocation1] sm:$0x1]
    %vm8 = vcmask 130048
    %9 = vst.msk [vmem:[#allocation0] sm:$0x1] %vm8, %v7
    %s10 = scalar_lea.vmem [#allocation1], 1
    %v11 = vld [vmem:[%s10] sm:$0x1]
    %12 = vrot.lane.b32.xlu0 %v11, 16
    %v13 = vpop.permute.xlu0 %12
    %vm14 = vcmask 261248
    %15 = vst.msk [vmem:[#allocation0] sm:$0x1] %vm14, %v13
    %s17 = sshll.u32 1, 1
    %s18 = ssub.s32 %s17, 1
    %v20 = vld [vmem:[#allocation0] sm:%s18]
    %s21 = sshll.u32 1, 1
    %s22 = ssub.s32 %s21, 1
    %23 = vst [vmem:[%s1] sm:%s22] %v20

// kernel: gcnpose_forward.1
$region0: #{gcnpose_forward.1}
  #allocation0 [shape = 'u32[]', space=smem, size = 0x4, offset = 0x4, fixed_abs, tag = 'smem constant byte address 0x4 - core index']
  #allocation1 [shape = 'u32[144,128]{1,0:T(1,128)}', space=vmem, size = 0x12000, scoped, tag = 'internal scratch']
  %s0 = inlined_call_operand.vmem [shape: f32[32,2], index: 0, kind: input, shape index: {}]
  %s1 = inlined_call_operand.vmem [shape: f32[32,32], index: 1, kind: input, shape index: {}]
  %s2 = inlined_call_operand.vmem [shape: f32[32,32], index: 2, kind: input, shape index: {}]
  %s3 = inlined_call_operand.vmem [shape: f32[32,32], index: 3, kind: input, shape index: {}]
  %s4 = inlined_call_operand.vmem [shape: f32[2,32,32], index: 4, kind: input, shape index: {}]
  %s5 = inlined_call_operand.vmem [shape: f32[6,32], index: 5, kind: input, shape index: {}]
  %s6 = inlined_call_operand.vmem [shape: f32[1,32], index: 6, kind: input, shape index: {}]
  %s7 = inlined_call_operand.vmem [shape: f32[96,3], index: 7, kind: input, shape index: {}]
  %s8 = inlined_call_operand.vmem [shape: f32[1,3], index: 8, kind: input, shape index: {}]
  %s9 = inlined_call_operand.vmem [shape: f32[2,4,32], index: 9, kind: input, shape index: {}]
  %s10 = inlined_call_operand.vmem [shape: f32[2,32,96], index: 10, kind: input, shape index: {}]
  %s11 = inlined_call_operand.vmem [shape: f32[2,1,96], index: 11, kind: input, shape index: {}]
  %s12 = inlined_call_operand.vmem [shape: f32[2,32,32], index: 12, kind: input, shape index: {}]
  %s13 = inlined_call_operand.vmem [shape: f32[2,1,32], index: 13, kind: input, shape index: {}]
  %s14 = inlined_call_operand.vmem [shape: f32[2,32,64], index: 14, kind: input, shape index: {}]
  %s15 = inlined_call_operand.vmem [shape: f32[2,1,64], index: 15, kind: input, shape index: {}]
  %s16 = inlined_call_operand.vmem [shape: f32[2,64,32], index: 16, kind: input, shape index: {}]
  %s17 = inlined_call_operand.vmem [shape: f32[2,1,32], index: 17, kind: input, shape index: {}]
  %s18 = inlined_call_operand.vmem [shape: f32[2,96,32], index: 18, kind: input, shape index: {}]
  %s19 = inlined_call_operand.vmem [shape: f32[2,1,32], index: 19, kind: input, shape index: {}]
  %s20 = inlined_call_operand.vmem [shape: f32[2,96,32], index: 20, kind: input, shape index: {}]
  %s21 = inlined_call_operand.vmem [shape: f32[2,1,32], index: 21, kind: input, shape index: {}]
  %s22 = inlined_call_operand.vmem [shape: f32[32,3], index: 22, kind: output, shape index: {}]
  %s23 = sld [smem:[#allocation0]]
  $region98: #{gcnpose_forward.1} parent=0
    _
  %s25 = ssub.s32 1, %s23
  %s26 = scalar_select 0, %s25, %s23
  // Predicated region
  $region2: #{gcnpose_forward.1} parent=0 // pred_check
    _
  $region3: #{gcnpose_forward.1} parent=0 // pred_check_branch
    %28 = sbr.rel (0) target = $region5
  $region4: #{gcnpose_forward.1} parent=0 // pred_region
    _
  $region5: #{gcnpose_forward.1} parent=0 // pred_fallthru
    _
  // Predicated region
  $region6: #{gcnpose_forward.1} parent=0 // pred_check
    _
  $region7: #{gcnpose_forward.1} parent=0 // pred_check_branch
    %30 = sbr.rel (0) target = $region9
  $region8: #{gcnpose_forward.1} parent=0 // pred_region
    _
  $region9: #{gcnpose_forward.1} parent=0 // pred_fallthru
    _
  // Predicated region
  $region10: #{gcnpose_forward.1} parent=0 // pred_check
    _
  $region11: #{gcnpose_forward.1} parent=0 // pred_check_branch
    %32 = sbr.rel (0) target = $region13
  $region12: #{gcnpose_forward.1} parent=0 // pred_region
    _
  $region13: #{gcnpose_forward.1} parent=0 // pred_fallthru
    _
  // Predicated region
  $region14: #{gcnpose_forward.1} parent=0 // pred_check
    _
  $region15: #{gcnpose_forward.1} parent=0 // pred_check_branch
    %34 = sbr.rel (0) target = $region17
  $region16: #{gcnpose_forward.1} parent=0 // pred_region
    _
  $region17: #{gcnpose_forward.1} parent=0 // pred_fallthru
    _
  // Predicated region
  $region18: #{gcnpose_forward.1} parent=0 // pred_check
    _
  $region19: #{gcnpose_forward.1} parent=0 // pred_check_branch
    %36 = sbr.rel (0) target = $region21
  $region20: #{gcnpose_forward.1} parent=0 // pred_region
    _
  $region21: #{gcnpose_forward.1} parent=0 // pred_fallthru
    _
  // Predicated region
  $region22: #{gcnpose_forward.1} parent=0 // pred_check
    _
  $region23: #{gcnpose_forward.1} parent=0 // pred_check_branch
    %38 = sbr.rel (0) target = $region25
  $region24: #{gcnpose_forward.1} parent=0 // pred_region
    _
  $region25: #{gcnpose_forward.1} parent=0 // pred_fallthru
    _
  // Predicated region
  $region26: #{gcnpose_forward.1} parent=0 // pred_check
    _
  $region27: #{gcnpose_forward.1} parent=0 // pred_check_branch
    %40 = sbr.rel (0) target = $region29
  $region28: #{gcnpose_forward.1} parent=0 // pred_region
    _
  $region29: #{gcnpose_forward.1} parent=0 // pred_fallthru
    _
  // Predicated region
  $region30: #{gcnpose_forward.1} parent=0 // pred_check
    _
  $region31: #{gcnpose_forward.1} parent=0 // pred_check_branch
    %42 = sbr.rel (0) target = $region33
  $region32: #{gcnpose_forward.1} parent=0 // pred_region
    _
  $region33: #{gcnpose_forward.1} parent=0 // pred_fallthru
    _
  // Predicated region
  $region34: #{gcnpose_forward.1} parent=0 // pred_check
    _
  $region35: #{gcnpose_forward.1} parent=0 // pred_check_branch
    %44 = sbr.rel (0) target = $region37
  $region36: #{gcnpose_forward.1} parent=0 // pred_region
    _
  $region37: #{gcnpose_forward.1} parent=0 // pred_fallthru
    _
  // Predicated region
  $region38: #{gcnpose_forward.1} parent=0 // pred_check
    _
  $region39: #{gcnpose_forward.1} parent=0 // pred_check_branch
    %46 = sbr.rel (0) target = $region41
  $region40: #{gcnpose_forward.1} parent=0 // pred_region
    _
  $region41: #{gcnpose_forward.1} parent=0 // pred_fallthru
    _
  // Predicated region
  $region42: #{gcnpose_forward.1} parent=0 // pred_check
    _
  $region43: #{gcnpose_forward.1} parent=0 // pred_check_branch
    %48 = sbr.rel (0) target = $region45
  $region44: #{gcnpose_forward.1} parent=0 // pred_region
    _
  $region45: #{gcnpose_forward.1} parent=0 // pred_fallthru
    _
  // Predicated region
  $region46: #{gcnpose_forward.1} parent=0 // pred_check
    _
  $region47: #{gcnpose_forward.1} parent=0 // pred_check_branch
    %50 = sbr.rel (0) target = $region49
  $region48: #{gcnpose_forward.1} parent=0 // pred_region
    _
  $region49: #{gcnpose_forward.1} parent=0 // pred_fallthru
    _
  // Predicated region
  $region50: #{gcnpose_forward.1} parent=0 // pred_check
    _
  $region51: #{gcnpose_forward.1} parent=0 // pred_check_branch
    %52 = sbr.rel (0) target = $region53
  $region52: #{gcnpose_forward.1} parent=0 // pred_region
    _
  $region53: #{gcnpose_forward.1} parent=0 // pred_fallthru
    _
  // Predicated region
  $region54: #{gcnpose_forward.1} parent=0 // pred_check
    _
  $region55: #{gcnpose_forward.1} parent=0 // pred_check_branch
    %54 = sbr.rel (0) target = $region57
  $region56: #{gcnpose_forward.1} parent=0 // pred_region
    _
  $region57: #{gcnpose_forward.1} parent=0 // pred_fallthru
    _
  // Predicated region
  $region58: #{gcnpose_forward.1} parent=0 // pred_check
    _
  $region59: #{gcnpose_forward.1} parent=0 // pred_check_branch
    %56 = sbr.rel (0) target = $region61
  $region60: #{gcnpose_forward.1} parent=0 // pred_region
    _
  $region61: #{gcnpose_forward.1} parent=0 // pred_fallthru
    _
  // Predicated region
  $region62: #{gcnpose_forward.1} parent=0 // pred_check
    _
  $region63: #{gcnpose_forward.1} parent=0 // pred_check_branch
    %58 = sbr.rel (0) target = $region65
  $region64: #{gcnpose_forward.1} parent=0 // pred_region
    _
  $region65: #{gcnpose_forward.1} parent=0 // pred_fallthru
    _
  // Predicated region
  $region66: #{gcnpose_forward.1} parent=0 // pred_check
    _
  $region67: #{gcnpose_forward.1} parent=0 // pred_check_branch
    %60 = sbr.rel (0) target = $region69
  $region68: #{gcnpose_forward.1} parent=0 // pred_region
    _
  $region69: #{gcnpose_forward.1} parent=0 // pred_fallthru
    _
  // Predicated region
  $region70: #{gcnpose_forward.1} parent=0 // pred_check
    _
  $region71: #{gcnpose_forward.1} parent=0 // pred_check_branch
    %62 = sbr.rel (0) target = $region73
  $region72: #{gcnpose_forward.1} parent=0 // pred_region
    _
  $region73: #{gcnpose_forward.1} parent=0 // pred_fallthru
    _
  // Predicated region
  $region74: #{gcnpose_forward.1} parent=0 // pred_check
    _
  $region75: #{gcnpose_forward.1} parent=0 // pred_check_branch
    %64 = sbr.rel (0) target = $region77
  $region76: #{gcnpose_forward.1} parent=0 // pred_region
    _
  $region77: #{gcnpose_forward.1} parent=0 // pred_fallthru
    _
  // Predicated region
  $region78: #{gcnpose_forward.1} parent=0 // pred_check
    _
  $region79: #{gcnpose_forward.1} parent=0 // pred_check_branch
    %66 = sbr.rel (0) target = $region81
  $region80: #{gcnpose_forward.1} parent=0 // pred_region
    _
  $region81: #{gcnpose_forward.1} parent=0 // pred_fallthru
    _
  // Predicated region
  $region82: #{gcnpose_forward.1} parent=0 // pred_check
    _
  $region83: #{gcnpose_forward.1} parent=0 // pred_check_branch
    %68 = sbr.rel (0) target = $region85
  $region84: #{gcnpose_forward.1} parent=0 // pred_region
    _
  $region85: #{gcnpose_forward.1} parent=0 // pred_fallthru
    _
  // Predicated region
  $region86: #{gcnpose_forward.1} parent=0 // pred_check
    _
  $region87: #{gcnpose_forward.1} parent=0 // pred_check_branch
    %70 = sbr.rel (0) target = $region89
  $region88: #{gcnpose_forward.1} parent=0 // pred_region
    _
  $region89: #{gcnpose_forward.1} parent=0 // pred_fallthru
    _
  %v71 = vld [vmem:[%s1] sm:$0xff]
  %v72 = vld [vmem:[%s1 + $0x8] sm:$0xff]
  %v73 = vld [vmem:[%s1 + $0x10] sm:$0xff]
  %v74 = vld [vmem:[%s1 + $0x18] sm:$0xff]
  %v75 = vld [vmem:[%s2] sm:$0xff]
  %v76 = vld [vmem:[%s2 + $0x8] sm:$0xff]
  %v77 = vld [vmem:[%s2 + $0x10] sm:$0xff]
  %v78 = vld [vmem:[%s2 + $0x18] sm:$0xff]
  %v79 = vld [vmem:[%s3] sm:$0xff]
  %v80 = vld [vmem:[%s3 + $0x8] sm:$0xff]
  %v81 = vld [vmem:[%s3 + $0x10] sm:$0xff]
  %v82 = vld [vmem:[%s3 + $0x18] sm:$0xff]
  %v83 = vld [vmem:[%s0] sm:$0xff]
  %v84 = vld [vmem:[%s0 + $0x8] sm:$0xff]
  %v85 = vld [vmem:[%s0 + $0x10] sm:$0xff]
  %v86 = vld [vmem:[%s0 + $0x18] sm:$0xff]
  %v87 = vld [vmem:[%s5] sm:$0x3f]
  %v88 = vld [vmem:[%s6] sm:$0x1]
  %vm89 = vcmask 261120
  %v91 = vsel %vm89, %v71, 0
  %v94 = vsel %vm89, %v72, 0
  %v97 = vsel %vm89, %v73, 0
  %v100 = vsel %vm89, %v74, 0
  %102 = vmatprep.subr.mxu0 0.0
  %103 = vmatpush1.msra.mxu0 0.0
  %104 = vmatprep.subr.mxu0 0.0
  %105 = vmatpush1.msra.mxu0 0.0
  %106 = vmatprep.subr.mxu0 0.0
  %107 = vmatpush1.msra.mxu0 0.0
  %108 = vmatprep.subr.mxu0 0.0
  %109 = vmatpush1.msra.mxu0 0.0
  %110 = vmatprep.subr.mxu0 0.0
  %111 = vmatpush1.msra.mxu0 0.0
  %112 = vmatprep.subr.mxu0 0.0
  %113 = vmatpush1.msra.mxu0 0.0
  %114 = vmatprep.subr.mxu0 0.0
  %115 = vmatpush1.msra.mxu0 0.0
  %116 = vmatprep.subr.mxu0 0.0
  %117 = vmatpush1.msra.mxu0 0.0
  %118 = vmatprep.subr.mxu0 0.0
  %119 = vmatpush1.msra.mxu0 0.0
  %120 = vmatprep.subr.mxu0 0.0
  %121 = vmatpush1.msra.mxu0 0.0
  %122 = vmatprep.subr.mxu0 0.0
  %123 = vmatpush1.msra.mxu0 0.0
  %124 = vmatprep.subr.mxu0 0.0
  %125 = vmatpush1.msra.mxu0 0.0
  %126 = vmatprep.subr.mxu0 0.0
  %127 = vmatpush1.msra.mxu0 %v86
  %128 = vmatprep.subr.mxu0 0.0
  %129 = vmatpush1.msra.mxu0 %v85
  %130 = vmatprep.subr.mxu0 0.0
  %131 = vmatpush1.msra.mxu0 %v84
  %132 = vmatprep.subr.mxu0 0.0
  %133 = vmatpush1.msra.mxu0 %v83
  %134 = vmatprep.subr.mxu0 0.0
  %135 = vmatpush2.msra.mxu0 0.0
  %136 = vmatprep.subr.mxu0 0.0
  %137 = vmatpush2.msra.mxu0 0.0
  %138 = vmatprep.subr.mxu0 0.0
  %139 = vmatpush2.msra.mxu0 0.0
  %140 = vmatprep.subr.mxu0 0.0
  %141 = vmatpush2.msra.mxu0 0.0
  %142 = vmatprep.subr.mxu0 0.0
  %143 = vmatpush2.msra.mxu0 0.0
  %144 = vmatprep.subr.mxu0 0.0
  %145 = vmatpush2.msra.mxu0 0.0
  %146 = vmatprep.subr.mxu0 0.0
  %147 = vmatpush2.msra.mxu0 0.0
  %148 = vmatprep.subr.mxu0 0.0
  %149 = vmatpush2.msra.mxu0 0.0
  %150 = vmatprep.subr.mxu0 0.0
  %151 = vmatpush2.msra.mxu0 0.0
  %152 = vmatprep.subr.mxu0 0.0
  %153 = vmatpush2.msra.mxu0 0.0
  %154 = vmatprep.subr.mxu0 0.0
  %155 = vmatpush2.msra.mxu0 0.0
  %156 = vmatprep.subr.mxu0 0.0
  %157 = vmatpush2.msra.mxu0 0.0
  %158 = vmatprep.subr.mxu0 0.0
  %159 = vmatpush2.msra.mxu0 0.0
  %160 = vmatprep.subr.mxu0 0.0
  %161 = vmatpush2.msra.mxu0 0.0
  %162 = vmatprep.subr.mxu0 0.0
  %163 = vmatpush2.msra.mxu0 0.0
  %164 = vmatprep.subr.mxu0 0.0
  %165 = vmatpush2.msra.mxu0 0.0
  %166 = vmatprep.mubr.f32.mxu0 0.0
  %167 = vmatmul.mubr.f32.gmra.mxu0 %v91
  %v168 = vpop.f32.mrf.mxu0
  %v169 = vadd.f32 0.0, %v168
  %v170 = vpop.f32.mrf.mxu0
  %171 = vmatprep.mubr.f32.mxu0 0.0
  %172 = vmatmul.mubr.f32.gmra.mxu0 %v94
  %v173 = vpop.f32.mrf.mxu0
  %v174 = vadd.f32 0.0, %v173
  %v175 = vpop.f32.mrf.mxu0
  %176 = vmatprep.mubr.f32.mxu0 0.0
  %177 = vmatmul.mubr.f32.gmra.mxu0 %v97
  %v178 = vpop.f32.mrf.mxu0
  %v179 = vadd.f32 0.0, %v178
  %v180 = vpop.f32.mrf.mxu0
  %181 = vmatprep.mubr.f32.mxu0 0.0
  %182 = vmatmul.mubr.f32.gmra.mxu0 %v100
  %v183 = vpop.f32.mrf.mxu0
  %v184 = vadd.f32 0.0, %v183
  %v185 = vpop.f32.mrf.mxu0
  %186 = vdwg.mxu0
  %v188 = vsel %vm89, %v75, 0
  %v191 = vsel %vm89, %v76, 0
  %v194 = vsel %vm89, %v77, 0
  %v197 = vsel %vm89, %v78, 0
  %199 = vmatprep.subr.mxu0 0.0
  %200 = vmatpush1.msra.mxu0 0.0
  %201 = vmatprep.subr.mxu0 0.0
  %202 = vmatpush1.msra.mxu0 0.0
  %203 = vmatprep.subr.mxu0 0.0
  %204 = vmatpush1.msra.mxu0 0.0
  %205 = vmatprep.subr.mxu0 0.0
  %206 = vmatpush1.msra.mxu0 0.0
  %207 = vmatprep.subr.mxu0 0.0
  %208 = vmatpush1.msra.mxu0 0.0
  %209 = vmatprep.subr.mxu0 0.0
  %210 = vmatpush1.msra.mxu0 0.0
  %211 = vmatprep.subr.mxu0 0.0
  %212 = vmatpush1.msra.mxu0 0.0
  %213 = vmatprep.subr.mxu0 0.0
  %214 = vmatpush1.msra.mxu0 0.0
  %215 = vmatprep.subr.mxu0 0.0
  %216 = vmatpush1.msra.mxu0 0.0
  %217 = vmatprep.subr.mxu0 0.0
  %218 = vmatpush1.msra.mxu0 0.0
  %219 = vmatprep.subr.mxu0 0.0
  %220 = vmatpush1.msra.mxu0 0.0
  %221 = vmatprep.subr.mxu0 0.0
  %222 = vmatpush1.msra.mxu0 0.0
  %223 = vmatprep.subr.mxu0 0.0
  %224 = vmatpush1.msra.mxu0 %v86
  %225 = vmatprep.subr.mxu0 0.0
  %226 = vmatpush1.msra.mxu0 %v85
  %227 = vmatprep.subr.mxu0 0.0
  %228 = vmatpush1.msra.mxu0 %v84
  %229 = vmatprep.subr.mxu0 0.0
  %230 = vmatpush1.msra.mxu0 %v83
  %231 = vmatprep.subr.mxu0 0.0
  %232 = vmatpush2.msra.mxu0 0.0
  %233 = vmatprep.subr.mxu0 0.0
  %234 = vmatpush2.msra.mxu0 0.0
  %235 = vmatprep.subr.mxu0 0.0
  %236 = vmatpush2.msra.mxu0 0.0
  %237 = vmatprep.subr.mxu0 0.0
  %238 = vmatpush2.msra.mxu0 0.0
  %239 = vmatprep.subr.mxu0 0.0
  %240 = vmatpush2.msra.mxu0 0.0
  %241 = vmatprep.subr.mxu0 0.0
  %242 = vmatpush2.msra.mxu0 0.0
  %243 = vmatprep.subr.mxu0 0.0
  %244 = vmatpush2.msra.mxu0 0.0
  %245 = vmatprep.subr.mxu0 0.0
  %246 = vmatpush2.msra.mxu0 0.0
  %247 = vmatprep.subr.mxu0 0.0
  %248 = vmatpush2.msra.mxu0 0.0
  %249 = vmatprep.subr.mxu0 0.0
  %250 = vmatpush2.msra.mxu0 0.0
  %251 = vmatprep.subr.mxu0 0.0
  %252 = vmatpush2.msra.mxu0 0.0
  %253 = vmatprep.subr.mxu0 0.0
  %254 = vmatpush2.msra.mxu0 0.0
  %255 = vmatprep.subr.mxu0 0.0
  %256 = vmatpush2.msra.mxu0 0.0
  %257 = vmatprep.subr.mxu0 0.0
  %258 = vmatpush2.msra.mxu0 0.0
  %259 = vmatprep.subr.mxu0 0.0
  %260 = vmatpush2.msra.mxu0 0.0
  %261 = vmatprep.subr.mxu0 0.0
  %262 = vmatpush2.msra.mxu0 0.0
  %263 = vmatprep.mubr.f32.mxu0 0.0
  %264 = vmatmul.mubr.f32.gmra.mxu0 %v188
  %v265 = vpop.f32.mrf.mxu0
  %v266 = vadd.f32 0.0, %v265
  %v267 = vpop.f32.mrf.mxu0
  %268 = vmatprep.mubr.f32.mxu0 0.0
  %269 = vmatmul.mubr.f32.gmra.mxu0 %v191
  %v270 = vpop.f32.mrf.mxu0
  %v271 = vadd.f32 0.0, %v270
  %v272 = vpop.f32.mrf.mxu0
  %273 = vmatprep.mubr.f32.mxu0 0.0
  %274 = vmatmul.mubr.f32.gmra.mxu0 %v194
  %v275 = vpop.f32.mrf.mxu0
  %v276 = vadd.f32 0.0, %v275
  %v277 = vpop.f32.mrf.mxu0
  %278 = vmatprep.mubr.f32.mxu0 0.0
  %279 = vmatmul.mubr.f32.gmra.mxu0 %v197
  %v280 = vpop.f32.mrf.mxu0
  %v281 = vadd.f32 0.0, %v280
  %v282 = vpop.f32.mrf.mxu0
  %283 = vdwg.mxu0
  %288 = vrot.lane.b32.xlu0 %v169, 2
  %v289 = vpop.permute.xlu0 %288
  %290 = vrot.lane.b32.xlu0 %v174, 2
  %v291 = vpop.permute.xlu0 %290
  %292 = vrot.lane.b32.xlu0 %v179, 2
  %v293 = vpop.permute.xlu0 %292
  %294 = vrot.lane.b32.xlu0 %v184, 2
  %v295 = vpop.permute.xlu0 %294
  %304 = vrot.lane.b32.xlu0 %v266, 4
  %v305 = vpop.permute.xlu0 %304
  %306 = vrot.lane.b32.xlu0 %v271, 4
  %v307 = vpop.permute.xlu0 %306
  %308 = vrot.lane.b32.xlu0 %v276, 4
  %v309 = vpop.permute.xlu0 %308
  %310 = vrot.lane.b32.xlu0 %v281, 4
  %v311 = vpop.permute.xlu0 %310
  %vm316 = vcmask 15360
  %v317 = vsel %vm316, %v83, %v289
  %v318 = vsel %vm316, %v84, %v291
  %v319 = vsel %vm316, %v85, %v293
  %v320 = vsel %vm316, %v86, %v295
  %vm321 = vcmask 31744
  %v322 = vsel %vm321, %v317, %v305
  %v323 = vsel %vm321, %v318, %v307
  %v324 = vsel %vm321, %v319, %v309
  %v325 = vsel %vm321, %v320, %v311
  %v327 = vlaneseq
  %v328 = vshrl.u32 %v327, 7
  %v329 = vsub.s32 0, %v328
  %v330 = vrot.slane %v88, %v329
  %vm332 = vcmask 48128
  %v334 = vsel %vm332, %v322, 0
  %v337 = vsel %vm332, %v323, 0
  %v340 = vsel %vm332, %v324, 0
  %v343 = vsel %vm332, %v325, 0
  %vm345 = vcmask 1045504
  %v347 = vsel %vm345, %v87, 0
  %349 = vmatprep.subr.mxu0 0.0
  %350 = vmatpush1.msra.mxu0 0.0
  %351 = vmatprep.subr.mxu0 0.0
  %352 = vmatpush1.msra.mxu0 0.0
  %353 = vmatprep.subr.mxu0 0.0
  %354 = vmatpush1.msra.mxu0 0.0
  %355 = vmatprep.subr.mxu0 0.0
  %356 = vmatpush1.msra.mxu0 0.0
  %357 = vmatprep.subr.mxu0 0.0
  %358 = vmatpush1.msra.mxu0 0.0
  %359 = vmatprep.subr.mxu0 0.0
  %360 = vmatpush1.msra.mxu0 0.0
  %361 = vmatprep.subr.mxu0 0.0
  %362 = vmatpush1.msra.mxu0 0.0
  %363 = vmatprep.subr.mxu0 0.0
  %364 = vmatpush1.msra.mxu0 0.0
  %365 = vmatprep.subr.mxu0 0.0
  %366 = vmatpush1.msra.mxu0 0.0
  %367 = vmatprep.subr.mxu0 0.0
  %368 = vmatpush1.msra.mxu0 0.0
  %369 = vmatprep.subr.mxu0 0.0
  %370 = vmatpush1.msra.mxu0 0.0
  %371 = vmatprep.subr.mxu0 0.0
  %372 = vmatpush1.msra.mxu0 0.0
  %373 = vmatprep.subr.mxu0 0.0
  %374 = vmatpush1.msra.mxu0 0.0
  %375 = vmatprep.subr.mxu0 0.0
  %376 = vmatpush1.msra.mxu0 0.0
  %377 = vmatprep.subr.mxu0 0.0
  %378 = vmatpush1.msra.mxu0 0.0
  %379 = vmatprep.subr.mxu0 0.0
  %380 = vmatpush1.msra.mxu0 %v347
  %381 = vmatprep.subr.mxu0 0.0
  %382 = vmatpush2.msra.mxu0 0.0
  %383 = vmatprep.subr.mxu0 0.0
  %384 = vmatpush2.msra.mxu0 0.0
  %385 = vmatprep.subr.mxu0 0.0
  %386 = vmatpush2.msra.mxu0 0.0
  %387 = vmatprep.subr.mxu0 0.0
  %388 = vmatpush2.msra.mxu0 0.0
  %389 = vmatprep.subr.mxu0 0.0
  %390 = vmatpush2.msra.mxu0 0.0
  %391 = vmatprep.subr.mxu0 0.0
  %392 = vmatpush2.msra.mxu0 0.0
  %393 = vmatprep.subr.mxu0 0.0
  %394 = vmatpush2.msra.mxu0 0.0
  %395 = vmatprep.subr.mxu0 0.0
  %396 = vmatpush2.msra.mxu0 0.0
  %397 = vmatprep.subr.mxu0 0.0
  %398 = vmatpush2.msra.mxu0 0.0
  %399 = vmatprep.subr.mxu0 0.0
  %400 = vmatpush2.msra.mxu0 0.0
  %401 = vmatprep.subr.mxu0 0.0
  %402 = vmatpush2.msra.mxu0 0.0
  %403 = vmatprep.subr.mxu0 0.0
  %404 = vmatpush2.msra.mxu0 0.0
  %405 = vmatprep.subr.mxu0 0.0
  %406 = vmatpush2.msra.mxu0 0.0
  %407 = vmatprep.subr.mxu0 0.0
  %408 = vmatpush2.msra.mxu0 0.0
  %409 = vmatprep.subr.mxu0 0.0
  %410 = vmatpush2.msra.mxu0 0.0
  %411 = vmatprep.subr.mxu0 0.0
  %412 = vmatpush2.msra.mxu0 0.0
  %413 = vmatprep.mubr.f32.mxu0 0.0
  %414 = vmatmul.mubr.f32.gmra.mxu0 %v334
  %v415 = vpop.f32.mrf.mxu0
  %v416 = vadd.f32 %v330, %v415
  %v417 = vpop.f32.mrf.mxu0
  %418 = vmatprep.mubr.f32.mxu0 0.0
  %419 = vmatmul.mubr.f32.gmra.mxu0 %v337
  %v420 = vpop.f32.mrf.mxu0
  %v421 = vadd.f32 %v330, %v420
  %v422 = vpop.f32.mrf.mxu0
  %423 = vmatprep.mubr.f32.mxu0 0.0
  %424 = vmatmul.mubr.f32.gmra.mxu0 %v340
  %v425 = vpop.f32.mrf.mxu0
  %v426 = vadd.f32 %v330, %v425
  %v427 = vpop.f32.mrf.mxu0
  %428 = vmatprep.mubr.f32.mxu0 0.0
  %429 = vmatmul.mubr.f32.gmra.mxu0 %v343
  %v430 = vpop.f32.mrf.mxu0
  %v431 = vadd.f32 %v330, %v430
  %v432 = vpop.f32.mrf.mxu0
  %433 = vdwg.mxu0
  %v434 = vld [vmem:[%s9] sm:$0xf]
  %v435 = vld [vmem:[%s12] sm:$0xff]
  %v436 = vld [vmem:[%s12 + $0x8] sm:$0xff]
  %v437 = vld [vmem:[%s12 + $0x10] sm:$0xff]
  %v438 = vld [vmem:[%s12 + $0x18] sm:$0xff]
  %v439 = vld [vmem:[%s4] sm:$0xff]
  %v440 = vld [vmem:[%s4 + $0x8] sm:$0xff]
  %v441 = vld [vmem:[%s4 + $0x10] sm:$0xff]
  %v442 = vld [vmem:[%s4 + $0x18] sm:$0xff]
  %v443 = vsel %vm89, %v416, 0.0
  %444 = vadd.xlane.f32.xlu0 %v443
  %v445 = vpop.xlane.xlu0 %444
  %v446 = vsel %vm89, %v421, 0.0
  %447 = vadd.xlane.f32.xlu0 %v446
  %v448 = vpop.xlane.xlu0 %447
  %v449 = vsel %vm89, %v426, 0.0
  %450 = vadd.xlane.f32.xlu0 %v449
  %v451 = vpop.xlane.xlu0 %450
  %v452 = vsel %vm89, %v431, 0.0
  %453 = vadd.xlane.f32.xlu0 %v452
  %v454 = vpop.xlane.xlu0 %453
  %v455 = vrcp.pop 32.0
  %v456 = vmul.f32 %v445, %v455
  %v457 = vmul.f32 %v448, %v455
  %v458 = vmul.f32 %v451, %v455
  %v459 = vmul.f32 %v454, %v455
  %v460 = vsub.f32 %v416, %v456
  %v461 = vsub.f32 %v421, %v457
  %v462 = vsub.f32 %v426, %v458
  %v463 = vsub.f32 %v431, %v459
  %v464 = vmul.f32 %v460, %v460
  %v465 = vmul.f32 %v461, %v461
  %v466 = vmul.f32 %v462, %v462
  %v467 = vmul.f32 %v463, %v463
  %v468 = vsel %vm89, %v464, 0.0
  %469 = vadd.xlane.f32.xlu0 %v468
  %v470 = vpop.xlane.xlu0 %469
  %v471 = vsel %vm89, %v465, 0.0
  %472 = vadd.xlane.f32.xlu0 %v471
  %v473 = vpop.xlane.xlu0 %472
  %v474 = vsel %vm89, %v466, 0.0
  %475 = vadd.xlane.f32.xlu0 %v474
  %v476 = vpop.xlane.xlu0 %475
  %v477 = vsel %vm89, %v467, 0.0
  %478 = vadd.xlane.f32.xlu0 %v477
  %v479 = vpop.xlane.xlu0 %478
  %v480 = vrcp.pop 31.0
  %v481 = vmul.f32 %v470, %v480
  %v482 = vmul.f32 %v473, %v480
  %v483 = vmul.f32 %v476, %v480
  %v484 = vmul.f32 %v479, %v480
  %v485 = vlaneseq
  %v486 = vshrl.u32 %v485, 7
  %v487 = vsub.s32 0, %v486
  %v488 = vrot.slane %v434, %v487
  %v489 = vmul.f32 %v488, %v460
  %v490 = vmul.f32 %v488, %v461
  %v491 = vmul.f32 %v488, %v462
  %v492 = vmul.f32 %v488, %v463
  %v493 = vrsqrt.pop %v481
  %v494 = vmul.f32 %v481, %v493
  %vm495 = vcmp.eq.f32.partialorder %v481, inf
  %v496 = vsel %vm495, %v481, %v494
  %vm497 = vcmp.eq.f32.partialorder %v481, 0.0
  %v498 = vand.u32 %v481, 2147483648
  %v499 = vsel %vm497, %v498, %v496
  %v500 = vrsqrt.pop %v482
  %v501 = vmul.f32 %v482, %v500
  %vm502 = vcmp.eq.f32.partialorder %v482, inf
  %v503 = vsel %vm502, %v482, %v501
  %vm504 = vcmp.eq.f32.partialorder %v482, 0.0
  %v505 = vand.u32 %v482, 2147483648
  %v506 = vsel %vm504, %v505, %v503
  %v507 = vrsqrt.pop %v483
  %v508 = vmul.f32 %v483, %v507
  %vm509 = vcmp.eq.f32.partialorder %v483, inf
  %v510 = vsel %vm509, %v483, %v508
  %vm511 = vcmp.eq.f32.partialorder %v483, 0.0
  %v512 = vand.u32 %v483, 2147483648
  %v513 = vsel %vm511, %v512, %v510
  %v514 = vrsqrt.pop %v484
  %v515 = vmul.f32 %v484, %v514
  %vm516 = vcmp.eq.f32.partialorder %v484, inf
  %v517 = vsel %vm516, %v484, %v515
  %vm518 = vcmp.eq.f32.partialorder %v484, 0.0
  %v519 = vand.u32 %v484, 2147483648
  %v520 = vsel %vm518, %v519, %v517
  %v521 = vadd.f32 %v499, 1e-06
  %v522 = vadd.f32 %v506, 1e-06
  %v523 = vadd.f32 %v513, 1e-06
  %v524 = vadd.f32 %v520, 1e-06
  %v525 = vrcp.pop %v521
  %v526 = vmul.f32 %v489, %v525
  %v527 = vrcp.pop %v522
  %v528 = vmul.f32 %v490, %v527
  %v529 = vrcp.pop %v523
  %v530 = vmul.f32 %v491, %v529
  %v531 = vrcp.pop %v524
  %v532 = vmul.f32 %v492, %v531
  %v533 = vlaneseq
  %v534 = vshrl.u32 %v533, 7
  %v535 = vsub.s32 1, %v534
  %v536 = vrot.slane %v434, %v535
  %v537 = vadd.f32 %v526, %v536
  %v538 = vadd.f32 %v528, %v536
  %v539 = vadd.f32 %v530, %v536
  %v540 = vadd.f32 %v532, %v536
  %v541 = vld [vmem:[%s10] sm:$0xff]
  %v542 = vld [vmem:[%s10 + $0x8] sm:$0xff]
  %v543 = vld [vmem:[%s10 + $0x10] sm:$0xff]
  %v544 = vld [vmem:[%s10 + $0x18] sm:$0xff]
  %v545 = vld [vmem:[%s11] sm:$0x1]
  %v547 = vlaneseq
  %v548 = vshrl.u32 %v547, 7
  %v549 = vsub.s32 0, %v548
  %v550 = vrot.slane %v545, %v549
  %v553 = vsel %vm89, %v537, 0
  %v556 = vsel %vm89, %v538, 0
  %v559 = vsel %vm89, %v539, 0
  %v562 = vsel %vm89, %v540, 0
  %564 = vmatprep.subr.mxu0 0.0
  %565 = vmatpush1.msra.mxu0 0.0
  %566 = vmatprep.subr.mxu0 0.0
  %567 = vmatpush1.msra.mxu0 0.0
  %568 = vmatprep.subr.mxu0 0.0
  %569 = vmatpush1.msra.mxu0 0.0
  %570 = vmatprep.subr.mxu0 0.0
  %571 = vmatpush1.msra.mxu0 0.0
  %572 = vmatprep.subr.mxu0 0.0
  %573 = vmatpush1.msra.mxu0 0.0
  %574 = vmatprep.subr.mxu0 0.0
  %575 = vmatpush1.msra.mxu0 0.0
  %576 = vmatprep.subr.mxu0 0.0
  %577 = vmatpush1.msra.mxu0 0.0
  %578 = vmatprep.subr.mxu0 0.0
  %579 = vmatpush1.msra.mxu0 0.0
  %580 = vmatprep.subr.mxu0 0.0
  %581 = vmatpush1.msra.mxu0 0.0
  %582 = vmatprep.subr.mxu0 0.0
  %583 = vmatpush1.msra.mxu0 0.0
  %584 = vmatprep.subr.mxu0 0.0
  %585 = vmatpush1.msra.mxu0 0.0
  %586 = vmatprep.subr.mxu0 0.0
  %587 = vmatpush1.msra.mxu0 0.0
  %588 = vmatprep.subr.mxu0 0.0
  %589 = vmatpush1.msra.mxu0 %v544
  %590 = vmatprep.subr.mxu0 0.0
  %591 = vmatpush1.msra.mxu0 %v543
  %592 = vmatprep.subr.mxu0 0.0
  %593 = vmatpush1.msra.mxu0 %v542
  %594 = vmatprep.subr.mxu0 0.0
  %595 = vmatpush1.msra.mxu0 %v541
  %596 = vmatprep.subr.mxu0 0.0
  %597 = vmatpush2.msra.mxu0 0.0
  %598 = vmatprep.subr.mxu0 0.0
  %599 = vmatpush2.msra.mxu0 0.0
  %600 = vmatprep.subr.mxu0 0.0
  %601 = vmatpush2.msra.mxu0 0.0
  %602 = vmatprep.subr.mxu0 0.0
  %603 = vmatpush2.msra.mxu0 0.0
  %604 = vmatprep.subr.mxu0 0.0
  %605 = vmatpush2.msra.mxu0 0.0
  %606 = vmatprep.subr.mxu0 0.0
  %607 = vmatpush2.msra.mxu0 0.0
  %608 = vmatprep.subr.mxu0 0.0
  %609 = vmatpush2.msra.mxu0 0.0
  %610 = vmatprep.subr.mxu0 0.0
  %611 = vmatpush2.msra.mxu0 0.0
  %612 = vmatprep.subr.mxu0 0.0
  %613 = vmatpush2.msra.mxu0 0.0
  %614 = vmatprep.subr.mxu0 0.0
  %615 = vmatpush2.msra.mxu0 0.0
  %616 = vmatprep.subr.mxu0 0.0
  %617 = vmatpush2.msra.mxu0 0.0
  %618 = vmatprep.subr.mxu0 0.0
  %619 = vmatpush2.msra.mxu0 0.0
  %620 = vmatprep.subr.mxu0 0.0
  %621 = vmatpush2.msra.mxu0 0.0
  %622 = vmatprep.subr.mxu0 0.0
  %623 = vmatpush2.msra.mxu0 0.0
  %624 = vmatprep.subr.mxu0 0.0
  %625 = vmatpush2.msra.mxu0 0.0
  %626 = vmatprep.subr.mxu0 0.0
  %627 = vmatpush2.msra.mxu0 0.0
  %628 = vmatprep.mubr.f32.mxu0 0.0
  %629 = vmatmul.mubr.f32.gmra.mxu0 %v553
  %v630 = vpop.f32.mrf.mxu0
  %v631 = vadd.f32 %v550, %v630
  %v632 = vpop.f32.mrf.mxu0
  %633 = vmatprep.mubr.f32.mxu0 0.0
  %634 = vmatmul.mubr.f32.gmra.mxu0 %v556
  %v635 = vpop.f32.mrf.mxu0
  %v636 = vadd.f32 %v550, %v635
  %v637 = vpop.f32.mrf.mxu0
  %638 = vmatprep.mubr.f32.mxu0 0.0
  %639 = vmatmul.mubr.f32.gmra.mxu0 %v559
  %v640 = vpop.f32.mrf.mxu0
  %v641 = vadd.f32 %v550, %v640
  %v642 = vpop.f32.mrf.mxu0
  %643 = vmatprep.mubr.f32.mxu0 0.0
  %644 = vmatmul.mubr.f32.gmra.mxu0 %v562
  %v645 = vpop.f32.mrf.mxu0
  %v646 = vadd.f32 %v550, %v645
  %v647 = vpop.f32.mrf.mxu0
  %648 = vdwg.mxu0
  %v649 = vld [vmem:[%s13] sm:$0x1]
  %v651 = vlaneseq
  %v652 = vshrl.u32 %v651, 7
  %v653 = vsub.s32 0, %v652
  %v654 = vrot.slane %v649, %v653
  %660 = vrot.lane.b32.xlu0 %v631, 96
  %v661 = vpop.permute.xlu0 %660
  %662 = vrot.lane.b32.xlu0 %v636, 96
  %v663 = vpop.permute.xlu0 %662
  %664 = vrot.lane.b32.xlu0 %v641, 96
  %v665 = vpop.permute.xlu0 %664
  %666 = vrot.lane.b32.xlu0 %v646, 96
  %v667 = vpop.permute.xlu0 %666
  %vm668 = vcmask 64512
  %v669 = vsel %vm668, %v631, 0
  %v671 = vsel %vm668, %v636, 0
  %v673 = vsel %vm668, %v641, 0
  %v675 = vsel %vm668, %v646, 0
  %v677 = vsel %vm668, %v661, 0
  %v679 = vsel %vm668, %v663, 0
  %v681 = vsel %vm668, %v665, 0
  %v683 = vsel %vm668, %v667, 0
  %685 = vmatprep.subr.mxu0 0.0
  %686 = vmatpush1.xpose.msra.mxu0 0.0
  %687 = vmatprep.subr.mxu0 0.0
  %688 = vmatpush1.xpose.msra.mxu0 0.0
  %689 = vmatprep.subr.mxu0 0.0
  %690 = vmatpush1.xpose.msra.mxu0 0.0
  %691 = vmatprep.subr.mxu0 0.0
  %692 = vmatpush1.xpose.msra.mxu0 0.0
  %693 = vmatprep.subr.mxu0 0.0
  %694 = vmatpush1.xpose.msra.mxu0 0.0
  %695 = vmatprep.subr.mxu0 0.0
  %696 = vmatpush1.xpose.msra.mxu0 0.0
  %697 = vmatprep.subr.mxu0 0.0
  %698 = vmatpush1.xpose.msra.mxu0 0.0
  %699 = vmatprep.subr.mxu0 0.0
  %700 = vmatpush1.xpose.msra.mxu0 0.0
  %701 = vmatprep.subr.mxu0 0.0
  %702 = vmatpush1.xpose.msra.mxu0 0.0
  %703 = vmatprep.subr.mxu0 0.0
  %704 = vmatpush1.xpose.msra.mxu0 0.0
  %705 = vmatprep.subr.mxu0 0.0
  %706 = vmatpush1.xpose.msra.mxu0 0.0
  %707 = vmatprep.subr.mxu0 0.0
  %708 = vmatpush1.xpose.msra.mxu0 0.0
  %709 = vmatprep.subr.mxu0 0.0
  %710 = vmatpush1.xpose.msra.mxu0 %v683
  %711 = vmatprep.subr.mxu0 0.0
  %712 = vmatpush1.xpose.msra.mxu0 %v681
  %713 = vmatprep.subr.mxu0 0.0
  %714 = vmatpush1.xpose.msra.mxu0 %v679
  %715 = vmatprep.subr.mxu0 0.0
  %716 = vmatpush1.xpose.msra.mxu0 %v677
  %717 = vmatprep.subr.mxu0 0.0
  %718 = vmatpush2.xpose.msra.mxu0 0.0
  %719 = vmatprep.subr.mxu0 0.0
  %720 = vmatpush2.xpose.msra.mxu0 0.0
  %721 = vmatprep.subr.mxu0 0.0
  %722 = vmatpush2.xpose.msra.mxu0 0.0
  %723 = vmatprep.subr.mxu0 0.0
  %724 = vmatpush2.xpose.msra.mxu0 0.0
  %725 = vmatprep.subr.mxu0 0.0
  %726 = vmatpush2.xpose.msra.mxu0 0.0
  %727 = vmatprep.subr.mxu0 0.0
  %728 = vmatpush2.xpose.msra.mxu0 0.0
  %729 = vmatprep.subr.mxu0 0.0
  %730 = vmatpush2.xpose.msra.mxu0 0.0
  %731 = vmatprep.subr.mxu0 0.0
  %732 = vmatpush2.xpose.msra.mxu0 0.0
  %733 = vmatprep.subr.mxu0 0.0
  %734 = vmatpush2.xpose.msra.mxu0 0.0
  %735 = vmatprep.subr.mxu0 0.0
  %736 = vmatpush2.xpose.msra.mxu0 0.0
  %737 = vmatprep.subr.mxu0 0.0
  %738 = vmatpush2.xpose.msra.mxu0 0.0
  %739 = vmatprep.subr.mxu0 0.0
  %740 = vmatpush2.xpose.msra.mxu0 0.0
  %741 = vmatprep.subr.mxu0 0.0
  %742 = vmatpush2.xpose.msra.mxu0 0.0
  %743 = vmatprep.subr.mxu0 0.0
  %744 = vmatpush2.xpose.msra.mxu0 0.0
  %745 = vmatprep.subr.mxu0 0.0
  %746 = vmatpush2.xpose.msra.mxu0 0.0
  %747 = vmatprep.subr.mxu0 0.0
  %748 = vmatpush2.xpose.msra.mxu0 0.0
  %749 = vmatprep.mubr.f32.mxu0 0.0
  %750 = vmatmul.mubr.f32.gmra.mxu0 %v669
  %v751 = vpop.f32.mrf.mxu0
  %v752 = vadd.f32 0.0, %v751
  %v753 = vpop.f32.mrf.mxu0
  %754 = vmatprep.mubr.f32.mxu0 0.0
  %755 = vmatmul.mubr.f32.gmra.mxu0 %v671
  %v756 = vpop.f32.mrf.mxu0
  %v757 = vadd.f32 0.0, %v756
  %v758 = vpop.f32.mrf.mxu0
  %759 = vmatprep.mubr.f32.mxu0 0.0
  %760 = vmatmul.mubr.f32.gmra.mxu0 %v673
  %v761 = vpop.f32.mrf.mxu0
  %v762 = vadd.f32 0.0, %v761
  %v763 = vpop.f32.mrf.mxu0
  %764 = vmatprep.mubr.f32.mxu0 0.0
  %765 = vmatmul.mubr.f32.gmra.mxu0 %v675
  %v766 = vpop.f32.mrf.mxu0
  %v767 = vadd.f32 0.0, %v766
  %v768 = vpop.f32.mrf.mxu0
  %769 = vdwg.mxu0
  %v770 = vmul.f32 %v752, 0.35355338
  %v771 = vmul.f32 %v757, 0.35355338
  %v772 = vmul.f32 %v762, 0.35355338
  %v773 = vmul.f32 %v767, 0.35355338
  %v774 = vadd.f32 %v770, %v79
  %v775 = vadd.f32 %v771, %v80
  %v776 = vadd.f32 %v772, %v81
  %v777 = vadd.f32 %v773, %v82
  %v778 = vsel %vm89, %v774, -inf
  %779 = vmax.xlane.f32.xlu0 %v778
  %v780 = vpop.xlane.xlu0 %779
  %v781 = vsel %vm89, %v775, -inf
  %782 = vmax.xlane.f32.xlu0 %v781
  %v783 = vpop.xlane.xlu0 %782
  %v784 = vsel %vm89, %v776, -inf
  %785 = vmax.xlane.f32.xlu0 %v784
  %v786 = vpop.xlane.xlu0 %785
  %v787 = vsel %vm89, %v777, -inf
  %788 = vmax.xlane.f32.xlu0 %v787
  %v789 = vpop.xlane.xlu0 %788
  %v790 = vsub.f32 %v774, %v780
  %v791 = vsub.f32 %v775, %v783
  %v792 = vsub.f32 %v776, %v786
  %v793 = vsub.f32 %v777, %v789
  %v794 = vmul.f32 %v790, 1.442695
  %v795 = vpow.pop %v794
  %v796 = vmul.f32 %v791, 1.442695
  %v797 = vpow.pop %v796
  %v798 = vmul.f32 %v792, 1.442695
  %v799 = vpow.pop %v798
  %v800 = vmul.f32 %v793, 1.442695
  %v801 = vpow.pop %v800
  %v802 = vsel %vm89, %v795, 0.0
  %803 = vadd.xlane.f32.xlu0 %v802
  %v804 = vpop.xlane.xlu0 %803
  %v805 = vsel %vm89, %v797, 0.0
  %806 = vadd.xlane.f32.xlu0 %v805
  %v807 = vpop.xlane.xlu0 %806
  %v808 = vsel %vm89, %v799, 0.0
  %809 = vadd.xlane.f32.xlu0 %v808
  %v810 = vpop.xlane.xlu0 %809
  %v811 = vsel %vm89, %v801, 0.0
  %812 = vadd.xlane.f32.xlu0 %v811
  %v813 = vpop.xlane.xlu0 %812
  %v814 = vrcp.pop %v804
  %v815 = vmul.f32 %v795, %v814
  %v816 = vrcp.pop %v807
  %v817 = vmul.f32 %v797, %v816
  %v818 = vrcp.pop %v810
  %v819 = vmul.f32 %v799, %v818
  %v820 = vrcp.pop %v813
  %v821 = vmul.f32 %v801, %v820
  %822 = vrot.lane.b32.xlu0 %v631, 64
  %v823 = vpop.permute.xlu0 %822
  %824 = vrot.lane.b32.xlu0 %v636, 64
  %v825 = vpop.permute.xlu0 %824
  %826 = vrot.lane.b32.xlu0 %v641, 64
  %v827 = vpop.permute.xlu0 %826
  %828 = vrot.lane.b32.xlu0 %v646, 64
  %v829 = vpop.permute.xlu0 %828
  %v835 = vsel %vm89, %v815, 0
  %v838 = vsel %vm89, %v817, 0
  %v841 = vsel %vm89, %v819, 0
  %v844 = vsel %vm89, %v821, 0
  %846 = vmatprep.subr.mxu0 0.0
  %847 = vmatpush1.msra.mxu0 0.0
  %848 = vmatprep.subr.mxu0 0.0
  %849 = vmatpush1.msra.mxu0 0.0
  %850 = vmatprep.subr.mxu0 0.0
  %851 = vmatpush1.msra.mxu0 0.0
  %852 = vmatprep.subr.mxu0 0.0
  %853 = vmatpush1.msra.mxu0 0.0
  %854 = vmatprep.subr.mxu0 0.0
  %855 = vmatpush1.msra.mxu0 0.0
  %856 = vmatprep.subr.mxu0 0.0
  %857 = vmatpush1.msra.mxu0 0.0
  %858 = vmatprep.subr.mxu0 0.0
  %859 = vmatpush1.msra.mxu0 0.0
  %860 = vmatprep.subr.mxu0 0.0
  %861 = vmatpush1.msra.mxu0 0.0
  %862 = vmatprep.subr.mxu0 0.0
  %863 = vmatpush1.msra.mxu0 0.0
  %864 = vmatprep.subr.mxu0 0.0
  %865 = vmatpush1.msra.mxu0 0.0
  %866 = vmatprep.subr.mxu0 0.0
  %867 = vmatpush1.msra.mxu0 0.0
  %868 = vmatprep.subr.mxu0 0.0
  %869 = vmatpush1.msra.mxu0 0.0
  %870 = vmatprep.subr.mxu0 0.0
  %871 = vmatpush1.msra.mxu0 %v829
  %872 = vmatprep.subr.mxu0 0.0
  %873 = vmatpush1.msra.mxu0 %v827
  %874 = vmatprep.subr.mxu0 0.0
  %875 = vmatpush1.msra.mxu0 %v825
  %876 = vmatprep.subr.mxu0 0.0
  %877 = vmatpush1.msra.mxu0 %v823
  %878 = vmatprep.subr.mxu0 0.0
  %879 = vmatpush2.msra.mxu0 0.0
  %880 = vmatprep.subr.mxu0 0.0
  %881 = vmatpush2.msra.mxu0 0.0
  %882 = vmatprep.subr.mxu0 0.0
  %883 = vmatpush2.msra.mxu0 0.0
  %884 = vmatprep.subr.mxu0 0.0
  %885 = vmatpush2.msra.mxu0 0.0
  %886 = vmatprep.subr.mxu0 0.0
  %887 = vmatpush2.msra.mxu0 0.0
  %888 = vmatprep.subr.mxu0 0.0
  %889 = vmatpush2.msra.mxu0 0.0
  %890 = vmatprep.subr.mxu0 0.0
  %891 = vmatpush2.msra.mxu0 0.0
  %892 = vmatprep.subr.mxu0 0.0
  %893 = vmatpush2.msra.mxu0 0.0
  %894 = vmatprep.subr.mxu0 0.0
  %895 = vmatpush2.msra.mxu0 0.0
  %896 = vmatprep.subr.mxu0 0.0
  %897 = vmatpush2.msra.mxu0 0.0
  %898 = vmatprep.subr.mxu0 0.0
  %899 = vmatpush2.msra.mxu0 0.0
  %900 = vmatprep.subr.mxu0 0.0
  %901 = vmatpush2.msra.mxu0 0.0
  %902 = vmatprep.subr.mxu0 0.0
  %903 = vmatpush2.msra.mxu0 0.0
  %904 = vmatprep.subr.mxu0 0.0
  %905 = vmatpush2.msra.mxu0 0.0
  %906 = vmatprep.subr.mxu0 0.0
  %907 = vmatpush2.msra.mxu0 0.0
  %908 = vmatprep.subr.mxu0 0.0
  %909 = vmatpush2.msra.mxu0 0.0
  %910 = vmatprep.mubr.f32.mxu0 0.0
  %911 = vmatmul.mubr.f32.gmra.mxu0 %v835
  %v912 = vpop.f32.mrf.mxu0
  %v913 = vadd.f32 0.0, %v912
  %v914 = vpop.f32.mrf.mxu0
  %915 = vmatprep.mubr.f32.mxu0 0.0
  %916 = vmatmul.mubr.f32.gmra.mxu0 %v838
  %v917 = vpop.f32.mrf.mxu0
  %v918 = vadd.f32 0.0, %v917
  %v919 = vpop.f32.mrf.mxu0
  %920 = vmatprep.mubr.f32.mxu0 0.0
  %921 = vmatmul.mubr.f32.gmra.mxu0 %v841
  %v922 = vpop.f32.mrf.mxu0
  %v923 = vadd.f32 0.0, %v922
  %v924 = vpop.f32.mrf.mxu0
  %925 = vmatprep.mubr.f32.mxu0 0.0
  %926 = vmatmul.mubr.f32.gmra.mxu0 %v844
  %v927 = vpop.f32.mrf.mxu0
  %v928 = vadd.f32 0.0, %v927
  %v929 = vpop.f32.mrf.mxu0
  %930 = vdwg.mxu0
  %v932 = vsel %vm668, %v913, 0
  %v935 = vsel %vm668, %v918, 0
  %v938 = vsel %vm668, %v923, 0
  %v941 = vsel %vm668, %v928, 0
  %943 = vmatprep.subr.mxu0 0.0
  %944 = vmatpush1.msra.mxu0 0.0
  %945 = vmatprep.subr.mxu0 0.0
  %946 = vmatpush1.msra.mxu0 0.0
  %947 = vmatprep.subr.mxu0 0.0
  %948 = vmatpush1.msra.mxu0 0.0
  %949 = vmatprep.subr.mxu0 0.0
  %950 = vmatpush1.msra.mxu0 0.0
  %951 = vmatprep.subr.mxu0 0.0
  %952 = vmatpush1.msra.mxu0 0.0
  %953 = vmatprep.subr.mxu0 0.0
  %954 = vmatpush1.msra.mxu0 0.0
  %955 = vmatprep.subr.mxu0 0.0
  %956 = vmatpush1.msra.mxu0 0.0
  %957 = vmatprep.subr.mxu0 0.0
  %958 = vmatpush1.msra.mxu0 0.0
  %959 = vmatprep.subr.mxu0 0.0
  %960 = vmatpush1.msra.mxu0 0.0
  %961 = vmatprep.subr.mxu0 0.0
  %962 = vmatpush1.msra.mxu0 0.0
  %963 = vmatprep.subr.mxu0 0.0
  %964 = vmatpush1.msra.mxu0 0.0
  %965 = vmatprep.subr.mxu0 0.0
  %966 = vmatpush1.msra.mxu0 0.0
  %967 = vmatprep.subr.mxu0 0.0
  %968 = vmatpush1.msra.mxu0 0.0
  %969 = vmatprep.subr.mxu0 0.0
  %970 = vmatpush1.msra.mxu0 0.0
  %971 = vmatprep.subr.mxu0 0.0
  %972 = vmatpush1.msra.mxu0 0.0
  %973 = vmatprep.subr.mxu0 0.0
  %974 = vmatpush1.msra.mxu0 %v435
  %975 = vmatprep.subr.mxu0 0.0
  %976 = vmatpush2.msra.mxu0 0.0
  %977 = vmatprep.subr.mxu0 0.0
  %978 = vmatpush2.msra.mxu0 0.0
  %979 = vmatprep.subr.mxu0 0.0
  %980 = vmatpush2.msra.mxu0 0.0
  %981 = vmatprep.subr.mxu0 0.0
  %982 = vmatpush2.msra.mxu0 0.0
  %983 = vmatprep.subr.mxu0 0.0
  %984 = vmatpush2.msra.mxu0 0.0
  %985 = vmatprep.subr.mxu0 0.0
  %986 = vmatpush2.msra.mxu0 0.0
  %987 = vmatprep.subr.mxu0 0.0
  %988 = vmatpush2.msra.mxu0 0.0
  %989 = vmatprep.subr.mxu0 0.0
  %990 = vmatpush2.msra.mxu0 0.0
  %991 = vmatprep.subr.mxu0 0.0
  %992 = vmatpush2.msra.mxu0 0.0
  %993 = vmatprep.subr.mxu0 0.0
  %994 = vmatpush2.msra.mxu0 0.0
  %995 = vmatprep.subr.mxu0 0.0
  %996 = vmatpush2.msra.mxu0 0.0
  %997 = vmatprep.subr.mxu0 0.0
  %998 = vmatpush2.msra.mxu0 0.0
  %999 = vmatprep.subr.mxu0 0.0
  %1000 = vmatpush2.msra.mxu0 0.0
  %1001 = vmatprep.subr.mxu0 0.0
  %1002 = vmatpush2.msra.mxu0 0.0
  %1003 = vmatprep.subr.mxu0 0.0
  %1004 = vmatpush2.msra.mxu0 0.0
  %1005 = vmatprep.subr.mxu0 0.0
  %1006 = vmatpush2.msra.mxu0 0.0
  %1007 = vmatprep.mubr.f32.mxu0 0.0
  %1008 = vmatmul.mubr.f32.gmra.mxu0 %v932
  %v1009 = vpop.f32.mrf.mxu0
  %v1010 = vadd.f32 0.0, %v1009
  %v1011 = vpop.f32.mrf.mxu0
  %1012 = vmatprep.mubr.f32.mxu0 0.0
  %1013 = vmatmul.mubr.f32.gmra.mxu0 %v935
  %v1014 = vpop.f32.mrf.mxu0
  %v1015 = vadd.f32 0.0, %v1014
  %v1016 = vpop.f32.mrf.mxu0
  %1017 = vmatprep.mubr.f32.mxu0 0.0
  %1018 = vmatmul.mubr.f32.gmra.mxu0 %v938
  %v1019 = vpop.f32.mrf.mxu0
  %v1020 = vadd.f32 0.0, %v1019
  %v1021 = vpop.f32.mrf.mxu0
  %1022 = vmatprep.mubr.f32.mxu0 0.0
  %1023 = vmatmul.mubr.f32.gmra.mxu0 %v941
  %v1024 = vpop.f32.mrf.mxu0
  %v1025 = vadd.f32 0.0, %v1024
  %v1026 = vpop.f32.mrf.mxu0
  %1027 = vdwg.mxu0
  %v1028 = vadd.f32 %v654, %v1010
  %v1029 = vadd.f32 %v654, %v1015
  %v1030 = vadd.f32 %v654, %v1020
  %v1031 = vadd.f32 %v654, %v1025
  %1032 = vrot.lane.b32.xlu0 %v631, 120
  %v1033 = vpop.permute.xlu0 %1032
  %1034 = vrot.lane.b32.xlu0 %v636, 120
  %v1035 = vpop.permute.xlu0 %1034
  %1036 = vrot.lane.b32.xlu0 %v641, 120
  %v1037 = vpop.permute.xlu0 %1036
  %1038 = vrot.lane.b32.xlu0 %v646, 120
  %v1039 = vpop.permute.xlu0 %1038
  %1040 = vrot.lane.b32.xlu0 %v631, 88
  %v1041 = vpop.permute.xlu0 %1040
  %1042 = vrot.lane.b32.xlu0 %v636, 88
  %v1043 = vpop.permute.xlu0 %1042
  %1044 = vrot.lane.b32.xlu0 %v641, 88
  %v1045 = vpop.permute.xlu0 %1044
  %1046 = vrot.lane.b32.xlu0 %v646, 88
  %v1047 = vpop.permute.xlu0 %1046
  %v1048 = vsel %vm668, %v1033, 0
  %v1050 = vsel %vm668, %v1035, 0
  %v1052 = vsel %vm668, %v1037, 0
  %v1054 = vsel %vm668, %v1039, 0
  %v1056 = vsel %vm668, %v1041, 0
  %v1058 = vsel %vm668, %v1043, 0
  %v1060 = vsel %vm668, %v1045, 0
  %v1062 = vsel %vm668, %v1047, 0
  %1064 = vmatprep.subr.mxu0 0.0
  %1065 = vmatpush1.xpose.msra.mxu0 0.0
  %1066 = vmatprep.subr.mxu0 0.0
  %1067 = vmatpush1.xpose.msra.mxu0 0.0
  %1068 = vmatprep.subr.mxu0 0.0
  %1069 = vmatpush1.xpose.msra.mxu0 0.0
  %1070 = vmatprep.subr.mxu0 0.0
  %1071 = vmatpush1.xpose.msra.mxu0 0.0
  %1072 = vmatprep.subr.mxu0 0.0
  %1073 = vmatpush1.xpose.msra.mxu0 0.0
  %1074 = vmatprep.subr.mxu0 0.0
  %1075 = vmatpush1.xpose.msra.mxu0 0.0
  %1076 = vmatprep.subr.mxu0 0.0
  %1077 = vmatpush1.xpose.msra.mxu0 0.0
  %1078 = vmatprep.subr.mxu0 0.0
  %1079 = vmatpush1.xpose.msra.mxu0 0.0
  %1080 = vmatprep.subr.mxu0 0.0
  %1081 = vmatpush1.xpose.msra.mxu0 0.0
  %1082 = vmatprep.subr.mxu0 0.0
  %1083 = vmatpush1.xpose.msra.mxu0 0.0
  %1084 = vmatprep.subr.mxu0 0.0
  %1085 = vmatpush1.xpose.msra.mxu0 0.0
  %1086 = vmatprep.subr.mxu0 0.0
  %1087 = vmatpush1.xpose.msra.mxu0 0.0
  %1088 = vmatprep.subr.mxu0 0.0
  %1089 = vmatpush1.xpose.msra.mxu0 %v1062
  %1090 = vmatprep.subr.mxu0 0.0
  %1091 = vmatpush1.xpose.msra.mxu0 %v1060
  %1092 = vmatprep.subr.mxu0 0.0
  %1093 = vmatpush1.xpose.msra.mxu0 %v1058
  %1094 = vmatprep.subr.mxu0 0.0
  %1095 = vmatpush1.xpose.msra.mxu0 %v1056
  %1096 = vmatprep.subr.mxu0 0.0
  %1097 = vmatpush2.xpose.msra.mxu0 0.0
  %1098 = vmatprep.subr.mxu0 0.0
  %1099 = vmatpush2.xpose.msra.mxu0 0.0
  %1100 = vmatprep.subr.mxu0 0.0
  %1101 = vmatpush2.xpose.msra.mxu0 0.0
  %1102 = vmatprep.subr.mxu0 0.0
  %1103 = vmatpush2.xpose.msra.mxu0 0.0
  %1104 = vmatprep.subr.mxu0 0.0
  %1105 = vmatpush2.xpose.msra.mxu0 0.0
  %1106 = vmatprep.subr.mxu0 0.0
  %1107 = vmatpush2.xpose.msra.mxu0 0.0
  %1108 = vmatprep.subr.mxu0 0.0
  %1109 = vmatpush2.xpose.msra.mxu0 0.0
  %1110 = vmatprep.subr.mxu0 0.0
  %1111 = vmatpush2.xpose.msra.mxu0 0.0
  %1112 = vmatprep.subr.mxu0 0.0
  %1113 = vmatpush2.xpose.msra.mxu0 0.0
  %1114 = vmatprep.subr.mxu0 0.0
  %1115 = vmatpush2.xpose.msra.mxu0 0.0
  %1116 = vmatprep.subr.mxu0 0.0
  %1117 = vmatpush2.xpose.msra.mxu0 0.0
  %1118 = vmatprep.subr.mxu0 0.0
  %1119 = vmatpush2.xpose.msra.mxu0 0.0
  %1120 = vmatprep.subr.mxu0 0.0
  %1121 = vmatpush2.xpose.msra.mxu0 0.0
  %1122 = vmatprep.subr.mxu0 0.0
  %1123 = vmatpush2.xpose.msra.mxu0 0.0
  %1124 = vmatprep.subr.mxu0 0.0
  %1125 = vmatpush2.xpose.msra.mxu0 0.0
  %1126 = vmatprep.subr.mxu0 0.0
  %1127 = vmatpush2.xpose.msra.mxu0 0.0
  %1128 = vmatprep.mubr.f32.mxu0 0.0
  %1129 = vmatmul.mubr.f32.gmra.mxu0 %v1048
  %v1130 = vpop.f32.mrf.mxu0
  %v1131 = vadd.f32 0.0, %v1130
  %v1132 = vpop.f32.mrf.mxu0
  %1133 = vmatprep.mubr.f32.mxu0 0.0
  %1134 = vmatmul.mubr.f32.gmra.mxu0 %v1050
  %v1135 = vpop.f32.mrf.mxu0
  %v1136 = vadd.f32 0.0, %v1135
  %v1137 = vpop.f32.mrf.mxu0
  %1138 = vmatprep.mubr.f32.mxu0 0.0
  %1139 = vmatmul.mubr.f32.gmra.mxu0 %v1052
  %v1140 = vpop.f32.mrf.mxu0
  %v1141 = vadd.f32 0.0, %v1140
  %v1142 = vpop.f32.mrf.mxu0
  %1143 = vmatprep.mubr.f32.mxu0 0.0
  %1144 = vmatmul.mubr.f32.gmra.mxu0 %v1054
  %v1145 = vpop.f32.mrf.mxu0
  %v1146 = vadd.f32 0.0, %v1145
  %v1147 = vpop.f32.mrf.mxu0
  %1148 = vdwg.mxu0
  %v1149 = vmul.f32 %v1131, 0.35355338
  %v1150 = vmul.f32 %v1136, 0.35355338
  %v1151 = vmul.f32 %v1141, 0.35355338
  %v1152 = vmul.f32 %v1146, 0.35355338
  %v1153 = vadd.f32 %v1149, %v79
  %v1154 = vadd.f32 %v1150, %v80
  %v1155 = vadd.f32 %v1151, %v81
  %v1156 = vadd.f32 %v1152, %v82
  %v1157 = vsel %vm89, %v1153, -inf
  %1158 = vmax.xlane.f32.xlu0 %v1157
  %v1159 = vpop.xlane.xlu0 %1158
  %v1160 = vsel %vm89, %v1154, -inf
  %1161 = vmax.xlane.f32.xlu0 %v1160
  %v1162 = vpop.xlane.xlu0 %1161
  %v1163 = vsel %vm89, %v1155, -inf
  %1164 = vmax.xlane.f32.xlu0 %v1163
  %v1165 = vpop.xlane.xlu0 %1164
  %v1166 = vsel %vm89, %v1156, -inf
  %1167 = vmax.xlane.f32.xlu0 %v1166
  %v1168 = vpop.xlane.xlu0 %1167
  %v1169 = vsub.f32 %v1153, %v1159
  %v1170 = vsub.f32 %v1154, %v1162
  %v1171 = vsub.f32 %v1155, %v1165
  %v1172 = vsub.f32 %v1156, %v1168
  %v1173 = vmul.f32 %v1169, 1.442695
  %v1174 = vpow.pop %v1173
  %v1175 = vmul.f32 %v1170, 1.442695
  %v1176 = vpow.pop %v1175
  %v1177 = vmul.f32 %v1171, 1.442695
  %v1178 = vpow.pop %v1177
  %v1179 = vmul.f32 %v1172, 1.442695
  %v1180 = vpow.pop %v1179
  %v1181 = vsel %vm89, %v1174, 0.0
  %1182 = vadd.xlane.f32.xlu0 %v1181
  %v1183 = vpop.xlane.xlu0 %1182
  %v1184 = vsel %vm89, %v1176, 0.0
  %1185 = vadd.xlane.f32.xlu0 %v1184
  %v1186 = vpop.xlane.xlu0 %1185
  %v1187 = vsel %vm89, %v1178, 0.0
  %1188 = vadd.xlane.f32.xlu0 %v1187
  %v1189 = vpop.xlane.xlu0 %1188
  %v1190 = vsel %vm89, %v1180, 0.0
  %1191 = vadd.xlane.f32.xlu0 %v1190
  %v1192 = vpop.xlane.xlu0 %1191
  %v1193 = vrcp.pop %v1183
  %v1194 = vmul.f32 %v1174, %v1193
  %v1195 = vrcp.pop %v1186
  %v1196 = vmul.f32 %v1176, %v1195
  %v1197 = vrcp.pop %v1189
  %v1198 = vmul.f32 %v1178, %v1197
  %v1199 = vrcp.pop %v1192
  %v1200 = vmul.f32 %v1180, %v1199
  %1201 = vrot.lane.b32.xlu0 %v631, 56
  %v1202 = vpop.permute.xlu0 %1201
  %1203 = vrot.lane.b32.xlu0 %v636, 56
  %v1204 = vpop.permute.xlu0 %1203
  %1205 = vrot.lane.b32.xlu0 %v641, 56
  %v1206 = vpop.permute.xlu0 %1205
  %1207 = vrot.lane.b32.xlu0 %v646, 56
  %v1208 = vpop.permute.xlu0 %1207
  %v1214 = vsel %vm89, %v1194, 0
  %v1217 = vsel %vm89, %v1196, 0
  %v1220 = vsel %vm89, %v1198, 0
  %v1223 = vsel %vm89, %v1200, 0
  %1225 = vmatprep.subr.mxu0 0.0
  %1226 = vmatpush1.msra.mxu0 0.0
  %1227 = vmatprep.subr.mxu0 0.0
  %1228 = vmatpush1.msra.mxu0 0.0
  %1229 = vmatprep.subr.mxu0 0.0
  %1230 = vmatpush1.msra.mxu0 0.0
  %1231 = vmatprep.subr.mxu0 0.0
  %1232 = vmatpush1.msra.mxu0 0.0
  %1233 = vmatprep.subr.mxu0 0.0
  %1234 = vmatpush1.msra.mxu0 0.0
  %1235 = vmatprep.subr.mxu0 0.0
  %1236 = vmatpush1.msra.mxu0 0.0
  %1237 = vmatprep.subr.mxu0 0.0
  %1238 = vmatpush1.msra.mxu0 0.0
  %1239 = vmatprep.subr.mxu0 0.0
  %1240 = vmatpush1.msra.mxu0 0.0
  %1241 = vmatprep.subr.mxu0 0.0
  %1242 = vmatpush1.msra.mxu0 0.0
  %1243 = vmatprep.subr.mxu0 0.0
  %1244 = vmatpush1.msra.mxu0 0.0
  %1245 = vmatprep.subr.mxu0 0.0
  %1246 = vmatpush1.msra.mxu0 0.0
  %1247 = vmatprep.subr.mxu0 0.0
  %1248 = vmatpush1.msra.mxu0 0.0
  %1249 = vmatprep.subr.mxu0 0.0
  %1250 = vmatpush1.msra.mxu0 %v1208
  %1251 = vmatprep.subr.mxu0 0.0
  %1252 = vmatpush1.msra.mxu0 %v1206
  %1253 = vmatprep.subr.mxu0 0.0
  %1254 = vmatpush1.msra.mxu0 %v1204
  %1255 = vmatprep.subr.mxu0 0.0
  %1256 = vmatpush1.msra.mxu0 %v1202
  %1257 = vmatprep.subr.mxu0 0.0
  %1258 = vmatpush2.msra.mxu0 0.0
  %1259 = vmatprep.subr.mxu0 0.0
  %1260 = vmatpush2.msra.mxu0 0.0
  %1261 = vmatprep.subr.mxu0 0.0
  %1262 = vmatpush2.msra.mxu0 0.0
  %1263 = vmatprep.subr.mxu0 0.0
  %1264 = vmatpush2.msra.mxu0 0.0
  %1265 = vmatprep.subr.mxu0 0.0
  %1266 = vmatpush2.msra.mxu0 0.0
  %1267 = vmatprep.subr.mxu0 0.0
  %1268 = vmatpush2.msra.mxu0 0.0
  %1269 = vmatprep.subr.mxu0 0.0
  %1270 = vmatpush2.msra.mxu0 0.0
  %1271 = vmatprep.subr.mxu0 0.0
  %1272 = vmatpush2.msra.mxu0 0.0
  %1273 = vmatprep.subr.mxu0 0.0
  %1274 = vmatpush2.msra.mxu0 0.0
  %1275 = vmatprep.subr.mxu0 0.0
  %1276 = vmatpush2.msra.mxu0 0.0
  %1277 = vmatprep.subr.mxu0 0.0
  %1278 = vmatpush2.msra.mxu0 0.0
  %1279 = vmatprep.subr.mxu0 0.0
  %1280 = vmatpush2.msra.mxu0 0.0
  %1281 = vmatprep.subr.mxu0 0.0
  %1282 = vmatpush2.msra.mxu0 0.0
  %1283 = vmatprep.subr.mxu0 0.0
  %1284 = vmatpush2.msra.mxu0 0.0
  %1285 = vmatprep.subr.mxu0 0.0
  %1286 = vmatpush2.msra.mxu0 0.0
  %1287 = vmatprep.subr.mxu0 0.0
  %1288 = vmatpush2.msra.mxu0 0.0
  %1289 = vmatprep.mubr.f32.mxu0 0.0
  %1290 = vmatmul.mubr.f32.gmra.mxu0 %v1214
  %v1291 = vpop.f32.mrf.mxu0
  %v1292 = vadd.f32 0.0, %v1291
  %v1293 = vpop.f32.mrf.mxu0
  %1294 = vmatprep.mubr.f32.mxu0 0.0
  %1295 = vmatmul.mubr.f32.gmra.mxu0 %v1217
  %v1296 = vpop.f32.mrf.mxu0
  %v1297 = vadd.f32 0.0, %v1296
  %v1298 = vpop.f32.mrf.mxu0
  %1299 = vmatprep.mubr.f32.mxu0 0.0
  %1300 = vmatmul.mubr.f32.gmra.mxu0 %v1220
  %v1301 = vpop.f32.mrf.mxu0
  %v1302 = vadd.f32 0.0, %v1301
  %v1303 = vpop.f32.mrf.mxu0
  %1304 = vmatprep.mubr.f32.mxu0 0.0
  %1305 = vmatmul.mubr.f32.gmra.mxu0 %v1223
  %v1306 = vpop.f32.mrf.mxu0
  %v1307 = vadd.f32 0.0, %v1306
  %v1308 = vpop.f32.mrf.mxu0
  %1309 = vdwg.mxu0
  %v1311 = vsel %vm668, %v1292, 0
  %v1314 = vsel %vm668, %v1297, 0
  %v1317 = vsel %vm668, %v1302, 0
  %v1320 = vsel %vm668, %v1307, 0
  %1322 = vmatprep.subr.mxu0 0.0
  %1323 = vmatpush1.msra.mxu0 0.0
  %1324 = vmatprep.subr.mxu0 0.0
  %1325 = vmatpush1.msra.mxu0 0.0
  %1326 = vmatprep.subr.mxu0 0.0
  %1327 = vmatpush1.msra.mxu0 0.0
  %1328 = vmatprep.subr.mxu0 0.0
  %1329 = vmatpush1.msra.mxu0 0.0
  %1330 = vmatprep.subr.mxu0 0.0
  %1331 = vmatpush1.msra.mxu0 0.0
  %1332 = vmatprep.subr.mxu0 0.0
  %1333 = vmatpush1.msra.mxu0 0.0
  %1334 = vmatprep.subr.mxu0 0.0
  %1335 = vmatpush1.msra.mxu0 0.0
  %1336 = vmatprep.subr.mxu0 0.0
  %1337 = vmatpush1.msra.mxu0 0.0
  %1338 = vmatprep.subr.mxu0 0.0
  %1339 = vmatpush1.msra.mxu0 0.0
  %1340 = vmatprep.subr.mxu0 0.0
  %1341 = vmatpush1.msra.mxu0 0.0
  %1342 = vmatprep.subr.mxu0 0.0
  %1343 = vmatpush1.msra.mxu0 0.0
  %1344 = vmatprep.subr.mxu0 0.0
  %1345 = vmatpush1.msra.mxu0 0.0
  %1346 = vmatprep.subr.mxu0 0.0
  %1347 = vmatpush1.msra.mxu0 0.0
  %1348 = vmatprep.subr.mxu0 0.0
  %1349 = vmatpush1.msra.mxu0 0.0
  %1350 = vmatprep.subr.mxu0 0.0
  %1351 = vmatpush1.msra.mxu0 0.0
  %1352 = vmatprep.subr.mxu0 0.0
  %1353 = vmatpush1.msra.mxu0 %v436
  %1354 = vmatprep.subr.mxu0 0.0
  %1355 = vmatpush2.msra.mxu0 0.0
  %1356 = vmatprep.subr.mxu0 0.0
  %1357 = vmatpush2.msra.mxu0 0.0
  %1358 = vmatprep.subr.mxu0 0.0
  %1359 = vmatpush2.msra.mxu0 0.0
  %1360 = vmatprep.subr.mxu0 0.0
  %1361 = vmatpush2.msra.mxu0 0.0
  %1362 = vmatprep.subr.mxu0 0.0
  %1363 = vmatpush2.msra.mxu0 0.0
  %1364 = vmatprep.subr.mxu0 0.0
  %1365 = vmatpush2.msra.mxu0 0.0
  %1366 = vmatprep.subr.mxu0 0.0
  %1367 = vmatpush2.msra.mxu0 0.0
  %1368 = vmatprep.subr.mxu0 0.0
  %1369 = vmatpush2.msra.mxu0 0.0
  %1370 = vmatprep.subr.mxu0 0.0
  %1371 = vmatpush2.msra.mxu0 0.0
  %1372 = vmatprep.subr.mxu0 0.0
  %1373 = vmatpush2.msra.mxu0 0.0
  %1374 = vmatprep.subr.mxu0 0.0
  %1375 = vmatpush2.msra.mxu0 0.0
  %1376 = vmatprep.subr.mxu0 0.0
  %1377 = vmatpush2.msra.mxu0 0.0
  %1378 = vmatprep.subr.mxu0 0.0
  %1379 = vmatpush2.msra.mxu0 0.0
  %1380 = vmatprep.subr.mxu0 0.0
  %1381 = vmatpush2.msra.mxu0 0.0
  %1382 = vmatprep.subr.mxu0 0.0
  %1383 = vmatpush2.msra.mxu0 0.0
  %1384 = vmatprep.subr.mxu0 0.0
  %1385 = vmatpush2.msra.mxu0 0.0
  %1386 = vmatprep.mubr.f32.mxu0 0.0
  %1387 = vmatmul.mubr.f32.gmra.mxu0 %v1311
  %v1388 = vpop.f32.mrf.mxu0
  %v1389 = vadd.f32 0.0, %v1388
  %v1390 = vpop.f32.mrf.mxu0
  %1391 = vmatprep.mubr.f32.mxu0 0.0
  %1392 = vmatmul.mubr.f32.gmra.mxu0 %v1314
  %v1393 = vpop.f32.mrf.mxu0
  %v1394 = vadd.f32 0.0, %v1393
  %v1395 = vpop.f32.mrf.mxu0
  %1396 = vmatprep.mubr.f32.mxu0 0.0
  %1397 = vmatmul.mubr.f32.gmra.mxu0 %v1317
  %v1398 = vpop.f32.mrf.mxu0
  %v1399 = vadd.f32 0.0, %v1398
  %v1400 = vpop.f32.mrf.mxu0
  %1401 = vmatprep.mubr.f32.mxu0 0.0
  %1402 = vmatmul.mubr.f32.gmra.mxu0 %v1320
  %v1403 = vpop.f32.mrf.mxu0
  %v1404 = vadd.f32 0.0, %v1403
  %v1405 = vpop.f32.mrf.mxu0
  %1406 = vdwg.mxu0
  %v1407 = vadd.f32 %v1028, %v1389
  %v1408 = vadd.f32 %v1029, %v1394
  %v1409 = vadd.f32 %v1030, %v1399
  %v1410 = vadd.f32 %v1031, %v1404
  %1411 = vrot.lane.b32.xlu0 %v631, 112
  %v1412 = vpop.permute.xlu0 %1411
  %1413 = vrot.lane.b32.xlu0 %v636, 112
  %v1414 = vpop.permute.xlu0 %1413
  %1415 = vrot.lane.b32.xlu0 %v641, 112
  %v1416 = vpop.permute.xlu0 %1415
  %1417 = vrot.lane.b32.xlu0 %v646, 112
  %v1418 = vpop.permute.xlu0 %1417
  %1419 = vrot.lane.b32.xlu0 %v631, 80
  %v1420 = vpop.permute.xlu0 %1419
  %1421 = vrot.lane.b32.xlu0 %v636, 80
  %v1422 = vpop.permute.xlu0 %1421
  %1423 = vrot.lane.b32.xlu0 %v641, 80
  %v1424 = vpop.permute.xlu0 %1423
  %1425 = vrot.lane.b32.xlu0 %v646, 80
  %v1426 = vpop.permute.xlu0 %1425
  %v1427 = vsel %vm668, %v1412, 0
  %v1429 = vsel %vm668, %v1414, 0
  %v1431 = vsel %vm668, %v1416, 0
  %v1433 = vsel %vm668, %v1418, 0
  %v1435 = vsel %vm668, %v1420, 0
  %v1437 = vsel %vm668, %v1422, 0
  %v1439 = vsel %vm668, %v1424, 0
  %v1441 = vsel %vm668, %v1426, 0
  %1443 = vmatprep.subr.mxu0 0.0
  %1444 = vmatpush1.xpose.msra.mxu0 0.0
  %1445 = vmatprep.subr.mxu0 0.0
  %1446 = vmatpush1.xpose.msra.mxu0 0.0
  %1447 = vmatprep.subr.mxu0 0.0
  %1448 = vmatpush1.xpose.msra.mxu0 0.0
  %1449 = vmatprep.subr.mxu0 0.0
  %1450 = vmatpush1.xpose.msra.mxu0 0.0
  %1451 = vmatprep.subr.mxu0 0.0
  %1452 = vmatpush1.xpose.msra.mxu0 0.0
  %1453 = vmatprep.subr.mxu0 0.0
  %1454 = vmatpush1.xpose.msra.mxu0 0.0
  %1455 = vmatprep.subr.mxu0 0.0
  %1456 = vmatpush1.xpose.msra.mxu0 0.0
  %1457 = vmatprep.subr.mxu0 0.0
  %1458 = vmatpush1.xpose.msra.mxu0 0.0
  %1459 = vmatprep.subr.mxu0 0.0
  %1460 = vmatpush1.xpose.msra.mxu0 0.0
  %1461 = vmatprep.subr.mxu0 0.0
  %1462 = vmatpush1.xpose.msra.mxu0 0.0
  %1463 = vmatprep.subr.mxu0 0.0
  %1464 = vmatpush1.xpose.msra.mxu0 0.0
  %1465 = vmatprep.subr.mxu0 0.0
  %1466 = vmatpush1.xpose.msra.mxu0 0.0
  %1467 = vmatprep.subr.mxu0 0.0
  %1468 = vmatpush1.xpose.msra.mxu0 %v1441
  %1469 = vmatprep.subr.mxu0 0.0
  %1470 = vmatpush1.xpose.msra.mxu0 %v1439
  %1471 = vmatprep.subr.mxu0 0.0
  %1472 = vmatpush1.xpose.msra.mxu0 %v1437
  %1473 = vmatprep.subr.mxu0 0.0
  %1474 = vmatpush1.xpose.msra.mxu0 %v1435
  %1475 = vmatprep.subr.mxu0 0.0
  %1476 = vmatpush2.xpose.msra.mxu0 0.0
  %1477 = vmatprep.subr.mxu0 0.0
  %1478 = vmatpush2.xpose.msra.mxu0 0.0
  %1479 = vmatprep.subr.mxu0 0.0
  %1480 = vmatpush2.xpose.msra.mxu0 0.0
  %1481 = vmatprep.subr.mxu0 0.0
  %1482 = vmatpush2.xpose.msra.mxu0 0.0
  %1483 = vmatprep.subr.mxu0 0.0
  %1484 = vmatpush2.xpose.msra.mxu0 0.0
  %1485 = vmatprep.subr.mxu0 0.0
  %1486 = vmatpush2.xpose.msra.mxu0 0.0
  %1487 = vmatprep.subr.mxu0 0.0
  %1488 = vmatpush2.xpose.msra.mxu0 0.0
  %1489 = vmatprep.subr.mxu0 0.0
  %1490 = vmatpush2.xpose.msra.mxu0 0.0
  %1491 = vmatprep.subr.mxu0 0.0
  %1492 = vmatpush2.xpose.msra.mxu0 0.0
  %1493 = vmatprep.subr.mxu0 0.0
  %1494 = vmatpush2.xpose.msra.mxu0 0.0
  %1495 = vmatprep.subr.mxu0 0.0
  %1496 = vmatpush2.xpose.msra.mxu0 0.0
  %1497 = vmatprep.subr.mxu0 0.0
  %1498 = vmatpush2.xpose.msra.mxu0 0.0
  %1499 = vmatprep.subr.mxu0 0.0
  %1500 = vmatpush2.xpose.msra.mxu0 0.0
  %1501 = vmatprep.subr.mxu0 0.0
  %1502 = vmatpush2.xpose.msra.mxu0 0.0
  %1503 = vmatprep.subr.mxu0 0.0
  %1504 = vmatpush2.xpose.msra.mxu0 0.0
  %1505 = vmatprep.subr.mxu0 0.0
  %1506 = vmatpush2.xpose.msra.mxu0 0.0
  %1507 = vmatprep.mubr.f32.mxu0 0.0
  %1508 = vmatmul.mubr.f32.gmra.mxu0 %v1427
  %v1509 = vpop.f32.mrf.mxu0
  %v1510 = vadd.f32 0.0, %v1509
  %v1511 = vpop.f32.mrf.mxu0
  %1512 = vmatprep.mubr.f32.mxu0 0.0
  %1513 = vmatmul.mubr.f32.gmra.mxu0 %v1429
  %v1514 = vpop.f32.mrf.mxu0
  %v1515 = vadd.f32 0.0, %v1514
  %v1516 = vpop.f32.mrf.mxu0
  %1517 = vmatprep.mubr.f32.mxu0 0.0
  %1518 = vmatmul.mubr.f32.gmra.mxu0 %v1431
  %v1519 = vpop.f32.mrf.mxu0
  %v1520 = vadd.f32 0.0, %v1519
  %v1521 = vpop.f32.mrf.mxu0
  %1522 = vmatprep.mubr.f32.mxu0 0.0
  %1523 = vmatmul.mubr.f32.gmra.mxu0 %v1433
  %v1524 = vpop.f32.mrf.mxu0
  %v1525 = vadd.f32 0.0, %v1524
  %v1526 = vpop.f32.mrf.mxu0
  %1527 = vdwg.mxu0
  %v1528 = vmul.f32 %v1510, 0.35355338
  %v1529 = vmul.f32 %v1515, 0.35355338
  %v1530 = vmul.f32 %v1520, 0.35355338
  %v1531 = vmul.f32 %v1525, 0.35355338
  %v1532 = vadd.f32 %v1528, %v79
  %v1533 = vadd.f32 %v1529, %v80
  %v1534 = vadd.f32 %v1530, %v81
  %v1535 = vadd.f32 %v1531, %v82
  %v1536 = vsel %vm89, %v1532, -inf
  %1537 = vmax.xlane.f32.xlu0 %v1536
  %v1538 = vpop.xlane.xlu0 %1537
  %v1539 = vsel %vm89, %v1533, -inf
  %1540 = vmax.xlane.f32.xlu0 %v1539
  %v1541 = vpop.xlane.xlu0 %1540
  %v1542 = vsel %vm89, %v1534, -inf
  %1543 = vmax.xlane.f32.xlu0 %v1542
  %v1544 = vpop.xlane.xlu0 %1543
  %v1545 = vsel %vm89, %v1535, -inf
  %1546 = vmax.xlane.f32.xlu0 %v1545
  %v1547 = vpop.xlane.xlu0 %1546
  %v1548 = vsub.f32 %v1532, %v1538
  %v1549 = vsub.f32 %v1533, %v1541
  %v1550 = vsub.f32 %v1534, %v1544
  %v1551 = vsub.f32 %v1535, %v1547
  %v1552 = vmul.f32 %v1548, 1.442695
  %v1553 = vpow.pop %v1552
  %v1554 = vmul.f32 %v1549, 1.442695
  %v1555 = vpow.pop %v1554
  %v1556 = vmul.f32 %v1550, 1.442695
  %v1557 = vpow.pop %v1556
  %v1558 = vmul.f32 %v1551, 1.442695
  %v1559 = vpow.pop %v1558
  %v1560 = vsel %vm89, %v1553, 0.0
  %1561 = vadd.xlane.f32.xlu0 %v1560
  %v1562 = vpop.xlane.xlu0 %1561
  %v1563 = vsel %vm89, %v1555, 0.0
  %1564 = vadd.xlane.f32.xlu0 %v1563
  %v1565 = vpop.xlane.xlu0 %1564
  %v1566 = vsel %vm89, %v1557, 0.0
  %1567 = vadd.xlane.f32.xlu0 %v1566
  %v1568 = vpop.xlane.xlu0 %1567
  %v1569 = vsel %vm89, %v1559, 0.0
  %1570 = vadd.xlane.f32.xlu0 %v1569
  %v1571 = vpop.xlane.xlu0 %1570
  %v1572 = vrcp.pop %v1562
  %v1573 = vmul.f32 %v1553, %v1572
  %v1574 = vrcp.pop %v1565
  %v1575 = vmul.f32 %v1555, %v1574
  %v1576 = vrcp.pop %v1568
  %v1577 = vmul.f32 %v1557, %v1576
  %v1578 = vrcp.pop %v1571
  %v1579 = vmul.f32 %v1559, %v1578
  %1580 = vrot.lane.b32.xlu0 %v631, 48
  %v1581 = vpop.permute.xlu0 %1580
  %1582 = vrot.lane.b32.xlu0 %v636, 48
  %v1583 = vpop.permute.xlu0 %1582
  %1584 = vrot.lane.b32.xlu0 %v641, 48
  %v1585 = vpop.permute.xlu0 %1584
  %1586 = vrot.lane.b32.xlu0 %v646, 48
  %v1587 = vpop.permute.xlu0 %1586
  %v1593 = vsel %vm89, %v1573, 0
  %v1596 = vsel %vm89, %v1575, 0
  %v1599 = vsel %vm89, %v1577, 0
  %v1602 = vsel %vm89, %v1579, 0
  %1604 = vmatprep.subr.mxu0 0.0
  %1605 = vmatpush1.msra.mxu0 0.0
  %1606 = vmatprep.subr.mxu0 0.0
  %1607 = vmatpush1.msra.mxu0 0.0
  %1608 = vmatprep.subr.mxu0 0.0
  %1609 = vmatpush1.msra.mxu0 0.0
  %1610 = vmatprep.subr.mxu0 0.0
  %1611 = vmatpush1.msra.mxu0 0.0
  %1612 = vmatprep.subr.mxu0 0.0
  %1613 = vmatpush1.msra.mxu0 0.0
  %1614 = vmatprep.subr.mxu0 0.0
  %1615 = vmatpush1.msra.mxu0 0.0
  %1616 = vmatprep.subr.mxu0 0.0
  %1617 = vmatpush1.msra.mxu0 0.0
  %1618 = vmatprep.subr.mxu0 0.0
  %1619 = vmatpush1.msra.mxu0 0.0
  %1620 = vmatprep.subr.mxu0 0.0
  %1621 = vmatpush1.msra.mxu0 0.0
  %1622 = vmatprep.subr.mxu0 0.0
  %1623 = vmatpush1.msra.mxu0 0.0
  %1624 = vmatprep.subr.mxu0 0.0
  %1625 = vmatpush1.msra.mxu0 0.0
  %1626 = vmatprep.subr.mxu0 0.0
  %1627 = vmatpush1.msra.mxu0 0.0
  %1628 = vmatprep.subr.mxu0 0.0
  %1629 = vmatpush1.msra.mxu0 %v1587
  %1630 = vmatprep.subr.mxu0 0.0
  %1631 = vmatpush1.msra.mxu0 %v1585
  %1632 = vmatprep.subr.mxu0 0.0
  %1633 = vmatpush1.msra.mxu0 %v1583
  %1634 = vmatprep.subr.mxu0 0.0
  %1635 = vmatpush1.msra.mxu0 %v1581
  %1636 = vmatprep.subr.mxu0 0.0
  %1637 = vmatpush2.msra.mxu0 0.0
  %1638 = vmatprep.subr.mxu0 0.0
  %1639 = vmatpush2.msra.mxu0 0.0
  %1640 = vmatprep.subr.mxu0 0.0
  %1641 = vmatpush2.msra.mxu0 0.0
  %1642 = vmatprep.subr.mxu0 0.0
  %1643 = vmatpush2.msra.mxu0 0.0
  %1644 = vmatprep.subr.mxu0 0.0
  %1645 = vmatpush2.msra.mxu0 0.0
  %1646 = vmatprep.subr.mxu0 0.0
  %1647 = vmatpush2.msra.mxu0 0.0
  %1648 = vmatprep.subr.mxu0 0.0
  %1649 = vmatpush2.msra.mxu0 0.0
  %1650 = vmatprep.subr.mxu0 0.0
  %1651 = vmatpush2.msra.mxu0 0.0
  %1652 = vmatprep.subr.mxu0 0.0
  %1653 = vmatpush2.msra.mxu0 0.0
  %1654 = vmatprep.subr.mxu0 0.0
  %1655 = vmatpush2.msra.mxu0 0.0
  %1656 = vmatprep.subr.mxu0 0.0
  %1657 = vmatpush2.msra.mxu0 0.0
  %1658 = vmatprep.subr.mxu0 0.0
  %1659 = vmatpush2.msra.mxu0 0.0
  %1660 = vmatprep.subr.mxu0 0.0
  %1661 = vmatpush2.msra.mxu0 0.0
  %1662 = vmatprep.subr.mxu0 0.0
  %1663 = vmatpush2.msra.mxu0 0.0
  %1664 = vmatprep.subr.mxu0 0.0
  %1665 = vmatpush2.msra.mxu0 0.0
  %1666 = vmatprep.subr.mxu0 0.0
  %1667 = vmatpush2.msra.mxu0 0.0
  %1668 = vmatprep.mubr.f32.mxu0 0.0
  %1669 = vmatmul.mubr.f32.gmra.mxu0 %v1593
  %v1670 = vpop.f32.mrf.mxu0
  %v1671 = vadd.f32 0.0, %v1670
  %v1672 = vpop.f32.mrf.mxu0
  %1673 = vmatprep.mubr.f32.mxu0 0.0
  %1674 = vmatmul.mubr.f32.gmra.mxu0 %v1596
  %v1675 = vpop.f32.mrf.mxu0
  %v1676 = vadd.f32 0.0, %v1675
  %v1677 = vpop.f32.mrf.mxu0
  %1678 = vmatprep.mubr.f32.mxu0 0.0
  %1679 = vmatmul.mubr.f32.gmra.mxu0 %v1599
  %v1680 = vpop.f32.mrf.mxu0
  %v1681 = vadd.f32 0.0, %v1680
  %v1682 = vpop.f32.mrf.mxu0
  %1683 = vmatprep.mubr.f32.mxu0 0.0
  %1684 = vmatmul.mubr.f32.gmra.mxu0 %v1602
  %v1685 = vpop.f32.mrf.mxu0
  %v1686 = vadd.f32 0.0, %v1685
  %v1687 = vpop.f32.mrf.mxu0
  %1688 = vdwg.mxu0
  %v1690 = vsel %vm668, %v1671, 0
  %v1693 = vsel %vm668, %v1676, 0
  %v1696 = vsel %vm668, %v1681, 0
  %v1699 = vsel %vm668, %v1686, 0
  %1701 = vmatprep.subr.mxu0 0.0
  %1702 = vmatpush1.msra.mxu0 0.0
  %1703 = vmatprep.subr.mxu0 0.0
  %1704 = vmatpush1.msra.mxu0 0.0
  %1705 = vmatprep.subr.mxu0 0.0
  %1706 = vmatpush1.msra.mxu0 0.0
  %1707 = vmatprep.subr.mxu0 0.0
  %1708 = vmatpush1.msra.mxu0 0.0
  %1709 = vmatprep.subr.mxu0 0.0
  %1710 = vmatpush1.msra.mxu0 0.0
  %1711 = vmatprep.subr.mxu0 0.0
  %1712 = vmatpush1.msra.mxu0 0.0
  %1713 = vmatprep.subr.mxu0 0.0
  %1714 = vmatpush1.msra.mxu0 0.0
  %1715 = vmatprep.subr.mxu0 0.0
  %1716 = vmatpush1.msra.mxu0 0.0
  %1717 = vmatprep.subr.mxu0 0.0
  %1718 = vmatpush1.msra.mxu0 0.0
  %1719 = vmatprep.subr.mxu0 0.0
  %1720 = vmatpush1.msra.mxu0 0.0
  %1721 = vmatprep.subr.mxu0 0.0
  %1722 = vmatpush1.msra.mxu0 0.0
  %1723 = vmatprep.subr.mxu0 0.0
  %1724 = vmatpush1.msra.mxu0 0.0
  %1725 = vmatprep.subr.mxu0 0.0
  %1726 = vmatpush1.msra.mxu0 0.0
  %1727 = vmatprep.subr.mxu0 0.0
  %1728 = vmatpush1.msra.mxu0 0.0
  %1729 = vmatprep.subr.mxu0 0.0
  %1730 = vmatpush1.msra.mxu0 0.0
  %1731 = vmatprep.subr.mxu0 0.0
  %1732 = vmatpush1.msra.mxu0 %v437
  %1733 = vmatprep.subr.mxu0 0.0
  %1734 = vmatpush2.msra.mxu0 0.0
  %1735 = vmatprep.subr.mxu0 0.0
  %1736 = vmatpush2.msra.mxu0 0.0
  %1737 = vmatprep.subr.mxu0 0.0
  %1738 = vmatpush2.msra.mxu0 0.0
  %1739 = vmatprep.subr.mxu0 0.0
  %1740 = vmatpush2.msra.mxu0 0.0
  %1741 = vmatprep.subr.mxu0 0.0
  %1742 = vmatpush2.msra.mxu0 0.0
  %1743 = vmatprep.subr.mxu0 0.0
  %1744 = vmatpush2.msra.mxu0 0.0
  %1745 = vmatprep.subr.mxu0 0.0
  %1746 = vmatpush2.msra.mxu0 0.0
  %1747 = vmatprep.subr.mxu0 0.0
  %1748 = vmatpush2.msra.mxu0 0.0
  %1749 = vmatprep.subr.mxu0 0.0
  %1750 = vmatpush2.msra.mxu0 0.0
  %1751 = vmatprep.subr.mxu0 0.0
  %1752 = vmatpush2.msra.mxu0 0.0
  %1753 = vmatprep.subr.mxu0 0.0
  %1754 = vmatpush2.msra.mxu0 0.0
  %1755 = vmatprep.subr.mxu0 0.0
  %1756 = vmatpush2.msra.mxu0 0.0
  %1757 = vmatprep.subr.mxu0 0.0
  %1758 = vmatpush2.msra.mxu0 0.0
  %1759 = vmatprep.subr.mxu0 0.0
  %1760 = vmatpush2.msra.mxu0 0.0
  %1761 = vmatprep.subr.mxu0 0.0
  %1762 = vmatpush2.msra.mxu0 0.0
  %1763 = vmatprep.subr.mxu0 0.0
  %1764 = vmatpush2.msra.mxu0 0.0
  %1765 = vmatprep.mubr.f32.mxu0 0.0
  %1766 = vmatmul.mubr.f32.gmra.mxu0 %v1690
  %v1767 = vpop.f32.mrf.mxu0
  %v1768 = vadd.f32 0.0, %v1767
  %v1769 = vpop.f32.mrf.mxu0
  %1770 = vmatprep.mubr.f32.mxu0 0.0
  %1771 = vmatmul.mubr.f32.gmra.mxu0 %v1693
  %v1772 = vpop.f32.mrf.mxu0
  %v1773 = vadd.f32 0.0, %v1772
  %v1774 = vpop.f32.mrf.mxu0
  %1775 = vmatprep.mubr.f32.mxu0 0.0
  %1776 = vmatmul.mubr.f32.gmra.mxu0 %v1696
  %v1777 = vpop.f32.mrf.mxu0
  %v1778 = vadd.f32 0.0, %v1777
  %v1779 = vpop.f32.mrf.mxu0
  %1780 = vmatprep.mubr.f32.mxu0 0.0
  %1781 = vmatmul.mubr.f32.gmra.mxu0 %v1699
  %v1782 = vpop.f32.mrf.mxu0
  %v1783 = vadd.f32 0.0, %v1782
  %v1784 = vpop.f32.mrf.mxu0
  %1785 = vdwg.mxu0
  %v1786 = vadd.f32 %v1407, %v1768
  %v1787 = vadd.f32 %v1408, %v1773
  %v1788 = vadd.f32 %v1409, %v1778
  %v1789 = vadd.f32 %v1410, %v1783
  %1790 = vrot.lane.b32.xlu0 %v631, 104
  %v1791 = vpop.permute.xlu0 %1790
  %1792 = vrot.lane.b32.xlu0 %v636, 104
  %v1793 = vpop.permute.xlu0 %1792
  %1794 = vrot.lane.b32.xlu0 %v641, 104
  %v1795 = vpop.permute.xlu0 %1794
  %1796 = vrot.lane.b32.xlu0 %v646, 104
  %v1797 = vpop.permute.xlu0 %1796
  %1798 = vrot.lane.b32.xlu0 %v631, 72
  %v1799 = vpop.permute.xlu0 %1798
  %1800 = vrot.lane.b32.xlu0 %v636, 72
  %v1801 = vpop.permute.xlu0 %1800
  %1802 = vrot.lane.b32.xlu0 %v641, 72
  %v1803 = vpop.permute.xlu0 %1802
  %1804 = vrot.lane.b32.xlu0 %v646, 72
  %v1805 = vpop.permute.xlu0 %1804
  %v1806 = vsel %vm668, %v1791, 0
  %v1808 = vsel %vm668, %v1793, 0
  %v1810 = vsel %vm668, %v1795, 0
  %v1812 = vsel %vm668, %v1797, 0
  %v1814 = vsel %vm668, %v1799, 0
  %v1816 = vsel %vm668, %v1801, 0
  %v1818 = vsel %vm668, %v1803, 0
  %v1820 = vsel %vm668, %v1805, 0
  %1822 = vmatprep.subr.mxu0 0.0
  %1823 = vmatpush1.xpose.msra.mxu0 0.0
  %1824 = vmatprep.subr.mxu0 0.0
  %1825 = vmatpush1.xpose.msra.mxu0 0.0
  %1826 = vmatprep.subr.mxu0 0.0
  %1827 = vmatpush1.xpose.msra.mxu0 0.0
  %1828 = vmatprep.subr.mxu0 0.0
  %1829 = vmatpush1.xpose.msra.mxu0 0.0
  %1830 = vmatprep.subr.mxu0 0.0
  %1831 = vmatpush1.xpose.msra.mxu0 0.0
  %1832 = vmatprep.subr.mxu0 0.0
  %1833 = vmatpush1.xpose.msra.mxu0 0.0
  %1834 = vmatprep.subr.mxu0 0.0
  %1835 = vmatpush1.xpose.msra.mxu0 0.0
  %1836 = vmatprep.subr.mxu0 0.0
  %1837 = vmatpush1.xpose.msra.mxu0 0.0
  %1838 = vmatprep.subr.mxu0 0.0
  %1839 = vmatpush1.xpose.msra.mxu0 0.0
  %1840 = vmatprep.subr.mxu0 0.0
  %1841 = vmatpush1.xpose.msra.mxu0 0.0
  %1842 = vmatprep.subr.mxu0 0.0
  %1843 = vmatpush1.xpose.msra.mxu0 0.0
  %1844 = vmatprep.subr.mxu0 0.0
  %1845 = vmatpush1.xpose.msra.mxu0 0.0
  %1846 = vmatprep.subr.mxu0 0.0
  %1847 = vmatpush1.xpose.msra.mxu0 %v1820
  %1848 = vmatprep.subr.mxu0 0.0
  %1849 = vmatpush1.xpose.msra.mxu0 %v1818
  %1850 = vmatprep.subr.mxu0 0.0
  %1851 = vmatpush1.xpose.msra.mxu0 %v1816
  %1852 = vmatprep.subr.mxu0 0.0
  %1853 = vmatpush1.xpose.msra.mxu0 %v1814
  %1854 = vmatprep.subr.mxu0 0.0
  %1855 = vmatpush2.xpose.msra.mxu0 0.0
  %1856 = vmatprep.subr.mxu0 0.0
  %1857 = vmatpush2.xpose.msra.mxu0 0.0
  %1858 = vmatprep.subr.mxu0 0.0
  %1859 = vmatpush2.xpose.msra.mxu0 0.0
  %1860 = vmatprep.subr.mxu0 0.0
  %1861 = vmatpush2.xpose.msra.mxu0 0.0
  %1862 = vmatprep.subr.mxu0 0.0
  %1863 = vmatpush2.xpose.msra.mxu0 0.0
  %1864 = vmatprep.subr.mxu0 0.0
  %1865 = vmatpush2.xpose.msra.mxu0 0.0
  %1866 = vmatprep.subr.mxu0 0.0
  %1867 = vmatpush2.xpose.msra.mxu0 0.0
  %1868 = vmatprep.subr.mxu0 0.0
  %1869 = vmatpush2.xpose.msra.mxu0 0.0
  %1870 = vmatprep.subr.mxu0 0.0
  %1871 = vmatpush2.xpose.msra.mxu0 0.0
  %1872 = vmatprep.subr.mxu0 0.0
  %1873 = vmatpush2.xpose.msra.mxu0 0.0
  %1874 = vmatprep.subr.mxu0 0.0
  %1875 = vmatpush2.xpose.msra.mxu0 0.0
  %1876 = vmatprep.subr.mxu0 0.0
  %1877 = vmatpush2.xpose.msra.mxu0 0.0
  %1878 = vmatprep.subr.mxu0 0.0
  %1879 = vmatpush2.xpose.msra.mxu0 0.0
  %1880 = vmatprep.subr.mxu0 0.0
  %1881 = vmatpush2.xpose.msra.mxu0 0.0
  %1882 = vmatprep.subr.mxu0 0.0
  %1883 = vmatpush2.xpose.msra.mxu0 0.0
  %1884 = vmatprep.subr.mxu0 0.0
  %1885 = vmatpush2.xpose.msra.mxu0 0.0
  %1886 = vmatprep.mubr.f32.mxu0 0.0
  %1887 = vmatmul.mubr.f32.gmra.mxu0 %v1806
  %v1888 = vpop.f32.mrf.mxu0
  %v1889 = vadd.f32 0.0, %v1888
  %v1890 = vpop.f32.mrf.mxu0
  %1891 = vmatprep.mubr.f32.mxu0 0.0
  %1892 = vmatmul.mubr.f32.gmra.mxu0 %v1808
  %v1893 = vpop.f32.mrf.mxu0
  %v1894 = vadd.f32 0.0, %v1893
  %v1895 = vpop.f32.mrf.mxu0
  %1896 = vmatprep.mubr.f32.mxu0 0.0
  %1897 = vmatmul.mubr.f32.gmra.mxu0 %v1810
  %v1898 = vpop.f32.mrf.mxu0
  %v1899 = vadd.f32 0.0, %v1898
  %v1900 = vpop.f32.mrf.mxu0
  %1901 = vmatprep.mubr.f32.mxu0 0.0
  %1902 = vmatmul.mubr.f32.gmra.mxu0 %v1812
  %v1903 = vpop.f32.mrf.mxu0
  %v1904 = vadd.f32 0.0, %v1903
  %v1905 = vpop.f32.mrf.mxu0
  %1906 = vdwg.mxu0
  %v1907 = vmul.f32 %v1889, 0.35355338
  %v1908 = vmul.f32 %v1894, 0.35355338
  %v1909 = vmul.f32 %v1899, 0.35355338
  %v1910 = vmul.f32 %v1904, 0.35355338
  %v1911 = vadd.f32 %v1907, %v79
  %v1912 = vadd.f32 %v1908, %v80
  %v1913 = vadd.f32 %v1909, %v81
  %v1914 = vadd.f32 %v1910, %v82
  %v1915 = vsel %vm89, %v1911, -inf
  %1916 = vmax.xlane.f32.xlu0 %v1915
  %v1917 = vpop.xlane.xlu0 %1916
  %v1918 = vsel %vm89, %v1912, -inf
  %1919 = vmax.xlane.f32.xlu0 %v1918
  %v1920 = vpop.xlane.xlu0 %1919
  %v1921 = vsel %vm89, %v1913, -inf
  %1922 = vmax.xlane.f32.xlu0 %v1921
  %v1923 = vpop.xlane.xlu0 %1922
  %v1924 = vsel %vm89, %v1914, -inf
  %1925 = vmax.xlane.f32.xlu0 %v1924
  %v1926 = vpop.xlane.xlu0 %1925
  %v1927 = vsub.f32 %v1911, %v1917
  %v1928 = vsub.f32 %v1912, %v1920
  %v1929 = vsub.f32 %v1913, %v1923
  %v1930 = vsub.f32 %v1914, %v1926
  %v1931 = vmul.f32 %v1927, 1.442695
  %v1932 = vpow.pop %v1931
  %v1933 = vmul.f32 %v1928, 1.442695
  %v1934 = vpow.pop %v1933
  %v1935 = vmul.f32 %v1929, 1.442695
  %v1936 = vpow.pop %v1935
  %v1937 = vmul.f32 %v1930, 1.442695
  %v1938 = vpow.pop %v1937
  %v1939 = vsel %vm89, %v1932, 0.0
  %1940 = vadd.xlane.f32.xlu0 %v1939
  %v1941 = vpop.xlane.xlu0 %1940
  %v1942 = vsel %vm89, %v1934, 0.0
  %1943 = vadd.xlane.f32.xlu0 %v1942
  %v1944 = vpop.xlane.xlu0 %1943
  %v1945 = vsel %vm89, %v1936, 0.0
  %1946 = vadd.xlane.f32.xlu0 %v1945
  %v1947 = vpop.xlane.xlu0 %1946
  %v1948 = vsel %vm89, %v1938, 0.0
  %1949 = vadd.xlane.f32.xlu0 %v1948
  %v1950 = vpop.xlane.xlu0 %1949
  %v1951 = vrcp.pop %v1941
  %v1952 = vmul.f32 %v1932, %v1951
  %v1953 = vrcp.pop %v1944
  %v1954 = vmul.f32 %v1934, %v1953
  %v1955 = vrcp.pop %v1947
  %v1956 = vmul.f32 %v1936, %v1955
  %v1957 = vrcp.pop %v1950
  %v1958 = vmul.f32 %v1938, %v1957
  %1959 = vrot.lane.b32.xlu0 %v631, 40
  %v1960 = vpop.permute.xlu0 %1959
  %1961 = vrot.lane.b32.xlu0 %v636, 40
  %v1962 = vpop.permute.xlu0 %1961
  %1963 = vrot.lane.b32.xlu0 %v641, 40
  %v1964 = vpop.permute.xlu0 %1963
  %1965 = vrot.lane.b32.xlu0 %v646, 40
  %v1966 = vpop.permute.xlu0 %1965
  %v1972 = vsel %vm89, %v1952, 0
  %v1975 = vsel %vm89, %v1954, 0
  %v1978 = vsel %vm89, %v1956, 0
  %v1981 = vsel %vm89, %v1958, 0
  %1983 = vmatprep.subr.mxu0 0.0
  %1984 = vmatpush1.msra.mxu0 0.0
  %1985 = vmatprep.subr.mxu0 0.0
  %1986 = vmatpush1.msra.mxu0 0.0
  %1987 = vmatprep.subr.mxu0 0.0
  %1988 = vmatpush1.msra.mxu0 0.0
  %1989 = vmatprep.subr.mxu0 0.0
  %1990 = vmatpush1.msra.mxu0 0.0
  %1991 = vmatprep.subr.mxu0 0.0
  %1992 = vmatpush1.msra.mxu0 0.0
  %1993 = vmatprep.subr.mxu0 0.0
  %1994 = vmatpush1.msra.mxu0 0.0
  %1995 = vmatprep.subr.mxu0 0.0
  %1996 = vmatpush1.msra.mxu0 0.0
  %1997 = vmatprep.subr.mxu0 0.0
  %1998 = vmatpush1.msra.mxu0 0.0
  %1999 = vmatprep.subr.mxu0 0.0
  %2000 = vmatpush1.msra.mxu0 0.0
  %2001 = vmatprep.subr.mxu0 0.0
  %2002 = vmatpush1.msra.mxu0 0.0
  %2003 = vmatprep.subr.mxu0 0.0
  %2004 = vmatpush1.msra.mxu0 0.0
  %2005 = vmatprep.subr.mxu0 0.0
  %2006 = vmatpush1.msra.mxu0 0.0
  %2007 = vmatprep.subr.mxu0 0.0
  %2008 = vmatpush1.msra.mxu0 %v1966
  %2009 = vmatprep.subr.mxu0 0.0
  %2010 = vmatpush1.msra.mxu0 %v1964
  %2011 = vmatprep.subr.mxu0 0.0
  %2012 = vmatpush1.msra.mxu0 %v1962
  %2013 = vmatprep.subr.mxu0 0.0
  %2014 = vmatpush1.msra.mxu0 %v1960
  %2015 = vmatprep.subr.mxu0 0.0
  %2016 = vmatpush2.msra.mxu0 0.0
  %2017 = vmatprep.subr.mxu0 0.0
  %2018 = vmatpush2.msra.mxu0 0.0
  %2019 = vmatprep.subr.mxu0 0.0
  %2020 = vmatpush2.msra.mxu0 0.0
  %2021 = vmatprep.subr.mxu0 0.0
  %2022 = vmatpush2.msra.mxu0 0.0
  %2023 = vmatprep.subr.mxu0 0.0
  %2024 = vmatpush2.msra.mxu0 0.0
  %2025 = vmatprep.subr.mxu0 0.0
  %2026 = vmatpush2.msra.mxu0 0.0
  %2027 = vmatprep.subr.mxu0 0.0
  %2028 = vmatpush2.msra.mxu0 0.0
  %2029 = vmatprep.subr.mxu0 0.0
  %2030 = vmatpush2.msra.mxu0 0.0
  %2031 = vmatprep.subr.mxu0 0.0
  %2032 = vmatpush2.msra.mxu0 0.0
  %2033 = vmatprep.subr.mxu0 0.0
  %2034 = vmatpush2.msra.mxu0 0.0
  %2035 = vmatprep.subr.mxu0 0.0
  %2036 = vmatpush2.msra.mxu0 0.0
  %2037 = vmatprep.subr.mxu0 0.0
  %2038 = vmatpush2.msra.mxu0 0.0
  %2039 = vmatprep.subr.mxu0 0.0
  %2040 = vmatpush2.msra.mxu0 0.0
  %2041 = vmatprep.subr.mxu0 0.0
  %2042 = vmatpush2.msra.mxu0 0.0
  %2043 = vmatprep.subr.mxu0 0.0
  %2044 = vmatpush2.msra.mxu0 0.0
  %2045 = vmatprep.subr.mxu0 0.0
  %2046 = vmatpush2.msra.mxu0 0.0
  %2047 = vmatprep.mubr.f32.mxu0 0.0
  %2048 = vmatmul.mubr.f32.gmra.mxu0 %v1972
  %v2049 = vpop.f32.mrf.mxu0
  %v2050 = vadd.f32 0.0, %v2049
  %v2051 = vpop.f32.mrf.mxu0
  %2052 = vmatprep.mubr.f32.mxu0 0.0
  %2053 = vmatmul.mubr.f32.gmra.mxu0 %v1975
  %v2054 = vpop.f32.mrf.mxu0
  %v2055 = vadd.f32 0.0, %v2054
  %v2056 = vpop.f32.mrf.mxu0
  %2057 = vmatprep.mubr.f32.mxu0 0.0
  %2058 = vmatmul.mubr.f32.gmra.mxu0 %v1978
  %v2059 = vpop.f32.mrf.mxu0
  %v2060 = vadd.f32 0.0, %v2059
  %v2061 = vpop.f32.mrf.mxu0
  %2062 = vmatprep.mubr.f32.mxu0 0.0
  %2063 = vmatmul.mubr.f32.gmra.mxu0 %v1981
  %v2064 = vpop.f32.mrf.mxu0
  %v2065 = vadd.f32 0.0, %v2064
  %v2066 = vpop.f32.mrf.mxu0
  %2067 = vdwg.mxu0
  %v2069 = vsel %vm668, %v2050, 0
  %v2072 = vsel %vm668, %v2055, 0
  %v2075 = vsel %vm668, %v2060, 0
  %v2078 = vsel %vm668, %v2065, 0
  %2080 = vmatprep.subr.mxu0 0.0
  %2081 = vmatpush1.msra.mxu0 0.0
  %2082 = vmatprep.subr.mxu0 0.0
  %2083 = vmatpush1.msra.mxu0 0.0
  %2084 = vmatprep.subr.mxu0 0.0
  %2085 = vmatpush1.msra.mxu0 0.0
  %2086 = vmatprep.subr.mxu0 0.0
  %2087 = vmatpush1.msra.mxu0 0.0
  %2088 = vmatprep.subr.mxu0 0.0
  %2089 = vmatpush1.msra.mxu0 0.0
  %2090 = vmatprep.subr.mxu0 0.0
  %2091 = vmatpush1.msra.mxu0 0.0
  %2092 = vmatprep.subr.mxu0 0.0
  %2093 = vmatpush1.msra.mxu0 0.0
  %2094 = vmatprep.subr.mxu0 0.0
  %2095 = vmatpush1.msra.mxu0 0.0
  %2096 = vmatprep.subr.mxu0 0.0
  %2097 = vmatpush1.msra.mxu0 0.0
  %2098 = vmatprep.subr.mxu0 0.0
  %2099 = vmatpush1.msra.mxu0 0.0
  %2100 = vmatprep.subr.mxu0 0.0
  %2101 = vmatpush1.msra.mxu0 0.0
  %2102 = vmatprep.subr.mxu0 0.0
  %2103 = vmatpush1.msra.mxu0 0.0
  %2104 = vmatprep.subr.mxu0 0.0
  %2105 = vmatpush1.msra.mxu0 0.0
  %2106 = vmatprep.subr.mxu0 0.0
  %2107 = vmatpush1.msra.mxu0 0.0
  %2108 = vmatprep.subr.mxu0 0.0
  %2109 = vmatpush1.msra.mxu0 0.0
  %2110 = vmatprep.subr.mxu0 0.0
  %2111 = vmatpush1.msra.mxu0 %v438
  %2112 = vmatprep.subr.mxu0 0.0
  %2113 = vmatpush2.msra.mxu0 0.0
  %2114 = vmatprep.subr.mxu0 0.0
  %2115 = vmatpush2.msra.mxu0 0.0
  %2116 = vmatprep.subr.mxu0 0.0
  %2117 = vmatpush2.msra.mxu0 0.0
  %2118 = vmatprep.subr.mxu0 0.0
  %2119 = vmatpush2.msra.mxu0 0.0
  %2120 = vmatprep.subr.mxu0 0.0
  %2121 = vmatpush2.msra.mxu0 0.0
  %2122 = vmatprep.subr.mxu0 0.0
  %2123 = vmatpush2.msra.mxu0 0.0
  %2124 = vmatprep.subr.mxu0 0.0
  %2125 = vmatpush2.msra.mxu0 0.0
  %2126 = vmatprep.subr.mxu0 0.0
  %2127 = vmatpush2.msra.mxu0 0.0
  %2128 = vmatprep.subr.mxu0 0.0
  %2129 = vmatpush2.msra.mxu0 0.0
  %2130 = vmatprep.subr.mxu0 0.0
  %2131 = vmatpush2.msra.mxu0 0.0
  %2132 = vmatprep.subr.mxu0 0.0
  %2133 = vmatpush2.msra.mxu0 0.0
  %2134 = vmatprep.subr.mxu0 0.0
  %2135 = vmatpush2.msra.mxu0 0.0
  %2136 = vmatprep.subr.mxu0 0.0
  %2137 = vmatpush2.msra.mxu0 0.0
  %2138 = vmatprep.subr.mxu0 0.0
  %2139 = vmatpush2.msra.mxu0 0.0
  %2140 = vmatprep.subr.mxu0 0.0
  %2141 = vmatpush2.msra.mxu0 0.0
  %2142 = vmatprep.subr.mxu0 0.0
  %2143 = vmatpush2.msra.mxu0 0.0
  %2144 = vmatprep.mubr.f32.mxu0 0.0
  %2145 = vmatmul.mubr.f32.gmra.mxu0 %v2069
  %v2146 = vpop.f32.mrf.mxu0
  %v2147 = vadd.f32 0.0, %v2146
  %v2148 = vpop.f32.mrf.mxu0
  %2149 = vmatprep.mubr.f32.mxu0 0.0
  %2150 = vmatmul.mubr.f32.gmra.mxu0 %v2072
  %v2151 = vpop.f32.mrf.mxu0
  %v2152 = vadd.f32 0.0, %v2151
  %v2153 = vpop.f32.mrf.mxu0
  %2154 = vmatprep.mubr.f32.mxu0 0.0
  %2155 = vmatmul.mubr.f32.gmra.mxu0 %v2075
  %v2156 = vpop.f32.mrf.mxu0
  %v2157 = vadd.f32 0.0, %v2156
  %v2158 = vpop.f32.mrf.mxu0
  %2159 = vmatprep.mubr.f32.mxu0 0.0
  %2160 = vmatmul.mubr.f32.gmra.mxu0 %v2078
  %v2161 = vpop.f32.mrf.mxu0
  %v2162 = vadd.f32 0.0, %v2161
  %v2163 = vpop.f32.mrf.mxu0
  %2164 = vdwg.mxu0
  %v2165 = vadd.f32 %v1786, %v2147
  %v2166 = vadd.f32 %v1787, %v2152
  %v2167 = vadd.f32 %v1788, %v2157
  %v2168 = vadd.f32 %v1789, %v2162
  %v2169 = vadd.f32 %v416, %v2165
  %v2170 = vadd.f32 %v421, %v2166
  %v2171 = vadd.f32 %v426, %v2167
  %v2172 = vadd.f32 %v431, %v2168
  %v2173 = vsel %vm89, %v2169, 0.0
  %2174 = vadd.xlane.f32.xlu0 %v2173
  %v2175 = vpop.xlane.xlu0 %2174
  %v2176 = vsel %vm89, %v2170, 0.0
  %2177 = vadd.xlane.f32.xlu0 %v2176
  %v2178 = vpop.xlane.xlu0 %2177
  %v2179 = vsel %vm89, %v2171, 0.0
  %2180 = vadd.xlane.f32.xlu0 %v2179
  %v2181 = vpop.xlane.xlu0 %2180
  %v2182 = vsel %vm89, %v2172, 0.0
  %2183 = vadd.xlane.f32.xlu0 %v2182
  %v2184 = vpop.xlane.xlu0 %2183
  %v2185 = vmul.f32 %v2175, %v455
  %v2186 = vmul.f32 %v2178, %v455
  %v2187 = vmul.f32 %v2181, %v455
  %v2188 = vmul.f32 %v2184, %v455
  %v2189 = vsub.f32 %v2169, %v2185
  %v2190 = vsub.f32 %v2170, %v2186
  %v2191 = vsub.f32 %v2171, %v2187
  %v2192 = vsub.f32 %v2172, %v2188
  %v2193 = vmul.f32 %v2189, %v2189
  %v2194 = vmul.f32 %v2190, %v2190
  %v2195 = vmul.f32 %v2191, %v2191
  %v2196 = vmul.f32 %v2192, %v2192
  %v2197 = vsel %vm89, %v2193, 0.0
  %2198 = vadd.xlane.f32.xlu0 %v2197
  %v2199 = vpop.xlane.xlu0 %2198
  %v2200 = vsel %vm89, %v2194, 0.0
  %2201 = vadd.xlane.f32.xlu0 %v2200
  %v2202 = vpop.xlane.xlu0 %2201
  %v2203 = vsel %vm89, %v2195, 0.0
  %2204 = vadd.xlane.f32.xlu0 %v2203
  %v2205 = vpop.xlane.xlu0 %2204
  %v2206 = vsel %vm89, %v2196, 0.0
  %2207 = vadd.xlane.f32.xlu0 %v2206
  %v2208 = vpop.xlane.xlu0 %2207
  %v2209 = vmul.f32 %v2199, %v480
  %v2210 = vmul.f32 %v2202, %v480
  %v2211 = vmul.f32 %v2205, %v480
  %v2212 = vmul.f32 %v2208, %v480
  %v2213 = vlaneseq
  %v2214 = vshrl.u32 %v2213, 7
  %v2215 = vsub.s32 2, %v2214
  %v2216 = vrot.slane %v434, %v2215
  %v2217 = vmul.f32 %v2216, %v2189
  %v2218 = vmul.f32 %v2216, %v2190
  %v2219 = vmul.f32 %v2216, %v2191
  %v2220 = vmul.f32 %v2216, %v2192
  %v2221 = vrsqrt.pop %v2209
  %v2222 = vmul.f32 %v2209, %v2221
  %vm2223 = vcmp.eq.f32.partialorder %v2209, inf
  %v2224 = vsel %vm2223, %v2209, %v2222
  %vm2225 = vcmp.eq.f32.partialorder %v2209, 0.0
  %v2226 = vand.u32 %v2209, 2147483648
  %v2227 = vsel %vm2225, %v2226, %v2224
  %v2228 = vrsqrt.pop %v2210
  %v2229 = vmul.f32 %v2210, %v2228
  %vm2230 = vcmp.eq.f32.partialorder %v2210, inf
  %v2231 = vsel %vm2230, %v2210, %v2229
  %vm2232 = vcmp.eq.f32.partialorder %v2210, 0.0
  %v2233 = vand.u32 %v2210, 2147483648
  %v2234 = vsel %vm2232, %v2233, %v2231
  %v2235 = vrsqrt.pop %v2211
  %v2236 = vmul.f32 %v2211, %v2235
  %vm2237 = vcmp.eq.f32.partialorder %v2211, inf
  %v2238 = vsel %vm2237, %v2211, %v2236
  %vm2239 = vcmp.eq.f32.partialorder %v2211, 0.0
  %v2240 = vand.u32 %v2211, 2147483648
  %v2241 = vsel %vm2239, %v2240, %v2238
  %v2242 = vrsqrt.pop %v2212
  %v2243 = vmul.f32 %v2212, %v2242
  %vm2244 = vcmp.eq.f32.partialorder %v2212, inf
  %v2245 = vsel %vm2244, %v2212, %v2243
  %vm2246 = vcmp.eq.f32.partialorder %v2212, 0.0
  %v2247 = vand.u32 %v2212, 2147483648
  %v2248 = vsel %vm2246, %v2247, %v2245
  %v2249 = vadd.f32 %v2227, 1e-06
  %v2250 = vadd.f32 %v2234, 1e-06
  %v2251 = vadd.f32 %v2241, 1e-06
  %v2252 = vadd.f32 %v2248, 1e-06
  %v2253 = vrcp.pop %v2249
  %v2254 = vmul.f32 %v2217, %v2253
  %v2255 = vrcp.pop %v2250
  %v2256 = vmul.f32 %v2218, %v2255
  %v2257 = vrcp.pop %v2251
  %v2258 = vmul.f32 %v2219, %v2257
  %v2259 = vrcp.pop %v2252
  %v2260 = vmul.f32 %v2220, %v2259
  %v2261 = vlaneseq
  %v2262 = vshrl.u32 %v2261, 7
  %v2263 = vsub.s32 3, %v2262
  %v2264 = vrot.slane %v434, %v2263
  %v2265 = vadd.f32 %v2254, %v2264
  %v2266 = vadd.f32 %v2256, %v2264
  %v2267 = vadd.f32 %v2258, %v2264
  %v2268 = vadd.f32 %v2260, %v2264
  %v2270 = vsel %vm89, %v439, 0
  %v2273 = vsel %vm89, %v440, 0
  %v2276 = vsel %vm89, %v441, 0
  %v2279 = vsel %vm89, %v442, 0
  %2281 = vmatprep.subr.mxu0 0.0
  %2282 = vmatpush1.msra.mxu0 0.0
  %2283 = vmatprep.subr.mxu0 0.0
  %2284 = vmatpush1.msra.mxu0 0.0
  %2285 = vmatprep.subr.mxu0 0.0
  %2286 = vmatpush1.msra.mxu0 0.0
  %2287 = vmatprep.subr.mxu0 0.0
  %2288 = vmatpush1.msra.mxu0 0.0
  %2289 = vmatprep.subr.mxu0 0.0
  %2290 = vmatpush1.msra.mxu0 0.0
  %2291 = vmatprep.subr.mxu0 0.0
  %2292 = vmatpush1.msra.mxu0 0.0
  %2293 = vmatprep.subr.mxu0 0.0
  %2294 = vmatpush1.msra.mxu0 0.0
  %2295 = vmatprep.subr.mxu0 0.0
  %2296 = vmatpush1.msra.mxu0 0.0
  %2297 = vmatprep.subr.mxu0 0.0
  %2298 = vmatpush1.msra.mxu0 0.0
  %2299 = vmatprep.subr.mxu0 0.0
  %2300 = vmatpush1.msra.mxu0 0.0
  %2301 = vmatprep.subr.mxu0 0.0
  %2302 = vmatpush1.msra.mxu0 0.0
  %2303 = vmatprep.subr.mxu0 0.0
  %2304 = vmatpush1.msra.mxu0 0.0
  %2305 = vmatprep.subr.mxu0 0.0
  %2306 = vmatpush1.msra.mxu0 %v2268
  %2307 = vmatprep.subr.mxu0 0.0
  %2308 = vmatpush1.msra.mxu0 %v2267
  %2309 = vmatprep.subr.mxu0 0.0
  %2310 = vmatpush1.msra.mxu0 %v2266
  %2311 = vmatprep.subr.mxu0 0.0
  %2312 = vmatpush1.msra.mxu0 %v2265
  %2313 = vmatprep.subr.mxu0 0.0
  %2314 = vmatpush2.msra.mxu0 0.0
  %2315 = vmatprep.subr.mxu0 0.0
  %2316 = vmatpush2.msra.mxu0 0.0
  %2317 = vmatprep.subr.mxu0 0.0
  %2318 = vmatpush2.msra.mxu0 0.0
  %2319 = vmatprep.subr.mxu0 0.0
  %2320 = vmatpush2.msra.mxu0 0.0
  %2321 = vmatprep.subr.mxu0 0.0
  %2322 = vmatpush2.msra.mxu0 0.0
  %2323 = vmatprep.subr.mxu0 0.0
  %2324 = vmatpush2.msra.mxu0 0.0
  %2325 = vmatprep.subr.mxu0 0.0
  %2326 = vmatpush2.msra.mxu0 0.0
  %2327 = vmatprep.subr.mxu0 0.0
  %2328 = vmatpush2.msra.mxu0 0.0
  %2329 = vmatprep.subr.mxu0 0.0
  %2330 = vmatpush2.msra.mxu0 0.0
  %2331 = vmatprep.subr.mxu0 0.0
  %2332 = vmatpush2.msra.mxu0 0.0
  %2333 = vmatprep.subr.mxu0 0.0
  %2334 = vmatpush2.msra.mxu0 0.0
  %2335 = vmatprep.subr.mxu0 0.0
  %2336 = vmatpush2.msra.mxu0 0.0
  %2337 = vmatprep.subr.mxu0 0.0
  %2338 = vmatpush2.msra.mxu0 0.0
  %2339 = vmatprep.subr.mxu0 0.0
  %2340 = vmatpush2.msra.mxu0 0.0
  %2341 = vmatprep.subr.mxu0 0.0
  %2342 = vmatpush2.msra.mxu0 0.0
  %2343 = vmatprep.subr.mxu0 0.0
  %2344 = vmatpush2.msra.mxu0 0.0
  %2345 = vmatprep.mubr.f32.mxu0 0.0
  %2346 = vmatmul.mubr.f32.gmra.mxu0 %v2270
  %v2347 = vpop.f32.mrf.mxu0
  %v2348 = vadd.f32 0.0, %v2347
  %v2349 = vpop.f32.mrf.mxu0
  %2350 = vmatprep.mubr.f32.mxu0 0.0
  %2351 = vmatmul.mubr.f32.gmra.mxu0 %v2273
  %v2352 = vpop.f32.mrf.mxu0
  %v2353 = vadd.f32 0.0, %v2352
  %v2354 = vpop.f32.mrf.mxu0
  %2355 = vmatprep.mubr.f32.mxu0 0.0
  %2356 = vmatmul.mubr.f32.gmra.mxu0 %v2276
  %v2357 = vpop.f32.mrf.mxu0
  %v2358 = vadd.f32 0.0, %v2357
  %v2359 = vpop.f32.mrf.mxu0
  %2360 = vmatprep.mubr.f32.mxu0 0.0
  %2361 = vmatmul.mubr.f32.gmra.mxu0 %v2279
  %v2362 = vpop.f32.mrf.mxu0
  %v2363 = vadd.f32 0.0, %v2362
  %v2364 = vpop.f32.mrf.mxu0
  %2365 = vdwg.mxu0
  %v2366 = vld [vmem:[%s14] sm:$0xff]
  %v2367 = vld [vmem:[%s14 + $0x8] sm:$0xff]
  %v2368 = vld [vmem:[%s14 + $0x10] sm:$0xff]
  %v2369 = vld [vmem:[%s14 + $0x18] sm:$0xff]
  %v2370 = vld [vmem:[%s15] sm:$0x1]
  %v2372 = vlaneseq
  %v2373 = vshrl.u32 %v2372, 7
  %v2374 = vsub.s32 0, %v2373
  %v2375 = vrot.slane %v2370, %v2374
  %v2378 = vsel %vm89, %v2348, 0
  %v2381 = vsel %vm89, %v2353, 0
  %v2384 = vsel %vm89, %v2358, 0
  %v2387 = vsel %vm89, %v2363, 0
  %2389 = vmatprep.subr.mxu0 0.0
  %2390 = vmatpush1.msra.mxu0 0.0
  %2391 = vmatprep.subr.mxu0 0.0
  %2392 = vmatpush1.msra.mxu0 0.0
  %2393 = vmatprep.subr.mxu0 0.0
  %2394 = vmatpush1.msra.mxu0 0.0
  %2395 = vmatprep.subr.mxu0 0.0
  %2396 = vmatpush1.msra.mxu0 0.0
  %2397 = vmatprep.subr.mxu0 0.0
  %2398 = vmatpush1.msra.mxu0 0.0
  %2399 = vmatprep.subr.mxu0 0.0
  %2400 = vmatpush1.msra.mxu0 0.0
  %2401 = vmatprep.subr.mxu0 0.0
  %2402 = vmatpush1.msra.mxu0 0.0
  %2403 = vmatprep.subr.mxu0 0.0
  %2404 = vmatpush1.msra.mxu0 0.0
  %2405 = vmatprep.subr.mxu0 0.0
  %2406 = vmatpush1.msra.mxu0 0.0
  %2407 = vmatprep.subr.mxu0 0.0
  %2408 = vmatpush1.msra.mxu0 0.0
  %2409 = vmatprep.subr.mxu0 0.0
  %2410 = vmatpush1.msra.mxu0 0.0
  %2411 = vmatprep.subr.mxu0 0.0
  %2412 = vmatpush1.msra.mxu0 0.0
  %2413 = vmatprep.subr.mxu0 0.0
  %2414 = vmatpush1.msra.mxu0 %v2369
  %2415 = vmatprep.subr.mxu0 0.0
  %2416 = vmatpush1.msra.mxu0 %v2368
  %2417 = vmatprep.subr.mxu0 0.0
  %2418 = vmatpush1.msra.mxu0 %v2367
  %2419 = vmatprep.subr.mxu0 0.0
  %2420 = vmatpush1.msra.mxu0 %v2366
  %2421 = vmatprep.subr.mxu0 0.0
  %2422 = vmatpush2.msra.mxu0 0.0
  %2423 = vmatprep.subr.mxu0 0.0
  %2424 = vmatpush2.msra.mxu0 0.0
  %2425 = vmatprep.subr.mxu0 0.0
  %2426 = vmatpush2.msra.mxu0 0.0
  %2427 = vmatprep.subr.mxu0 0.0
  %2428 = vmatpush2.msra.mxu0 0.0
  %2429 = vmatprep.subr.mxu0 0.0
  %2430 = vmatpush2.msra.mxu0 0.0
  %2431 = vmatprep.subr.mxu0 0.0
  %2432 = vmatpush2.msra.mxu0 0.0
  %2433 = vmatprep.subr.mxu0 0.0
  %2434 = vmatpush2.msra.mxu0 0.0
  %2435 = vmatprep.subr.mxu0 0.0
  %2436 = vmatpush2.msra.mxu0 0.0
  %2437 = vmatprep.subr.mxu0 0.0
  %2438 = vmatpush2.msra.mxu0 0.0
  %2439 = vmatprep.subr.mxu0 0.0
  %2440 = vmatpush2.msra.mxu0 0.0
  %2441 = vmatprep.subr.mxu0 0.0
  %2442 = vmatpush2.msra.mxu0 0.0
  %2443 = vmatprep.subr.mxu0 0.0
  %2444 = vmatpush2.msra.mxu0 0.0
  %2445 = vmatprep.subr.mxu0 0.0
  %2446 = vmatpush2.msra.mxu0 0.0
  %2447 = vmatprep.subr.mxu0 0.0
  %2448 = vmatpush2.msra.mxu0 0.0
  %2449 = vmatprep.subr.mxu0 0.0
  %2450 = vmatpush2.msra.mxu0 0.0
  %2451 = vmatprep.subr.mxu0 0.0
  %2452 = vmatpush2.msra.mxu0 0.0
  %2453 = vmatprep.mubr.f32.mxu0 0.0
  %2454 = vmatmul.mubr.f32.gmra.mxu0 %v2378
  %v2455 = vpop.f32.mrf.mxu0
  %v2456 = vadd.f32 %v2375, %v2455
  %v2457 = vpop.f32.mrf.mxu0
  %2458 = vmatprep.mubr.f32.mxu0 0.0
  %2459 = vmatmul.mubr.f32.gmra.mxu0 %v2381
  %v2460 = vpop.f32.mrf.mxu0
  %v2461 = vadd.f32 %v2375, %v2460
  %v2462 = vpop.f32.mrf.mxu0
  %2463 = vmatprep.mubr.f32.mxu0 0.0
  %2464 = vmatmul.mubr.f32.gmra.mxu0 %v2384
  %v2465 = vpop.f32.mrf.mxu0
  %v2466 = vadd.f32 %v2375, %v2465
  %v2467 = vpop.f32.mrf.mxu0
  %2468 = vmatprep.mubr.f32.mxu0 0.0
  %2469 = vmatmul.mubr.f32.gmra.mxu0 %v2387
  %v2470 = vpop.f32.mrf.mxu0
  %v2471 = vadd.f32 %v2375, %v2470
  %v2472 = vpop.f32.mrf.mxu0
  %2473 = vdwg.mxu0
  %v2474 = vmax.f32 %v2456, 0.0
  %v2475 = vmax.f32 %v2461, 0.0
  %v2476 = vmax.f32 %v2466, 0.0
  %v2477 = vmax.f32 %v2471, 0.0
  %2478 = vmatprep.subr.mxu0 0.0
  %2479 = vmatpush1.msra.mxu0 0.0
  %2480 = vmatprep.subr.mxu0 0.0
  %2481 = vmatpush1.msra.mxu0 0.0
  %2482 = vmatprep.subr.mxu0 0.0
  %2483 = vmatpush1.msra.mxu0 0.0
  %2484 = vmatprep.subr.mxu0 0.0
  %2485 = vmatpush1.msra.mxu0 0.0
  %2486 = vmatprep.subr.mxu0 0.0
  %2487 = vmatpush1.msra.mxu0 0.0
  %2488 = vmatprep.subr.mxu0 0.0
  %2489 = vmatpush1.msra.mxu0 0.0
  %2490 = vmatprep.subr.mxu0 0.0
  %2491 = vmatpush1.msra.mxu0 0.0
  %2492 = vmatprep.subr.mxu0 0.0
  %2493 = vmatpush1.msra.mxu0 0.0
  %2494 = vmatprep.subr.mxu0 0.0
  %2495 = vmatpush1.msra.mxu0 0.0
  %2496 = vmatprep.subr.mxu0 0.0
  %2497 = vmatpush1.msra.mxu0 0.0
  %2498 = vmatprep.subr.mxu0 0.0
  %2499 = vmatpush1.msra.mxu0 0.0
  %2500 = vmatprep.subr.mxu0 0.0
  %2501 = vmatpush1.msra.mxu0 0.0
  %2502 = vmatprep.subr.mxu0 0.0
  %2503 = vmatpush1.msra.mxu0 %v2477
  %2504 = vmatprep.subr.mxu0 0.0
  %2505 = vmatpush1.msra.mxu0 %v2476
  %2506 = vmatprep.subr.mxu0 0.0
  %2507 = vmatpush1.msra.mxu0 %v2475
  %2508 = vmatprep.subr.mxu0 0.0
  %2509 = vmatpush1.msra.mxu0 %v2474
  %2510 = vmatprep.subr.mxu0 0.0
  %2511 = vmatpush2.msra.mxu0 0.0
  %2512 = vmatprep.subr.mxu0 0.0
  %2513 = vmatpush2.msra.mxu0 0.0
  %2514 = vmatprep.subr.mxu0 0.0
  %2515 = vmatpush2.msra.mxu0 0.0
  %2516 = vmatprep.subr.mxu0 0.0
  %2517 = vmatpush2.msra.mxu0 0.0
  %2518 = vmatprep.subr.mxu0 0.0
  %2519 = vmatpush2.msra.mxu0 0.0
  %2520 = vmatprep.subr.mxu0 0.0
  %2521 = vmatpush2.msra.mxu0 0.0
  %2522 = vmatprep.subr.mxu0 0.0
  %2523 = vmatpush2.msra.mxu0 0.0
  %2524 = vmatprep.subr.mxu0 0.0
  %2525 = vmatpush2.msra.mxu0 0.0
  %2526 = vmatprep.subr.mxu0 0.0
  %2527 = vmatpush2.msra.mxu0 0.0
  %2528 = vmatprep.subr.mxu0 0.0
  %2529 = vmatpush2.msra.mxu0 0.0
  %2530 = vmatprep.subr.mxu0 0.0
  %2531 = vmatpush2.msra.mxu0 0.0
  %2532 = vmatprep.subr.mxu0 0.0
  %2533 = vmatpush2.msra.mxu0 0.0
  %2534 = vmatprep.subr.mxu0 0.0
  %2535 = vmatpush2.msra.mxu0 0.0
  %2536 = vmatprep.subr.mxu0 0.0
  %2537 = vmatpush2.msra.mxu0 0.0
  %2538 = vmatprep.subr.mxu0 0.0
  %2539 = vmatpush2.msra.mxu0 0.0
  %2540 = vmatprep.subr.mxu0 0.0
  %2541 = vmatpush2.msra.mxu0 0.0
  %2542 = vmatprep.mubr.f32.mxu0 0.0
  %2543 = vmatmul.mubr.f32.gmra.mxu0 %v2270
  %v2544 = vpop.f32.mrf.mxu0
  %v2545 = vadd.f32 0.0, %v2544
  %v2546 = vpop.f32.mrf.mxu0
  %2547 = vmatprep.mubr.f32.mxu0 0.0
  %2548 = vmatmul.mubr.f32.gmra.mxu0 %v2273
  %v2549 = vpop.f32.mrf.mxu0
  %v2550 = vadd.f32 0.0, %v2549
  %v2551 = vpop.f32.mrf.mxu0
  %2552 = vmatprep.mubr.f32.mxu0 0.0
  %2553 = vmatmul.mubr.f32.gmra.mxu0 %v2276
  %v2554 = vpop.f32.mrf.mxu0
  %v2555 = vadd.f32 0.0, %v2554
  %v2556 = vpop.f32.mrf.mxu0
  %2557 = vmatprep.mubr.f32.mxu0 0.0
  %2558 = vmatmul.mubr.f32.gmra.mxu0 %v2279
  %v2559 = vpop.f32.mrf.mxu0
  %v2560 = vadd.f32 0.0, %v2559
  %v2561 = vpop.f32.mrf.mxu0
  %2562 = vdwg.mxu0
  %v2563 = vld [vmem:[%s16] sm:$0xff]
  %v2564 = vld [vmem:[%s16 + $0x8] sm:$0xff]
  %v2565 = vld [vmem:[%s16 + $0x10] sm:$0xff]
  %v2566 = vld [vmem:[%s16 + $0x18] sm:$0xff]
  %v2567 = vld [vmem:[%s16 + $0x20] sm:$0xff]
  %v2568 = vld [vmem:[%s16 + $0x28] sm:$0xff]
  %v2569 = vld [vmem:[%s16 + $0x30] sm:$0xff]
  %v2570 = vld [vmem:[%s16 + $0x38] sm:$0xff]
  %v2571 = vld [vmem:[%s17] sm:$0x1]
  %v2573 = vlaneseq
  %v2574 = vshrl.u32 %v2573, 7
  %v2575 = vsub.s32 0, %v2574
  %v2576 = vrot.slane %v2571, %v2575
  %vm2578 = vcmask 523264
  %v2580 = vsel %vm2578, %v2545, 0
  %v2583 = vsel %vm2578, %v2550, 0
  %v2586 = vsel %vm2578, %v2555, 0
  %v2589 = vsel %vm2578, %v2560, 0
  %2591 = vmatprep.subr.mxu0 0.0
  %2592 = vmatpush1.msra.mxu0 0.0
  %2593 = vmatprep.subr.mxu0 0.0
  %2594 = vmatpush1.msra.mxu0 0.0
  %2595 = vmatprep.subr.mxu0 0.0
  %2596 = vmatpush1.msra.mxu0 0.0
  %2597 = vmatprep.subr.mxu0 0.0
  %2598 = vmatpush1.msra.mxu0 0.0
  %2599 = vmatprep.subr.mxu0 0.0
  %2600 = vmatpush1.msra.mxu0 0.0
  %2601 = vmatprep.subr.mxu0 0.0
  %2602 = vmatpush1.msra.mxu0 0.0
  %2603 = vmatprep.subr.mxu0 0.0
  %2604 = vmatpush1.msra.mxu0 0.0
  %2605 = vmatprep.subr.mxu0 0.0
  %2606 = vmatpush1.msra.mxu0 0.0
  %2607 = vmatprep.subr.mxu0 0.0
  %2608 = vmatpush1.msra.mxu0 %v2570
  %2609 = vmatprep.subr.mxu0 0.0
  %2610 = vmatpush1.msra.mxu0 %v2569
  %2611 = vmatprep.subr.mxu0 0.0
  %2612 = vmatpush1.msra.mxu0 %v2568
  %2613 = vmatprep.subr.mxu0 0.0
  %2614 = vmatpush1.msra.mxu0 %v2567
  %2615 = vmatprep.subr.mxu0 0.0
  %2616 = vmatpush1.msra.mxu0 %v2566
  %2617 = vmatprep.subr.mxu0 0.0
  %2618 = vmatpush1.msra.mxu0 %v2565
  %2619 = vmatprep.subr.mxu0 0.0
  %2620 = vmatpush1.msra.mxu0 %v2564
  %2621 = vmatprep.subr.mxu0 0.0
  %2622 = vmatpush1.msra.mxu0 %v2563
  %2623 = vmatprep.subr.mxu0 0.0
  %2624 = vmatpush2.msra.mxu0 0.0
  %2625 = vmatprep.subr.mxu0 0.0
  %2626 = vmatpush2.msra.mxu0 0.0
  %2627 = vmatprep.subr.mxu0 0.0
  %2628 = vmatpush2.msra.mxu0 0.0
  %2629 = vmatprep.subr.mxu0 0.0
  %2630 = vmatpush2.msra.mxu0 0.0
  %2631 = vmatprep.subr.mxu0 0.0
  %2632 = vmatpush2.msra.mxu0 0.0
  %2633 = vmatprep.subr.mxu0 0.0
  %2634 = vmatpush2.msra.mxu0 0.0
  %2635 = vmatprep.subr.mxu0 0.0
  %2636 = vmatpush2.msra.mxu0 0.0
  %2637 = vmatprep.subr.mxu0 0.0
  %2638 = vmatpush2.msra.mxu0 0.0
  %2639 = vmatprep.subr.mxu0 0.0
  %2640 = vmatpush2.msra.mxu0 0.0
  %2641 = vmatprep.subr.mxu0 0.0
  %2642 = vmatpush2.msra.mxu0 0.0
  %2643 = vmatprep.subr.mxu0 0.0
  %2644 = vmatpush2.msra.mxu0 0.0
  %2645 = vmatprep.subr.mxu0 0.0
  %2646 = vmatpush2.msra.mxu0 0.0
  %2647 = vmatprep.subr.mxu0 0.0
  %2648 = vmatpush2.msra.mxu0 0.0
  %2649 = vmatprep.subr.mxu0 0.0
  %2650 = vmatpush2.msra.mxu0 0.0
  %2651 = vmatprep.subr.mxu0 0.0
  %2652 = vmatpush2.msra.mxu0 0.0
  %2653 = vmatprep.subr.mxu0 0.0
  %2654 = vmatpush2.msra.mxu0 0.0
  %2655 = vmatprep.mubr.f32.mxu0 0.0
  %2656 = vmatmul.mubr.f32.gmra.mxu0 %v2580
  %v2657 = vpop.f32.mrf.mxu0
  %v2658 = vadd.f32 %v2576, %v2657
  %v2659 = vpop.f32.mrf.mxu0
  %2660 = vmatprep.mubr.f32.mxu0 0.0
  %2661 = vmatmul.mubr.f32.gmra.mxu0 %v2583
  %v2662 = vpop.f32.mrf.mxu0
  %v2663 = vadd.f32 %v2576, %v2662
  %v2664 = vpop.f32.mrf.mxu0
  %2665 = vmatprep.mubr.f32.mxu0 0.0
  %2666 = vmatmul.mubr.f32.gmra.mxu0 %v2586
  %v2667 = vpop.f32.mrf.mxu0
  %v2668 = vadd.f32 %v2576, %v2667
  %v2669 = vpop.f32.mrf.mxu0
  %2670 = vmatprep.mubr.f32.mxu0 0.0
  %2671 = vmatmul.mubr.f32.gmra.mxu0 %v2589
  %v2672 = vpop.f32.mrf.mxu0
  %v2673 = vadd.f32 %v2576, %v2672
  %v2674 = vpop.f32.mrf.mxu0
  %2675 = vdwg.mxu0
  %v2676 = vadd.f32 %v2169, %v2658
  %v2677 = vadd.f32 %v2170, %v2663
  %v2678 = vadd.f32 %v2171, %v2668
  %v2679 = vadd.f32 %v2172, %v2673
  %v2680 = vld [vmem:[%s18] sm:$0xff]
  %v2681 = vld [vmem:[%s18 + $0x8] sm:$0xff]
  %v2682 = vld [vmem:[%s18 + $0x10] sm:$0xff]
  %v2683 = vld [vmem:[%s18 + $0x18] sm:$0xff]
  %v2684 = vld [vmem:[%s18 + $0x20] sm:$0xff]
  %v2685 = vld [vmem:[%s18 + $0x28] sm:$0xff]
  %v2686 = vld [vmem:[%s18 + $0x30] sm:$0xff]
  %v2687 = vld [vmem:[%s18 + $0x38] sm:$0xff]
  %v2688 = vld [vmem:[%s18 + $0x40] sm:$0xff]
  %v2689 = vld [vmem:[%s18 + $0x48] sm:$0xff]
  %v2690 = vld [vmem:[%s18 + $0x50] sm:$0xff]
  %v2691 = vld [vmem:[%s18 + $0x58] sm:$0xff]
  %v2692 = vld [vmem:[%s19] sm:$0x1]
  %2693 = vmatprep.subr.mxu0 0.0
  %2694 = vmatpush1.msra.mxu0 0.0
  %2695 = vmatprep.subr.mxu0 0.0
  %2696 = vmatpush1.msra.mxu0 0.0
  %2697 = vmatprep.subr.mxu0 0.0
  %2698 = vmatpush1.msra.mxu0 0.0
  %2699 = vmatprep.subr.mxu0 0.0
  %2700 = vmatpush1.msra.mxu0 0.0
  %2701 = vmatprep.subr.mxu0 0.0
  %2702 = vmatpush1.msra.mxu0 0.0
  %2703 = vmatprep.subr.mxu0 0.0
  %2704 = vmatpush1.msra.mxu0 0.0
  %2705 = vmatprep.subr.mxu0 0.0
  %2706 = vmatpush1.msra.mxu0 0.0
  %2707 = vmatprep.subr.mxu0 0.0
  %2708 = vmatpush1.msra.mxu0 0.0
  %2709 = vmatprep.subr.mxu0 0.0
  %2710 = vmatpush1.msra.mxu0 0.0
  %2711 = vmatprep.subr.mxu0 0.0
  %2712 = vmatpush1.msra.mxu0 0.0
  %2713 = vmatprep.subr.mxu0 0.0
  %2714 = vmatpush1.msra.mxu0 0.0
  %2715 = vmatprep.subr.mxu0 0.0
  %2716 = vmatpush1.msra.mxu0 0.0
  %2717 = vmatprep.subr.mxu0 0.0
  %2718 = vmatpush1.msra.mxu0 %v2679
  %2719 = vmatprep.subr.mxu0 0.0
  %2720 = vmatpush1.msra.mxu0 %v2678
  %2721 = vmatprep.subr.mxu0 0.0
  %2722 = vmatpush1.msra.mxu0 %v2677
  %2723 = vmatprep.subr.mxu0 0.0
  %2724 = vmatpush1.msra.mxu0 %v2676
  %2725 = vmatprep.subr.mxu0 0.0
  %2726 = vmatpush2.msra.mxu0 0.0
  %2727 = vmatprep.subr.mxu0 0.0
  %2728 = vmatpush2.msra.mxu0 0.0
  %2729 = vmatprep.subr.mxu0 0.0
  %2730 = vmatpush2.msra.mxu0 0.0
  %2731 = vmatprep.subr.mxu0 0.0
  %2732 = vmatpush2.msra.mxu0 0.0
  %2733 = vmatprep.subr.mxu0 0.0
  %2734 = vmatpush2.msra.mxu0 0.0
  %2735 = vmatprep.subr.mxu0 0.0
  %2736 = vmatpush2.msra.mxu0 0.0
  %2737 = vmatprep.subr.mxu0 0.0
  %2738 = vmatpush2.msra.mxu0 0.0
  %2739 = vmatprep.subr.mxu0 0.0
  %2740 = vmatpush2.msra.mxu0 0.0
  %2741 = vmatprep.subr.mxu0 0.0
  %2742 = vmatpush2.msra.mxu0 0.0
  %2743 = vmatprep.subr.mxu0 0.0
  %2744 = vmatpush2.msra.mxu0 0.0
  %2745 = vmatprep.subr.mxu0 0.0
  %2746 = vmatpush2.msra.mxu0 0.0
  %2747 = vmatprep.subr.mxu0 0.0
  %2748 = vmatpush2.msra.mxu0 0.0
  %2749 = vmatprep.subr.mxu0 0.0
  %2750 = vmatpush2.msra.mxu0 0.0
  %2751 = vmatprep.subr.mxu0 0.0
  %2752 = vmatpush2.msra.mxu0 0.0
  %2753 = vmatprep.subr.mxu0 0.0
  %2754 = vmatpush2.msra.mxu0 0.0
  %2755 = vmatprep.subr.mxu0 0.0
  %2756 = vmatpush2.msra.mxu0 0.0
  %2757 = vmatprep.mubr.f32.mxu0 0.0
  %2758 = vmatmul.mubr.f32.gmra.mxu0 %v91
  %v2759 = vpop.f32.mrf.mxu0
  %v2760 = vadd.f32 0.0, %v2759
  %v2761 = vpop.f32.mrf.mxu0
  %2762 = vmatprep.mubr.f32.mxu0 0.0
  %2763 = vmatmul.mubr.f32.gmra.mxu0 %v94
  %v2764 = vpop.f32.mrf.mxu0
  %v2765 = vadd.f32 0.0, %v2764
  %v2766 = vpop.f32.mrf.mxu0
  %2767 = vmatprep.mubr.f32.mxu0 0.0
  %2768 = vmatmul.mubr.f32.gmra.mxu0 %v97
  %v2769 = vpop.f32.mrf.mxu0
  %v2770 = vadd.f32 0.0, %v2769
  %v2771 = vpop.f32.mrf.mxu0
  %2772 = vmatprep.mubr.f32.mxu0 0.0
  %2773 = vmatmul.mubr.f32.gmra.mxu0 %v100
  %v2774 = vpop.f32.mrf.mxu0
  %v2775 = vadd.f32 0.0, %v2774
  %v2776 = vpop.f32.mrf.mxu0
  %2777 = vdwg.mxu0
  %2778 = vmatprep.subr.mxu0 0.0
  %2779 = vmatpush1.msra.mxu0 0.0
  %2780 = vmatprep.subr.mxu0 0.0
  %2781 = vmatpush1.msra.mxu0 0.0
  %2782 = vmatprep.subr.mxu0 0.0
  %2783 = vmatpush1.msra.mxu0 0.0
  %2784 = vmatprep.subr.mxu0 0.0
  %2785 = vmatpush1.msra.mxu0 0.0
  %2786 = vmatprep.subr.mxu0 0.0
  %2787 = vmatpush1.msra.mxu0 0.0
  %2788 = vmatprep.subr.mxu0 0.0
  %2789 = vmatpush1.msra.mxu0 0.0
  %2790 = vmatprep.subr.mxu0 0.0
  %2791 = vmatpush1.msra.mxu0 0.0
  %2792 = vmatprep.subr.mxu0 0.0
  %2793 = vmatpush1.msra.mxu0 0.0
  %2794 = vmatprep.subr.mxu0 0.0
  %2795 = vmatpush1.msra.mxu0 0.0
  %2796 = vmatprep.subr.mxu0 0.0
  %2797 = vmatpush1.msra.mxu0 0.0
  %2798 = vmatprep.subr.mxu0 0.0
  %2799 = vmatpush1.msra.mxu0 0.0
  %2800 = vmatprep.subr.mxu0 0.0
  %2801 = vmatpush1.msra.mxu0 0.0
  %2802 = vmatprep.subr.mxu0 0.0
  %2803 = vmatpush1.msra.mxu0 %v2679
  %2804 = vmatprep.subr.mxu0 0.0
  %2805 = vmatpush1.msra.mxu0 %v2678
  %2806 = vmatprep.subr.mxu0 0.0
  %2807 = vmatpush1.msra.mxu0 %v2677
  %2808 = vmatprep.subr.mxu0 0.0
  %2809 = vmatpush1.msra.mxu0 %v2676
  %2810 = vmatprep.subr.mxu0 0.0
  %2811 = vmatpush2.msra.mxu0 0.0
  %2812 = vmatprep.subr.mxu0 0.0
  %2813 = vmatpush2.msra.mxu0 0.0
  %2814 = vmatprep.subr.mxu0 0.0
  %2815 = vmatpush2.msra.mxu0 0.0
  %2816 = vmatprep.subr.mxu0 0.0
  %2817 = vmatpush2.msra.mxu0 0.0
  %2818 = vmatprep.subr.mxu0 0.0
  %2819 = vmatpush2.msra.mxu0 0.0
  %2820 = vmatprep.subr.mxu0 0.0
  %2821 = vmatpush2.msra.mxu0 0.0
  %2822 = vmatprep.subr.mxu0 0.0
  %2823 = vmatpush2.msra.mxu0 0.0
  %2824 = vmatprep.subr.mxu0 0.0
  %2825 = vmatpush2.msra.mxu0 0.0
  %2826 = vmatprep.subr.mxu0 0.0
  %2827 = vmatpush2.msra.mxu0 0.0
  %2828 = vmatprep.subr.mxu0 0.0
  %2829 = vmatpush2.msra.mxu0 0.0
  %2830 = vmatprep.subr.mxu0 0.0
  %2831 = vmatpush2.msra.mxu0 0.0
  %2832 = vmatprep.subr.mxu0 0.0
  %2833 = vmatpush2.msra.mxu0 0.0
  %2834 = vmatprep.subr.mxu0 0.0
  %2835 = vmatpush2.msra.mxu0 0.0
  %2836 = vmatprep.subr.mxu0 0.0
  %2837 = vmatpush2.msra.mxu0 0.0
  %2838 = vmatprep.subr.mxu0 0.0
  %2839 = vmatpush2.msra.mxu0 0.0
  %2840 = vmatprep.subr.mxu0 0.0
  %2841 = vmatpush2.msra.mxu0 0.0
  %2842 = vmatprep.mubr.f32.mxu0 0.0
  %2843 = vmatmul.mubr.f32.gmra.mxu0 %v188
  %v2844 = vpop.f32.mrf.mxu0
  %v2845 = vadd.f32 0.0, %v2844
  %v2846 = vpop.f32.mrf.mxu0
  %2847 = vmatprep.mubr.f32.mxu0 0.0
  %2848 = vmatmul.mubr.f32.gmra.mxu0 %v191
  %v2849 = vpop.f32.mrf.mxu0
  %v2850 = vadd.f32 0.0, %v2849
  %v2851 = vpop.f32.mrf.mxu0
  %2852 = vmatprep.mubr.f32.mxu0 0.0
  %2853 = vmatmul.mubr.f32.gmra.mxu0 %v194
  %v2854 = vpop.f32.mrf.mxu0
  %v2855 = vadd.f32 0.0, %v2854
  %v2856 = vpop.f32.mrf.mxu0
  %2857 = vmatprep.mubr.f32.mxu0 0.0
  %2858 = vmatmul.mubr.f32.gmra.mxu0 %v197
  %v2859 = vpop.f32.mrf.mxu0
  %v2860 = vadd.f32 0.0, %v2859
  %v2861 = vpop.f32.mrf.mxu0
  %2862 = vdwg.mxu0
  %2867 = vrot.lane.b32.xlu0 %v2760, 32
  %v2868 = vpop.permute.xlu0 %2867
  %2869 = vrot.lane.b32.xlu0 %v2765, 32
  %v2870 = vpop.permute.xlu0 %2869
  %2871 = vrot.lane.b32.xlu0 %v2770, 32
  %v2872 = vpop.permute.xlu0 %2871
  %2873 = vrot.lane.b32.xlu0 %v2775, 32
  %v2874 = vpop.permute.xlu0 %2873
  %2883 = vrot.lane.b32.xlu0 %v2845, 64
  %v2884 = vpop.permute.xlu0 %2883
  %2885 = vrot.lane.b32.xlu0 %v2850, 64
  %v2886 = vpop.permute.xlu0 %2885
  %2887 = vrot.lane.b32.xlu0 %v2855, 64
  %v2888 = vpop.permute.xlu0 %2887
  %2889 = vrot.lane.b32.xlu0 %v2860, 64
  %v2890 = vpop.permute.xlu0 %2889
  %v2895 = vsel %vm89, %v2676, %v2868
  %v2896 = vsel %vm89, %v2677, %v2870
  %v2897 = vsel %vm89, %v2678, %v2872
  %v2898 = vsel %vm89, %v2679, %v2874
  %v2899 = vsel %vm2578, %v2895, %v2884
  %v2900 = vsel %vm2578, %v2896, %v2886
  %v2901 = vsel %vm2578, %v2897, %v2888
  %v2902 = vsel %vm2578, %v2898, %v2890
  %v2904 = vlaneseq
  %v2905 = vshrl.u32 %v2904, 7
  %v2906 = vsub.s32 0, %v2905
  %v2907 = vrot.slane %v2692, %v2906
  %vm2909 = vcmask 785408
  %v2911 = vsel %vm2909, %v2899, 0
  %v2914 = vsel %vm2909, %v2900, 0
  %v2917 = vsel %vm2909, %v2901, 0
  %v2920 = vsel %vm2909, %v2902, 0
  %2922 = vmatprep.subr.mxu0 0.0
  %2923 = vmatpush1.msra.mxu0 0.0
  %2924 = vmatprep.subr.mxu0 0.0
  %2925 = vmatpush1.msra.mxu0 0.0
  %2926 = vmatprep.subr.mxu0 0.0
  %2927 = vmatpush1.msra.mxu0 0.0
  %2928 = vmatprep.subr.mxu0 0.0
  %2929 = vmatpush1.msra.mxu0 0.0
  %2930 = vmatprep.subr.mxu0 0.0
  %2931 = vmatpush1.msra.mxu0 %v2691
  %2932 = vmatprep.subr.mxu0 0.0
  %2933 = vmatpush1.msra.mxu0 %v2690
  %2934 = vmatprep.subr.mxu0 0.0
  %2935 = vmatpush1.msra.mxu0 %v2689
  %2936 = vmatprep.subr.mxu0 0.0
  %2937 = vmatpush1.msra.mxu0 %v2688
  %2938 = vmatprep.subr.mxu0 0.0
  %2939 = vmatpush1.msra.mxu0 %v2687
  %2940 = vmatprep.subr.mxu0 0.0
  %2941 = vmatpush1.msra.mxu0 %v2686
  %2942 = vmatprep.subr.mxu0 0.0
  %2943 = vmatpush1.msra.mxu0 %v2685
  %2944 = vmatprep.subr.mxu0 0.0
  %2945 = vmatpush1.msra.mxu0 %v2684
  %2946 = vmatprep.subr.mxu0 0.0
  %2947 = vmatpush1.msra.mxu0 %v2683
  %2948 = vmatprep.subr.mxu0 0.0
  %2949 = vmatpush1.msra.mxu0 %v2682
  %2950 = vmatprep.subr.mxu0 0.0
  %2951 = vmatpush1.msra.mxu0 %v2681
  %2952 = vmatprep.subr.mxu0 0.0
  %2953 = vmatpush1.msra.mxu0 %v2680
  %2954 = vmatprep.subr.mxu0 0.0
  %2955 = vmatpush2.msra.mxu0 0.0
  %2956 = vmatprep.subr.mxu0 0.0
  %2957 = vmatpush2.msra.mxu0 0.0
  %2958 = vmatprep.subr.mxu0 0.0
  %2959 = vmatpush2.msra.mxu0 0.0
  %2960 = vmatprep.subr.mxu0 0.0
  %2961 = vmatpush2.msra.mxu0 0.0
  %2962 = vmatprep.subr.mxu0 0.0
  %2963 = vmatpush2.msra.mxu0 0.0
  %2964 = vmatprep.subr.mxu0 0.0
  %2965 = vmatpush2.msra.mxu0 0.0
  %2966 = vmatprep.subr.mxu0 0.0
  %2967 = vmatpush2.msra.mxu0 0.0
  %2968 = vmatprep.subr.mxu0 0.0
  %2969 = vmatpush2.msra.mxu0 0.0
  %2970 = vmatprep.subr.mxu0 0.0
  %2971 = vmatpush2.msra.mxu0 0.0
  %2972 = vmatprep.subr.mxu0 0.0
  %2973 = vmatpush2.msra.mxu0 0.0
  %2974 = vmatprep.subr.mxu0 0.0
  %2975 = vmatpush2.msra.mxu0 0.0
  %2976 = vmatprep.subr.mxu0 0.0
  %2977 = vmatpush2.msra.mxu0 0.0
  %2978 = vmatprep.subr.mxu0 0.0
  %2979 = vmatpush2.msra.mxu0 0.0
  %2980 = vmatprep.subr.mxu0 0.0
  %2981 = vmatpush2.msra.mxu0 0.0
  %2982 = vmatprep.subr.mxu0 0.0
  %2983 = vmatpush2.msra.mxu0 0.0
  %2984 = vmatprep.subr.mxu0 0.0
  %2985 = vmatpush2.msra.mxu0 0.0
  %2986 = vmatprep.mubr.f32.mxu0 0.0
  %2987 = vmatmul.mubr.f32.gmra.mxu0 %v2911
  %v2988 = vpop.f32.mrf.mxu0
  %v2989 = vadd.f32 %v2907, %v2988
  %v2990 = vpop.f32.mrf.mxu0
  %2991 = vmatprep.mubr.f32.mxu0 0.0
  %2992 = vmatmul.mubr.f32.gmra.mxu0 %v2914
  %v2993 = vpop.f32.mrf.mxu0
  %v2994 = vadd.f32 %v2907, %v2993
  %v2995 = vpop.f32.mrf.mxu0
  %2996 = vmatprep.mubr.f32.mxu0 0.0
  %2997 = vmatmul.mubr.f32.gmra.mxu0 %v2917
  %v2998 = vpop.f32.mrf.mxu0
  %v2999 = vadd.f32 %v2907, %v2998
  %v3000 = vpop.f32.mrf.mxu0
  %3001 = vmatprep.mubr.f32.mxu0 0.0
  %3002 = vmatmul.mubr.f32.gmra.mxu0 %v2920
  %v3003 = vpop.f32.mrf.mxu0
  %v3004 = vadd.f32 %v2907, %v3003
  %v3005 = vpop.f32.mrf.mxu0
  %3006 = vdwg.mxu0
  %v3007 = vmax.f32 %v2989, 0.0
  %v3008 = vmax.f32 %v2994, 0.0
  %v3009 = vmax.f32 %v2999, 0.0
  %v3010 = vmax.f32 %v3004, 0.0
  %v3011 = vld [vmem:[%s20] sm:$0xff]
  %v3012 = vld [vmem:[%s20 + $0x8] sm:$0xff]
  %v3013 = vld [vmem:[%s20 + $0x10] sm:$0xff]
  %v3014 = vld [vmem:[%s20 + $0x18] sm:$0xff]
  %v3015 = vld [vmem:[%s20 + $0x20] sm:$0xff]
  %v3016 = vld [vmem:[%s20 + $0x28] sm:$0xff]
  %v3017 = vld [vmem:[%s20 + $0x30] sm:$0xff]
  %v3018 = vld [vmem:[%s20 + $0x38] sm:$0xff]
  %v3019 = vld [vmem:[%s20 + $0x40] sm:$0xff]
  %v3020 = vld [vmem:[%s20 + $0x48] sm:$0xff]
  %v3021 = vld [vmem:[%s20 + $0x50] sm:$0xff]
  %v3022 = vld [vmem:[%s20 + $0x58] sm:$0xff]
  %v3023 = vld [vmem:[%s21] sm:$0x1]
  %3024 = vmatprep.subr.mxu0 0.0
  %3025 = vmatpush1.msra.mxu0 0.0
  %3026 = vmatprep.subr.mxu0 0.0
  %3027 = vmatpush1.msra.mxu0 0.0
  %3028 = vmatprep.subr.mxu0 0.0
  %3029 = vmatpush1.msra.mxu0 0.0
  %3030 = vmatprep.subr.mxu0 0.0
  %3031 = vmatpush1.msra.mxu0 0.0
  %3032 = vmatprep.subr.mxu0 0.0
  %3033 = vmatpush1.msra.mxu0 0.0
  %3034 = vmatprep.subr.mxu0 0.0
  %3035 = vmatpush1.msra.mxu0 0.0
  %3036 = vmatprep.subr.mxu0 0.0
  %3037 = vmatpush1.msra.mxu0 0.0
  %3038 = vmatprep.subr.mxu0 0.0
  %3039 = vmatpush1.msra.mxu0 0.0
  %3040 = vmatprep.subr.mxu0 0.0
  %3041 = vmatpush1.msra.mxu0 0.0
  %3042 = vmatprep.subr.mxu0 0.0
  %3043 = vmatpush1.msra.mxu0 0.0
  %3044 = vmatprep.subr.mxu0 0.0
  %3045 = vmatpush1.msra.mxu0 0.0
  %3046 = vmatprep.subr.mxu0 0.0
  %3047 = vmatpush1.msra.mxu0 0.0
  %3048 = vmatprep.subr.mxu0 0.0
  %3049 = vmatpush1.msra.mxu0 %v3010
  %3050 = vmatprep.subr.mxu0 0.0
  %3051 = vmatpush1.msra.mxu0 %v3009
  %3052 = vmatprep.subr.mxu0 0.0
  %3053 = vmatpush1.msra.mxu0 %v3008
  %3054 = vmatprep.subr.mxu0 0.0
  %3055 = vmatpush1.msra.mxu0 %v3007
  %3056 = vmatprep.subr.mxu0 0.0
  %3057 = vmatpush2.msra.mxu0 0.0
  %3058 = vmatprep.subr.mxu0 0.0
  %3059 = vmatpush2.msra.mxu0 0.0
  %3060 = vmatprep.subr.mxu0 0.0
  %3061 = vmatpush2.msra.mxu0 0.0
  %3062 = vmatprep.subr.mxu0 0.0
  %3063 = vmatpush2.msra.mxu0 0.0
  %3064 = vmatprep.subr.mxu0 0.0
  %3065 = vmatpush2.msra.mxu0 0.0
  %3066 = vmatprep.subr.mxu0 0.0
  %3067 = vmatpush2.msra.mxu0 0.0
  %3068 = vmatprep.subr.mxu0 0.0
  %3069 = vmatpush2.msra.mxu0 0.0
  %3070 = vmatprep.subr.mxu0 0.0
  %3071 = vmatpush2.msra.mxu0 0.0
  %3072 = vmatprep.subr.mxu0 0.0
  %3073 = vmatpush2.msra.mxu0 0.0
  %3074 = vmatprep.subr.mxu0 0.0
  %3075 = vmatpush2.msra.mxu0 0.0
  %3076 = vmatprep.subr.mxu0 0.0
  %3077 = vmatpush2.msra.mxu0 0.0
  %3078 = vmatprep.subr.mxu0 0.0
  %3079 = vmatpush2.msra.mxu0 0.0
  %3080 = vmatprep.subr.mxu0 0.0
  %3081 = vmatpush2.msra.mxu0 0.0
  %3082 = vmatprep.subr.mxu0 0.0
  %3083 = vmatpush2.msra.mxu0 0.0
  %3084 = vmatprep.subr.mxu0 0.0
  %3085 = vmatpush2.msra.mxu0 0.0
  %3086 = vmatprep.subr.mxu0 0.0
  %3087 = vmatpush2.msra.mxu0 0.0
  %3088 = vmatprep.mubr.f32.mxu0 0.0
  %3089 = vmatmul.mubr.f32.gmra.mxu0 %v91
  %v3090 = vpop.f32.mrf.mxu0
  %v3091 = vadd.f32 0.0, %v3090
  %v3092 = vpop.f32.mrf.mxu0
  %3093 = vmatprep.mubr.f32.mxu0 0.0
  %3094 = vmatmul.mubr.f32.gmra.mxu0 %v94
  %v3095 = vpop.f32.mrf.mxu0
  %v3096 = vadd.f32 0.0, %v3095
  %v3097 = vpop.f32.mrf.mxu0
  %3098 = vmatprep.mubr.f32.mxu0 0.0
  %3099 = vmatmul.mubr.f32.gmra.mxu0 %v97
  %v3100 = vpop.f32.mrf.mxu0
  %v3101 = vadd.f32 0.0, %v3100
  %v3102 = vpop.f32.mrf.mxu0
  %3103 = vmatprep.mubr.f32.mxu0 0.0
  %3104 = vmatmul.mubr.f32.gmra.mxu0 %v100
  %v3105 = vpop.f32.mrf.mxu0
  %v3106 = vadd.f32 0.0, %v3105
  %v3107 = vpop.f32.mrf.mxu0
  %3108 = vdwg.mxu0
  %3109 = vmatprep.subr.mxu0 0.0
  %3110 = vmatpush1.msra.mxu0 0.0
  %3111 = vmatprep.subr.mxu0 0.0
  %3112 = vmatpush1.msra.mxu0 0.0
  %3113 = vmatprep.subr.mxu0 0.0
  %3114 = vmatpush1.msra.mxu0 0.0
  %3115 = vmatprep.subr.mxu0 0.0
  %3116 = vmatpush1.msra.mxu0 0.0
  %3117 = vmatprep.subr.mxu0 0.0
  %3118 = vmatpush1.msra.mxu0 0.0
  %3119 = vmatprep.subr.mxu0 0.0
  %3120 = vmatpush1.msra.mxu0 0.0
  %3121 = vmatprep.subr.mxu0 0.0
  %3122 = vmatpush1.msra.mxu0 0.0
  %3123 = vmatprep.subr.mxu0 0.0
  %3124 = vmatpush1.msra.mxu0 0.0
  %3125 = vmatprep.subr.mxu0 0.0
  %3126 = vmatpush1.msra.mxu0 0.0
  %3127 = vmatprep.subr.mxu0 0.0
  %3128 = vmatpush1.msra.mxu0 0.0
  %3129 = vmatprep.subr.mxu0 0.0
  %3130 = vmatpush1.msra.mxu0 0.0
  %3131 = vmatprep.subr.mxu0 0.0
  %3132 = vmatpush1.msra.mxu0 0.0
  %3133 = vmatprep.subr.mxu0 0.0
  %3134 = vmatpush1.msra.mxu0 %v3010
  %3135 = vmatprep.subr.mxu0 0.0
  %3136 = vmatpush1.msra.mxu0 %v3009
  %3137 = vmatprep.subr.mxu0 0.0
  %3138 = vmatpush1.msra.mxu0 %v3008
  %3139 = vmatprep.subr.mxu0 0.0
  %3140 = vmatpush1.msra.mxu0 %v3007
  %3141 = vmatprep.subr.mxu0 0.0
  %3142 = vmatpush2.msra.mxu0 0.0
  %3143 = vmatprep.subr.mxu0 0.0
  %3144 = vmatpush2.msra.mxu0 0.0
  %3145 = vmatprep.subr.mxu0 0.0
  %3146 = vmatpush2.msra.mxu0 0.0
  %3147 = vmatprep.subr.mxu0 0.0
  %3148 = vmatpush2.msra.mxu0 0.0
  %3149 = vmatprep.subr.mxu0 0.0
  %3150 = vmatpush2.msra.mxu0 0.0
  %3151 = vmatprep.subr.mxu0 0.0
  %3152 = vmatpush2.msra.mxu0 0.0
  %3153 = vmatprep.subr.mxu0 0.0
  %3154 = vmatpush2.msra.mxu0 0.0
  %3155 = vmatprep.subr.mxu0 0.0
  %3156 = vmatpush2.msra.mxu0 0.0
  %3157 = vmatprep.subr.mxu0 0.0
  %3158 = vmatpush2.msra.mxu0 0.0
  %3159 = vmatprep.subr.mxu0 0.0
  %3160 = vmatpush2.msra.mxu0 0.0
  %3161 = vmatprep.subr.mxu0 0.0
  %3162 = vmatpush2.msra.mxu0 0.0
  %3163 = vmatprep.subr.mxu0 0.0
  %3164 = vmatpush2.msra.mxu0 0.0
  %3165 = vmatprep.subr.mxu0 0.0
  %3166 = vmatpush2.msra.mxu0 0.0
  %3167 = vmatprep.subr.mxu0 0.0
  %3168 = vmatpush2.msra.mxu0 0.0
  %3169 = vmatprep.subr.mxu0 0.0
  %3170 = vmatpush2.msra.mxu0 0.0
  %3171 = vmatprep.subr.mxu0 0.0
  %3172 = vmatpush2.msra.mxu0 0.0
  %3173 = vmatprep.mubr.f32.mxu0 0.0
  %3174 = vmatmul.mubr.f32.gmra.mxu0 %v188
  %v3175 = vpop.f32.mrf.mxu0
  %v3176 = vadd.f32 0.0, %v3175
  %v3177 = vpop.f32.mrf.mxu0
  %3178 = vmatprep.mubr.f32.mxu0 0.0
  %3179 = vmatmul.mubr.f32.gmra.mxu0 %v191
  %v3180 = vpop.f32.mrf.mxu0
  %v3181 = vadd.f32 0.0, %v3180
  %v3182 = vpop.f32.mrf.mxu0
  %3183 = vmatprep.mubr.f32.mxu0 0.0
  %3184 = vmatmul.mubr.f32.gmra.mxu0 %v194
  %v3185 = vpop.f32.mrf.mxu0
  %v3186 = vadd.f32 0.0, %v3185
  %v3187 = vpop.f32.mrf.mxu0
  %3188 = vmatprep.mubr.f32.mxu0 0.0
  %3189 = vmatmul.mubr.f32.gmra.mxu0 %v197
  %v3190 = vpop.f32.mrf.mxu0
  %v3191 = vadd.f32 0.0, %v3190
  %v3192 = vpop.f32.mrf.mxu0
  %3193 = vdwg.mxu0
  %3198 = vrot.lane.b32.xlu0 %v3091, 32
  %v3199 = vpop.permute.xlu0 %3198
  %3200 = vrot.lane.b32.xlu0 %v3096, 32
  %v3201 = vpop.permute.xlu0 %3200
  %3202 = vrot.lane.b32.xlu0 %v3101, 32
  %v3203 = vpop.permute.xlu0 %3202
  %3204 = vrot.lane.b32.xlu0 %v3106, 32
  %v3205 = vpop.permute.xlu0 %3204
  %3214 = vrot.lane.b32.xlu0 %v3176, 64
  %v3215 = vpop.permute.xlu0 %3214
  %3216 = vrot.lane.b32.xlu0 %v3181, 64
  %v3217 = vpop.permute.xlu0 %3216
  %3218 = vrot.lane.b32.xlu0 %v3186, 64
  %v3219 = vpop.permute.xlu0 %3218
  %3220 = vrot.lane.b32.xlu0 %v3191, 64
  %v3221 = vpop.permute.xlu0 %3220
  %v3226 = vsel %vm89, %v3007, %v3199
  %v3227 = vsel %vm89, %v3008, %v3201
  %v3228 = vsel %vm89, %v3009, %v3203
  %v3229 = vsel %vm89, %v3010, %v3205
  %v3230 = vsel %vm2578, %v3226, %v3215
  %v3231 = vsel %vm2578, %v3227, %v3217
  %v3232 = vsel %vm2578, %v3228, %v3219
  %v3233 = vsel %vm2578, %v3229, %v3221
  %v3235 = vlaneseq
  %v3236 = vshrl.u32 %v3235, 7
  %v3237 = vsub.s32 0, %v3236
  %v3238 = vrot.slane %v3023, %v3237
  %v3241 = vsel %vm2909, %v3230, 0
  %v3244 = vsel %vm2909, %v3231, 0
  %v3247 = vsel %vm2909, %v3232, 0
  %v3250 = vsel %vm2909, %v3233, 0
  %3252 = vmatprep.subr.mxu0 0.0
  %3253 = vmatpush1.msra.mxu0 0.0
  %3254 = vmatprep.subr.mxu0 0.0
  %3255 = vmatpush1.msra.mxu0 0.0
  %3256 = vmatprep.subr.mxu0 0.0
  %3257 = vmatpush1.msra.mxu0 0.0
  %3258 = vmatprep.subr.mxu0 0.0
  %3259 = vmatpush1.msra.mxu0 0.0
  %3260 = vmatprep.subr.mxu0 0.0
  %3261 = vmatpush1.msra.mxu0 %v3022
  %3262 = vmatprep.subr.mxu0 0.0
  %3263 = vmatpush1.msra.mxu0 %v3021
  %3264 = vmatprep.subr.mxu0 0.0
  %3265 = vmatpush1.msra.mxu0 %v3020
  %3266 = vmatprep.subr.mxu0 0.0
  %3267 = vmatpush1.msra.mxu0 %v3019
  %3268 = vmatprep.subr.mxu0 0.0
  %3269 = vmatpush1.msra.mxu0 %v3018
  %3270 = vmatprep.subr.mxu0 0.0
  %3271 = vmatpush1.msra.mxu0 %v3017
  %3272 = vmatprep.subr.mxu0 0.0
  %3273 = vmatpush1.msra.mxu0 %v3016
  %3274 = vmatprep.subr.mxu0 0.0
  %3275 = vmatpush1.msra.mxu0 %v3015
  %3276 = vmatprep.subr.mxu0 0.0
  %3277 = vmatpush1.msra.mxu0 %v3014
  %3278 = vmatprep.subr.mxu0 0.0
  %3279 = vmatpush1.msra.mxu0 %v3013
  %3280 = vmatprep.subr.mxu0 0.0
  %3281 = vmatpush1.msra.mxu0 %v3012
  %3282 = vmatprep.subr.mxu0 0.0
  %3283 = vmatpush1.msra.mxu0 %v3011
  %3284 = vmatprep.subr.mxu0 0.0
  %3285 = vmatpush2.msra.mxu0 0.0
  %3286 = vmatprep.subr.mxu0 0.0
  %3287 = vmatpush2.msra.mxu0 0.0
  %3288 = vmatprep.subr.mxu0 0.0
  %3289 = vmatpush2.msra.mxu0 0.0
  %3290 = vmatprep.subr.mxu0 0.0
  %3291 = vmatpush2.msra.mxu0 0.0
  %3292 = vmatprep.subr.mxu0 0.0
  %3293 = vmatpush2.msra.mxu0 0.0
  %3294 = vmatprep.subr.mxu0 0.0
  %3295 = vmatpush2.msra.mxu0 0.0
  %3296 = vmatprep.subr.mxu0 0.0
  %3297 = vmatpush2.msra.mxu0 0.0
  %3298 = vmatprep.subr.mxu0 0.0
  %3299 = vmatpush2.msra.mxu0 0.0
  %3300 = vmatprep.subr.mxu0 0.0
  %3301 = vmatpush2.msra.mxu0 0.0
  %3302 = vmatprep.subr.mxu0 0.0
  %3303 = vmatpush2.msra.mxu0 0.0
  %3304 = vmatprep.subr.mxu0 0.0
  %3305 = vmatpush2.msra.mxu0 0.0
  %3306 = vmatprep.subr.mxu0 0.0
  %3307 = vmatpush2.msra.mxu0 0.0
  %3308 = vmatprep.subr.mxu0 0.0
  %3309 = vmatpush2.msra.mxu0 0.0
  %3310 = vmatprep.subr.mxu0 0.0
  %3311 = vmatpush2.msra.mxu0 0.0
  %3312 = vmatprep.subr.mxu0 0.0
  %3313 = vmatpush2.msra.mxu0 0.0
  %3314 = vmatprep.subr.mxu0 0.0
  %3315 = vmatpush2.msra.mxu0 0.0
  %3316 = vmatprep.mubr.f32.mxu0 0.0
  %3317 = vmatmul.mubr.f32.gmra.mxu0 %v3241
  %v3318 = vpop.f32.mrf.mxu0
  %v3319 = vadd.f32 %v3238, %v3318
  %v3320 = vpop.f32.mrf.mxu0
  %3321 = vmatprep.mubr.f32.mxu0 0.0
  %3322 = vmatmul.mubr.f32.gmra.mxu0 %v3244
  %v3323 = vpop.f32.mrf.mxu0
  %v3324 = vadd.f32 %v3238, %v3323
  %v3325 = vpop.f32.mrf.mxu0
  %3326 = vmatprep.mubr.f32.mxu0 0.0
  %3327 = vmatmul.mubr.f32.gmra.mxu0 %v3247
  %v3328 = vpop.f32.mrf.mxu0
  %v3329 = vadd.f32 %v3238, %v3328
  %v3330 = vpop.f32.mrf.mxu0
  %3331 = vmatprep.mubr.f32.mxu0 0.0
  %3332 = vmatmul.mubr.f32.gmra.mxu0 %v3250
  %v3333 = vpop.f32.mrf.mxu0
  %v3334 = vadd.f32 %v3238, %v3333
  %v3335 = vpop.f32.mrf.mxu0
  %3336 = vdwg.mxu0
  %v3337 = vmax.f32 %v3319, 0.0
  %v3338 = vmax.f32 %v3324, 0.0
  %v3339 = vmax.f32 %v3329, 0.0
  %v3340 = vmax.f32 %v3334, 0.0
  %v3341 = vadd.f32 %v2676, %v3337
  %v3342 = vadd.f32 %v2677, %v3338
  %v3343 = vadd.f32 %v2678, %v3339
  %v3344 = vadd.f32 %v2679, %v3340
  %s3345 = scalar_lea.vmem %s9, 4
  %v3346 = vld [vmem:[%s3345] sm:$0xf]
  %s3347 = scalar_lea.vmem %s12, 32
  %v3348 = vld [vmem:[%s3347] sm:$0xff]
  %v3349 = vld [vmem:[%s3347 + $0x8] sm:$0xff]
  %v3350 = vld [vmem:[%s3347 + $0x10] sm:$0xff]
  %v3351 = vld [vmem:[%s3347 + $0x18] sm:$0xff]
  %s3352 = scalar_lea.vmem %s4, 32
  %v3353 = vld [vmem:[%s3352] sm:$0xff]
  %v3354 = vld [vmem:[%s3352 + $0x8] sm:$0xff]
  %v3355 = vld [vmem:[%s3352 + $0x10] sm:$0xff]
  %v3356 = vld [vmem:[%s3352 + $0x18] sm:$0xff]
  %v3357 = vsel %vm89, %v3341, 0.0
  %3358 = vadd.xlane.f32.xlu0 %v3357
  %v3359 = vpop.xlane.xlu0 %3358
  %v3360 = vsel %vm89, %v3342, 0.0
  %3361 = vadd.xlane.f32.xlu0 %v3360
  %v3362 = vpop.xlane.xlu0 %3361
  %v3363 = vsel %vm89, %v3343, 0.0
  %3364 = vadd.xlane.f32.xlu0 %v3363
  %v3365 = vpop.xlane.xlu0 %3364
  %v3366 = vsel %vm89, %v3344, 0.0
  %3367 = vadd.xlane.f32.xlu0 %v3366
  %v3368 = vpop.xlane.xlu0 %3367
  %v3369 = vmul.f32 %v3359, %v455
  %v3370 = vmul.f32 %v3362, %v455
  %v3371 = vmul.f32 %v3365, %v455
  %v3372 = vmul.f32 %v3368, %v455
  %v3373 = vsub.f32 %v3341, %v3369
  %v3374 = vsub.f32 %v3342, %v3370
  %v3375 = vsub.f32 %v3343, %v3371
  %v3376 = vsub.f32 %v3344, %v3372
  %v3377 = vmul.f32 %v3373, %v3373
  %v3378 = vmul.f32 %v3374, %v3374
  %v3379 = vmul.f32 %v3375, %v3375
  %v3380 = vmul.f32 %v3376, %v3376
  %v3381 = vsel %vm89, %v3377, 0.0
  %3382 = vadd.xlane.f32.xlu0 %v3381
  %v3383 = vpop.xlane.xlu0 %3382
  %v3384 = vsel %vm89, %v3378, 0.0
  %3385 = vadd.xlane.f32.xlu0 %v3384
  %v3386 = vpop.xlane.xlu0 %3385
  %v3387 = vsel %vm89, %v3379, 0.0
  %3388 = vadd.xlane.f32.xlu0 %v3387
  %v3389 = vpop.xlane.xlu0 %3388
  %v3390 = vsel %vm89, %v3380, 0.0
  %3391 = vadd.xlane.f32.xlu0 %v3390
  %v3392 = vpop.xlane.xlu0 %3391
  %v3393 = vmul.f32 %v3383, %v480
  %v3394 = vmul.f32 %v3386, %v480
  %v3395 = vmul.f32 %v3389, %v480
  %v3396 = vmul.f32 %v3392, %v480
  %v3397 = vlaneseq
  %v3398 = vshrl.u32 %v3397, 7
  %v3399 = vsub.s32 0, %v3398
  %v3400 = vrot.slane %v3346, %v3399
  %v3401 = vmul.f32 %v3400, %v3373
  %v3402 = vmul.f32 %v3400, %v3374
  %v3403 = vmul.f32 %v3400, %v3375
  %v3404 = vmul.f32 %v3400, %v3376
  %v3405 = vrsqrt.pop %v3393
  %v3406 = vmul.f32 %v3393, %v3405
  %vm3407 = vcmp.eq.f32.partialorder %v3393, inf
  %v3408 = vsel %vm3407, %v3393, %v3406
  %vm3409 = vcmp.eq.f32.partialorder %v3393, 0.0
  %v3410 = vand.u32 %v3393, 2147483648
  %v3411 = vsel %vm3409, %v3410, %v3408
  %v3412 = vrsqrt.pop %v3394
  %v3413 = vmul.f32 %v3394, %v3412
  %vm3414 = vcmp.eq.f32.partialorder %v3394, inf
  %v3415 = vsel %vm3414, %v3394, %v3413
  %vm3416 = vcmp.eq.f32.partialorder %v3394, 0.0
  %v3417 = vand.u32 %v3394, 2147483648
  %v3418 = vsel %vm3416, %v3417, %v3415
  %v3419 = vrsqrt.pop %v3395
  %v3420 = vmul.f32 %v3395, %v3419
  %vm3421 = vcmp.eq.f32.partialorder %v3395, inf
  %v3422 = vsel %vm3421, %v3395, %v3420
  %vm3423 = vcmp.eq.f32.partialorder %v3395, 0.0
  %v3424 = vand.u32 %v3395, 2147483648
  %v3425 = vsel %vm3423, %v3424, %v3422
  %v3426 = vrsqrt.pop %v3396
  %v3427 = vmul.f32 %v3396, %v3426
  %vm3428 = vcmp.eq.f32.partialorder %v3396, inf
  %v3429 = vsel %vm3428, %v3396, %v3427
  %vm3430 = vcmp.eq.f32.partialorder %v3396, 0.0
  %v3431 = vand.u32 %v3396, 2147483648
  %v3432 = vsel %vm3430, %v3431, %v3429
  %v3433 = vadd.f32 %v3411, 1e-06
  %v3434 = vadd.f32 %v3418, 1e-06
  %v3435 = vadd.f32 %v3425, 1e-06
  %v3436 = vadd.f32 %v3432, 1e-06
  %v3437 = vrcp.pop %v3433
  %v3438 = vmul.f32 %v3401, %v3437
  %v3439 = vrcp.pop %v3434
  %v3440 = vmul.f32 %v3402, %v3439
  %v3441 = vrcp.pop %v3435
  %v3442 = vmul.f32 %v3403, %v3441
  %v3443 = vrcp.pop %v3436
  %v3444 = vmul.f32 %v3404, %v3443
  %v3445 = vlaneseq
  %v3446 = vshrl.u32 %v3445, 7
  %v3447 = vsub.s32 1, %v3446
  %v3448 = vrot.slane %v3346, %v3447
  %v3449 = vadd.f32 %v3438, %v3448
  %v3450 = vadd.f32 %v3440, %v3448
  %v3451 = vadd.f32 %v3442, %v3448
  %v3452 = vadd.f32 %v3444, %v3448
  %s3453 = scalar_lea.vmem %s10, 32
  %v3454 = vld [vmem:[%s3453] sm:$0xff]
  %v3455 = vld [vmem:[%s3453 + $0x8] sm:$0xff]
  %v3456 = vld [vmem:[%s3453 + $0x10] sm:$0xff]
  %v3457 = vld [vmem:[%s3453 + $0x18] sm:$0xff]
  %s3458 = scalar_lea.vmem %s11, 1
  %v3459 = vld [vmem:[%s3458] sm:$0x1]
  %v3461 = vlaneseq
  %v3462 = vshrl.u32 %v3461, 7
  %v3463 = vsub.s32 0, %v3462
  %v3464 = vrot.slane %v3459, %v3463
  %v3467 = vsel %vm89, %v3449, 0
  %v3470 = vsel %vm89, %v3450, 0
  %v3473 = vsel %vm89, %v3451, 0
  %v3476 = vsel %vm89, %v3452, 0
  %3478 = vmatprep.subr.mxu0 0.0
  %3479 = vmatpush1.msra.mxu0 0.0
  %3480 = vmatprep.subr.mxu0 0.0
  %3481 = vmatpush1.msra.mxu0 0.0
  %3482 = vmatprep.subr.mxu0 0.0
  %3483 = vmatpush1.msra.mxu0 0.0
  %3484 = vmatprep.subr.mxu0 0.0
  %3485 = vmatpush1.msra.mxu0 0.0
  %3486 = vmatprep.subr.mxu0 0.0
  %3487 = vmatpush1.msra.mxu0 0.0
  %3488 = vmatprep.subr.mxu0 0.0
  %3489 = vmatpush1.msra.mxu0 0.0
  %3490 = vmatprep.subr.mxu0 0.0
  %3491 = vmatpush1.msra.mxu0 0.0
  %3492 = vmatprep.subr.mxu0 0.0
  %3493 = vmatpush1.msra.mxu0 0.0
  %3494 = vmatprep.subr.mxu0 0.0
  %3495 = vmatpush1.msra.mxu0 0.0
  %3496 = vmatprep.subr.mxu0 0.0
  %3497 = vmatpush1.msra.mxu0 0.0
  %3498 = vmatprep.subr.mxu0 0.0
  %3499 = vmatpush1.msra.mxu0 0.0
  %3500 = vmatprep.subr.mxu0 0.0
  %3501 = vmatpush1.msra.mxu0 0.0
  %3502 = vmatprep.subr.mxu0 0.0
  %3503 = vmatpush1.msra.mxu0 %v3457
  %3504 = vmatprep.subr.mxu0 0.0
  %3505 = vmatpush1.msra.mxu0 %v3456
  %3506 = vmatprep.subr.mxu0 0.0
  %3507 = vmatpush1.msra.mxu0 %v3455
  %3508 = vmatprep.subr.mxu0 0.0
  %3509 = vmatpush1.msra.mxu0 %v3454
  %3510 = vmatprep.subr.mxu0 0.0
  %3511 = vmatpush2.msra.mxu0 0.0
  %3512 = vmatprep.subr.mxu0 0.0
  %3513 = vmatpush2.msra.mxu0 0.0
  %3514 = vmatprep.subr.mxu0 0.0
  %3515 = vmatpush2.msra.mxu0 0.0
  %3516 = vmatprep.subr.mxu0 0.0
  %3517 = vmatpush2.msra.mxu0 0.0
  %3518 = vmatprep.subr.mxu0 0.0
  %3519 = vmatpush2.msra.mxu0 0.0
  %3520 = vmatprep.subr.mxu0 0.0
  %3521 = vmatpush2.msra.mxu0 0.0
  %3522 = vmatprep.subr.mxu0 0.0
  %3523 = vmatpush2.msra.mxu0 0.0
  %3524 = vmatprep.subr.mxu0 0.0
  %3525 = vmatpush2.msra.mxu0 0.0
  %3526 = vmatprep.subr.mxu0 0.0
  %3527 = vmatpush2.msra.mxu0 0.0
  %3528 = vmatprep.subr.mxu0 0.0
  %3529 = vmatpush2.msra.mxu0 0.0
  %3530 = vmatprep.subr.mxu0 0.0
  %3531 = vmatpush2.msra.mxu0 0.0
  %3532 = vmatprep.subr.mxu0 0.0
  %3533 = vmatpush2.msra.mxu0 0.0
  %3534 = vmatprep.subr.mxu0 0.0
  %3535 = vmatpush2.msra.mxu0 0.0
  %3536 = vmatprep.subr.mxu0 0.0
  %3537 = vmatpush2.msra.mxu0 0.0
  %3538 = vmatprep.subr.mxu0 0.0
  %3539 = vmatpush2.msra.mxu0 0.0
  %3540 = vmatprep.subr.mxu0 0.0
  %3541 = vmatpush2.msra.mxu0 0.0
  %3542 = vmatprep.mubr.f32.mxu0 0.0
  %3543 = vmatmul.mubr.f32.gmra.mxu0 %v3467
  %v3544 = vpop.f32.mrf.mxu0
  %v3545 = vadd.f32 %v3464, %v3544
  %v3546 = vpop.f32.mrf.mxu0
  %3547 = vmatprep.mubr.f32.mxu0 0.0
  %3548 = vmatmul.mubr.f32.gmra.mxu0 %v3470
  %v3549 = vpop.f32.mrf.mxu0
  %v3550 = vadd.f32 %v3464, %v3549
  %v3551 = vpop.f32.mrf.mxu0
  %3552 = vmatprep.mubr.f32.mxu0 0.0
  %3553 = vmatmul.mubr.f32.gmra.mxu0 %v3473
  %v3554 = vpop.f32.mrf.mxu0
  %v3555 = vadd.f32 %v3464, %v3554
  %v3556 = vpop.f32.mrf.mxu0
  %3557 = vmatprep.mubr.f32.mxu0 0.0
  %3558 = vmatmul.mubr.f32.gmra.mxu0 %v3476
  %v3559 = vpop.f32.mrf.mxu0
  %v3560 = vadd.f32 %v3464, %v3559
  %v3561 = vpop.f32.mrf.mxu0
  %3562 = vdwg.mxu0
  %s3563 = scalar_lea.vmem %s13, 1
  %v3564 = vld [vmem:[%s3563] sm:$0x1]
  %v3566 = vlaneseq
  %v3567 = vshrl.u32 %v3566, 7
  %v3568 = vsub.s32 0, %v3567
  %v3569 = vrot.slane %v3564, %v3568
  %3575 = vrot.lane.b32.xlu0 %v3545, 96
  %v3576 = vpop.permute.xlu0 %3575
  %3577 = vrot.lane.b32.xlu0 %v3550, 96
  %v3578 = vpop.permute.xlu0 %3577
  %3579 = vrot.lane.b32.xlu0 %v3555, 96
  %v3580 = vpop.permute.xlu0 %3579
  %3581 = vrot.lane.b32.xlu0 %v3560, 96
  %v3582 = vpop.permute.xlu0 %3581
  %v3583 = vsel %vm668, %v3545, 0
  %v3585 = vsel %vm668, %v3550, 0
  %v3587 = vsel %vm668, %v3555, 0
  %v3589 = vsel %vm668, %v3560, 0
  %v3591 = vsel %vm668, %v3576, 0
  %v3593 = vsel %vm668, %v3578, 0
  %v3595 = vsel %vm668, %v3580, 0
  %v3597 = vsel %vm668, %v3582, 0
  %3599 = vmatprep.subr.mxu0 0.0
  %3600 = vmatpush1.xpose.msra.mxu0 0.0
  %3601 = vmatprep.subr.mxu0 0.0
  %3602 = vmatpush1.xpose.msra.mxu0 0.0
  %3603 = vmatprep.subr.mxu0 0.0
  %3604 = vmatpush1.xpose.msra.mxu0 0.0
  %3605 = vmatprep.subr.mxu0 0.0
  %3606 = vmatpush1.xpose.msra.mxu0 0.0
  %3607 = vmatprep.subr.mxu0 0.0
  %3608 = vmatpush1.xpose.msra.mxu0 0.0
  %3609 = vmatprep.subr.mxu0 0.0
  %3610 = vmatpush1.xpose.msra.mxu0 0.0
  %3611 = vmatprep.subr.mxu0 0.0
  %3612 = vmatpush1.xpose.msra.mxu0 0.0
  %3613 = vmatprep.subr.mxu0 0.0
  %3614 = vmatpush1.xpose.msra.mxu0 0.0
  %3615 = vmatprep.subr.mxu0 0.0
  %3616 = vmatpush1.xpose.msra.mxu0 0.0
  %3617 = vmatprep.subr.mxu0 0.0
  %3618 = vmatpush1.xpose.msra.mxu0 0.0
  %3619 = vmatprep.subr.mxu0 0.0
  %3620 = vmatpush1.xpose.msra.mxu0 0.0
  %3621 = vmatprep.subr.mxu0 0.0
  %3622 = vmatpush1.xpose.msra.mxu0 0.0
  %3623 = vmatprep.subr.mxu0 0.0
  %3624 = vmatpush1.xpose.msra.mxu0 %v3597
  %3625 = vmatprep.subr.mxu0 0.0
  %3626 = vmatpush1.xpose.msra.mxu0 %v3595
  %3627 = vmatprep.subr.mxu0 0.0
  %3628 = vmatpush1.xpose.msra.mxu0 %v3593
  %3629 = vmatprep.subr.mxu0 0.0
  %3630 = vmatpush1.xpose.msra.mxu0 %v3591
  %3631 = vmatprep.subr.mxu0 0.0
  %3632 = vmatpush2.xpose.msra.mxu0 0.0
  %3633 = vmatprep.subr.mxu0 0.0
  %3634 = vmatpush2.xpose.msra.mxu0 0.0
  %3635 = vmatprep.subr.mxu0 0.0
  %3636 = vmatpush2.xpose.msra.mxu0 0.0
  %3637 = vmatprep.subr.mxu0 0.0
  %3638 = vmatpush2.xpose.msra.mxu0 0.0
  %3639 = vmatprep.subr.mxu0 0.0
  %3640 = vmatpush2.xpose.msra.mxu0 0.0
  %3641 = vmatprep.subr.mxu0 0.0
  %3642 = vmatpush2.xpose.msra.mxu0 0.0
  %3643 = vmatprep.subr.mxu0 0.0
  %3644 = vmatpush2.xpose.msra.mxu0 0.0
  %3645 = vmatprep.subr.mxu0 0.0
  %3646 = vmatpush2.xpose.msra.mxu0 0.0
  %3647 = vmatprep.subr.mxu0 0.0
  %3648 = vmatpush2.xpose.msra.mxu0 0.0
  %3649 = vmatprep.subr.mxu0 0.0
  %3650 = vmatpush2.xpose.msra.mxu0 0.0
  %3651 = vmatprep.subr.mxu0 0.0
  %3652 = vmatpush2.xpose.msra.mxu0 0.0
  %3653 = vmatprep.subr.mxu0 0.0
  %3654 = vmatpush2.xpose.msra.mxu0 0.0
  %3655 = vmatprep.subr.mxu0 0.0
  %3656 = vmatpush2.xpose.msra.mxu0 0.0
  %3657 = vmatprep.subr.mxu0 0.0
  %3658 = vmatpush2.xpose.msra.mxu0 0.0
  %3659 = vmatprep.subr.mxu0 0.0
  %3660 = vmatpush2.xpose.msra.mxu0 0.0
  %3661 = vmatprep.subr.mxu0 0.0
  %3662 = vmatpush2.xpose.msra.mxu0 0.0
  %3663 = vmatprep.mubr.f32.mxu0 0.0
  %3664 = vmatmul.mubr.f32.gmra.mxu0 %v3583
  %v3665 = vpop.f32.mrf.mxu0
  %v3666 = vadd.f32 0.0, %v3665
  %v3667 = vpop.f32.mrf.mxu0
  %3668 = vmatprep.mubr.f32.mxu0 0.0
  %3669 = vmatmul.mubr.f32.gmra.mxu0 %v3585
  %v3670 = vpop.f32.mrf.mxu0
  %v3671 = vadd.f32 0.0, %v3670
  %v3672 = vpop.f32.mrf.mxu0
  %3673 = vmatprep.mubr.f32.mxu0 0.0
  %3674 = vmatmul.mubr.f32.gmra.mxu0 %v3587
  %v3675 = vpop.f32.mrf.mxu0
  %v3676 = vadd.f32 0.0, %v3675
  %v3677 = vpop.f32.mrf.mxu0
  %3678 = vmatprep.mubr.f32.mxu0 0.0
  %3679 = vmatmul.mubr.f32.gmra.mxu0 %v3589
  %v3680 = vpop.f32.mrf.mxu0
  %v3681 = vadd.f32 0.0, %v3680
  %v3682 = vpop.f32.mrf.mxu0
  %3683 = vdwg.mxu0
  %v3684 = vmul.f32 %v3666, 0.35355338
  %v3685 = vmul.f32 %v3671, 0.35355338
  %v3686 = vmul.f32 %v3676, 0.35355338
  %v3687 = vmul.f32 %v3681, 0.35355338
  %v3688 = vadd.f32 %v3684, %v79
  %v3689 = vadd.f32 %v3685, %v80
  %v3690 = vadd.f32 %v3686, %v81
  %v3691 = vadd.f32 %v3687, %v82
  %v3692 = vsel %vm89, %v3688, -inf
  %3693 = vmax.xlane.f32.xlu0 %v3692
  %v3694 = vpop.xlane.xlu0 %3693
  %v3695 = vsel %vm89, %v3689, -inf
  %3696 = vmax.xlane.f32.xlu0 %v3695
  %v3697 = vpop.xlane.xlu0 %3696
  %v3698 = vsel %vm89, %v3690, -inf
  %3699 = vmax.xlane.f32.xlu0 %v3698
  %v3700 = vpop.xlane.xlu0 %3699
  %v3701 = vsel %vm89, %v3691, -inf
  %3702 = vmax.xlane.f32.xlu0 %v3701
  %v3703 = vpop.xlane.xlu0 %3702
  %v3704 = vsub.f32 %v3688, %v3694
  %v3705 = vsub.f32 %v3689, %v3697
  %v3706 = vsub.f32 %v3690, %v3700
  %v3707 = vsub.f32 %v3691, %v3703
  %v3708 = vmul.f32 %v3704, 1.442695
  %v3709 = vpow.pop %v3708
  %v3710 = vmul.f32 %v3705, 1.442695
  %v3711 = vpow.pop %v3710
  %v3712 = vmul.f32 %v3706, 1.442695
  %v3713 = vpow.pop %v3712
  %v3714 = vmul.f32 %v3707, 1.442695
  %v3715 = vpow.pop %v3714
  %v3716 = vsel %vm89, %v3709, 0.0
  %3717 = vadd.xlane.f32.xlu0 %v3716
  %v3718 = vpop.xlane.xlu0 %3717
  %v3719 = vsel %vm89, %v3711, 0.0
  %3720 = vadd.xlane.f32.xlu0 %v3719
  %v3721 = vpop.xlane.xlu0 %3720
  %v3722 = vsel %vm89, %v3713, 0.0
  %3723 = vadd.xlane.f32.xlu0 %v3722
  %v3724 = vpop.xlane.xlu0 %3723
  %v3725 = vsel %vm89, %v3715, 0.0
  %3726 = vadd.xlane.f32.xlu0 %v3725
  %v3727 = vpop.xlane.xlu0 %3726
  %v3728 = vrcp.pop %v3718
  %v3729 = vmul.f32 %v3709, %v3728
  %v3730 = vrcp.pop %v3721
  %v3731 = vmul.f32 %v3711, %v3730
  %v3732 = vrcp.pop %v3724
  %v3733 = vmul.f32 %v3713, %v3732
  %v3734 = vrcp.pop %v3727
  %v3735 = vmul.f32 %v3715, %v3734
  %3736 = vrot.lane.b32.xlu0 %v3545, 64
  %v3737 = vpop.permute.xlu0 %3736
  %3738 = vrot.lane.b32.xlu0 %v3550, 64
  %v3739 = vpop.permute.xlu0 %3738
  %3740 = vrot.lane.b32.xlu0 %v3555, 64
  %v3741 = vpop.permute.xlu0 %3740
  %3742 = vrot.lane.b32.xlu0 %v3560, 64
  %v3743 = vpop.permute.xlu0 %3742
  %v3749 = vsel %vm89, %v3729, 0
  %v3752 = vsel %vm89, %v3731, 0
  %v3755 = vsel %vm89, %v3733, 0
  %v3758 = vsel %vm89, %v3735, 0
  %3760 = vmatprep.subr.mxu0 0.0
  %3761 = vmatpush1.msra.mxu0 0.0
  %3762 = vmatprep.subr.mxu0 0.0
  %3763 = vmatpush1.msra.mxu0 0.0
  %3764 = vmatprep.subr.mxu0 0.0
  %3765 = vmatpush1.msra.mxu0 0.0
  %3766 = vmatprep.subr.mxu0 0.0
  %3767 = vmatpush1.msra.mxu0 0.0
  %3768 = vmatprep.subr.mxu0 0.0
  %3769 = vmatpush1.msra.mxu0 0.0
  %3770 = vmatprep.subr.mxu0 0.0
  %3771 = vmatpush1.msra.mxu0 0.0
  %3772 = vmatprep.subr.mxu0 0.0
  %3773 = vmatpush1.msra.mxu0 0.0
  %3774 = vmatprep.subr.mxu0 0.0
  %3775 = vmatpush1.msra.mxu0 0.0
  %3776 = vmatprep.subr.mxu0 0.0
  %3777 = vmatpush1.msra.mxu0 0.0
  %3778 = vmatprep.subr.mxu0 0.0
  %3779 = vmatpush1.msra.mxu0 0.0
  %3780 = vmatprep.subr.mxu0 0.0
  %3781 = vmatpush1.msra.mxu0 0.0
  %3782 = vmatprep.subr.mxu0 0.0
  %3783 = vmatpush1.msra.mxu0 0.0
  %3784 = vmatprep.subr.mxu0 0.0
  %3785 = vmatpush1.msra.mxu0 %v3743
  %3786 = vmatprep.subr.mxu0 0.0
  %3787 = vmatpush1.msra.mxu0 %v3741
  %3788 = vmatprep.subr.mxu0 0.0
  %3789 = vmatpush1.msra.mxu0 %v3739
  %3790 = vmatprep.subr.mxu0 0.0
  %3791 = vmatpush1.msra.mxu0 %v3737
  %3792 = vmatprep.subr.mxu0 0.0
  %3793 = vmatpush2.msra.mxu0 0.0
  %3794 = vmatprep.subr.mxu0 0.0
  %3795 = vmatpush2.msra.mxu0 0.0
  %3796 = vmatprep.subr.mxu0 0.0
  %3797 = vmatpush2.msra.mxu0 0.0
  %3798 = vmatprep.subr.mxu0 0.0
  %3799 = vmatpush2.msra.mxu0 0.0
  %3800 = vmatprep.subr.mxu0 0.0
  %3801 = vmatpush2.msra.mxu0 0.0
  %3802 = vmatprep.subr.mxu0 0.0
  %3803 = vmatpush2.msra.mxu0 0.0
  %3804 = vmatprep.subr.mxu0 0.0
  %3805 = vmatpush2.msra.mxu0 0.0
  %3806 = vmatprep.subr.mxu0 0.0
  %3807 = vmatpush2.msra.mxu0 0.0
  %3808 = vmatprep.subr.mxu0 0.0
  %3809 = vmatpush2.msra.mxu0 0.0
  %3810 = vmatprep.subr.mxu0 0.0
  %3811 = vmatpush2.msra.mxu0 0.0
  %3812 = vmatprep.subr.mxu0 0.0
  %3813 = vmatpush2.msra.mxu0 0.0
  %3814 = vmatprep.subr.mxu0 0.0
  %3815 = vmatpush2.msra.mxu0 0.0
  %3816 = vmatprep.subr.mxu0 0.0
  %3817 = vmatpush2.msra.mxu0 0.0
  %3818 = vmatprep.subr.mxu0 0.0
  %3819 = vmatpush2.msra.mxu0 0.0
  %3820 = vmatprep.subr.mxu0 0.0
  %3821 = vmatpush2.msra.mxu0 0.0
  %3822 = vmatprep.subr.mxu0 0.0
  %3823 = vmatpush2.msra.mxu0 0.0
  %3824 = vmatprep.mubr.f32.mxu0 0.0
  %3825 = vmatmul.mubr.f32.gmra.mxu0 %v3749
  %v3826 = vpop.f32.mrf.mxu0
  %v3827 = vadd.f32 0.0, %v3826
  %v3828 = vpop.f32.mrf.mxu0
  %3829 = vmatprep.mubr.f32.mxu0 0.0
  %3830 = vmatmul.mubr.f32.gmra.mxu0 %v3752
  %v3831 = vpop.f32.mrf.mxu0
  %v3832 = vadd.f32 0.0, %v3831
  %v3833 = vpop.f32.mrf.mxu0
  %3834 = vmatprep.mubr.f32.mxu0 0.0
  %3835 = vmatmul.mubr.f32.gmra.mxu0 %v3755
  %v3836 = vpop.f32.mrf.mxu0
  %v3837 = vadd.f32 0.0, %v3836
  %v3838 = vpop.f32.mrf.mxu0
  %3839 = vmatprep.mubr.f32.mxu0 0.0
  %3840 = vmatmul.mubr.f32.gmra.mxu0 %v3758
  %v3841 = vpop.f32.mrf.mxu0
  %v3842 = vadd.f32 0.0, %v3841
  %v3843 = vpop.f32.mrf.mxu0
  %3844 = vdwg.mxu0
  %v3846 = vsel %vm668, %v3827, 0
  %v3849 = vsel %vm668, %v3832, 0
  %v3852 = vsel %vm668, %v3837, 0
  %v3855 = vsel %vm668, %v3842, 0
  %3857 = vmatprep.subr.mxu0 0.0
  %3858 = vmatpush1.msra.mxu0 0.0
  %3859 = vmatprep.subr.mxu0 0.0
  %3860 = vmatpush1.msra.mxu0 0.0
  %3861 = vmatprep.subr.mxu0 0.0
  %3862 = vmatpush1.msra.mxu0 0.0
  %3863 = vmatprep.subr.mxu0 0.0
  %3864 = vmatpush1.msra.mxu0 0.0
  %3865 = vmatprep.subr.mxu0 0.0
  %3866 = vmatpush1.msra.mxu0 0.0
  %3867 = vmatprep.subr.mxu0 0.0
  %3868 = vmatpush1.msra.mxu0 0.0
  %3869 = vmatprep.subr.mxu0 0.0
  %3870 = vmatpush1.msra.mxu0 0.0
  %3871 = vmatprep.subr.mxu0 0.0
  %3872 = vmatpush1.msra.mxu0 0.0
  %3873 = vmatprep.subr.mxu0 0.0
  %3874 = vmatpush1.msra.mxu0 0.0
  %3875 = vmatprep.subr.mxu0 0.0
  %3876 = vmatpush1.msra.mxu0 0.0
  %3877 = vmatprep.subr.mxu0 0.0
  %3878 = vmatpush1.msra.mxu0 0.0
  %3879 = vmatprep.subr.mxu0 0.0
  %3880 = vmatpush1.msra.mxu0 0.0
  %3881 = vmatprep.subr.mxu0 0.0
  %3882 = vmatpush1.msra.mxu0 0.0
  %3883 = vmatprep.subr.mxu0 0.0
  %3884 = vmatpush1.msra.mxu0 0.0
  %3885 = vmatprep.subr.mxu0 0.0
  %3886 = vmatpush1.msra.mxu0 0.0
  %3887 = vmatprep.subr.mxu0 0.0
  %3888 = vmatpush1.msra.mxu0 %v3348
  %3889 = vmatprep.subr.mxu0 0.0
  %3890 = vmatpush2.msra.mxu0 0.0
  %3891 = vmatprep.subr.mxu0 0.0
  %3892 = vmatpush2.msra.mxu0 0.0
  %3893 = vmatprep.subr.mxu0 0.0
  %3894 = vmatpush2.msra.mxu0 0.0
  %3895 = vmatprep.subr.mxu0 0.0
  %3896 = vmatpush2.msra.mxu0 0.0
  %3897 = vmatprep.subr.mxu0 0.0
  %3898 = vmatpush2.msra.mxu0 0.0
  %3899 = vmatprep.subr.mxu0 0.0
  %3900 = vmatpush2.msra.mxu0 0.0
  %3901 = vmatprep.subr.mxu0 0.0
  %3902 = vmatpush2.msra.mxu0 0.0
  %3903 = vmatprep.subr.mxu0 0.0
  %3904 = vmatpush2.msra.mxu0 0.0
  %3905 = vmatprep.subr.mxu0 0.0
  %3906 = vmatpush2.msra.mxu0 0.0
  %3907 = vmatprep.subr.mxu0 0.0
  %3908 = vmatpush2.msra.mxu0 0.0
  %3909 = vmatprep.subr.mxu0 0.0
  %3910 = vmatpush2.msra.mxu0 0.0
  %3911 = vmatprep.subr.mxu0 0.0
  %3912 = vmatpush2.msra.mxu0 0.0
  %3913 = vmatprep.subr.mxu0 0.0
  %3914 = vmatpush2.msra.mxu0 0.0
  %3915 = vmatprep.subr.mxu0 0.0
  %3916 = vmatpush2.msra.mxu0 0.0
  %3917 = vmatprep.subr.mxu0 0.0
  %3918 = vmatpush2.msra.mxu0 0.0
  %3919 = vmatprep.subr.mxu0 0.0
  %3920 = vmatpush2.msra.mxu0 0.0
  %3921 = vmatprep.mubr.f32.mxu0 0.0
  %3922 = vmatmul.mubr.f32.gmra.mxu0 %v3846
  %v3923 = vpop.f32.mrf.mxu0
  %v3924 = vadd.f32 0.0, %v3923
  %v3925 = vpop.f32.mrf.mxu0
  %3926 = vmatprep.mubr.f32.mxu0 0.0
  %3927 = vmatmul.mubr.f32.gmra.mxu0 %v3849
  %v3928 = vpop.f32.mrf.mxu0
  %v3929 = vadd.f32 0.0, %v3928
  %v3930 = vpop.f32.mrf.mxu0
  %3931 = vmatprep.mubr.f32.mxu0 0.0
  %3932 = vmatmul.mubr.f32.gmra.mxu0 %v3852
  %v3933 = vpop.f32.mrf.mxu0
  %v3934 = vadd.f32 0.0, %v3933
  %v3935 = vpop.f32.mrf.mxu0
  %3936 = vmatprep.mubr.f32.mxu0 0.0
  %3937 = vmatmul.mubr.f32.gmra.mxu0 %v3855
  %v3938 = vpop.f32.mrf.mxu0
  %v3939 = vadd.f32 0.0, %v3938
  %v3940 = vpop.f32.mrf.mxu0
  %3941 = vdwg.mxu0
  %v3942 = vadd.f32 %v3569, %v3924
  %v3943 = vadd.f32 %v3569, %v3929
  %v3944 = vadd.f32 %v3569, %v3934
  %v3945 = vadd.f32 %v3569, %v3939
  %3946 = vrot.lane.b32.xlu0 %v3545, 120
  %v3947 = vpop.permute.xlu0 %3946
  %3948 = vrot.lane.b32.xlu0 %v3550, 120
  %v3949 = vpop.permute.xlu0 %3948
  %3950 = vrot.lane.b32.xlu0 %v3555, 120
  %v3951 = vpop.permute.xlu0 %3950
  %3952 = vrot.lane.b32.xlu0 %v3560, 120
  %v3953 = vpop.permute.xlu0 %3952
  %3954 = vrot.lane.b32.xlu0 %v3545, 88
  %v3955 = vpop.permute.xlu0 %3954
  %3956 = vrot.lane.b32.xlu0 %v3550, 88
  %v3957 = vpop.permute.xlu0 %3956
  %3958 = vrot.lane.b32.xlu0 %v3555, 88
  %v3959 = vpop.permute.xlu0 %3958
  %3960 = vrot.lane.b32.xlu0 %v3560, 88
  %v3961 = vpop.permute.xlu0 %3960
  %v3962 = vsel %vm668, %v3947, 0
  %v3964 = vsel %vm668, %v3949, 0
  %v3966 = vsel %vm668, %v3951, 0
  %v3968 = vsel %vm668, %v3953, 0
  %v3970 = vsel %vm668, %v3955, 0
  %v3972 = vsel %vm668, %v3957, 0
  %v3974 = vsel %vm668, %v3959, 0
  %v3976 = vsel %vm668, %v3961, 0
  %3978 = vmatprep.subr.mxu0 0.0
  %3979 = vmatpush1.xpose.msra.mxu0 0.0
  %3980 = vmatprep.subr.mxu0 0.0
  %3981 = vmatpush1.xpose.msra.mxu0 0.0
  %3982 = vmatprep.subr.mxu0 0.0
  %3983 = vmatpush1.xpose.msra.mxu0 0.0
  %3984 = vmatprep.subr.mxu0 0.0
  %3985 = vmatpush1.xpose.msra.mxu0 0.0
  %3986 = vmatprep.subr.mxu0 0.0
  %3987 = vmatpush1.xpose.msra.mxu0 0.0
  %3988 = vmatprep.subr.mxu0 0.0
  %3989 = vmatpush1.xpose.msra.mxu0 0.0
  %3990 = vmatprep.subr.mxu0 0.0
  %3991 = vmatpush1.xpose.msra.mxu0 0.0
  %3992 = vmatprep.subr.mxu0 0.0
  %3993 = vmatpush1.xpose.msra.mxu0 0.0
  %3994 = vmatprep.subr.mxu0 0.0
  %3995 = vmatpush1.xpose.msra.mxu0 0.0
  %3996 = vmatprep.subr.mxu0 0.0
  %3997 = vmatpush1.xpose.msra.mxu0 0.0
  %3998 = vmatprep.subr.mxu0 0.0
  %3999 = vmatpush1.xpose.msra.mxu0 0.0
  %4000 = vmatprep.subr.mxu0 0.0
  %4001 = vmatpush1.xpose.msra.mxu0 0.0
  %4002 = vmatprep.subr.mxu0 0.0
  %4003 = vmatpush1.xpose.msra.mxu0 %v3976
  %4004 = vmatprep.subr.mxu0 0.0
  %4005 = vmatpush1.xpose.msra.mxu0 %v3974
  %4006 = vmatprep.subr.mxu0 0.0
  %4007 = vmatpush1.xpose.msra.mxu0 %v3972
  %4008 = vmatprep.subr.mxu0 0.0
  %4009 = vmatpush1.xpose.msra.mxu0 %v3970
  %4010 = vmatprep.subr.mxu0 0.0
  %4011 = vmatpush2.xpose.msra.mxu0 0.0
  %4012 = vmatprep.subr.mxu0 0.0
  %4013 = vmatpush2.xpose.msra.mxu0 0.0
  %4014 = vmatprep.subr.mxu0 0.0
  %4015 = vmatpush2.xpose.msra.mxu0 0.0
  %4016 = vmatprep.subr.mxu0 0.0
  %4017 = vmatpush2.xpose.msra.mxu0 0.0
  %4018 = vmatprep.subr.mxu0 0.0
  %4019 = vmatpush2.xpose.msra.mxu0 0.0
  %4020 = vmatprep.subr.mxu0 0.0
  %4021 = vmatpush2.xpose.msra.mxu0 0.0
  %4022 = vmatprep.subr.mxu0 0.0
  %4023 = vmatpush2.xpose.msra.mxu0 0.0
  %4024 = vmatprep.subr.mxu0 0.0
  %4025 = vmatpush2.xpose.msra.mxu0 0.0
  %4026 = vmatprep.subr.mxu0 0.0
  %4027 = vmatpush2.xpose.msra.mxu0 0.0
  %4028 = vmatprep.subr.mxu0 0.0
  %4029 = vmatpush2.xpose.msra.mxu0 0.0
  %4030 = vmatprep.subr.mxu0 0.0
  %4031 = vmatpush2.xpose.msra.mxu0 0.0
  %4032 = vmatprep.subr.mxu0 0.0
  %4033 = vmatpush2.xpose.msra.mxu0 0.0
  %4034 = vmatprep.subr.mxu0 0.0
  %4035 = vmatpush2.xpose.msra.mxu0 0.0
  %4036 = vmatprep.subr.mxu0 0.0
  %4037 = vmatpush2.xpose.msra.mxu0 0.0
  %4038 = vmatprep.subr.mxu0 0.0
  %4039 = vmatpush2.xpose.msra.mxu0 0.0
  %4040 = vmatprep.subr.mxu0 0.0
  %4041 = vmatpush2.xpose.msra.mxu0 0.0
  %4042 = vmatprep.mubr.f32.mxu0 0.0
  %4043 = vmatmul.mubr.f32.gmra.mxu0 %v3962
  %v4044 = vpop.f32.mrf.mxu0
  %v4045 = vadd.f32 0.0, %v4044
  %v4046 = vpop.f32.mrf.mxu0
  %4047 = vmatprep.mubr.f32.mxu0 0.0
  %4048 = vmatmul.mubr.f32.gmra.mxu0 %v3964
  %v4049 = vpop.f32.mrf.mxu0
  %v4050 = vadd.f32 0.0, %v4049
  %v4051 = vpop.f32.mrf.mxu0
  %4052 = vmatprep.mubr.f32.mxu0 0.0
  %4053 = vmatmul.mubr.f32.gmra.mxu0 %v3966
  %v4054 = vpop.f32.mrf.mxu0
  %v4055 = vadd.f32 0.0, %v4054
  %v4056 = vpop.f32.mrf.mxu0
  %4057 = vmatprep.mubr.f32.mxu0 0.0
  %4058 = vmatmul.mubr.f32.gmra.mxu0 %v3968
  %v4059 = vpop.f32.mrf.mxu0
  %v4060 = vadd.f32 0.0, %v4059
  %v4061 = vpop.f32.mrf.mxu0
  %4062 = vdwg.mxu0
  %v4063 = vmul.f32 %v4045, 0.35355338
  %v4064 = vmul.f32 %v4050, 0.35355338
  %v4065 = vmul.f32 %v4055, 0.35355338
  %v4066 = vmul.f32 %v4060, 0.35355338
  %v4067 = vadd.f32 %v4063, %v79
  %v4068 = vadd.f32 %v4064, %v80
  %v4069 = vadd.f32 %v4065, %v81
  %v4070 = vadd.f32 %v4066, %v82
  %v4071 = vsel %vm89, %v4067, -inf
  %4072 = vmax.xlane.f32.xlu0 %v4071
  %v4073 = vpop.xlane.xlu0 %4072
  %v4074 = vsel %vm89, %v4068, -inf
  %4075 = vmax.xlane.f32.xlu0 %v4074
  %v4076 = vpop.xlane.xlu0 %4075
  %v4077 = vsel %vm89, %v4069, -inf
  %4078 = vmax.xlane.f32.xlu0 %v4077
  %v4079 = vpop.xlane.xlu0 %4078
  %v4080 = vsel %vm89, %v4070, -inf
  %4081 = vmax.xlane.f32.xlu0 %v4080
  %v4082 = vpop.xlane.xlu0 %4081
  %v4083 = vsub.f32 %v4067, %v4073
  %v4084 = vsub.f32 %v4068, %v4076
  %v4085 = vsub.f32 %v4069, %v4079
  %v4086 = vsub.f32 %v4070, %v4082
  %v4087 = vmul.f32 %v4083, 1.442695
  %v4088 = vpow.pop %v4087
  %v4089 = vmul.f32 %v4084, 1.442695
  %v4090 = vpow.pop %v4089
  %v4091 = vmul.f32 %v4085, 1.442695
  %v4092 = vpow.pop %v4091
  %v4093 = vmul.f32 %v4086, 1.442695
  %v4094 = vpow.pop %v4093
  %v4095 = vsel %vm89, %v4088, 0.0
  %4096 = vadd.xlane.f32.xlu0 %v4095
  %v4097 = vpop.xlane.xlu0 %4096
  %v4098 = vsel %vm89, %v4090, 0.0
  %4099 = vadd.xlane.f32.xlu0 %v4098
  %v4100 = vpop.xlane.xlu0 %4099
  %v4101 = vsel %vm89, %v4092, 0.0
  %4102 = vadd.xlane.f32.xlu0 %v4101
  %v4103 = vpop.xlane.xlu0 %4102
  %v4104 = vsel %vm89, %v4094, 0.0
  %4105 = vadd.xlane.f32.xlu0 %v4104
  %v4106 = vpop.xlane.xlu0 %4105
  %v4107 = vrcp.pop %v4097
  %v4108 = vmul.f32 %v4088, %v4107
  %v4109 = vrcp.pop %v4100
  %v4110 = vmul.f32 %v4090, %v4109
  %v4111 = vrcp.pop %v4103
  %v4112 = vmul.f32 %v4092, %v4111
  %v4113 = vrcp.pop %v4106
  %v4114 = vmul.f32 %v4094, %v4113
  %4115 = vrot.lane.b32.xlu0 %v3545, 56
  %v4116 = vpop.permute.xlu0 %4115
  %4117 = vrot.lane.b32.xlu0 %v3550, 56
  %v4118 = vpop.permute.xlu0 %4117
  %4119 = vrot.lane.b32.xlu0 %v3555, 56
  %v4120 = vpop.permute.xlu0 %4119
  %4121 = vrot.lane.b32.xlu0 %v3560, 56
  %v4122 = vpop.permute.xlu0 %4121
  %v4128 = vsel %vm89, %v4108, 0
  %v4131 = vsel %vm89, %v4110, 0
  %v4134 = vsel %vm89, %v4112, 0
  %v4137 = vsel %vm89, %v4114, 0
  %4139 = vmatprep.subr.mxu0 0.0
  %4140 = vmatpush1.msra.mxu0 0.0
  %4141 = vmatprep.subr.mxu0 0.0
  %4142 = vmatpush1.msra.mxu0 0.0
  %4143 = vmatprep.subr.mxu0 0.0
  %4144 = vmatpush1.msra.mxu0 0.0
  %4145 = vmatprep.subr.mxu0 0.0
  %4146 = vmatpush1.msra.mxu0 0.0
  %4147 = vmatprep.subr.mxu0 0.0
  %4148 = vmatpush1.msra.mxu0 0.0
  %4149 = vmatprep.subr.mxu0 0.0
  %4150 = vmatpush1.msra.mxu0 0.0
  %4151 = vmatprep.subr.mxu0 0.0
  %4152 = vmatpush1.msra.mxu0 0.0
  %4153 = vmatprep.subr.mxu0 0.0
  %4154 = vmatpush1.msra.mxu0 0.0
  %4155 = vmatprep.subr.mxu0 0.0
  %4156 = vmatpush1.msra.mxu0 0.0
  %4157 = vmatprep.subr.mxu0 0.0
  %4158 = vmatpush1.msra.mxu0 0.0
  %4159 = vmatprep.subr.mxu0 0.0
  %4160 = vmatpush1.msra.mxu0 0.0
  %4161 = vmatprep.subr.mxu0 0.0
  %4162 = vmatpush1.msra.mxu0 0.0
  %4163 = vmatprep.subr.mxu0 0.0
  %4164 = vmatpush1.msra.mxu0 %v4122
  %4165 = vmatprep.subr.mxu0 0.0
  %4166 = vmatpush1.msra.mxu0 %v4120
  %4167 = vmatprep.subr.mxu0 0.0
  %4168 = vmatpush1.msra.mxu0 %v4118
  %4169 = vmatprep.subr.mxu0 0.0
  %4170 = vmatpush1.msra.mxu0 %v4116
  %4171 = vmatprep.subr.mxu0 0.0
  %4172 = vmatpush2.msra.mxu0 0.0
  %4173 = vmatprep.subr.mxu0 0.0
  %4174 = vmatpush2.msra.mxu0 0.0
  %4175 = vmatprep.subr.mxu0 0.0
  %4176 = vmatpush2.msra.mxu0 0.0
  %4177 = vmatprep.subr.mxu0 0.0
  %4178 = vmatpush2.msra.mxu0 0.0
  %4179 = vmatprep.subr.mxu0 0.0
  %4180 = vmatpush2.msra.mxu0 0.0
  %4181 = vmatprep.subr.mxu0 0.0
  %4182 = vmatpush2.msra.mxu0 0.0
  %4183 = vmatprep.subr.mxu0 0.0
  %4184 = vmatpush2.msra.mxu0 0.0
  %4185 = vmatprep.subr.mxu0 0.0
  %4186 = vmatpush2.msra.mxu0 0.0
  %4187 = vmatprep.subr.mxu0 0.0
  %4188 = vmatpush2.msra.mxu0 0.0
  %4189 = vmatprep.subr.mxu0 0.0
  %4190 = vmatpush2.msra.mxu0 0.0
  %4191 = vmatprep.subr.mxu0 0.0
  %4192 = vmatpush2.msra.mxu0 0.0
  %4193 = vmatprep.subr.mxu0 0.0
  %4194 = vmatpush2.msra.mxu0 0.0
  %4195 = vmatprep.subr.mxu0 0.0
  %4196 = vmatpush2.msra.mxu0 0.0
  %4197 = vmatprep.subr.mxu0 0.0
  %4198 = vmatpush2.msra.mxu0 0.0
  %4199 = vmatprep.subr.mxu0 0.0
  %4200 = vmatpush2.msra.mxu0 0.0
  %4201 = vmatprep.subr.mxu0 0.0
  %4202 = vmatpush2.msra.mxu0 0.0
  %4203 = vmatprep.mubr.f32.mxu0 0.0
  %4204 = vmatmul.mubr.f32.gmra.mxu0 %v4128
  %v4205 = vpop.f32.mrf.mxu0
  %v4206 = vadd.f32 0.0, %v4205
  %v4207 = vpop.f32.mrf.mxu0
  %4208 = vmatprep.mubr.f32.mxu0 0.0
  %4209 = vmatmul.mubr.f32.gmra.mxu0 %v4131
  %v4210 = vpop.f32.mrf.mxu0
  %v4211 = vadd.f32 0.0, %v4210
  %v4212 = vpop.f32.mrf.mxu0
  %4213 = vmatprep.mubr.f32.mxu0 0.0
  %4214 = vmatmul.mubr.f32.gmra.mxu0 %v4134
  %v4215 = vpop.f32.mrf.mxu0
  %v4216 = vadd.f32 0.0, %v4215
  %v4217 = vpop.f32.mrf.mxu0
  %4218 = vmatprep.mubr.f32.mxu0 0.0
  %4219 = vmatmul.mubr.f32.gmra.mxu0 %v4137
  %v4220 = vpop.f32.mrf.mxu0
  %v4221 = vadd.f32 0.0, %v4220
  %v4222 = vpop.f32.mrf.mxu0
  %4223 = vdwg.mxu0
  %v4225 = vsel %vm668, %v4206, 0
  %v4228 = vsel %vm668, %v4211, 0
  %v4231 = vsel %vm668, %v4216, 0
  %v4234 = vsel %vm668, %v4221, 0
  %4236 = vmatprep.subr.mxu0 0.0
  %4237 = vmatpush1.msra.mxu0 0.0
  %4238 = vmatprep.subr.mxu0 0.0
  %4239 = vmatpush1.msra.mxu0 0.0
  %4240 = vmatprep.subr.mxu0 0.0
  %4241 = vmatpush1.msra.mxu0 0.0
  %4242 = vmatprep.subr.mxu0 0.0
  %4243 = vmatpush1.msra.mxu0 0.0
  %4244 = vmatprep.subr.mxu0 0.0
  %4245 = vmatpush1.msra.mxu0 0.0
  %4246 = vmatprep.subr.mxu0 0.0
  %4247 = vmatpush1.msra.mxu0 0.0
  %4248 = vmatprep.subr.mxu0 0.0
  %4249 = vmatpush1.msra.mxu0 0.0
  %4250 = vmatprep.subr.mxu0 0.0
  %4251 = vmatpush1.msra.mxu0 0.0
  %4252 = vmatprep.subr.mxu0 0.0
  %4253 = vmatpush1.msra.mxu0 0.0
  %4254 = vmatprep.subr.mxu0 0.0
  %4255 = vmatpush1.msra.mxu0 0.0
  %4256 = vmatprep.subr.mxu0 0.0
  %4257 = vmatpush1.msra.mxu0 0.0
  %4258 = vmatprep.subr.mxu0 0.0
  %4259 = vmatpush1.msra.mxu0 0.0
  %4260 = vmatprep.subr.mxu0 0.0
  %4261 = vmatpush1.msra.mxu0 0.0
  %4262 = vmatprep.subr.mxu0 0.0
  %4263 = vmatpush1.msra.mxu0 0.0
  %4264 = vmatprep.subr.mxu0 0.0
  %4265 = vmatpush1.msra.mxu0 0.0
  %4266 = vmatprep.subr.mxu0 0.0
  %4267 = vmatpush1.msra.mxu0 %v3349
  %4268 = vmatprep.subr.mxu0 0.0
  %4269 = vmatpush2.msra.mxu0 0.0
  %4270 = vmatprep.subr.mxu0 0.0
  %4271 = vmatpush2.msra.mxu0 0.0
  %4272 = vmatprep.subr.mxu0 0.0
  %4273 = vmatpush2.msra.mxu0 0.0
  %4274 = vmatprep.subr.mxu0 0.0
  %4275 = vmatpush2.msra.mxu0 0.0
  %4276 = vmatprep.subr.mxu0 0.0
  %4277 = vmatpush2.msra.mxu0 0.0
  %4278 = vmatprep.subr.mxu0 0.0
  %4279 = vmatpush2.msra.mxu0 0.0
  %4280 = vmatprep.subr.mxu0 0.0
  %4281 = vmatpush2.msra.mxu0 0.0
  %4282 = vmatprep.subr.mxu0 0.0
  %4283 = vmatpush2.msra.mxu0 0.0
  %4284 = vmatprep.subr.mxu0 0.0
  %4285 = vmatpush2.msra.mxu0 0.0
  %4286 = vmatprep.subr.mxu0 0.0
  %4287 = vmatpush2.msra.mxu0 0.0
  %4288 = vmatprep.subr.mxu0 0.0
  %4289 = vmatpush2.msra.mxu0 0.0
  %4290 = vmatprep.subr.mxu0 0.0
  %4291 = vmatpush2.msra.mxu0 0.0
  %4292 = vmatprep.subr.mxu0 0.0
  %4293 = vmatpush2.msra.mxu0 0.0
  %4294 = vmatprep.subr.mxu0 0.0
  %4295 = vmatpush2.msra.mxu0 0.0
  %4296 = vmatprep.subr.mxu0 0.0
  %4297 = vmatpush2.msra.mxu0 0.0
  %4298 = vmatprep.subr.mxu0 0.0
  %4299 = vmatpush2.msra.mxu0 0.0
  %4300 = vmatprep.mubr.f32.mxu0 0.0
  %4301 = vmatmul.mubr.f32.gmra.mxu0 %v4225
  %v4302 = vpop.f32.mrf.mxu0
  %v4303 = vadd.f32 0.0, %v4302
  %v4304 = vpop.f32.mrf.mxu0
  %4305 = vmatprep.mubr.f32.mxu0 0.0
  %4306 = vmatmul.mubr.f32.gmra.mxu0 %v4228
  %v4307 = vpop.f32.mrf.mxu0
  %v4308 = vadd.f32 0.0, %v4307
  %v4309 = vpop.f32.mrf.mxu0
  %4310 = vmatprep.mubr.f32.mxu0 0.0
  %4311 = vmatmul.mubr.f32.gmra.mxu0 %v4231
  %v4312 = vpop.f32.mrf.mxu0
  %v4313 = vadd.f32 0.0, %v4312
  %v4314 = vpop.f32.mrf.mxu0
  %4315 = vmatprep.mubr.f32.mxu0 0.0
  %4316 = vmatmul.mubr.f32.gmra.mxu0 %v4234
  %v4317 = vpop.f32.mrf.mxu0
  %v4318 = vadd.f32 0.0, %v4317
  %v4319 = vpop.f32.mrf.mxu0
  %4320 = vdwg.mxu0
  %v4321 = vadd.f32 %v3942, %v4303
  %v4322 = vadd.f32 %v3943, %v4308
  %v4323 = vadd.f32 %v3944, %v4313
  %v4324 = vadd.f32 %v3945, %v4318
  %4325 = vrot.lane.b32.xlu0 %v3545, 112
  %v4326 = vpop.permute.xlu0 %4325
  %4327 = vrot.lane.b32.xlu0 %v3550, 112
  %v4328 = vpop.permute.xlu0 %4327
  %4329 = vrot.lane.b32.xlu0 %v3555, 112
  %v4330 = vpop.permute.xlu0 %4329
  %4331 = vrot.lane.b32.xlu0 %v3560, 112
  %v4332 = vpop.permute.xlu0 %4331
  %4333 = vrot.lane.b32.xlu0 %v3545, 80
  %v4334 = vpop.permute.xlu0 %4333
  %4335 = vrot.lane.b32.xlu0 %v3550, 80
  %v4336 = vpop.permute.xlu0 %4335
  %4337 = vrot.lane.b32.xlu0 %v3555, 80
  %v4338 = vpop.permute.xlu0 %4337
  %4339 = vrot.lane.b32.xlu0 %v3560, 80
  %v4340 = vpop.permute.xlu0 %4339
  %v4341 = vsel %vm668, %v4326, 0
  %v4343 = vsel %vm668, %v4328, 0
  %v4345 = vsel %vm668, %v4330, 0
  %v4347 = vsel %vm668, %v4332, 0
  %v4349 = vsel %vm668, %v4334, 0
  %v4351 = vsel %vm668, %v4336, 0
  %v4353 = vsel %vm668, %v4338, 0
  %v4355 = vsel %vm668, %v4340, 0
  %4357 = vmatprep.subr.mxu0 0.0
  %4358 = vmatpush1.xpose.msra.mxu0 0.0
  %4359 = vmatprep.subr.mxu0 0.0
  %4360 = vmatpush1.xpose.msra.mxu0 0.0
  %4361 = vmatprep.subr.mxu0 0.0
  %4362 = vmatpush1.xpose.msra.mxu0 0.0
  %4363 = vmatprep.subr.mxu0 0.0
  %4364 = vmatpush1.xpose.msra.mxu0 0.0
  %4365 = vmatprep.subr.mxu0 0.0
  %4366 = vmatpush1.xpose.msra.mxu0 0.0
  %4367 = vmatprep.subr.mxu0 0.0
  %4368 = vmatpush1.xpose.msra.mxu0 0.0
  %4369 = vmatprep.subr.mxu0 0.0
  %4370 = vmatpush1.xpose.msra.mxu0 0.0
  %4371 = vmatprep.subr.mxu0 0.0
  %4372 = vmatpush1.xpose.msra.mxu0 0.0
  %4373 = vmatprep.subr.mxu0 0.0
  %4374 = vmatpush1.xpose.msra.mxu0 0.0
  %4375 = vmatprep.subr.mxu0 0.0
  %4376 = vmatpush1.xpose.msra.mxu0 0.0
  %4377 = vmatprep.subr.mxu0 0.0
  %4378 = vmatpush1.xpose.msra.mxu0 0.0
  %4379 = vmatprep.subr.mxu0 0.0
  %4380 = vmatpush1.xpose.msra.mxu0 0.0
  %4381 = vmatprep.subr.mxu0 0.0
  %4382 = vmatpush1.xpose.msra.mxu0 %v4355
  %4383 = vmatprep.subr.mxu0 0.0
  %4384 = vmatpush1.xpose.msra.mxu0 %v4353
  %4385 = vmatprep.subr.mxu0 0.0
  %4386 = vmatpush1.xpose.msra.mxu0 %v4351
  %4387 = vmatprep.subr.mxu0 0.0
  %4388 = vmatpush1.xpose.msra.mxu0 %v4349
  %4389 = vmatprep.subr.mxu0 0.0
  %4390 = vmatpush2.xpose.msra.mxu0 0.0
  %4391 = vmatprep.subr.mxu0 0.0
  %4392 = vmatpush2.xpose.msra.mxu0 0.0
  %4393 = vmatprep.subr.mxu0 0.0
  %4394 = vmatpush2.xpose.msra.mxu0 0.0
  %4395 = vmatprep.subr.mxu0 0.0
  %4396 = vmatpush2.xpose.msra.mxu0 0.0
  %4397 = vmatprep.subr.mxu0 0.0
  %4398 = vmatpush2.xpose.msra.mxu0 0.0
  %4399 = vmatprep.subr.mxu0 0.0
  %4400 = vmatpush2.xpose.msra.mxu0 0.0
  %4401 = vmatprep.subr.mxu0 0.0
  %4402 = vmatpush2.xpose.msra.mxu0 0.0
  %4403 = vmatprep.subr.mxu0 0.0
  %4404 = vmatpush2.xpose.msra.mxu0 0.0
  %4405 = vmatprep.subr.mxu0 0.0
  %4406 = vmatpush2.xpose.msra.mxu0 0.0
  %4407 = vmatprep.subr.mxu0 0.0
  %4408 = vmatpush2.xpose.msra.mxu0 0.0
  %4409 = vmatprep.subr.mxu0 0.0
  %4410 = vmatpush2.xpose.msra.mxu0 0.0
  %4411 = vmatprep.subr.mxu0 0.0
  %4412 = vmatpush2.xpose.msra.mxu0 0.0
  %4413 = vmatprep.subr.mxu0 0.0
  %4414 = vmatpush2.xpose.msra.mxu0 0.0
  %4415 = vmatprep.subr.mxu0 0.0
  %4416 = vmatpush2.xpose.msra.mxu0 0.0
  %4417 = vmatprep.subr.mxu0 0.0
  %4418 = vmatpush2.xpose.msra.mxu0 0.0
  %4419 = vmatprep.subr.mxu0 0.0
  %4420 = vmatpush2.xpose.msra.mxu0 0.0
  %4421 = vmatprep.mubr.f32.mxu0 0.0
  %4422 = vmatmul.mubr.f32.gmra.mxu0 %v4341
  %v4423 = vpop.f32.mrf.mxu0
  %v4424 = vadd.f32 0.0, %v4423
  %v4425 = vpop.f32.mrf.mxu0
  %4426 = vmatprep.mubr.f32.mxu0 0.0
  %4427 = vmatmul.mubr.f32.gmra.mxu0 %v4343
  %v4428 = vpop.f32.mrf.mxu0
  %v4429 = vadd.f32 0.0, %v4428
  %v4430 = vpop.f32.mrf.mxu0
  %4431 = vmatprep.mubr.f32.mxu0 0.0
  %4432 = vmatmul.mubr.f32.gmra.mxu0 %v4345
  %v4433 = vpop.f32.mrf.mxu0
  %v4434 = vadd.f32 0.0, %v4433
  %v4435 = vpop.f32.mrf.mxu0
  %4436 = vmatprep.mubr.f32.mxu0 0.0
  %4437 = vmatmul.mubr.f32.gmra.mxu0 %v4347
  %v4438 = vpop.f32.mrf.mxu0
  %v4439 = vadd.f32 0.0, %v4438
  %v4440 = vpop.f32.mrf.mxu0
  %4441 = vdwg.mxu0
  %v4442 = vmul.f32 %v4424, 0.35355338
  %v4443 = vmul.f32 %v4429, 0.35355338
  %v4444 = vmul.f32 %v4434, 0.35355338
  %v4445 = vmul.f32 %v4439, 0.35355338
  %v4446 = vadd.f32 %v4442, %v79
  %v4447 = vadd.f32 %v4443, %v80
  %v4448 = vadd.f32 %v4444, %v81
  %v4449 = vadd.f32 %v4445, %v82
  %v4450 = vsel %vm89, %v4446, -inf
  %4451 = vmax.xlane.f32.xlu0 %v4450
  %v4452 = vpop.xlane.xlu0 %4451
  %v4453 = vsel %vm89, %v4447, -inf
  %4454 = vmax.xlane.f32.xlu0 %v4453
  %v4455 = vpop.xlane.xlu0 %4454
  %v4456 = vsel %vm89, %v4448, -inf
  %4457 = vmax.xlane.f32.xlu0 %v4456
  %v4458 = vpop.xlane.xlu0 %4457
  %v4459 = vsel %vm89, %v4449, -inf
  %4460 = vmax.xlane.f32.xlu0 %v4459
  %v4461 = vpop.xlane.xlu0 %4460
  %v4462 = vsub.f32 %v4446, %v4452
  %v4463 = vsub.f32 %v4447, %v4455
  %v4464 = vsub.f32 %v4448, %v4458
  %v4465 = vsub.f32 %v4449, %v4461
  %v4466 = vmul.f32 %v4462, 1.442695
  %v4467 = vpow.pop %v4466
  %v4468 = vmul.f32 %v4463, 1.442695
  %v4469 = vpow.pop %v4468
  %v4470 = vmul.f32 %v4464, 1.442695
  %v4471 = vpow.pop %v4470
  %v4472 = vmul.f32 %v4465, 1.442695
  %v4473 = vpow.pop %v4472
  %v4474 = vsel %vm89, %v4467, 0.0
  %4475 = vadd.xlane.f32.xlu0 %v4474
  %v4476 = vpop.xlane.xlu0 %4475
  %v4477 = vsel %vm89, %v4469, 0.0
  %4478 = vadd.xlane.f32.xlu0 %v4477
  %v4479 = vpop.xlane.xlu0 %4478
  %v4480 = vsel %vm89, %v4471, 0.0
  %4481 = vadd.xlane.f32.xlu0 %v4480
  %v4482 = vpop.xlane.xlu0 %4481
  %v4483 = vsel %vm89, %v4473, 0.0
  %4484 = vadd.xlane.f32.xlu0 %v4483
  %v4485 = vpop.xlane.xlu0 %4484
  %v4486 = vrcp.pop %v4476
  %v4487 = vmul.f32 %v4467, %v4486
  %v4488 = vrcp.pop %v4479
  %v4489 = vmul.f32 %v4469, %v4488
  %v4490 = vrcp.pop %v4482
  %v4491 = vmul.f32 %v4471, %v4490
  %v4492 = vrcp.pop %v4485
  %v4493 = vmul.f32 %v4473, %v4492
  %4494 = vrot.lane.b32.xlu0 %v3545, 48
  %v4495 = vpop.permute.xlu0 %4494
  %4496 = vrot.lane.b32.xlu0 %v3550, 48
  %v4497 = vpop.permute.xlu0 %4496
  %4498 = vrot.lane.b32.xlu0 %v3555, 48
  %v4499 = vpop.permute.xlu0 %4498
  %4500 = vrot.lane.b32.xlu0 %v3560, 48
  %v4501 = vpop.permute.xlu0 %4500
  %v4507 = vsel %vm89, %v4487, 0
  %v4510 = vsel %vm89, %v4489, 0
  %v4513 = vsel %vm89, %v4491, 0
  %v4516 = vsel %vm89, %v4493, 0
  %4518 = vmatprep.subr.mxu0 0.0
  %4519 = vmatpush1.msra.mxu0 0.0
  %4520 = vmatprep.subr.mxu0 0.0
  %4521 = vmatpush1.msra.mxu0 0.0
  %4522 = vmatprep.subr.mxu0 0.0
  %4523 = vmatpush1.msra.mxu0 0.0
  %4524 = vmatprep.subr.mxu0 0.0
  %4525 = vmatpush1.msra.mxu0 0.0
  %4526 = vmatprep.subr.mxu0 0.0
  %4527 = vmatpush1.msra.mxu0 0.0
  %4528 = vmatprep.subr.mxu0 0.0
  %4529 = vmatpush1.msra.mxu0 0.0
  %4530 = vmatprep.subr.mxu0 0.0
  %4531 = vmatpush1.msra.mxu0 0.0
  %4532 = vmatprep.subr.mxu0 0.0
  %4533 = vmatpush1.msra.mxu0 0.0
  %4534 = vmatprep.subr.mxu0 0.0
  %4535 = vmatpush1.msra.mxu0 0.0
  %4536 = vmatprep.subr.mxu0 0.0
  %4537 = vmatpush1.msra.mxu0 0.0
  %4538 = vmatprep.subr.mxu0 0.0
  %4539 = vmatpush1.msra.mxu0 0.0
  %4540 = vmatprep.subr.mxu0 0.0
  %4541 = vmatpush1.msra.mxu0 0.0
  %4542 = vmatprep.subr.mxu0 0.0
  %4543 = vmatpush1.msra.mxu0 %v4501
  %4544 = vmatprep.subr.mxu0 0.0
  %4545 = vmatpush1.msra.mxu0 %v4499
  %4546 = vmatprep.subr.mxu0 0.0
  %4547 = vmatpush1.msra.mxu0 %v4497
  %4548 = vmatprep.subr.mxu0 0.0
  %4549 = vmatpush1.msra.mxu0 %v4495
  %4550 = vmatprep.subr.mxu0 0.0
  %4551 = vmatpush2.msra.mxu0 0.0
  %4552 = vmatprep.subr.mxu0 0.0
  %4553 = vmatpush2.msra.mxu0 0.0
  %4554 = vmatprep.subr.mxu0 0.0
  %4555 = vmatpush2.msra.mxu0 0.0
  %4556 = vmatprep.subr.mxu0 0.0
  %4557 = vmatpush2.msra.mxu0 0.0
  %4558 = vmatprep.subr.mxu0 0.0
  %4559 = vmatpush2.msra.mxu0 0.0
  %4560 = vmatprep.subr.mxu0 0.0
  %4561 = vmatpush2.msra.mxu0 0.0
  %4562 = vmatprep.subr.mxu0 0.0
  %4563 = vmatpush2.msra.mxu0 0.0
  %4564 = vmatprep.subr.mxu0 0.0
  %4565 = vmatpush2.msra.mxu0 0.0
  %4566 = vmatprep.subr.mxu0 0.0
  %4567 = vmatpush2.msra.mxu0 0.0
  %4568 = vmatprep.subr.mxu0 0.0
  %4569 = vmatpush2.msra.mxu0 0.0
  %4570 = vmatprep.subr.mxu0 0.0
  %4571 = vmatpush2.msra.mxu0 0.0
  %4572 = vmatprep.subr.mxu0 0.0
  %4573 = vmatpush2.msra.mxu0 0.0
  %4574 = vmatprep.subr.mxu0 0.0
  %4575 = vmatpush2.msra.mxu0 0.0
  %4576 = vmatprep.subr.mxu0 0.0
  %4577 = vmatpush2.msra.mxu0 0.0
  %4578 = vmatprep.subr.mxu0 0.0
  %4579 = vmatpush2.msra.mxu0 0.0
  %4580 = vmatprep.subr.mxu0 0.0
  %4581 = vmatpush2.msra.mxu0 0.0
  %4582 = vmatprep.mubr.f32.mxu0 0.0
  %4583 = vmatmul.mubr.f32.gmra.mxu0 %v4507
  %v4584 = vpop.f32.mrf.mxu0
  %v4585 = vadd.f32 0.0, %v4584
  %v4586 = vpop.f32.mrf.mxu0
  %4587 = vmatprep.mubr.f32.mxu0 0.0
  %4588 = vmatmul.mubr.f32.gmra.mxu0 %v4510
  %v4589 = vpop.f32.mrf.mxu0
  %v4590 = vadd.f32 0.0, %v4589
  %v4591 = vpop.f32.mrf.mxu0
  %4592 = vmatprep.mubr.f32.mxu0 0.0
  %4593 = vmatmul.mubr.f32.gmra.mxu0 %v4513
  %v4594 = vpop.f32.mrf.mxu0
  %v4595 = vadd.f32 0.0, %v4594
  %v4596 = vpop.f32.mrf.mxu0
  %4597 = vmatprep.mubr.f32.mxu0 0.0
  %4598 = vmatmul.mubr.f32.gmra.mxu0 %v4516
  %v4599 = vpop.f32.mrf.mxu0
  %v4600 = vadd.f32 0.0, %v4599
  %v4601 = vpop.f32.mrf.mxu0
  %4602 = vdwg.mxu0
  %v4604 = vsel %vm668, %v4585, 0
  %v4607 = vsel %vm668, %v4590, 0
  %v4610 = vsel %vm668, %v4595, 0
  %v4613 = vsel %vm668, %v4600, 0
  %4615 = vmatprep.subr.mxu0 0.0
  %4616 = vmatpush1.msra.mxu0 0.0
  %4617 = vmatprep.subr.mxu0 0.0
  %4618 = vmatpush1.msra.mxu0 0.0
  %4619 = vmatprep.subr.mxu0 0.0
  %4620 = vmatpush1.msra.mxu0 0.0
  %4621 = vmatprep.subr.mxu0 0.0
  %4622 = vmatpush1.msra.mxu0 0.0
  %4623 = vmatprep.subr.mxu0 0.0
  %4624 = vmatpush1.msra.mxu0 0.0
  %4625 = vmatprep.subr.mxu0 0.0
  %4626 = vmatpush1.msra.mxu0 0.0
  %4627 = vmatprep.subr.mxu0 0.0
  %4628 = vmatpush1.msra.mxu0 0.0
  %4629 = vmatprep.subr.mxu0 0.0
  %4630 = vmatpush1.msra.mxu0 0.0
  %4631 = vmatprep.subr.mxu0 0.0
  %4632 = vmatpush1.msra.mxu0 0.0
  %4633 = vmatprep.subr.mxu0 0.0
  %4634 = vmatpush1.msra.mxu0 0.0
  %4635 = vmatprep.subr.mxu0 0.0
  %4636 = vmatpush1.msra.mxu0 0.0
  %4637 = vmatprep.subr.mxu0 0.0
  %4638 = vmatpush1.msra.mxu0 0.0
  %4639 = vmatprep.subr.mxu0 0.0
  %4640 = vmatpush1.msra.mxu0 0.0
  %4641 = vmatprep.subr.mxu0 0.0
  %4642 = vmatpush1.msra.mxu0 0.0
  %4643 = vmatprep.subr.mxu0 0.0
  %4644 = vmatpush1.msra.mxu0 0.0
  %4645 = vmatprep.subr.mxu0 0.0
  %4646 = vmatpush1.msra.mxu0 %v3350
  %4647 = vmatprep.subr.mxu0 0.0
  %4648 = vmatpush2.msra.mxu0 0.0
  %4649 = vmatprep.subr.mxu0 0.0
  %4650 = vmatpush2.msra.mxu0 0.0
  %4651 = vmatprep.subr.mxu0 0.0
  %4652 = vmatpush2.msra.mxu0 0.0
  %4653 = vmatprep.subr.mxu0 0.0
  %4654 = vmatpush2.msra.mxu0 0.0
  %4655 = vmatprep.subr.mxu0 0.0
  %4656 = vmatpush2.msra.mxu0 0.0
  %4657 = vmatprep.subr.mxu0 0.0
  %4658 = vmatpush2.msra.mxu0 0.0
  %4659 = vmatprep.subr.mxu0 0.0
  %4660 = vmatpush2.msra.mxu0 0.0
  %4661 = vmatprep.subr.mxu0 0.0
  %4662 = vmatpush2.msra.mxu0 0.0
  %4663 = vmatprep.subr.mxu0 0.0
  %4664 = vmatpush2.msra.mxu0 0.0
  %4665 = vmatprep.subr.mxu0 0.0
  %4666 = vmatpush2.msra.mxu0 0.0
  %4667 = vmatprep.subr.mxu0 0.0
  %4668 = vmatpush2.msra.mxu0 0.0
  %4669 = vmatprep.subr.mxu0 0.0
  %4670 = vmatpush2.msra.mxu0 0.0
  %4671 = vmatprep.subr.mxu0 0.0
  %4672 = vmatpush2.msra.mxu0 0.0
  %4673 = vmatprep.subr.mxu0 0.0
  %4674 = vmatpush2.msra.mxu0 0.0
  %4675 = vmatprep.subr.mxu0 0.0
  %4676 = vmatpush2.msra.mxu0 0.0
  %4677 = vmatprep.subr.mxu0 0.0
  %4678 = vmatpush2.msra.mxu0 0.0
  %4679 = vmatprep.mubr.f32.mxu0 0.0
  %4680 = vmatmul.mubr.f32.gmra.mxu0 %v4604
  %v4681 = vpop.f32.mrf.mxu0
  %v4682 = vadd.f32 0.0, %v4681
  %v4683 = vpop.f32.mrf.mxu0
  %4684 = vmatprep.mubr.f32.mxu0 0.0
  %4685 = vmatmul.mubr.f32.gmra.mxu0 %v4607
  %v4686 = vpop.f32.mrf.mxu0
  %v4687 = vadd.f32 0.0, %v4686
  %v4688 = vpop.f32.mrf.mxu0
  %4689 = vmatprep.mubr.f32.mxu0 0.0
  %4690 = vmatmul.mubr.f32.gmra.mxu0 %v4610
  %v4691 = vpop.f32.mrf.mxu0
  %v4692 = vadd.f32 0.0, %v4691
  %v4693 = vpop.f32.mrf.mxu0
  %4694 = vmatprep.mubr.f32.mxu0 0.0
  %4695 = vmatmul.mubr.f32.gmra.mxu0 %v4613
  %v4696 = vpop.f32.mrf.mxu0
  %v4697 = vadd.f32 0.0, %v4696
  %v4698 = vpop.f32.mrf.mxu0
  %4699 = vdwg.mxu0
  %v4700 = vadd.f32 %v4321, %v4682
  %v4701 = vadd.f32 %v4322, %v4687
  %v4702 = vadd.f32 %v4323, %v4692
  %v4703 = vadd.f32 %v4324, %v4697
  %4704 = vrot.lane.b32.xlu0 %v3545, 104
  %v4705 = vpop.permute.xlu0 %4704
  %4706 = vrot.lane.b32.xlu0 %v3550, 104
  %v4707 = vpop.permute.xlu0 %4706
  %4708 = vrot.lane.b32.xlu0 %v3555, 104
  %v4709 = vpop.permute.xlu0 %4708
  %4710 = vrot.lane.b32.xlu0 %v3560, 104
  %v4711 = vpop.permute.xlu0 %4710
  %4712 = vrot.lane.b32.xlu0 %v3545, 72
  %v4713 = vpop.permute.xlu0 %4712
  %4714 = vrot.lane.b32.xlu0 %v3550, 72
  %v4715 = vpop.permute.xlu0 %4714
  %4716 = vrot.lane.b32.xlu0 %v3555, 72
  %v4717 = vpop.permute.xlu0 %4716
  %4718 = vrot.lane.b32.xlu0 %v3560, 72
  %v4719 = vpop.permute.xlu0 %4718
  %v4720 = vsel %vm668, %v4705, 0
  %v4722 = vsel %vm668, %v4707, 0
  %v4724 = vsel %vm668, %v4709, 0
  %v4726 = vsel %vm668, %v4711, 0
  %v4728 = vsel %vm668, %v4713, 0
  %v4730 = vsel %vm668, %v4715, 0
  %v4732 = vsel %vm668, %v4717, 0
  %v4734 = vsel %vm668, %v4719, 0
  %4736 = vmatprep.subr.mxu0 0.0
  %4737 = vmatpush1.xpose.msra.mxu0 0.0
  %4738 = vmatprep.subr.mxu0 0.0
  %4739 = vmatpush1.xpose.msra.mxu0 0.0
  %4740 = vmatprep.subr.mxu0 0.0
  %4741 = vmatpush1.xpose.msra.mxu0 0.0
  %4742 = vmatprep.subr.mxu0 0.0
  %4743 = vmatpush1.xpose.msra.mxu0 0.0
  %4744 = vmatprep.subr.mxu0 0.0
  %4745 = vmatpush1.xpose.msra.mxu0 0.0
  %4746 = vmatprep.subr.mxu0 0.0
  %4747 = vmatpush1.xpose.msra.mxu0 0.0
  %4748 = vmatprep.subr.mxu0 0.0
  %4749 = vmatpush1.xpose.msra.mxu0 0.0
  %4750 = vmatprep.subr.mxu0 0.0
  %4751 = vmatpush1.xpose.msra.mxu0 0.0
  %4752 = vmatprep.subr.mxu0 0.0
  %4753 = vmatpush1.xpose.msra.mxu0 0.0
  %4754 = vmatprep.subr.mxu0 0.0
  %4755 = vmatpush1.xpose.msra.mxu0 0.0
  %4756 = vmatprep.subr.mxu0 0.0
  %4757 = vmatpush1.xpose.msra.mxu0 0.0
  %4758 = vmatprep.subr.mxu0 0.0
  %4759 = vmatpush1.xpose.msra.mxu0 0.0
  %4760 = vmatprep.subr.mxu0 0.0
  %4761 = vmatpush1.xpose.msra.mxu0 %v4734
  %4762 = vmatprep.subr.mxu0 0.0
  %4763 = vmatpush1.xpose.msra.mxu0 %v4732
  %4764 = vmatprep.subr.mxu0 0.0
  %4765 = vmatpush1.xpose.msra.mxu0 %v4730
  %4766 = vmatprep.subr.mxu0 0.0
  %4767 = vmatpush1.xpose.msra.mxu0 %v4728
  %4768 = vmatprep.subr.mxu0 0.0
  %4769 = vmatpush2.xpose.msra.mxu0 0.0
  %4770 = vmatprep.subr.mxu0 0.0
  %4771 = vmatpush2.xpose.msra.mxu0 0.0
  %4772 = vmatprep.subr.mxu0 0.0
  %4773 = vmatpush2.xpose.msra.mxu0 0.0
  %4774 = vmatprep.subr.mxu0 0.0
  %4775 = vmatpush2.xpose.msra.mxu0 0.0
  %4776 = vmatprep.subr.mxu0 0.0
  %4777 = vmatpush2.xpose.msra.mxu0 0.0
  %4778 = vmatprep.subr.mxu0 0.0
  %4779 = vmatpush2.xpose.msra.mxu0 0.0
  %4780 = vmatprep.subr.mxu0 0.0
  %4781 = vmatpush2.xpose.msra.mxu0 0.0
  %4782 = vmatprep.subr.mxu0 0.0
  %4783 = vmatpush2.xpose.msra.mxu0 0.0
  %4784 = vmatprep.subr.mxu0 0.0
  %4785 = vmatpush2.xpose.msra.mxu0 0.0
  %4786 = vmatprep.subr.mxu0 0.0
  %4787 = vmatpush2.xpose.msra.mxu0 0.0
  %4788 = vmatprep.subr.mxu0 0.0
  %4789 = vmatpush2.xpose.msra.mxu0 0.0
  %4790 = vmatprep.subr.mxu0 0.0
  %4791 = vmatpush2.xpose.msra.mxu0 0.0
  %4792 = vmatprep.subr.mxu0 0.0
  %4793 = vmatpush2.xpose.msra.mxu0 0.0
  %4794 = vmatprep.subr.mxu0 0.0
  %4795 = vmatpush2.xpose.msra.mxu0 0.0
  %4796 = vmatprep.subr.mxu0 0.0
  %4797 = vmatpush2.xpose.msra.mxu0 0.0
  %4798 = vmatprep.subr.mxu0 0.0
  %4799 = vmatpush2.xpose.msra.mxu0 0.0
  %4800 = vmatprep.mubr.f32.mxu0 0.0
  %4801 = vmatmul.mubr.f32.gmra.mxu0 %v4720
  %v4802 = vpop.f32.mrf.mxu0
  %v4803 = vadd.f32 0.0, %v4802
  %v4804 = vpop.f32.mrf.mxu0
  %4805 = vmatprep.mubr.f32.mxu0 0.0
  %4806 = vmatmul.mubr.f32.gmra.mxu0 %v4722
  %v4807 = vpop.f32.mrf.mxu0
  %v4808 = vadd.f32 0.0, %v4807
  %v4809 = vpop.f32.mrf.mxu0
  %4810 = vmatprep.mubr.f32.mxu0 0.0
  %4811 = vmatmul.mubr.f32.gmra.mxu0 %v4724
  %v4812 = vpop.f32.mrf.mxu0
  %v4813 = vadd.f32 0.0, %v4812
  %v4814 = vpop.f32.mrf.mxu0
  %4815 = vmatprep.mubr.f32.mxu0 0.0
  %4816 = vmatmul.mubr.f32.gmra.mxu0 %v4726
  %v4817 = vpop.f32.mrf.mxu0
  %v4818 = vadd.f32 0.0, %v4817
  %v4819 = vpop.f32.mrf.mxu0
  %4820 = vdwg.mxu0
  %v4821 = vmul.f32 %v4803, 0.35355338
  %v4822 = vmul.f32 %v4808, 0.35355338
  %v4823 = vmul.f32 %v4813, 0.35355338
  %v4824 = vmul.f32 %v4818, 0.35355338
  %v4825 = vadd.f32 %v4821, %v79
  %v4826 = vadd.f32 %v4822, %v80
  %v4827 = vadd.f32 %v4823, %v81
  %v4828 = vadd.f32 %v4824, %v82
  %v4829 = vsel %vm89, %v4825, -inf
  %4830 = vmax.xlane.f32.xlu0 %v4829
  %v4831 = vpop.xlane.xlu0 %4830
  %v4832 = vsel %vm89, %v4826, -inf
  %4833 = vmax.xlane.f32.xlu0 %v4832
  %v4834 = vpop.xlane.xlu0 %4833
  %v4835 = vsel %vm89, %v4827, -inf
  %4836 = vmax.xlane.f32.xlu0 %v4835
  %v4837 = vpop.xlane.xlu0 %4836
  %v4838 = vsel %vm89, %v4828, -inf
  %4839 = vmax.xlane.f32.xlu0 %v4838
  %v4840 = vpop.xlane.xlu0 %4839
  %v4841 = vsub.f32 %v4825, %v4831
  %v4842 = vsub.f32 %v4826, %v4834
  %v4843 = vsub.f32 %v4827, %v4837
  %v4844 = vsub.f32 %v4828, %v4840
  %v4845 = vmul.f32 %v4841, 1.442695
  %v4846 = vpow.pop %v4845
  %v4847 = vmul.f32 %v4842, 1.442695
  %v4848 = vpow.pop %v4847
  %v4849 = vmul.f32 %v4843, 1.442695
  %v4850 = vpow.pop %v4849
  %v4851 = vmul.f32 %v4844, 1.442695
  %v4852 = vpow.pop %v4851
  %v4853 = vsel %vm89, %v4846, 0.0
  %4854 = vadd.xlane.f32.xlu0 %v4853
  %v4855 = vpop.xlane.xlu0 %4854
  %v4856 = vsel %vm89, %v4848, 0.0
  %4857 = vadd.xlane.f32.xlu0 %v4856
  %v4858 = vpop.xlane.xlu0 %4857
  %v4859 = vsel %vm89, %v4850, 0.0
  %4860 = vadd.xlane.f32.xlu0 %v4859
  %v4861 = vpop.xlane.xlu0 %4860
  %v4862 = vsel %vm89, %v4852, 0.0
  %4863 = vadd.xlane.f32.xlu0 %v4862
  %v4864 = vpop.xlane.xlu0 %4863
  %v4865 = vrcp.pop %v4855
  %v4866 = vmul.f32 %v4846, %v4865
  %v4867 = vrcp.pop %v4858
  %v4868 = vmul.f32 %v4848, %v4867
  %v4869 = vrcp.pop %v4861
  %v4870 = vmul.f32 %v4850, %v4869
  %v4871 = vrcp.pop %v4864
  %v4872 = vmul.f32 %v4852, %v4871
  %4873 = vrot.lane.b32.xlu0 %v3545, 40
  %v4874 = vpop.permute.xlu0 %4873
  %4875 = vrot.lane.b32.xlu0 %v3550, 40
  %v4876 = vpop.permute.xlu0 %4875
  %4877 = vrot.lane.b32.xlu0 %v3555, 40
  %v4878 = vpop.permute.xlu0 %4877
  %4879 = vrot.lane.b32.xlu0 %v3560, 40
  %v4880 = vpop.permute.xlu0 %4879
  %v4886 = vsel %vm89, %v4866, 0
  %v4889 = vsel %vm89, %v4868, 0
  %v4892 = vsel %vm89, %v4870, 0
  %v4895 = vsel %vm89, %v4872, 0
  %4897 = vmatprep.subr.mxu0 0.0
  %4898 = vmatpush1.msra.mxu0 0.0
  %4899 = vmatprep.subr.mxu0 0.0
  %4900 = vmatpush1.msra.mxu0 0.0
  %4901 = vmatprep.subr.mxu0 0.0
  %4902 = vmatpush1.msra.mxu0 0.0
  %4903 = vmatprep.subr.mxu0 0.0
  %4904 = vmatpush1.msra.mxu0 0.0
  %4905 = vmatprep.subr.mxu0 0.0
  %4906 = vmatpush1.msra.mxu0 0.0
  %4907 = vmatprep.subr.mxu0 0.0
  %4908 = vmatpush1.msra.mxu0 0.0
  %4909 = vmatprep.subr.mxu0 0.0
  %4910 = vmatpush1.msra.mxu0 0.0
  %4911 = vmatprep.subr.mxu0 0.0
  %4912 = vmatpush1.msra.mxu0 0.0
  %4913 = vmatprep.subr.mxu0 0.0
  %4914 = vmatpush1.msra.mxu0 0.0
  %4915 = vmatprep.subr.mxu0 0.0
  %4916 = vmatpush1.msra.mxu0 0.0
  %4917 = vmatprep.subr.mxu0 0.0
  %4918 = vmatpush1.msra.mxu0 0.0
  %4919 = vmatprep.subr.mxu0 0.0
  %4920 = vmatpush1.msra.mxu0 0.0
  %4921 = vmatprep.subr.mxu0 0.0
  %4922 = vmatpush1.msra.mxu0 %v4880
  %4923 = vmatprep.subr.mxu0 0.0
  %4924 = vmatpush1.msra.mxu0 %v4878
  %4925 = vmatprep.subr.mxu0 0.0
  %4926 = vmatpush1.msra.mxu0 %v4876
  %4927 = vmatprep.subr.mxu0 0.0
  %4928 = vmatpush1.msra.mxu0 %v4874
  %4929 = vmatprep.subr.mxu0 0.0
  %4930 = vmatpush2.msra.mxu0 0.0
  %4931 = vmatprep.subr.mxu0 0.0
  %4932 = vmatpush2.msra.mxu0 0.0
  %4933 = vmatprep.subr.mxu0 0.0
  %4934 = vmatpush2.msra.mxu0 0.0
  %4935 = vmatprep.subr.mxu0 0.0
  %4936 = vmatpush2.msra.mxu0 0.0
  %4937 = vmatprep.subr.mxu0 0.0
  %4938 = vmatpush2.msra.mxu0 0.0
  %4939 = vmatprep.subr.mxu0 0.0
  %4940 = vmatpush2.msra.mxu0 0.0
  %4941 = vmatprep.subr.mxu0 0.0
  %4942 = vmatpush2.msra.mxu0 0.0
  %4943 = vmatprep.subr.mxu0 0.0
  %4944 = vmatpush2.msra.mxu0 0.0
  %4945 = vmatprep.subr.mxu0 0.0
  %4946 = vmatpush2.msra.mxu0 0.0
  %4947 = vmatprep.subr.mxu0 0.0
  %4948 = vmatpush2.msra.mxu0 0.0
  %4949 = vmatprep.subr.mxu0 0.0
  %4950 = vmatpush2.msra.mxu0 0.0
  %4951 = vmatprep.subr.mxu0 0.0
  %4952 = vmatpush2.msra.mxu0 0.0
  %4953 = vmatprep.subr.mxu0 0.0
  %4954 = vmatpush2.msra.mxu0 0.0
  %4955 = vmatprep.subr.mxu0 0.0
  %4956 = vmatpush2.msra.mxu0 0.0
  %4957 = vmatprep.subr.mxu0 0.0
  %4958 = vmatpush2.msra.mxu0 0.0
  %4959 = vmatprep.subr.mxu0 0.0
  %4960 = vmatpush2.msra.mxu0 0.0
  %4961 = vmatprep.mubr.f32.mxu0 0.0
  %4962 = vmatmul.mubr.f32.gmra.mxu0 %v4886
  %v4963 = vpop.f32.mrf.mxu0
  %v4964 = vadd.f32 0.0, %v4963
  %v4965 = vpop.f32.mrf.mxu0
  %4966 = vmatprep.mubr.f32.mxu0 0.0
  %4967 = vmatmul.mubr.f32.gmra.mxu0 %v4889
  %v4968 = vpop.f32.mrf.mxu0
  %v4969 = vadd.f32 0.0, %v4968
  %v4970 = vpop.f32.mrf.mxu0
  %4971 = vmatprep.mubr.f32.mxu0 0.0
  %4972 = vmatmul.mubr.f32.gmra.mxu0 %v4892
  %v4973 = vpop.f32.mrf.mxu0
  %v4974 = vadd.f32 0.0, %v4973
  %v4975 = vpop.f32.mrf.mxu0
  %4976 = vmatprep.mubr.f32.mxu0 0.0
  %4977 = vmatmul.mubr.f32.gmra.mxu0 %v4895
  %v4978 = vpop.f32.mrf.mxu0
  %v4979 = vadd.f32 0.0, %v4978
  %v4980 = vpop.f32.mrf.mxu0
  %4981 = vdwg.mxu0
  %v4983 = vsel %vm668, %v4964, 0
  %v4986 = vsel %vm668, %v4969, 0
  %v4989 = vsel %vm668, %v4974, 0
  %v4992 = vsel %vm668, %v4979, 0
  %4994 = vmatprep.subr.mxu0 0.0
  %4995 = vmatpush1.msra.mxu0 0.0
  %4996 = vmatprep.subr.mxu0 0.0
  %4997 = vmatpush1.msra.mxu0 0.0
  %4998 = vmatprep.subr.mxu0 0.0
  %4999 = vmatpush1.msra.mxu0 0.0
  %5000 = vmatprep.subr.mxu0 0.0
  %5001 = vmatpush1.msra.mxu0 0.0
  %5002 = vmatprep.subr.mxu0 0.0
  %5003 = vmatpush1.msra.mxu0 0.0
  %5004 = vmatprep.subr.mxu0 0.0
  %5005 = vmatpush1.msra.mxu0 0.0
  %5006 = vmatprep.subr.mxu0 0.0
  %5007 = vmatpush1.msra.mxu0 0.0
  %5008 = vmatprep.subr.mxu0 0.0
  %5009 = vmatpush1.msra.mxu0 0.0
  %5010 = vmatprep.subr.mxu0 0.0
  %5011 = vmatpush1.msra.mxu0 0.0
  %5012 = vmatprep.subr.mxu0 0.0
  %5013 = vmatpush1.msra.mxu0 0.0
  %5014 = vmatprep.subr.mxu0 0.0
  %5015 = vmatpush1.msra.mxu0 0.0
  %5016 = vmatprep.subr.mxu0 0.0
  %5017 = vmatpush1.msra.mxu0 0.0
  %5018 = vmatprep.subr.mxu0 0.0
  %5019 = vmatpush1.msra.mxu0 0.0
  %5020 = vmatprep.subr.mxu0 0.0
  %5021 = vmatpush1.msra.mxu0 0.0
  %5022 = vmatprep.subr.mxu0 0.0
  %5023 = vmatpush1.msra.mxu0 0.0
  %5024 = vmatprep.subr.mxu0 0.0
  %5025 = vmatpush1.msra.mxu0 %v3351
  %5026 = vmatprep.subr.mxu0 0.0
  %5027 = vmatpush2.msra.mxu0 0.0
  %5028 = vmatprep.subr.mxu0 0.0
  %5029 = vmatpush2.msra.mxu0 0.0
  %5030 = vmatprep.subr.mxu0 0.0
  %5031 = vmatpush2.msra.mxu0 0.0
  %5032 = vmatprep.subr.mxu0 0.0
  %5033 = vmatpush2.msra.mxu0 0.0
  %5034 = vmatprep.subr.mxu0 0.0
  %5035 = vmatpush2.msra.mxu0 0.0
  %5036 = vmatprep.subr.mxu0 0.0
  %5037 = vmatpush2.msra.mxu0 0.0
  %5038 = vmatprep.subr.mxu0 0.0
  %5039 = vmatpush2.msra.mxu0 0.0
  %5040 = vmatprep.subr.mxu0 0.0
  %5041 = vmatpush2.msra.mxu0 0.0
  %5042 = vmatprep.subr.mxu0 0.0
  %5043 = vmatpush2.msra.mxu0 0.0
  %5044 = vmatprep.subr.mxu0 0.0
  %5045 = vmatpush2.msra.mxu0 0.0
  %5046 = vmatprep.subr.mxu0 0.0
  %5047 = vmatpush2.msra.mxu0 0.0
  %5048 = vmatprep.subr.mxu0 0.0
  %5049 = vmatpush2.msra.mxu0 0.0
  %5050 = vmatprep.subr.mxu0 0.0
  %5051 = vmatpush2.msra.mxu0 0.0
  %5052 = vmatprep.subr.mxu0 0.0
  %5053 = vmatpush2.msra.mxu0 0.0
  %5054 = vmatprep.subr.mxu0 0.0
  %5055 = vmatpush2.msra.mxu0 0.0
  %5056 = vmatprep.subr.mxu0 0.0
  %5057 = vmatpush2.msra.mxu0 0.0
  %5058 = vmatprep.mubr.f32.mxu0 0.0
  %5059 = vmatmul.mubr.f32.gmra.mxu0 %v4983
  %v5060 = vpop.f32.mrf.mxu0
  %v5061 = vadd.f32 0.0, %v5060
  %v5062 = vpop.f32.mrf.mxu0
  %5063 = vmatprep.mubr.f32.mxu0 0.0
  %5064 = vmatmul.mubr.f32.gmra.mxu0 %v4986
  %v5065 = vpop.f32.mrf.mxu0
  %v5066 = vadd.f32 0.0, %v5065
  %v5067 = vpop.f32.mrf.mxu0
  %5068 = vmatprep.mubr.f32.mxu0 0.0
  %5069 = vmatmul.mubr.f32.gmra.mxu0 %v4989
  %v5070 = vpop.f32.mrf.mxu0
  %v5071 = vadd.f32 0.0, %v5070
  %v5072 = vpop.f32.mrf.mxu0
  %5073 = vmatprep.mubr.f32.mxu0 0.0
  %5074 = vmatmul.mubr.f32.gmra.mxu0 %v4992
  %v5075 = vpop.f32.mrf.mxu0
  %v5076 = vadd.f32 0.0, %v5075
  %v5077 = vpop.f32.mrf.mxu0
  %5078 = vdwg.mxu0
  %v5079 = vadd.f32 %v4700, %v5061
  %v5080 = vadd.f32 %v4701, %v5066
  %v5081 = vadd.f32 %v4702, %v5071
  %v5082 = vadd.f32 %v4703, %v5076
  %v5083 = vadd.f32 %v3341, %v5079
  %v5084 = vadd.f32 %v3342, %v5080
  %v5085 = vadd.f32 %v3343, %v5081
  %v5086 = vadd.f32 %v3344, %v5082
  %v5087 = vsel %vm89, %v5083, 0.0
  %5088 = vadd.xlane.f32.xlu0 %v5087
  %v5089 = vpop.xlane.xlu0 %5088
  %v5090 = vsel %vm89, %v5084, 0.0
  %5091 = vadd.xlane.f32.xlu0 %v5090
  %v5092 = vpop.xlane.xlu0 %5091
  %v5093 = vsel %vm89, %v5085, 0.0
  %5094 = vadd.xlane.f32.xlu0 %v5093
  %v5095 = vpop.xlane.xlu0 %5094
  %v5096 = vsel %vm89, %v5086, 0.0
  %5097 = vadd.xlane.f32.xlu0 %v5096
  %v5098 = vpop.xlane.xlu0 %5097
  %v5099 = vmul.f32 %v5089, %v455
  %v5100 = vmul.f32 %v5092, %v455
  %v5101 = vmul.f32 %v5095, %v455
  %v5102 = vmul.f32 %v5098, %v455
  %v5103 = vsub.f32 %v5083, %v5099
  %v5104 = vsub.f32 %v5084, %v5100
  %v5105 = vsub.f32 %v5085, %v5101
  %v5106 = vsub.f32 %v5086, %v5102
  %v5107 = vmul.f32 %v5103, %v5103
  %v5108 = vmul.f32 %v5104, %v5104
  %v5109 = vmul.f32 %v5105, %v5105
  %v5110 = vmul.f32 %v5106, %v5106
  %v5111 = vsel %vm89, %v5107, 0.0
  %5112 = vadd.xlane.f32.xlu0 %v5111
  %v5113 = vpop.xlane.xlu0 %5112
  %v5114 = vsel %vm89, %v5108, 0.0
  %5115 = vadd.xlane.f32.xlu0 %v5114
  %v5116 = vpop.xlane.xlu0 %5115
  %v5117 = vsel %vm89, %v5109, 0.0
  %5118 = vadd.xlane.f32.xlu0 %v5117
  %v5119 = vpop.xlane.xlu0 %5118
  %v5120 = vsel %vm89, %v5110, 0.0
  %5121 = vadd.xlane.f32.xlu0 %v5120
  %v5122 = vpop.xlane.xlu0 %5121
  %v5123 = vmul.f32 %v5113, %v480
  %v5124 = vmul.f32 %v5116, %v480
  %v5125 = vmul.f32 %v5119, %v480
  %v5126 = vmul.f32 %v5122, %v480
  %v5127 = vlaneseq
  %v5128 = vshrl.u32 %v5127, 7
  %v5129 = vsub.s32 2, %v5128
  %v5130 = vrot.slane %v3346, %v5129
  %v5131 = vmul.f32 %v5130, %v5103
  %v5132 = vmul.f32 %v5130, %v5104
  %v5133 = vmul.f32 %v5130, %v5105
  %v5134 = vmul.f32 %v5130, %v5106
  %v5135 = vrsqrt.pop %v5123
  %v5136 = vmul.f32 %v5123, %v5135
  %vm5137 = vcmp.eq.f32.partialorder %v5123, inf
  %v5138 = vsel %vm5137, %v5123, %v5136
  %vm5139 = vcmp.eq.f32.partialorder %v5123, 0.0
  %v5140 = vand.u32 %v5123, 2147483648
  %v5141 = vsel %vm5139, %v5140, %v5138
  %v5142 = vrsqrt.pop %v5124
  %v5143 = vmul.f32 %v5124, %v5142
  %vm5144 = vcmp.eq.f32.partialorder %v5124, inf
  %v5145 = vsel %vm5144, %v5124, %v5143
  %vm5146 = vcmp.eq.f32.partialorder %v5124, 0.0
  %v5147 = vand.u32 %v5124, 2147483648
  %v5148 = vsel %vm5146, %v5147, %v5145
  %v5149 = vrsqrt.pop %v5125
  %v5150 = vmul.f32 %v5125, %v5149
  %vm5151 = vcmp.eq.f32.partialorder %v5125, inf
  %v5152 = vsel %vm5151, %v5125, %v5150
  %vm5153 = vcmp.eq.f32.partialorder %v5125, 0.0
  %v5154 = vand.u32 %v5125, 2147483648
  %v5155 = vsel %vm5153, %v5154, %v5152
  %v5156 = vrsqrt.pop %v5126
  %v5157 = vmul.f32 %v5126, %v5156
  %vm5158 = vcmp.eq.f32.partialorder %v5126, inf
  %v5159 = vsel %vm5158, %v5126, %v5157
  %vm5160 = vcmp.eq.f32.partialorder %v5126, 0.0
  %v5161 = vand.u32 %v5126, 2147483648
  %v5162 = vsel %vm5160, %v5161, %v5159
  %v5163 = vadd.f32 %v5141, 1e-06
  %v5164 = vadd.f32 %v5148, 1e-06
  %v5165 = vadd.f32 %v5155, 1e-06
  %v5166 = vadd.f32 %v5162, 1e-06
  %v5167 = vrcp.pop %v5163
  %v5168 = vmul.f32 %v5131, %v5167
  %v5169 = vrcp.pop %v5164
  %v5170 = vmul.f32 %v5132, %v5169
  %v5171 = vrcp.pop %v5165
  %v5172 = vmul.f32 %v5133, %v5171
  %v5173 = vrcp.pop %v5166
  %v5174 = vmul.f32 %v5134, %v5173
  %v5175 = vlaneseq
  %v5176 = vshrl.u32 %v5175, 7
  %v5177 = vsub.s32 3, %v5176
  %v5178 = vrot.slane %v3346, %v5177
  %v5179 = vadd.f32 %v5168, %v5178
  %v5180 = vadd.f32 %v5170, %v5178
  %v5181 = vadd.f32 %v5172, %v5178
  %v5182 = vadd.f32 %v5174, %v5178
  %v5184 = vsel %vm89, %v3353, 0
  %v5187 = vsel %vm89, %v3354, 0
  %v5190 = vsel %vm89, %v3355, 0
  %v5193 = vsel %vm89, %v3356, 0
  %5195 = vmatprep.subr.mxu0 0.0
  %5196 = vmatpush1.msra.mxu0 0.0
  %5197 = vmatprep.subr.mxu0 0.0
  %5198 = vmatpush1.msra.mxu0 0.0
  %5199 = vmatprep.subr.mxu0 0.0
  %5200 = vmatpush1.msra.mxu0 0.0
  %5201 = vmatprep.subr.mxu0 0.0
  %5202 = vmatpush1.msra.mxu0 0.0
  %5203 = vmatprep.subr.mxu0 0.0
  %5204 = vmatpush1.msra.mxu0 0.0
  %5205 = vmatprep.subr.mxu0 0.0
  %5206 = vmatpush1.msra.mxu0 0.0
  %5207 = vmatprep.subr.mxu0 0.0
  %5208 = vmatpush1.msra.mxu0 0.0
  %5209 = vmatprep.subr.mxu0 0.0
  %5210 = vmatpush1.msra.mxu0 0.0
  %5211 = vmatprep.subr.mxu0 0.0
  %5212 = vmatpush1.msra.mxu0 0.0
  %5213 = vmatprep.subr.mxu0 0.0
  %5214 = vmatpush1.msra.mxu0 0.0
  %5215 = vmatprep.subr.mxu0 0.0
  %5216 = vmatpush1.msra.mxu0 0.0
  %5217 = vmatprep.subr.mxu0 0.0
  %5218 = vmatpush1.msra.mxu0 0.0
  %5219 = vmatprep.subr.mxu0 0.0
  %5220 = vmatpush1.msra.mxu0 %v5182
  %5221 = vmatprep.subr.mxu0 0.0
  %5222 = vmatpush1.msra.mxu0 %v5181
  %5223 = vmatprep.subr.mxu0 0.0
  %5224 = vmatpush1.msra.mxu0 %v5180
  %5225 = vmatprep.subr.mxu0 0.0
  %5226 = vmatpush1.msra.mxu0 %v5179
  %5227 = vmatprep.subr.mxu0 0.0
  %5228 = vmatpush2.msra.mxu0 0.0
  %5229 = vmatprep.subr.mxu0 0.0
  %5230 = vmatpush2.msra.mxu0 0.0
  %5231 = vmatprep.subr.mxu0 0.0
  %5232 = vmatpush2.msra.mxu0 0.0
  %5233 = vmatprep.subr.mxu0 0.0
  %5234 = vmatpush2.msra.mxu0 0.0
  %5235 = vmatprep.subr.mxu0 0.0
  %5236 = vmatpush2.msra.mxu0 0.0
  %5237 = vmatprep.subr.mxu0 0.0
  %5238 = vmatpush2.msra.mxu0 0.0
  %5239 = vmatprep.subr.mxu0 0.0
  %5240 = vmatpush2.msra.mxu0 0.0
  %5241 = vmatprep.subr.mxu0 0.0
  %5242 = vmatpush2.msra.mxu0 0.0
  %5243 = vmatprep.subr.mxu0 0.0
  %5244 = vmatpush2.msra.mxu0 0.0
  %5245 = vmatprep.subr.mxu0 0.0
  %5246 = vmatpush2.msra.mxu0 0.0
  %5247 = vmatprep.subr.mxu0 0.0
  %5248 = vmatpush2.msra.mxu0 0.0
  %5249 = vmatprep.subr.mxu0 0.0
  %5250 = vmatpush2.msra.mxu0 0.0
  %5251 = vmatprep.subr.mxu0 0.0
  %5252 = vmatpush2.msra.mxu0 0.0
  %5253 = vmatprep.subr.mxu0 0.0
  %5254 = vmatpush2.msra.mxu0 0.0
  %5255 = vmatprep.subr.mxu0 0.0
  %5256 = vmatpush2.msra.mxu0 0.0
  %5257 = vmatprep.subr.mxu0 0.0
  %5258 = vmatpush2.msra.mxu0 0.0
  %5259 = vmatprep.mubr.f32.mxu0 0.0
  %5260 = vmatmul.mubr.f32.gmra.mxu0 %v5184
  %v5261 = vpop.f32.mrf.mxu0
  %v5262 = vadd.f32 0.0, %v5261
  %v5263 = vpop.f32.mrf.mxu0
  %5264 = vmatprep.mubr.f32.mxu0 0.0
  %5265 = vmatmul.mubr.f32.gmra.mxu0 %v5187
  %v5266 = vpop.f32.mrf.mxu0
  %v5267 = vadd.f32 0.0, %v5266
  %v5268 = vpop.f32.mrf.mxu0
  %5269 = vmatprep.mubr.f32.mxu0 0.0
  %5270 = vmatmul.mubr.f32.gmra.mxu0 %v5190
  %v5271 = vpop.f32.mrf.mxu0
  %v5272 = vadd.f32 0.0, %v5271
  %v5273 = vpop.f32.mrf.mxu0
  %5274 = vmatprep.mubr.f32.mxu0 0.0
  %5275 = vmatmul.mubr.f32.gmra.mxu0 %v5193
  %v5276 = vpop.f32.mrf.mxu0
  %v5277 = vadd.f32 0.0, %v5276
  %v5278 = vpop.f32.mrf.mxu0
  %5279 = vdwg.mxu0
  %s5280 = scalar_lea.vmem %s14, 32
  %v5281 = vld [vmem:[%s5280] sm:$0xff]
  %v5282 = vld [vmem:[%s5280 + $0x8] sm:$0xff]
  %v5283 = vld [vmem:[%s5280 + $0x10] sm:$0xff]
  %v5284 = vld [vmem:[%s5280 + $0x18] sm:$0xff]
  %s5285 = scalar_lea.vmem %s15, 1
  %v5286 = vld [vmem:[%s5285] sm:$0x1]
  %v5288 = vlaneseq
  %v5289 = vshrl.u32 %v5288, 7
  %v5290 = vsub.s32 0, %v5289
  %v5291 = vrot.slane %v5286, %v5290
  %v5294 = vsel %vm89, %v5262, 0
  %v5297 = vsel %vm89, %v5267, 0
  %v5300 = vsel %vm89, %v5272, 0
  %v5303 = vsel %vm89, %v5277, 0
  %5305 = vmatprep.subr.mxu0 0.0
  %5306 = vmatpush1.msra.mxu0 0.0
  %5307 = vmatprep.subr.mxu0 0.0
  %5308 = vmatpush1.msra.mxu0 0.0
  %5309 = vmatprep.subr.mxu0 0.0
  %5310 = vmatpush1.msra.mxu0 0.0
  %5311 = vmatprep.subr.mxu0 0.0
  %5312 = vmatpush1.msra.mxu0 0.0
  %5313 = vmatprep.subr.mxu0 0.0
  %5314 = vmatpush1.msra.mxu0 0.0
  %5315 = vmatprep.subr.mxu0 0.0
  %5316 = vmatpush1.msra.mxu0 0.0
  %5317 = vmatprep.subr.mxu0 0.0
  %5318 = vmatpush1.msra.mxu0 0.0
  %5319 = vmatprep.subr.mxu0 0.0
  %5320 = vmatpush1.msra.mxu0 0.0
  %5321 = vmatprep.subr.mxu0 0.0
  %5322 = vmatpush1.msra.mxu0 0.0
  %5323 = vmatprep.subr.mxu0 0.0
  %5324 = vmatpush1.msra.mxu0 0.0
  %5325 = vmatprep.subr.mxu0 0.0
  %5326 = vmatpush1.msra.mxu0 0.0
  %5327 = vmatprep.subr.mxu0 0.0
  %5328 = vmatpush1.msra.mxu0 0.0
  %5329 = vmatprep.subr.mxu0 0.0
  %5330 = vmatpush1.msra.mxu0 %v5284
  %5331 = vmatprep.subr.mxu0 0.0
  %5332 = vmatpush1.msra.mxu0 %v5283
  %5333 = vmatprep.subr.mxu0 0.0
  %5334 = vmatpush1.msra.mxu0 %v5282
  %5335 = vmatprep.subr.mxu0 0.0
  %5336 = vmatpush1.msra.mxu0 %v5281
  %5337 = vmatprep.subr.mxu0 0.0
  %5338 = vmatpush2.msra.mxu0 0.0
  %5339 = vmatprep.subr.mxu0 0.0
  %5340 = vmatpush2.msra.mxu0 0.0
  %5341 = vmatprep.subr.mxu0 0.0
  %5342 = vmatpush2.msra.mxu0 0.0
  %5343 = vmatprep.subr.mxu0 0.0
  %5344 = vmatpush2.msra.mxu0 0.0
  %5345 = vmatprep.subr.mxu0 0.0
  %5346 = vmatpush2.msra.mxu0 0.0
  %5347 = vmatprep.subr.mxu0 0.0
  %5348 = vmatpush2.msra.mxu0 0.0
  %5349 = vmatprep.subr.mxu0 0.0
  %5350 = vmatpush2.msra.mxu0 0.0
  %5351 = vmatprep.subr.mxu0 0.0
  %5352 = vmatpush2.msra.mxu0 0.0
  %5353 = vmatprep.subr.mxu0 0.0
  %5354 = vmatpush2.msra.mxu0 0.0
  %5355 = vmatprep.subr.mxu0 0.0
  %5356 = vmatpush2.msra.mxu0 0.0
  %5357 = vmatprep.subr.mxu0 0.0
  %5358 = vmatpush2.msra.mxu0 0.0
  %5359 = vmatprep.subr.mxu0 0.0
  %5360 = vmatpush2.msra.mxu0 0.0
  %5361 = vmatprep.subr.mxu0 0.0
  %5362 = vmatpush2.msra.mxu0 0.0
  %5363 = vmatprep.subr.mxu0 0.0
  %5364 = vmatpush2.msra.mxu0 0.0
  %5365 = vmatprep.subr.mxu0 0.0
  %5366 = vmatpush2.msra.mxu0 0.0
  %5367 = vmatprep.subr.mxu0 0.0
  %5368 = vmatpush2.msra.mxu0 0.0
  %5369 = vmatprep.mubr.f32.mxu0 0.0
  %5370 = vmatmul.mubr.f32.gmra.mxu0 %v5294
  %v5371 = vpop.f32.mrf.mxu0
  %v5372 = vadd.f32 %v5291, %v5371
  %v5373 = vpop.f32.mrf.mxu0
  %5374 = vmatprep.mubr.f32.mxu0 0.0
  %5375 = vmatmul.mubr.f32.gmra.mxu0 %v5297
  %v5376 = vpop.f32.mrf.mxu0
  %v5377 = vadd.f32 %v5291, %v5376
  %v5378 = vpop.f32.mrf.mxu0
  %5379 = vmatprep.mubr.f32.mxu0 0.0
  %5380 = vmatmul.mubr.f32.gmra.mxu0 %v5300
  %v5381 = vpop.f32.mrf.mxu0
  %v5382 = vadd.f32 %v5291, %v5381
  %v5383 = vpop.f32.mrf.mxu0
  %5384 = vmatprep.mubr.f32.mxu0 0.0
  %5385 = vmatmul.mubr.f32.gmra.mxu0 %v5303
  %v5386 = vpop.f32.mrf.mxu0
  %v5387 = vadd.f32 %v5291, %v5386
  %v5388 = vpop.f32.mrf.mxu0
  %5389 = vdwg.mxu0
  %v5390 = vmax.f32 %v5372, 0.0
  %v5391 = vmax.f32 %v5377, 0.0
  %v5392 = vmax.f32 %v5382, 0.0
  %v5393 = vmax.f32 %v5387, 0.0
  %5394 = vmatprep.subr.mxu0 0.0
  %5395 = vmatpush1.msra.mxu0 0.0
  %5396 = vmatprep.subr.mxu0 0.0
  %5397 = vmatpush1.msra.mxu0 0.0
  %5398 = vmatprep.subr.mxu0 0.0
  %5399 = vmatpush1.msra.mxu0 0.0
  %5400 = vmatprep.subr.mxu0 0.0
  %5401 = vmatpush1.msra.mxu0 0.0
  %5402 = vmatprep.subr.mxu0 0.0
  %5403 = vmatpush1.msra.mxu0 0.0
  %5404 = vmatprep.subr.mxu0 0.0
  %5405 = vmatpush1.msra.mxu0 0.0
  %5406 = vmatprep.subr.mxu0 0.0
  %5407 = vmatpush1.msra.mxu0 0.0
  %5408 = vmatprep.subr.mxu0 0.0
  %5409 = vmatpush1.msra.mxu0 0.0
  %5410 = vmatprep.subr.mxu0 0.0
  %5411 = vmatpush1.msra.mxu0 0.0
  %5412 = vmatprep.subr.mxu0 0.0
  %5413 = vmatpush1.msra.mxu0 0.0
  %5414 = vmatprep.subr.mxu0 0.0
  %5415 = vmatpush1.msra.mxu0 0.0
  %5416 = vmatprep.subr.mxu0 0.0
  %5417 = vmatpush1.msra.mxu0 0.0
  %5418 = vmatprep.subr.mxu0 0.0
  %5419 = vmatpush1.msra.mxu0 %v5393
  %5420 = vmatprep.subr.mxu0 0.0
  %5421 = vmatpush1.msra.mxu0 %v5392
  %5422 = vmatprep.subr.mxu0 0.0
  %5423 = vmatpush1.msra.mxu0 %v5391
  %5424 = vmatprep.subr.mxu0 0.0
  %5425 = vmatpush1.msra.mxu0 %v5390
  %5426 = vmatprep.subr.mxu0 0.0
  %5427 = vmatpush2.msra.mxu0 0.0
  %5428 = vmatprep.subr.mxu0 0.0
  %5429 = vmatpush2.msra.mxu0 0.0
  %5430 = vmatprep.subr.mxu0 0.0
  %5431 = vmatpush2.msra.mxu0 0.0
  %5432 = vmatprep.subr.mxu0 0.0
  %5433 = vmatpush2.msra.mxu0 0.0
  %5434 = vmatprep.subr.mxu0 0.0
  %5435 = vmatpush2.msra.mxu0 0.0
  %5436 = vmatprep.subr.mxu0 0.0
  %5437 = vmatpush2.msra.mxu0 0.0
  %5438 = vmatprep.subr.mxu0 0.0
  %5439 = vmatpush2.msra.mxu0 0.0
  %5440 = vmatprep.subr.mxu0 0.0
  %5441 = vmatpush2.msra.mxu0 0.0
  %5442 = vmatprep.subr.mxu0 0.0
  %5443 = vmatpush2.msra.mxu0 0.0
  %5444 = vmatprep.subr.mxu0 0.0
  %5445 = vmatpush2.msra.mxu0 0.0
  %5446 = vmatprep.subr.mxu0 0.0
  %5447 = vmatpush2.msra.mxu0 0.0
  %5448 = vmatprep.subr.mxu0 0.0
  %5449 = vmatpush2.msra.mxu0 0.0
  %5450 = vmatprep.subr.mxu0 0.0
  %5451 = vmatpush2.msra.mxu0 0.0
  %5452 = vmatprep.subr.mxu0 0.0
  %5453 = vmatpush2.msra.mxu0 0.0
  %5454 = vmatprep.subr.mxu0 0.0
  %5455 = vmatpush2.msra.mxu0 0.0
  %5456 = vmatprep.subr.mxu0 0.0
  %5457 = vmatpush2.msra.mxu0 0.0
  %5458 = vmatprep.mubr.f32.mxu0 0.0
  %5459 = vmatmul.mubr.f32.gmra.mxu0 %v5184
  %v5460 = vpop.f32.mrf.mxu0
  %v5461 = vadd.f32 0.0, %v5460
  %v5462 = vpop.f32.mrf.mxu0
  %5463 = vmatprep.mubr.f32.mxu0 0.0
  %5464 = vmatmul.mubr.f32.gmra.mxu0 %v5187
  %v5465 = vpop.f32.mrf.mxu0
  %v5466 = vadd.f32 0.0, %v5465
  %v5467 = vpop.f32.mrf.mxu0
  %5468 = vmatprep.mubr.f32.mxu0 0.0
  %5469 = vmatmul.mubr.f32.gmra.mxu0 %v5190
  %v5470 = vpop.f32.mrf.mxu0
  %v5471 = vadd.f32 0.0, %v5470
  %v5472 = vpop.f32.mrf.mxu0
  %5473 = vmatprep.mubr.f32.mxu0 0.0
  %5474 = vmatmul.mubr.f32.gmra.mxu0 %v5193
  %v5475 = vpop.f32.mrf.mxu0
  %v5476 = vadd.f32 0.0, %v5475
  %v5477 = vpop.f32.mrf.mxu0
  %5478 = vdwg.mxu0
  %s5479 = scalar_lea.vmem %s16, 64
  %v5480 = vld [vmem:[%s5479] sm:$0xff]
  %v5481 = vld [vmem:[%s5479 + $0x8] sm:$0xff]
  %v5482 = vld [vmem:[%s5479 + $0x10] sm:$0xff]
  %v5483 = vld [vmem:[%s5479 + $0x18] sm:$0xff]
  %v5484 = vld [vmem:[%s5479 + $0x20] sm:$0xff]
  %v5485 = vld [vmem:[%s5479 + $0x28] sm:$0xff]
  %v5486 = vld [vmem:[%s5479 + $0x30] sm:$0xff]
  %v5487 = vld [vmem:[%s5479 + $0x38] sm:$0xff]
  %s5488 = scalar_lea.vmem %s17, 1
  %v5489 = vld [vmem:[%s5488] sm:$0x1]
  %v5491 = vlaneseq
  %v5492 = vshrl.u32 %v5491, 7
  %v5493 = vsub.s32 0, %v5492
  %v5494 = vrot.slane %v5489, %v5493
  %v5497 = vsel %vm2578, %v5461, 0
  %v5500 = vsel %vm2578, %v5466, 0
  %v5503 = vsel %vm2578, %v5471, 0
  %v5506 = vsel %vm2578, %v5476, 0
  %5508 = vmatprep.subr.mxu0 0.0
  %5509 = vmatpush1.msra.mxu0 0.0
  %5510 = vmatprep.subr.mxu0 0.0
  %5511 = vmatpush1.msra.mxu0 0.0
  %5512 = vmatprep.subr.mxu0 0.0
  %5513 = vmatpush1.msra.mxu0 0.0
  %5514 = vmatprep.subr.mxu0 0.0
  %5515 = vmatpush1.msra.mxu0 0.0
  %5516 = vmatprep.subr.mxu0 0.0
  %5517 = vmatpush1.msra.mxu0 0.0
  %5518 = vmatprep.subr.mxu0 0.0
  %5519 = vmatpush1.msra.mxu0 0.0
  %5520 = vmatprep.subr.mxu0 0.0
  %5521 = vmatpush1.msra.mxu0 0.0
  %5522 = vmatprep.subr.mxu0 0.0
  %5523 = vmatpush1.msra.mxu0 0.0
  %5524 = vmatprep.subr.mxu0 0.0
  %5525 = vmatpush1.msra.mxu0 %v5487
  %5526 = vmatprep.subr.mxu0 0.0
  %5527 = vmatpush1.msra.mxu0 %v5486
  %5528 = vmatprep.subr.mxu0 0.0
  %5529 = vmatpush1.msra.mxu0 %v5485
  %5530 = vmatprep.subr.mxu0 0.0
  %5531 = vmatpush1.msra.mxu0 %v5484
  %5532 = vmatprep.subr.mxu0 0.0
  %5533 = vmatpush1.msra.mxu0 %v5483
  %5534 = vmatprep.subr.mxu0 0.0
  %5535 = vmatpush1.msra.mxu0 %v5482
  %5536 = vmatprep.subr.mxu0 0.0
  %5537 = vmatpush1.msra.mxu0 %v5481
  %5538 = vmatprep.subr.mxu0 0.0
  %5539 = vmatpush1.msra.mxu0 %v5480
  %5540 = vmatprep.subr.mxu0 0.0
  %5541 = vmatpush2.msra.mxu0 0.0
  %5542 = vmatprep.subr.mxu0 0.0
  %5543 = vmatpush2.msra.mxu0 0.0
  %5544 = vmatprep.subr.mxu0 0.0
  %5545 = vmatpush2.msra.mxu0 0.0
  %5546 = vmatprep.subr.mxu0 0.0
  %5547 = vmatpush2.msra.mxu0 0.0
  %5548 = vmatprep.subr.mxu0 0.0
  %5549 = vmatpush2.msra.mxu0 0.0
  %5550 = vmatprep.subr.mxu0 0.0
  %5551 = vmatpush2.msra.mxu0 0.0
  %5552 = vmatprep.subr.mxu0 0.0
  %5553 = vmatpush2.msra.mxu0 0.0
  %5554 = vmatprep.subr.mxu0 0.0
  %5555 = vmatpush2.msra.mxu0 0.0
  %5556 = vmatprep.subr.mxu0 0.0
  %5557 = vmatpush2.msra.mxu0 0.0
  %5558 = vmatprep.subr.mxu0 0.0
  %5559 = vmatpush2.msra.mxu0 0.0
  %5560 = vmatprep.subr.mxu0 0.0
  %5561 = vmatpush2.msra.mxu0 0.0
  %5562 = vmatprep.subr.mxu0 0.0
  %5563 = vmatpush2.msra.mxu0 0.0
  %5564 = vmatprep.subr.mxu0 0.0
  %5565 = vmatpush2.msra.mxu0 0.0
  %5566 = vmatprep.subr.mxu0 0.0
  %5567 = vmatpush2.msra.mxu0 0.0
  %5568 = vmatprep.subr.mxu0 0.0
  %5569 = vmatpush2.msra.mxu0 0.0
  %5570 = vmatprep.subr.mxu0 0.0
  %5571 = vmatpush2.msra.mxu0 0.0
  %5572 = vmatprep.mubr.f32.mxu0 0.0
  %5573 = vmatmul.mubr.f32.gmra.mxu0 %v5497
  %v5574 = vpop.f32.mrf.mxu0
  %v5575 = vadd.f32 %v5494, %v5574
  %v5576 = vpop.f32.mrf.mxu0
  %5577 = vmatprep.mubr.f32.mxu0 0.0
  %5578 = vmatmul.mubr.f32.gmra.mxu0 %v5500
  %v5579 = vpop.f32.mrf.mxu0
  %v5580 = vadd.f32 %v5494, %v5579
  %v5581 = vpop.f32.mrf.mxu0
  %5582 = vmatprep.mubr.f32.mxu0 0.0
  %5583 = vmatmul.mubr.f32.gmra.mxu0 %v5503
  %v5584 = vpop.f32.mrf.mxu0
  %v5585 = vadd.f32 %v5494, %v5584
  %v5586 = vpop.f32.mrf.mxu0
  %5587 = vmatprep.mubr.f32.mxu0 0.0
  %5588 = vmatmul.mubr.f32.gmra.mxu0 %v5506
  %v5589 = vpop.f32.mrf.mxu0
  %v5590 = vadd.f32 %v5494, %v5589
  %v5591 = vpop.f32.mrf.mxu0
  %5592 = vdwg.mxu0
  %v5593 = vadd.f32 %v5083, %v5575
  %v5594 = vadd.f32 %v5084, %v5580
  %v5595 = vadd.f32 %v5085, %v5585
  %v5596 = vadd.f32 %v5086, %v5590
  %s5597 = scalar_lea.vmem %s18, 96
  %v5598 = vld [vmem:[%s5597] sm:$0xff]
  %v5599 = vld [vmem:[%s5597 + $0x8] sm:$0xff]
  %v5600 = vld [vmem:[%s5597 + $0x10] sm:$0xff]
  %v5601 = vld [vmem:[%s5597 + $0x18] sm:$0xff]
  %v5602 = vld [vmem:[%s5597 + $0x20] sm:$0xff]
  %v5603 = vld [vmem:[%s5597 + $0x28] sm:$0xff]
  %v5604 = vld [vmem:[%s5597 + $0x30] sm:$0xff]
  %v5605 = vld [vmem:[%s5597 + $0x38] sm:$0xff]
  %v5606 = vld [vmem:[%s5597 + $0x40] sm:$0xff]
  %v5607 = vld [vmem:[%s5597 + $0x48] sm:$0xff]
  %v5608 = vld [vmem:[%s5597 + $0x50] sm:$0xff]
  %v5609 = vld [vmem:[%s5597 + $0x58] sm:$0xff]
  %s5610 = scalar_lea.vmem %s19, 1
  %v5611 = vld [vmem:[%s5610] sm:$0x1]
  %5612 = vmatprep.subr.mxu0 0.0
  %5613 = vmatpush1.msra.mxu0 0.0
  %5614 = vmatprep.subr.mxu0 0.0
  %5615 = vmatpush1.msra.mxu0 0.0
  %5616 = vmatprep.subr.mxu0 0.0
  %5617 = vmatpush1.msra.mxu0 0.0
  %5618 = vmatprep.subr.mxu0 0.0
  %5619 = vmatpush1.msra.mxu0 0.0
  %5620 = vmatprep.subr.mxu0 0.0
  %5621 = vmatpush1.msra.mxu0 0.0
  %5622 = vmatprep.subr.mxu0 0.0
  %5623 = vmatpush1.msra.mxu0 0.0
  %5624 = vmatprep.subr.mxu0 0.0
  %5625 = vmatpush1.msra.mxu0 0.0
  %5626 = vmatprep.subr.mxu0 0.0
  %5627 = vmatpush1.msra.mxu0 0.0
  %5628 = vmatprep.subr.mxu0 0.0
  %5629 = vmatpush1.msra.mxu0 0.0
  %5630 = vmatprep.subr.mxu0 0.0
  %5631 = vmatpush1.msra.mxu0 0.0
  %5632 = vmatprep.subr.mxu0 0.0
  %5633 = vmatpush1.msra.mxu0 0.0
  %5634 = vmatprep.subr.mxu0 0.0
  %5635 = vmatpush1.msra.mxu0 0.0
  %5636 = vmatprep.subr.mxu0 0.0
  %5637 = vmatpush1.msra.mxu0 %v5596
  %5638 = vmatprep.subr.mxu0 0.0
  %5639 = vmatpush1.msra.mxu0 %v5595
  %5640 = vmatprep.subr.mxu0 0.0
  %5641 = vmatpush1.msra.mxu0 %v5594
  %5642 = vmatprep.subr.mxu0 0.0
  %5643 = vmatpush1.msra.mxu0 %v5593
  %5644 = vmatprep.subr.mxu0 0.0
  %5645 = vmatpush2.msra.mxu0 0.0
  %5646 = vmatprep.subr.mxu0 0.0
  %5647 = vmatpush2.msra.mxu0 0.0
  %5648 = vmatprep.subr.mxu0 0.0
  %5649 = vmatpush2.msra.mxu0 0.0
  %5650 = vmatprep.subr.mxu0 0.0
  %5651 = vmatpush2.msra.mxu0 0.0
  %5652 = vmatprep.subr.mxu0 0.0
  %5653 = vmatpush2.msra.mxu0 0.0
  %5654 = vmatprep.subr.mxu0 0.0
  %5655 = vmatpush2.msra.mxu0 0.0
  %5656 = vmatprep.subr.mxu0 0.0
  %5657 = vmatpush2.msra.mxu0 0.0
  %5658 = vmatprep.subr.mxu0 0.0
  %5659 = vmatpush2.msra.mxu0 0.0
  %5660 = vmatprep.subr.mxu0 0.0
  %5661 = vmatpush2.msra.mxu0 0.0
  %5662 = vmatprep.subr.mxu0 0.0
  %5663 = vmatpush2.msra.mxu0 0.0
  %5664 = vmatprep.subr.mxu0 0.0
  %5665 = vmatpush2.msra.mxu0 0.0
  %5666 = vmatprep.subr.mxu0 0.0
  %5667 = vmatpush2.msra.mxu0 0.0
  %5668 = vmatprep.subr.mxu0 0.0
  %5669 = vmatpush2.msra.mxu0 0.0
  %5670 = vmatprep.subr.mxu0 0.0
  %5671 = vmatpush2.msra.mxu0 0.0
  %5672 = vmatprep.subr.mxu0 0.0
  %5673 = vmatpush2.msra.mxu0 0.0
  %5674 = vmatprep.subr.mxu0 0.0
  %5675 = vmatpush2.msra.mxu0 0.0
  %5676 = vmatprep.mubr.f32.mxu0 0.0
  %5677 = vmatmul.mubr.f32.gmra.mxu0 %v91
  %v5678 = vpop.f32.mrf.mxu0
  %v5679 = vadd.f32 0.0, %v5678
  %v5680 = vpop.f32.mrf.mxu0
  %5681 = vmatprep.mubr.f32.mxu0 0.0
  %5682 = vmatmul.mubr.f32.gmra.mxu0 %v94
  %v5683 = vpop.f32.mrf.mxu0
  %v5684 = vadd.f32 0.0, %v5683
  %v5685 = vpop.f32.mrf.mxu0
  %5686 = vmatprep.mubr.f32.mxu0 0.0
  %5687 = vmatmul.mubr.f32.gmra.mxu0 %v97
  %v5688 = vpop.f32.mrf.mxu0
  %v5689 = vadd.f32 0.0, %v5688
  %v5690 = vpop.f32.mrf.mxu0
  %5691 = vmatprep.mubr.f32.mxu0 0.0
  %5692 = vmatmul.mubr.f32.gmra.mxu0 %v100
  %v5693 = vpop.f32.mrf.mxu0
  %v5694 = vadd.f32 0.0, %v5693
  %v5695 = vpop.f32.mrf.mxu0
  %5696 = vdwg.mxu0
  %5697 = vmatprep.subr.mxu0 0.0
  %5698 = vmatpush1.msra.mxu0 0.0
  %5699 = vmatprep.subr.mxu0 0.0
  %5700 = vmatpush1.msra.mxu0 0.0
  %5701 = vmatprep.subr.mxu0 0.0
  %5702 = vmatpush1.msra.mxu0 0.0
  %5703 = vmatprep.subr.mxu0 0.0
  %5704 = vmatpush1.msra.mxu0 0.0
  %5705 = vmatprep.subr.mxu0 0.0
  %5706 = vmatpush1.msra.mxu0 0.0
  %5707 = vmatprep.subr.mxu0 0.0
  %5708 = vmatpush1.msra.mxu0 0.0
  %5709 = vmatprep.subr.mxu0 0.0
  %5710 = vmatpush1.msra.mxu0 0.0
  %5711 = vmatprep.subr.mxu0 0.0
  %5712 = vmatpush1.msra.mxu0 0.0
  %5713 = vmatprep.subr.mxu0 0.0
  %5714 = vmatpush1.msra.mxu0 0.0
  %5715 = vmatprep.subr.mxu0 0.0
  %5716 = vmatpush1.msra.mxu0 0.0
  %5717 = vmatprep.subr.mxu0 0.0
  %5718 = vmatpush1.msra.mxu0 0.0
  %5719 = vmatprep.subr.mxu0 0.0
  %5720 = vmatpush1.msra.mxu0 0.0
  %5721 = vmatprep.subr.mxu0 0.0
  %5722 = vmatpush1.msra.mxu0 %v5596
  %5723 = vmatprep.subr.mxu0 0.0
  %5724 = vmatpush1.msra.mxu0 %v5595
  %5725 = vmatprep.subr.mxu0 0.0
  %5726 = vmatpush1.msra.mxu0 %v5594
  %5727 = vmatprep.subr.mxu0 0.0
  %5728 = vmatpush1.msra.mxu0 %v5593
  %5729 = vmatprep.subr.mxu0 0.0
  %5730 = vmatpush2.msra.mxu0 0.0
  %5731 = vmatprep.subr.mxu0 0.0
  %5732 = vmatpush2.msra.mxu0 0.0
  %5733 = vmatprep.subr.mxu0 0.0
  %5734 = vmatpush2.msra.mxu0 0.0
  %5735 = vmatprep.subr.mxu0 0.0
  %5736 = vmatpush2.msra.mxu0 0.0
  %5737 = vmatprep.subr.mxu0 0.0
  %5738 = vmatpush2.msra.mxu0 0.0
  %5739 = vmatprep.subr.mxu0 0.0
  %5740 = vmatpush2.msra.mxu0 0.0
  %5741 = vmatprep.subr.mxu0 0.0
  %5742 = vmatpush2.msra.mxu0 0.0
  %5743 = vmatprep.subr.mxu0 0.0
  %5744 = vmatpush2.msra.mxu0 0.0
  %5745 = vmatprep.subr.mxu0 0.0
  %5746 = vmatpush2.msra.mxu0 0.0
  %5747 = vmatprep.subr.mxu0 0.0
  %5748 = vmatpush2.msra.mxu0 0.0
  %5749 = vmatprep.subr.mxu0 0.0
  %5750 = vmatpush2.msra.mxu0 0.0
  %5751 = vmatprep.subr.mxu0 0.0
  %5752 = vmatpush2.msra.mxu0 0.0
  %5753 = vmatprep.subr.mxu0 0.0
  %5754 = vmatpush2.msra.mxu0 0.0
  %5755 = vmatprep.subr.mxu0 0.0
  %5756 = vmatpush2.msra.mxu0 0.0
  %5757 = vmatprep.subr.mxu0 0.0
  %5758 = vmatpush2.msra.mxu0 0.0
  %5759 = vmatprep.subr.mxu0 0.0
  %5760 = vmatpush2.msra.mxu0 0.0
  %5761 = vmatprep.mubr.f32.mxu0 0.0
  %5762 = vmatmul.mubr.f32.gmra.mxu0 %v188
  %v5763 = vpop.f32.mrf.mxu0
  %v5764 = vadd.f32 0.0, %v5763
  %v5765 = vpop.f32.mrf.mxu0
  %5766 = vmatprep.mubr.f32.mxu0 0.0
  %5767 = vmatmul.mubr.f32.gmra.mxu0 %v191
  %v5768 = vpop.f32.mrf.mxu0
  %v5769 = vadd.f32 0.0, %v5768
  %v5770 = vpop.f32.mrf.mxu0
  %5771 = vmatprep.mubr.f32.mxu0 0.0
  %5772 = vmatmul.mubr.f32.gmra.mxu0 %v194
  %v5773 = vpop.f32.mrf.mxu0
  %v5774 = vadd.f32 0.0, %v5773
  %v5775 = vpop.f32.mrf.mxu0
  %5776 = vmatprep.mubr.f32.mxu0 0.0
  %5777 = vmatmul.mubr.f32.gmra.mxu0 %v197
  %v5778 = vpop.f32.mrf.mxu0
  %v5779 = vadd.f32 0.0, %v5778
  %v5780 = vpop.f32.mrf.mxu0
  %5781 = vdwg.mxu0
  %5786 = vrot.lane.b32.xlu0 %v5679, 32
  %v5787 = vpop.permute.xlu0 %5786
  %5788 = vrot.lane.b32.xlu0 %v5684, 32
  %v5789 = vpop.permute.xlu0 %5788
  %5790 = vrot.lane.b32.xlu0 %v5689, 32
  %v5791 = vpop.permute.xlu0 %5790
  %5792 = vrot.lane.b32.xlu0 %v5694, 32
  %v5793 = vpop.permute.xlu0 %5792
  %5802 = vrot.lane.b32.xlu0 %v5764, 64
  %v5803 = vpop.permute.xlu0 %5802
  %5804 = vrot.lane.b32.xlu0 %v5769, 64
  %v5805 = vpop.permute.xlu0 %5804
  %5806 = vrot.lane.b32.xlu0 %v5774, 64
  %v5807 = vpop.permute.xlu0 %5806
  %5808 = vrot.lane.b32.xlu0 %v5779, 64
  %v5809 = vpop.permute.xlu0 %5808
  %v5814 = vsel %vm89, %v5593, %v5787
  %v5815 = vsel %vm89, %v5594, %v5789
  %v5816 = vsel %vm89, %v5595, %v5791
  %v5817 = vsel %vm89, %v5596, %v5793
  %v5818 = vsel %vm2578, %v5814, %v5803
  %v5819 = vsel %vm2578, %v5815, %v5805
  %v5820 = vsel %vm2578, %v5816, %v5807
  %v5821 = vsel %vm2578, %v5817, %v5809
  %v5823 = vlaneseq
  %v5824 = vshrl.u32 %v5823, 7
  %v5825 = vsub.s32 0, %v5824
  %v5826 = vrot.slane %v5611, %v5825
  %v5829 = vsel %vm2909, %v5818, 0
  %v5832 = vsel %vm2909, %v5819, 0
  %v5835 = vsel %vm2909, %v5820, 0
  %v5838 = vsel %vm2909, %v5821, 0
  %5840 = vmatprep.subr.mxu0 0.0
  %5841 = vmatpush1.msra.mxu0 0.0
  %5842 = vmatprep.subr.mxu0 0.0
  %5843 = vmatpush1.msra.mxu0 0.0
  %5844 = vmatprep.subr.mxu0 0.0
  %5845 = vmatpush1.msra.mxu0 0.0
  %5846 = vmatprep.subr.mxu0 0.0
  %5847 = vmatpush1.msra.mxu0 0.0
  %5848 = vmatprep.subr.mxu0 0.0
  %5849 = vmatpush1.msra.mxu0 %v5609
  %5850 = vmatprep.subr.mxu0 0.0
  %5851 = vmatpush1.msra.mxu0 %v5608
  %5852 = vmatprep.subr.mxu0 0.0
  %5853 = vmatpush1.msra.mxu0 %v5607
  %5854 = vmatprep.subr.mxu0 0.0
  %5855 = vmatpush1.msra.mxu0 %v5606
  %5856 = vmatprep.subr.mxu0 0.0
  %5857 = vmatpush1.msra.mxu0 %v5605
  %5858 = vmatprep.subr.mxu0 0.0
  %5859 = vmatpush1.msra.mxu0 %v5604
  %5860 = vmatprep.subr.mxu0 0.0
  %5861 = vmatpush1.msra.mxu0 %v5603
  %5862 = vmatprep.subr.mxu0 0.0
  %5863 = vmatpush1.msra.mxu0 %v5602
  %5864 = vmatprep.subr.mxu0 0.0
  %5865 = vmatpush1.msra.mxu0 %v5601
  %5866 = vmatprep.subr.mxu0 0.0
  %5867 = vmatpush1.msra.mxu0 %v5600
  %5868 = vmatprep.subr.mxu0 0.0
  %5869 = vmatpush1.msra.mxu0 %v5599
  %5870 = vmatprep.subr.mxu0 0.0
  %5871 = vmatpush1.msra.mxu0 %v5598
  %5872 = vmatprep.subr.mxu0 0.0
  %5873 = vmatpush2.msra.mxu0 0.0
  %5874 = vmatprep.subr.mxu0 0.0
  %5875 = vmatpush2.msra.mxu0 0.0
  %5876 = vmatprep.subr.mxu0 0.0
  %5877 = vmatpush2.msra.mxu0 0.0
  %5878 = vmatprep.subr.mxu0 0.0
  %5879 = vmatpush2.msra.mxu0 0.0
  %5880 = vmatprep.subr.mxu0 0.0
  %5881 = vmatpush2.msra.mxu0 0.0
  %5882 = vmatprep.subr.mxu0 0.0
  %5883 = vmatpush2.msra.mxu0 0.0
  %5884 = vmatprep.subr.mxu0 0.0
  %5885 = vmatpush2.msra.mxu0 0.0
  %5886 = vmatprep.subr.mxu0 0.0
  %5887 = vmatpush2.msra.mxu0 0.0
  %5888 = vmatprep.subr.mxu0 0.0
  %5889 = vmatpush2.msra.mxu0 0.0
  %5890 = vmatprep.subr.mxu0 0.0
  %5891 = vmatpush2.msra.mxu0 0.0
  %5892 = vmatprep.subr.mxu0 0.0
  %5893 = vmatpush2.msra.mxu0 0.0
  %5894 = vmatprep.subr.mxu0 0.0
  %5895 = vmatpush2.msra.mxu0 0.0
  %5896 = vmatprep.subr.mxu0 0.0
  %5897 = vmatpush2.msra.mxu0 0.0
  %5898 = vmatprep.subr.mxu0 0.0
  %5899 = vmatpush2.msra.mxu0 0.0
  %5900 = vmatprep.subr.mxu0 0.0
  %5901 = vmatpush2.msra.mxu0 0.0
  %5902 = vmatprep.subr.mxu0 0.0
  %5903 = vmatpush2.msra.mxu0 0.0
  %5904 = vmatprep.mubr.f32.mxu0 0.0
  %5905 = vmatmul.mubr.f32.gmra.mxu0 %v5829
  %v5906 = vpop.f32.mrf.mxu0
  %v5907 = vadd.f32 %v5826, %v5906
  %v5908 = vpop.f32.mrf.mxu0
  %5909 = vmatprep.mubr.f32.mxu0 0.0
  %5910 = vmatmul.mubr.f32.gmra.mxu0 %v5832
  %v5911 = vpop.f32.mrf.mxu0
  %v5912 = vadd.f32 %v5826, %v5911
  %v5913 = vpop.f32.mrf.mxu0
  %5914 = vmatprep.mubr.f32.mxu0 0.0
  %5915 = vmatmul.mubr.f32.gmra.mxu0 %v5835
  %v5916 = vpop.f32.mrf.mxu0
  %v5917 = vadd.f32 %v5826, %v5916
  %v5918 = vpop.f32.mrf.mxu0
  %5919 = vmatprep.mubr.f32.mxu0 0.0
  %5920 = vmatmul.mubr.f32.gmra.mxu0 %v5838
  %v5921 = vpop.f32.mrf.mxu0
  %v5922 = vadd.f32 %v5826, %v5921
  %v5923 = vpop.f32.mrf.mxu0
  %5924 = vdwg.mxu0
  %v5925 = vmax.f32 %v5907, 0.0
  %v5926 = vmax.f32 %v5912, 0.0
  %v5927 = vmax.f32 %v5917, 0.0
  %v5928 = vmax.f32 %v5922, 0.0
  %s5929 = scalar_lea.vmem %s20, 96
  %v5930 = vld [vmem:[%s5929] sm:$0xff]
  %v5931 = vld [vmem:[%s5929 + $0x8] sm:$0xff]
  %v5932 = vld [vmem:[%s5929 + $0x10] sm:$0xff]
  %v5933 = vld [vmem:[%s5929 + $0x18] sm:$0xff]
  %v5934 = vld [vmem:[%s5929 + $0x20] sm:$0xff]
  %v5935 = vld [vmem:[%s5929 + $0x28] sm:$0xff]
  %v5936 = vld [vmem:[%s5929 + $0x30] sm:$0xff]
  %v5937 = vld [vmem:[%s5929 + $0x38] sm:$0xff]
  %v5938 = vld [vmem:[%s5929 + $0x40] sm:$0xff]
  %v5939 = vld [vmem:[%s5929 + $0x48] sm:$0xff]
  %v5940 = vld [vmem:[%s5929 + $0x50] sm:$0xff]
  %v5941 = vld [vmem:[%s5929 + $0x58] sm:$0xff]
  %s5942 = scalar_lea.vmem %s21, 1
  %v5943 = vld [vmem:[%s5942] sm:$0x1]
  %5944 = vmatprep.subr.mxu0 0.0
  %5945 = vmatpush1.msra.mxu0 0.0
  %5946 = vmatprep.subr.mxu0 0.0
  %5947 = vmatpush1.msra.mxu0 0.0
  %5948 = vmatprep.subr.mxu0 0.0
  %5949 = vmatpush1.msra.mxu0 0.0
  %5950 = vmatprep.subr.mxu0 0.0
  %5951 = vmatpush1.msra.mxu0 0.0
  %5952 = vmatprep.subr.mxu0 0.0
  %5953 = vmatpush1.msra.mxu0 0.0
  %5954 = vmatprep.subr.mxu0 0.0
  %5955 = vmatpush1.msra.mxu0 0.0
  %5956 = vmatprep.subr.mxu0 0.0
  %5957 = vmatpush1.msra.mxu0 0.0
  %5958 = vmatprep.subr.mxu0 0.0
  %5959 = vmatpush1.msra.mxu0 0.0
  %5960 = vmatprep.subr.mxu0 0.0
  %5961 = vmatpush1.msra.mxu0 0.0
  %5962 = vmatprep.subr.mxu0 0.0
  %5963 = vmatpush1.msra.mxu0 0.0
  %5964 = vmatprep.subr.mxu0 0.0
  %5965 = vmatpush1.msra.mxu0 0.0
  %5966 = vmatprep.subr.mxu0 0.0
  %5967 = vmatpush1.msra.mxu0 0.0
  %5968 = vmatprep.subr.mxu0 0.0
  %5969 = vmatpush1.msra.mxu0 %v5928
  %5970 = vmatprep.subr.mxu0 0.0
  %5971 = vmatpush1.msra.mxu0 %v5927
  %5972 = vmatprep.subr.mxu0 0.0
  %5973 = vmatpush1.msra.mxu0 %v5926
  %5974 = vmatprep.subr.mxu0 0.0
  %5975 = vmatpush1.msra.mxu0 %v5925
  %5976 = vmatprep.subr.mxu0 0.0
  %5977 = vmatpush2.msra.mxu0 0.0
  %5978 = vmatprep.subr.mxu0 0.0
  %5979 = vmatpush2.msra.mxu0 0.0
  %5980 = vmatprep.subr.mxu0 0.0
  %5981 = vmatpush2.msra.mxu0 0.0
  %5982 = vmatprep.subr.mxu0 0.0
  %5983 = vmatpush2.msra.mxu0 0.0
  %5984 = vmatprep.subr.mxu0 0.0
  %5985 = vmatpush2.msra.mxu0 0.0
  %5986 = vmatprep.subr.mxu0 0.0
  %5987 = vmatpush2.msra.mxu0 0.0
  %5988 = vmatprep.subr.mxu0 0.0
  %5989 = vmatpush2.msra.mxu0 0.0
  %5990 = vmatprep.subr.mxu0 0.0
  %5991 = vmatpush2.msra.mxu0 0.0
  %5992 = vmatprep.subr.mxu0 0.0
  %5993 = vmatpush2.msra.mxu0 0.0
  %5994 = vmatprep.subr.mxu0 0.0
  %5995 = vmatpush2.msra.mxu0 0.0
  %5996 = vmatprep.subr.mxu0 0.0
  %5997 = vmatpush2.msra.mxu0 0.0
  %5998 = vmatprep.subr.mxu0 0.0
  %5999 = vmatpush2.msra.mxu0 0.0
  %6000 = vmatprep.subr.mxu0 0.0
  %6001 = vmatpush2.msra.mxu0 0.0
  %6002 = vmatprep.subr.mxu0 0.0
  %6003 = vmatpush2.msra.mxu0 0.0
  %6004 = vmatprep.subr.mxu0 0.0
  %6005 = vmatpush2.msra.mxu0 0.0
  %6006 = vmatprep.subr.mxu0 0.0
  %6007 = vmatpush2.msra.mxu0 0.0
  %6008 = vmatprep.mubr.f32.mxu0 0.0
  %6009 = vmatmul.mubr.f32.gmra.mxu0 %v91
  %v6010 = vpop.f32.mrf.mxu0
  %v6011 = vadd.f32 0.0, %v6010
  %v6012 = vpop.f32.mrf.mxu0
  %6013 = vmatprep.mubr.f32.mxu0 0.0
  %6014 = vmatmul.mubr.f32.gmra.mxu0 %v94
  %v6015 = vpop.f32.mrf.mxu0
  %v6016 = vadd.f32 0.0, %v6015
  %v6017 = vpop.f32.mrf.mxu0
  %6018 = vmatprep.mubr.f32.mxu0 0.0
  %6019 = vmatmul.mubr.f32.gmra.mxu0 %v97
  %v6020 = vpop.f32.mrf.mxu0
  %v6021 = vadd.f32 0.0, %v6020
  %v6022 = vpop.f32.mrf.mxu0
  %6023 = vmatprep.mubr.f32.mxu0 0.0
  %6024 = vmatmul.mubr.f32.gmra.mxu0 %v100
  %v6025 = vpop.f32.mrf.mxu0
  %v6026 = vadd.f32 0.0, %v6025
  %v6027 = vpop.f32.mrf.mxu0
  %6028 = vdwg.mxu0
  %6029 = vmatprep.subr.mxu0 0.0
  %6030 = vmatpush1.msra.mxu0 0.0
  %6031 = vmatprep.subr.mxu0 0.0
  %6032 = vmatpush1.msra.mxu0 0.0
  %6033 = vmatprep.subr.mxu0 0.0
  %6034 = vmatpush1.msra.mxu0 0.0
  %6035 = vmatprep.subr.mxu0 0.0
  %6036 = vmatpush1.msra.mxu0 0.0
  %6037 = vmatprep.subr.mxu0 0.0
  %6038 = vmatpush1.msra.mxu0 0.0
  %6039 = vmatprep.subr.mxu0 0.0
  %6040 = vmatpush1.msra.mxu0 0.0
  %6041 = vmatprep.subr.mxu0 0.0
  %6042 = vmatpush1.msra.mxu0 0.0
  %6043 = vmatprep.subr.mxu0 0.0
  %6044 = vmatpush1.msra.mxu0 0.0
  %6045 = vmatprep.subr.mxu0 0.0
  %6046 = vmatpush1.msra.mxu0 0.0
  %6047 = vmatprep.subr.mxu0 0.0
  %6048 = vmatpush1.msra.mxu0 0.0
  %6049 = vmatprep.subr.mxu0 0.0
  %6050 = vmatpush1.msra.mxu0 0.0
  %6051 = vmatprep.subr.mxu0 0.0
  %6052 = vmatpush1.msra.mxu0 0.0
  %6053 = vmatprep.subr.mxu0 0.0
  %6054 = vmatpush1.msra.mxu0 %v5928
  %6055 = vmatprep.subr.mxu0 0.0
  %6056 = vmatpush1.msra.mxu0 %v5927
  %6057 = vmatprep.subr.mxu0 0.0
  %6058 = vmatpush1.msra.mxu0 %v5926
  %6059 = vmatprep.subr.mxu0 0.0
  %6060 = vmatpush1.msra.mxu0 %v5925
  %6061 = vmatprep.subr.mxu0 0.0
  %6062 = vmatpush2.msra.mxu0 0.0
  %6063 = vmatprep.subr.mxu0 0.0
  %6064 = vmatpush2.msra.mxu0 0.0
  %6065 = vmatprep.subr.mxu0 0.0
  %6066 = vmatpush2.msra.mxu0 0.0
  %6067 = vmatprep.subr.mxu0 0.0
  %6068 = vmatpush2.msra.mxu0 0.0
  %6069 = vmatprep.subr.mxu0 0.0
  %6070 = vmatpush2.msra.mxu0 0.0
  %6071 = vmatprep.subr.mxu0 0.0
  %6072 = vmatpush2.msra.mxu0 0.0
  %6073 = vmatprep.subr.mxu0 0.0
  %6074 = vmatpush2.msra.mxu0 0.0
  %6075 = vmatprep.subr.mxu0 0.0
  %6076 = vmatpush2.msra.mxu0 0.0
  %6077 = vmatprep.subr.mxu0 0.0
  %6078 = vmatpush2.msra.mxu0 0.0
  %6079 = vmatprep.subr.mxu0 0.0
  %6080 = vmatpush2.msra.mxu0 0.0
  %6081 = vmatprep.subr.mxu0 0.0
  %6082 = vmatpush2.msra.mxu0 0.0
  %6083 = vmatprep.subr.mxu0 0.0
  %6084 = vmatpush2.msra.mxu0 0.0
  %6085 = vmatprep.subr.mxu0 0.0
  %6086 = vmatpush2.msra.mxu0 0.0
  %6087 = vmatprep.subr.mxu0 0.0
  %6088 = vmatpush2.msra.mxu0 0.0
  %6089 = vmatprep.subr.mxu0 0.0
  %6090 = vmatpush2.msra.mxu0 0.0
  %6091 = vmatprep.subr.mxu0 0.0
  %6092 = vmatpush2.msra.mxu0 0.0
  %6093 = vmatprep.mubr.f32.mxu0 0.0
  %6094 = vmatmul.mubr.f32.gmra.mxu0 %v188
  %v6095 = vpop.f32.mrf.mxu0
  %v6096 = vadd.f32 0.0, %v6095
  %v6097 = vpop.f32.mrf.mxu0
  %6098 = vmatprep.mubr.f32.mxu0 0.0
  %6099 = vmatmul.mubr.f32.gmra.mxu0 %v191
  %v6100 = vpop.f32.mrf.mxu0
  %v6101 = vadd.f32 0.0, %v6100
  %v6102 = vpop.f32.mrf.mxu0
  %6103 = vmatprep.mubr.f32.mxu0 0.0
  %6104 = vmatmul.mubr.f32.gmra.mxu0 %v194
  %v6105 = vpop.f32.mrf.mxu0
  %v6106 = vadd.f32 0.0, %v6105
  %v6107 = vpop.f32.mrf.mxu0
  %6108 = vmatprep.mubr.f32.mxu0 0.0
  %6109 = vmatmul.mubr.f32.gmra.mxu0 %v197
  %v6110 = vpop.f32.mrf.mxu0
  %v6111 = vadd.f32 0.0, %v6110
  %v6112 = vpop.f32.mrf.mxu0
  %6113 = vdwg.mxu0
  %6118 = vrot.lane.b32.xlu0 %v6011, 32
  %v6119 = vpop.permute.xlu0 %6118
  %6120 = vrot.lane.b32.xlu0 %v6016, 32
  %v6121 = vpop.permute.xlu0 %6120
  %6122 = vrot.lane.b32.xlu0 %v6021, 32
  %v6123 = vpop.permute.xlu0 %6122
  %6124 = vrot.lane.b32.xlu0 %v6026, 32
  %v6125 = vpop.permute.xlu0 %6124
  %6134 = vrot.lane.b32.xlu0 %v6096, 64
  %v6135 = vpop.permute.xlu0 %6134
  %6136 = vrot.lane.b32.xlu0 %v6101, 64
  %v6137 = vpop.permute.xlu0 %6136
  %6138 = vrot.lane.b32.xlu0 %v6106, 64
  %v6139 = vpop.permute.xlu0 %6138
  %6140 = vrot.lane.b32.xlu0 %v6111, 64
  %v6141 = vpop.permute.xlu0 %6140
  %v6146 = vsel %vm89, %v5925, %v6119
  %v6147 = vsel %vm89, %v5926, %v6121
  %v6148 = vsel %vm89, %v5927, %v6123
  %v6149 = vsel %vm89, %v5928, %v6125
  %v6150 = vsel %vm2578, %v6146, %v6135
  %v6151 = vsel %vm2578, %v6147, %v6137
  %v6152 = vsel %vm2578, %v6148, %v6139
  %v6153 = vsel %vm2578, %v6149, %v6141
  %v6155 = vlaneseq
  %v6156 = vshrl.u32 %v6155, 7
  %v6157 = vsub.s32 0, %v6156
  %v6158 = vrot.slane %v5943, %v6157
  %v6161 = vsel %vm2909, %v6150, 0
  %v6164 = vsel %vm2909, %v6151, 0
  %v6167 = vsel %vm2909, %v6152, 0
  %v6170 = vsel %vm2909, %v6153, 0
  %6172 = vmatprep.subr.mxu0 0.0
  %6173 = vmatpush1.msra.mxu0 0.0
  %6174 = vmatprep.subr.mxu0 0.0
  %6175 = vmatpush1.msra.mxu0 0.0
  %6176 = vmatprep.subr.mxu0 0.0
  %6177 = vmatpush1.msra.mxu0 0.0
  %6178 = vmatprep.subr.mxu0 0.0
  %6179 = vmatpush1.msra.mxu0 0.0
  %6180 = vmatprep.subr.mxu0 0.0
  %6181 = vmatpush1.msra.mxu0 %v5941
  %6182 = vmatprep.subr.mxu0 0.0
  %6183 = vmatpush1.msra.mxu0 %v5940
  %6184 = vmatprep.subr.mxu0 0.0
  %6185 = vmatpush1.msra.mxu0 %v5939
  %6186 = vmatprep.subr.mxu0 0.0
  %6187 = vmatpush1.msra.mxu0 %v5938
  %6188 = vmatprep.subr.mxu0 0.0
  %6189 = vmatpush1.msra.mxu0 %v5937
  %6190 = vmatprep.subr.mxu0 0.0
  %6191 = vmatpush1.msra.mxu0 %v5936
  %6192 = vmatprep.subr.mxu0 0.0
  %6193 = vmatpush1.msra.mxu0 %v5935
  %6194 = vmatprep.subr.mxu0 0.0
  %6195 = vmatpush1.msra.mxu0 %v5934
  %6196 = vmatprep.subr.mxu0 0.0
  %6197 = vmatpush1.msra.mxu0 %v5933
  %6198 = vmatprep.subr.mxu0 0.0
  %6199 = vmatpush1.msra.mxu0 %v5932
  %6200 = vmatprep.subr.mxu0 0.0
  %6201 = vmatpush1.msra.mxu0 %v5931
  %6202 = vmatprep.subr.mxu0 0.0
  %6203 = vmatpush1.msra.mxu0 %v5930
  %6204 = vmatprep.subr.mxu0 0.0
  %6205 = vmatpush2.msra.mxu0 0.0
  %6206 = vmatprep.subr.mxu0 0.0
  %6207 = vmatpush2.msra.mxu0 0.0
  %6208 = vmatprep.subr.mxu0 0.0
  %6209 = vmatpush2.msra.mxu0 0.0
  %6210 = vmatprep.subr.mxu0 0.0
  %6211 = vmatpush2.msra.mxu0 0.0
  %6212 = vmatprep.subr.mxu0 0.0
  %6213 = vmatpush2.msra.mxu0 0.0
  %6214 = vmatprep.subr.mxu0 0.0
  %6215 = vmatpush2.msra.mxu0 0.0
  %6216 = vmatprep.subr.mxu0 0.0
  %6217 = vmatpush2.msra.mxu0 0.0
  %6218 = vmatprep.subr.mxu0 0.0
  %6219 = vmatpush2.msra.mxu0 0.0
  %6220 = vmatprep.subr.mxu0 0.0
  %6221 = vmatpush2.msra.mxu0 0.0
  %6222 = vmatprep.subr.mxu0 0.0
  %6223 = vmatpush2.msra.mxu0 0.0
  %6224 = vmatprep.subr.mxu0 0.0
  %6225 = vmatpush2.msra.mxu0 0.0
  %6226 = vmatprep.subr.mxu0 0.0
  %6227 = vmatpush2.msra.mxu0 0.0
  %6228 = vmatprep.subr.mxu0 0.0
  %6229 = vmatpush2.msra.mxu0 0.0
  %6230 = vmatprep.subr.mxu0 0.0
  %6231 = vmatpush2.msra.mxu0 0.0
  %6232 = vmatprep.subr.mxu0 0.0
  %6233 = vmatpush2.msra.mxu0 0.0
  %6234 = vmatprep.subr.mxu0 0.0
  %6235 = vmatpush2.msra.mxu0 0.0
  %6236 = vmatprep.mubr.f32.mxu0 0.0
  %6237 = vmatmul.mubr.f32.gmra.mxu0 %v6161
  %v6238 = vpop.f32.mrf.mxu0
  %v6239 = vadd.f32 %v6158, %v6238
  %v6240 = vpop.f32.mrf.mxu0
  %6241 = vmatprep.mubr.f32.mxu0 0.0
  %6242 = vmatmul.mubr.f32.gmra.mxu0 %v6164
  %v6243 = vpop.f32.mrf.mxu0
  %v6244 = vadd.f32 %v6158, %v6243
  %v6245 = vpop.f32.mrf.mxu0
  %6246 = vmatprep.mubr.f32.mxu0 0.0
  %6247 = vmatmul.mubr.f32.gmra.mxu0 %v6167
  %v6248 = vpop.f32.mrf.mxu0
  %v6249 = vadd.f32 %v6158, %v6248
  %v6250 = vpop.f32.mrf.mxu0
  %6251 = vmatprep.mubr.f32.mxu0 0.0
  %6252 = vmatmul.mubr.f32.gmra.mxu0 %v6170
  %v6253 = vpop.f32.mrf.mxu0
  %v6254 = vadd.f32 %v6158, %v6253
  %v6255 = vpop.f32.mrf.mxu0
  %6256 = vdwg.mxu0
  %v6257 = vmax.f32 %v6239, 0.0
  %v6258 = vmax.f32 %v6244, 0.0
  %v6259 = vmax.f32 %v6249, 0.0
  %v6260 = vmax.f32 %v6254, 0.0
  %v6261 = vadd.f32 %v5593, %v6257
  %v6262 = vadd.f32 %v5594, %v6258
  %v6263 = vadd.f32 %v5595, %v6259
  %v6264 = vadd.f32 %v5596, %v6260
  %v6265 = vld [vmem:[%s7] sm:$0xff]
  %v6266 = vld [vmem:[%s7 + $0x8] sm:$0xff]
  %v6267 = vld [vmem:[%s7 + $0x10] sm:$0xff]
  %v6268 = vld [vmem:[%s7 + $0x18] sm:$0xff]
  %v6269 = vld [vmem:[%s7 + $0x20] sm:$0xff]
  %v6270 = vld [vmem:[%s7 + $0x28] sm:$0xff]
  %v6271 = vld [vmem:[%s7 + $0x30] sm:$0xff]
  %v6272 = vld [vmem:[%s7 + $0x38] sm:$0xff]
  %v6273 = vld [vmem:[%s7 + $0x40] sm:$0xff]
  %v6274 = vld [vmem:[%s7 + $0x48] sm:$0xff]
  %v6275 = vld [vmem:[%s7 + $0x50] sm:$0xff]
  %v6276 = vld [vmem:[%s7 + $0x58] sm:$0xff]
  %v6277 = vld [vmem:[%s8] sm:$0x1]
  %6278 = vmatprep.subr.mxu0 0.0
  %6279 = vmatpush1.msra.mxu0 0.0
  %6280 = vmatprep.subr.mxu0 0.0
  %6281 = vmatpush1.msra.mxu0 0.0
  %6282 = vmatprep.subr.mxu0 0.0
  %6283 = vmatpush1.msra.mxu0 0.0
  %6284 = vmatprep.subr.mxu0 0.0
  %6285 = vmatpush1.msra.mxu0 0.0
  %6286 = vmatprep.subr.mxu0 0.0
  %6287 = vmatpush1.msra.mxu0 0.0
  %6288 = vmatprep.subr.mxu0 0.0
  %6289 = vmatpush1.msra.mxu0 0.0
  %6290 = vmatprep.subr.mxu0 0.0
  %6291 = vmatpush1.msra.mxu0 0.0
  %6292 = vmatprep.subr.mxu0 0.0
  %6293 = vmatpush1.msra.mxu0 0.0
  %6294 = vmatprep.subr.mxu0 0.0
  %6295 = vmatpush1.msra.mxu0 0.0
  %6296 = vmatprep.subr.mxu0 0.0
  %6297 = vmatpush1.msra.mxu0 0.0
  %6298 = vmatprep.subr.mxu0 0.0
  %6299 = vmatpush1.msra.mxu0 0.0
  %6300 = vmatprep.subr.mxu0 0.0
  %6301 = vmatpush1.msra.mxu0 0.0
  %6302 = vmatprep.subr.mxu0 0.0
  %6303 = vmatpush1.msra.mxu0 %v6264
  %6304 = vmatprep.subr.mxu0 0.0
  %6305 = vmatpush1.msra.mxu0 %v6263
  %6306 = vmatprep.subr.mxu0 0.0
  %6307 = vmatpush1.msra.mxu0 %v6262
  %6308 = vmatprep.subr.mxu0 0.0
  %6309 = vmatpush1.msra.mxu0 %v6261
  %6310 = vmatprep.subr.mxu0 0.0
  %6311 = vmatpush2.msra.mxu0 0.0
  %6312 = vmatprep.subr.mxu0 0.0
  %6313 = vmatpush2.msra.mxu0 0.0
  %6314 = vmatprep.subr.mxu0 0.0
  %6315 = vmatpush2.msra.mxu0 0.0
  %6316 = vmatprep.subr.mxu0 0.0
  %6317 = vmatpush2.msra.mxu0 0.0
  %6318 = vmatprep.subr.mxu0 0.0
  %6319 = vmatpush2.msra.mxu0 0.0
  %6320 = vmatprep.subr.mxu0 0.0
  %6321 = vmatpush2.msra.mxu0 0.0
  %6322 = vmatprep.subr.mxu0 0.0
  %6323 = vmatpush2.msra.mxu0 0.0
  %6324 = vmatprep.subr.mxu0 0.0
  %6325 = vmatpush2.msra.mxu0 0.0
  %6326 = vmatprep.subr.mxu0 0.0
  %6327 = vmatpush2.msra.mxu0 0.0
  %6328 = vmatprep.subr.mxu0 0.0
  %6329 = vmatpush2.msra.mxu0 0.0
  %6330 = vmatprep.subr.mxu0 0.0
  %6331 = vmatpush2.msra.mxu0 0.0
  %6332 = vmatprep.subr.mxu0 0.0
  %6333 = vmatpush2.msra.mxu0 0.0
  %6334 = vmatprep.subr.mxu0 0.0
  %6335 = vmatpush2.msra.mxu0 0.0
  %6336 = vmatprep.subr.mxu0 0.0
  %6337 = vmatpush2.msra.mxu0 0.0
  %6338 = vmatprep.subr.mxu0 0.0
  %6339 = vmatpush2.msra.mxu0 0.0
  %6340 = vmatprep.subr.mxu0 0.0
  %6341 = vmatpush2.msra.mxu0 0.0
  %6342 = vmatprep.mubr.f32.mxu0 0.0
  %6343 = vmatmul.mubr.f32.gmra.mxu0 %v91
  %v6344 = vpop.f32.mrf.mxu0
  %v6345 = vadd.f32 0.0, %v6344
  %v6346 = vpop.f32.mrf.mxu0
  %6347 = vmatprep.mubr.f32.mxu0 0.0
  %6348 = vmatmul.mubr.f32.gmra.mxu0 %v94
  %v6349 = vpop.f32.mrf.mxu0
  %v6350 = vadd.f32 0.0, %v6349
  %v6351 = vpop.f32.mrf.mxu0
  %6352 = vmatprep.mubr.f32.mxu0 0.0
  %6353 = vmatmul.mubr.f32.gmra.mxu0 %v97
  %v6354 = vpop.f32.mrf.mxu0
  %v6355 = vadd.f32 0.0, %v6354
  %v6356 = vpop.f32.mrf.mxu0
  %6357 = vmatprep.mubr.f32.mxu0 0.0
  %6358 = vmatmul.mubr.f32.gmra.mxu0 %v100
  %v6359 = vpop.f32.mrf.mxu0
  %v6360 = vadd.f32 0.0, %v6359
  %v6361 = vpop.f32.mrf.mxu0
  %6362 = vdwg.mxu0
  %6363 = vmatprep.subr.mxu0 0.0
  %6364 = vmatpush1.msra.mxu0 0.0
  %6365 = vmatprep.subr.mxu0 0.0
  %6366 = vmatpush1.msra.mxu0 0.0
  %6367 = vmatprep.subr.mxu0 0.0
  %6368 = vmatpush1.msra.mxu0 0.0
  %6369 = vmatprep.subr.mxu0 0.0
  %6370 = vmatpush1.msra.mxu0 0.0
  %6371 = vmatprep.subr.mxu0 0.0
  %6372 = vmatpush1.msra.mxu0 0.0
  %6373 = vmatprep.subr.mxu0 0.0
  %6374 = vmatpush1.msra.mxu0 0.0
  %6375 = vmatprep.subr.mxu0 0.0
  %6376 = vmatpush1.msra.mxu0 0.0
  %6377 = vmatprep.subr.mxu0 0.0
  %6378 = vmatpush1.msra.mxu0 0.0
  %6379 = vmatprep.subr.mxu0 0.0
  %6380 = vmatpush1.msra.mxu0 0.0
  %6381 = vmatprep.subr.mxu0 0.0
  %6382 = vmatpush1.msra.mxu0 0.0
  %6383 = vmatprep.subr.mxu0 0.0
  %6384 = vmatpush1.msra.mxu0 0.0
  %6385 = vmatprep.subr.mxu0 0.0
  %6386 = vmatpush1.msra.mxu0 0.0
  %6387 = vmatprep.subr.mxu0 0.0
  %6388 = vmatpush1.msra.mxu0 %v6264
  %6389 = vmatprep.subr.mxu0 0.0
  %6390 = vmatpush1.msra.mxu0 %v6263
  %6391 = vmatprep.subr.mxu0 0.0
  %6392 = vmatpush1.msra.mxu0 %v6262
  %6393 = vmatprep.subr.mxu0 0.0
  %6394 = vmatpush1.msra.mxu0 %v6261
  %6395 = vmatprep.subr.mxu0 0.0
  %6396 = vmatpush2.msra.mxu0 0.0
  %6397 = vmatprep.subr.mxu0 0.0
  %6398 = vmatpush2.msra.mxu0 0.0
  %6399 = vmatprep.subr.mxu0 0.0
  %6400 = vmatpush2.msra.mxu0 0.0
  %6401 = vmatprep.subr.mxu0 0.0
  %6402 = vmatpush2.msra.mxu0 0.0
  %6403 = vmatprep.subr.mxu0 0.0
  %6404 = vmatpush2.msra.mxu0 0.0
  %6405 = vmatprep.subr.mxu0 0.0
  %6406 = vmatpush2.msra.mxu0 0.0
  %6407 = vmatprep.subr.mxu0 0.0
  %6408 = vmatpush2.msra.mxu0 0.0
  %6409 = vmatprep.subr.mxu0 0.0
  %6410 = vmatpush2.msra.mxu0 0.0
  %6411 = vmatprep.subr.mxu0 0.0
  %6412 = vmatpush2.msra.mxu0 0.0
  %6413 = vmatprep.subr.mxu0 0.0
  %6414 = vmatpush2.msra.mxu0 0.0
  %6415 = vmatprep.subr.mxu0 0.0
  %6416 = vmatpush2.msra.mxu0 0.0
  %6417 = vmatprep.subr.mxu0 0.0
  %6418 = vmatpush2.msra.mxu0 0.0
  %6419 = vmatprep.subr.mxu0 0.0
  %6420 = vmatpush2.msra.mxu0 0.0
  %6421 = vmatprep.subr.mxu0 0.0
  %6422 = vmatpush2.msra.mxu0 0.0
  %6423 = vmatprep.subr.mxu0 0.0
  %6424 = vmatpush2.msra.mxu0 0.0
  %6425 = vmatprep.subr.mxu0 0.0
  %6426 = vmatpush2.msra.mxu0 0.0
  %6427 = vmatprep.mubr.f32.mxu0 0.0
  %6428 = vmatmul.mubr.f32.gmra.mxu0 %v188
  %v6429 = vpop.f32.mrf.mxu0
  %v6430 = vadd.f32 0.0, %v6429
  %v6431 = vpop.f32.mrf.mxu0
  %6432 = vmatprep.mubr.f32.mxu0 0.0
  %6433 = vmatmul.mubr.f32.gmra.mxu0 %v191
  %v6434 = vpop.f32.mrf.mxu0
  %v6435 = vadd.f32 0.0, %v6434
  %v6436 = vpop.f32.mrf.mxu0
  %6437 = vmatprep.mubr.f32.mxu0 0.0
  %6438 = vmatmul.mubr.f32.gmra.mxu0 %v194
  %v6439 = vpop.f32.mrf.mxu0
  %v6440 = vadd.f32 0.0, %v6439
  %v6441 = vpop.f32.mrf.mxu0
  %6442 = vmatprep.mubr.f32.mxu0 0.0
  %6443 = vmatmul.mubr.f32.gmra.mxu0 %v197
  %v6444 = vpop.f32.mrf.mxu0
  %v6445 = vadd.f32 0.0, %v6444
  %v6446 = vpop.f32.mrf.mxu0
  %6447 = vdwg.mxu0
  %6452 = vrot.lane.b32.xlu0 %v6345, 32
  %v6453 = vpop.permute.xlu0 %6452
  %6454 = vrot.lane.b32.xlu0 %v6350, 32
  %v6455 = vpop.permute.xlu0 %6454
  %6456 = vrot.lane.b32.xlu0 %v6355, 32
  %v6457 = vpop.permute.xlu0 %6456
  %6458 = vrot.lane.b32.xlu0 %v6360, 32
  %v6459 = vpop.permute.xlu0 %6458
  %6468 = vrot.lane.b32.xlu0 %v6430, 64
  %v6469 = vpop.permute.xlu0 %6468
  %6470 = vrot.lane.b32.xlu0 %v6435, 64
  %v6471 = vpop.permute.xlu0 %6470
  %6472 = vrot.lane.b32.xlu0 %v6440, 64
  %v6473 = vpop.permute.xlu0 %6472
  %6474 = vrot.lane.b32.xlu0 %v6445, 64
  %v6475 = vpop.permute.xlu0 %6474
  %v6480 = vsel %vm89, %v6261, %v6453
  %v6481 = vsel %vm89, %v6262, %v6455
  %v6482 = vsel %vm89, %v6263, %v6457
  %v6483 = vsel %vm89, %v6264, %v6459
  %v6484 = vsel %vm2578, %v6480, %v6469
  %v6485 = vsel %vm2578, %v6481, %v6471
  %v6486 = vsel %vm2578, %v6482, %v6473
  %v6487 = vsel %vm2578, %v6483, %v6475
  %v6489 = vlaneseq
  %v6490 = vshrl.u32 %v6489, 7
  %v6491 = vsub.s32 0, %v6490
  %v6492 = vrot.slane %v6277, %v6491
  %v6495 = vsel %vm2909, %v6484, 0
  %v6498 = vsel %vm2909, %v6485, 0
  %v6501 = vsel %vm2909, %v6486, 0
  %v6504 = vsel %vm2909, %v6487, 0
  %6506 = vmatprep.subr.mxu0 0.0
  %6507 = vmatpush1.msra.mxu0 0.0
  %6508 = vmatprep.subr.mxu0 0.0
  %6509 = vmatpush1.msra.mxu0 0.0
  %6510 = vmatprep.subr.mxu0 0.0
  %6511 = vmatpush1.msra.mxu0 0.0
  %6512 = vmatprep.subr.mxu0 0.0
  %6513 = vmatpush1.msra.mxu0 0.0
  %6514 = vmatprep.subr.mxu0 0.0
  %6515 = vmatpush1.msra.mxu0 %v6276
  %6516 = vmatprep.subr.mxu0 0.0
  %6517 = vmatpush1.msra.mxu0 %v6275
  %6518 = vmatprep.subr.mxu0 0.0
  %6519 = vmatpush1.msra.mxu0 %v6274
  %6520 = vmatprep.subr.mxu0 0.0
  %6521 = vmatpush1.msra.mxu0 %v6273
  %6522 = vmatprep.subr.mxu0 0.0
  %6523 = vmatpush1.msra.mxu0 %v6272
  %6524 = vmatprep.subr.mxu0 0.0
  %6525 = vmatpush1.msra.mxu0 %v6271
  %6526 = vmatprep.subr.mxu0 0.0
  %6527 = vmatpush1.msra.mxu0 %v6270
  %6528 = vmatprep.subr.mxu0 0.0
  %6529 = vmatpush1.msra.mxu0 %v6269
  %6530 = vmatprep.subr.mxu0 0.0
  %6531 = vmatpush1.msra.mxu0 %v6268
  %6532 = vmatprep.subr.mxu0 0.0
  %6533 = vmatpush1.msra.mxu0 %v6267
  %6534 = vmatprep.subr.mxu0 0.0
  %6535 = vmatpush1.msra.mxu0 %v6266
  %6536 = vmatprep.subr.mxu0 0.0
  %6537 = vmatpush1.msra.mxu0 %v6265
  %6538 = vmatprep.subr.mxu0 0.0
  %6539 = vmatpush2.msra.mxu0 0.0
  %6540 = vmatprep.subr.mxu0 0.0
  %6541 = vmatpush2.msra.mxu0 0.0
  %6542 = vmatprep.subr.mxu0 0.0
  %6543 = vmatpush2.msra.mxu0 0.0
  %6544 = vmatprep.subr.mxu0 0.0
  %6545 = vmatpush2.msra.mxu0 0.0
  %6546 = vmatprep.subr.mxu0 0.0
  %6547 = vmatpush2.msra.mxu0 0.0
  %6548 = vmatprep.subr.mxu0 0.0
  %6549 = vmatpush2.msra.mxu0 0.0
  %6550 = vmatprep.subr.mxu0 0.0
  %6551 = vmatpush2.msra.mxu0 0.0
  %6552 = vmatprep.subr.mxu0 0.0
  %6553 = vmatpush2.msra.mxu0 0.0
  %6554 = vmatprep.subr.mxu0 0.0
  %6555 = vmatpush2.msra.mxu0 0.0
  %6556 = vmatprep.subr.mxu0 0.0
  %6557 = vmatpush2.msra.mxu0 0.0
  %6558 = vmatprep.subr.mxu0 0.0
  %6559 = vmatpush2.msra.mxu0 0.0
  %6560 = vmatprep.subr.mxu0 0.0
  %6561 = vmatpush2.msra.mxu0 0.0
  %6562 = vmatprep.subr.mxu0 0.0
  %6563 = vmatpush2.msra.mxu0 0.0
  %6564 = vmatprep.subr.mxu0 0.0
  %6565 = vmatpush2.msra.mxu0 0.0
  %6566 = vmatprep.subr.mxu0 0.0
  %6567 = vmatpush2.msra.mxu0 0.0
  %6568 = vmatprep.subr.mxu0 0.0
  %6569 = vmatpush2.msra.mxu0 0.0
  %6570 = vmatprep.mubr.f32.mxu0 0.0
  %6571 = vmatmul.mubr.f32.gmra.mxu0 %v6495
  %v6572 = vpop.f32.mrf.mxu0
  %v6573 = vadd.f32 %v6492, %v6572
  %v6574 = vpop.f32.mrf.mxu0
  %6575 = vmatprep.mubr.f32.mxu0 0.0
  %6576 = vmatmul.mubr.f32.gmra.mxu0 %v6498
  %v6577 = vpop.f32.mrf.mxu0
  %v6578 = vadd.f32 %v6492, %v6577
  %v6579 = vpop.f32.mrf.mxu0
  %6580 = vmatprep.mubr.f32.mxu0 0.0
  %6581 = vmatmul.mubr.f32.gmra.mxu0 %v6501
  %v6582 = vpop.f32.mrf.mxu0
  %v6583 = vadd.f32 %v6492, %v6582
  %v6584 = vpop.f32.mrf.mxu0
  %6585 = vmatprep.mubr.f32.mxu0 0.0
  %6586 = vmatmul.mubr.f32.gmra.mxu0 %v6504
  %v6587 = vpop.f32.mrf.mxu0
  %v6588 = vadd.f32 %v6492, %v6587
  %v6589 = vpop.f32.mrf.mxu0
  %6590 = vdwg.mxu0
  %vm6591 = vcmask 23552
  %6592 = vst.msk [vmem:[%s22] sm:$0xff] %vm6591, %v6573
  %6593 = vst.msk [vmem:[%s22 + $0x8] sm:$0xff] %vm6591, %v6578
  %6594 = vst.msk [vmem:[%s22 + $0x10] sm:$0xff] %vm6591, %v6583
  %6595 = vst.msk [vmem:[%s22 + $0x18] sm:$0xff] %vm6591, %v6588
  // Predicated region
  $region90: #{gcnpose_forward.1} parent=0 // pred_check
    _
  $region91: #{gcnpose_forward.1} parent=0 // pred_check_branch
    %6597 = sbr.rel (0) target = $region93
  $region92: #{gcnpose_forward.1} parent=0 // pred_region
    _
  $region93: #{gcnpose_forward.1} parent=0 // pred_fallthru
    _
  // Predicated region
  $region94: #{gcnpose_forward.1} parent=0 // pred_check
    _
  $region95: #{gcnpose_forward.1} parent=0 // pred_check_branch
    %6599 = sbr.rel (0) target = $region97
  $region96: #{gcnpose_forward.1} parent=0 // pred_region
    _
  $region97: #{gcnpose_forward.1} parent=0 // pred_fallthru
    _

</llo_original>
